<compile_context>
chip_gen: v7x
topology: tpu7x:2x2x1
jax: 0.10.0
libtpu: 0.0.40
codegen_flags: <defaults>
</compile_context>

<pallas_src>
import math
import functools

import jax
import jax.numpy as jnp
from jax.experimental import pallas as pl
from jax.experimental.pallas import tpu as pltpu

# ----------------------------------------------------------------------------
# Pallas kernel: lane-dense (Cout, TM) = W @ patches^T  + bias + fused activation
# ----------------------------------------------------------------------------
def _mm_bias_act_kernel(w_ref, x_ref, b_ref, o_ref, *, act, sig_rows):
    # w_ref: (Cout, K) bf16   x_ref: (K, TM) bf16   b_ref: (Cout, 1) f32
    y = jnp.dot(w_ref[...], x_ref[...], preferred_element_type=jnp.float32)
    y = y + b_ref[...]                       # bias broadcast along the 128-lane axis
    if act == "silu":
        y = y * jax.nn.sigmoid(y)            # exp/recip on the EUP slot, no VALU divide
    elif act == "sigmoid":
        y = jax.nn.sigmoid(y)
    elif act == "sigmoid_rows":              # sigmoid only on the first `sig_rows` output channels
        rows = jax.lax.broadcasted_iota(jnp.int32, y.shape, 0)
        y = jnp.where(rows < sig_rows, jax.nn.sigmoid(y), y)
    o_ref[...] = y.astype(o_ref.dtype)


def matmul_bias_act(patches, w, b, act=None, sig_rows=0):
    """patches: (K, M) bf16, w: (Cout, K) bf16, b: (Cout,) f32 -> (Cout, M) bf16."""
    K, M = patches.shape
    cout = w.shape[0]
    # adaptive lane tile: big maps get several 128-dense tiles (>=2 grid steps for megacore),
    # tiny maps get a single 128-wide tile instead of heavy zero padding.
    if M >= 1024:
        TM = 512
    elif M >= 512:
        TM = 256
    else:
        TM = pl.cdiv(M, 128) * 128
    Mp = pl.cdiv(M, TM) * TM
    if Mp != M:
        patches = jnp.pad(patches, ((0, 0), (0, Mp - M)))
    out = pl.pallas_call(
        functools.partial(_mm_bias_act_kernel, act=act, sig_rows=sig_rows),
        out_shape=jax.ShapeDtypeStruct((cout, Mp), jnp.bfloat16),
        grid=(Mp // TM,),
        in_specs=[
            pl.BlockSpec((cout, K), lambda i: (0, 0)),   # weights, resident in VMEM
            pl.BlockSpec((K, TM), lambda i: (0, i)),     # lane-dense patch tile
            pl.BlockSpec((cout, 1), lambda i: (0, 0)),   # bias
        ],
        out_specs=pl.BlockSpec((cout, TM), lambda i: (0, i)),  # lane-dense -> unmasked stores
        compiler_params=pltpu.CompilerParams(dimension_semantics=("parallel",)),
    )(w, patches, b.reshape(cout, 1))
    return out[:, :M]


# ----------------------------------------------------------------------------
# Conv = im2col in channel-major layout (glue) + Pallas fused matmul kernel
# ----------------------------------------------------------------------------
def conv2d(x, arr, spec):
    """x: (Cin, N, H, W) bf16 channel-major -> (Cout, N, Ho, Wo) bf16."""
    k, s, cout = spec["k"], spec["s"], spec["cout"]
    c, n, h, wd = x.shape
    if k == 1 and s == 1:
        ho, wo = h, wd
        patches = x.reshape(c, n * h * wd)                 # 1x1 conv: zero-cost reshape
    else:
        # TODO(synk): 3x3 tap reduction still uses XLA-glue im2col (k*k HBM replication); an
        #             in-kernel tap grid axis with a VMEM accumulator would remove that traffic.
        pad = k // 2
        xp = jnp.pad(x, ((0, 0), (0, 0), (pad, pad), (pad, pad)))
        ho = (h + 2 * pad - k) // s + 1
        wo = (wd + 2 * pad - k) // s + 1
        taps = []
        for i in range(k):
            for j in range(k):
                taps.append(xp[:, :, i:i + s * ho:s, j:j + s * wo:s].reshape(c, n * ho * wo))
        patches = jnp.concatenate(taps, axis=0)            # (k*k*Cin, M)
    out = matmul_bias_act(patches, arr["w"], arr["b"],
                          act=spec["act"], sig_rows=spec["sig_rows"])
    return out.reshape(cout, n, ho, wo)


def upsample2x(x):  # nearest-neighbor 2x upsample on (C, N, H, W)
    # TODO(synk): could be folded into the following conv's index_map instead of an XLA op.
    return jnp.repeat(jnp.repeat(x, 2, axis=2), 2, axis=3)


# ----------------------------------------------------------------------------
# Deterministic parameter construction (synthetic weights; BN folded into conv).
# Arrays and static config are kept in two parallel trees so jit only sees arrays.
# ----------------------------------------------------------------------------
NUM_CLASSES = 4
BB_CH = [3, 8, 16, 32, 48, 64]          # stem + 4 stages (strides 2,4,8,16,32)
C0, C1, C2 = 32, 48, 64                 # backbone outputs used (strides 8/16/32)
N0, N1, N2 = 16, 24, 32                 # neck output channels
DIS_CH = 16                             # GDC discriminator channels
STRIDES = (8, 16, 32)


def make_conv(key, cin, cout, k=3, s=1, act="silu"):
    kw, kb = jax.random.split(key)
    w = jax.random.normal(kw, (cout, k * k * cin), jnp.float32) / math.sqrt(k * k * cin)
    b = 0.01 * jax.random.normal(kb, (cout,), jnp.float32)
    arrays = {"w": w.astype(jnp.bfloat16), "b": b}
    spec = {"k": k, "s": s, "act": act, "cout": cout, "sig_rows": 0}
    return arrays, spec


def make_fused_pred(key, cl, nc):
    # block-diagonal 1x1 conv == cls_pred(cls_feat) with sigmoid  ++  reg_pred(reg_feat) raw
    kc, kr, kb = jax.random.split(key, 3)
    w = jnp.zeros((nc + 4, 2 * cl), jnp.float32)
    w = w.at[:nc, :cl].set(jax.random.normal(kc, (nc, cl), jnp.float32) / math.sqrt(cl))
    w = w.at[nc:, cl:].set(jax.random.normal(kr, (4, cl), jnp.float32) / math.sqrt(cl))
    b = 0.01 * jax.random.normal(kb, (nc + 4,), jnp.float32)
    arrays = {"w": w.astype(jnp.bfloat16), "b": b}
    spec = {"k": 1, "s": 1, "act": "sigmoid_rows", "cout": nc + 4, "sig_rows": nc}
    return arrays, spec


def init_model(key):
    keys = iter(jax.random.split(key, 64))
    P, S = {}, {}

    bb = [make_conv(next(keys), BB_CH[i], BB_CH[i + 1], k=3, s=2) for i in range(5)]
    P["backbone"] = [a for a, _ in bb]
    S["backbone"] = [sp for _, sp in bb]

    neck_defs = {
        "reduce0": (C2, N1, 1, 1),
        "td1":     (N1 + C1, N1, 3, 1),
        "reduce1": (N1, N0, 1, 1),
        "td0":     (N0 + C0, N0, 3, 1),
        "down0":   (N0, N0, 3, 2),
        "bu1":     (N0 + N0, N1, 3, 1),
        "down1":   (N1, N1, 3, 2),
        "bu2":     (N1 + N1, N2, 3, 1),
    }
    P["neck"], S["neck"] = {}, {}
    for name, (ci, co, k, s) in neck_defs.items():
        a, sp = make_conv(next(keys), ci, co, k=k, s=s)
        P["neck"][name], S["neck"][name] = a, sp

    P["head"], S["head"] = [], []
    for cl in (N0, N1, N2):
        stem_a, stem_s = make_conv(next(keys), cl, cl, k=1)
        crc_a, crc_s = make_conv(next(keys), cl, 2 * cl, k=3)       # fused cls_conv | reg_conv
        pred_a, pred_s = make_fused_pred(next(keys), cl, NUM_CLASSES)  # fused cls_pred | reg_pred
        P["head"].append({"stem": stem_a, "cls_reg": crc_a, "pred": pred_a})
        S["head"].append({"stem": stem_s, "cls_reg": crc_s, "pred": pred_s})

    P["gdc"], S["gdc"] = [], []
    for cin in (C0, C1, C2):
        defs = [(cin, DIS_CH, 3, "silu"), (DIS_CH, DIS_CH, 3, "silu"), (DIS_CH, 1, 1, None)]
        branch = [make_conv(next(keys), ci, co, k=k, act=act) for ci, co, k, act in defs]
        P["gdc"].append([a for a, _ in branch])
        S["gdc"].append([sp for _, sp in branch])
    return P, S


def make_anchors(feat_shapes, strides, offset=0.5):
    pts, strs = [], []
    for (h, w), s in zip(feat_shapes, strides):
        sy = jnp.arange(h, dtype=jnp.float32) + offset
        sx = jnp.arange(w, dtype=jnp.float32) + offset
        gy, gx = jnp.meshgrid(sy, sx, indexing="ij")
        pts.append(jnp.stack([gx, gy], axis=-1).reshape(-1, 2))
        strs.append(jnp.full((h * w, 1), float(s), jnp.float32))
    return jnp.concatenate(pts, 0), jnp.concatenate(strs, 0)


# ----------------------------------------------------------------------------
# Full model forward:  x -> backbone -> gdc -> neck -> detect
# returns [detections, featmaps, gdc_logits]  (export_mode == False branch)
# ----------------------------------------------------------------------------
def model_forward(specs, params, x_nchw):
    # NCHW -> channel-major (C, N, H, W); bf16 feature maps throughout (halves HBM traffic)
    x = jnp.transpose(x_nchw, (1, 0, 2, 3)).astype(jnp.bfloat16)

    # ---- backbone (EfficientRep, folded) ----
    feats = []
    for i, (arr, sp) in enumerate(zip(params["backbone"], specs["backbone"])):
        x = conv2d(x, arr, sp)
        if i >= 2:
            feats.append(x)                      # strides 8, 16, 32
    out0, out1, out2 = feats

    # ---- GDC domain classifier (GRL is identity in the forward pass) ----
    gdc_logits = []
    for f, arrs, sps in zip(feats, params["gdc"], specs["gdc"]):
        g = f
        for a, sp in zip(arrs, sps):
            g = conv2d(g, a, sp)
        gdc_logits.append(jnp.transpose(g, (1, 0, 2, 3)).astype(jnp.float32))   # NCHW

    # ---- neck (Rep-PAN, folded: top-down FPN + bottom-up PAN) ----
    npar, nsp = params["neck"], specs["neck"]
    cv = lambda t, name: conv2d(t, npar[name], nsp[name])
    r0 = cv(out2, "reduce0")
    td1 = cv(jnp.concatenate([upsample2x(r0), out1], axis=0), "td1")
    r1 = cv(td1, "reduce1")
    td0 = cv(jnp.concatenate([upsample2x(r1), out0], axis=0), "td0")
    d0 = cv(td0, "down0")
    bu1 = cv(jnp.concatenate([d0, r1], axis=0), "bu1")
    d1 = cv(bu1, "down1")
    bu2 = cv(jnp.concatenate([d1, r0], axis=0), "bu2")
    neck_outs = [td0, bu1, bu2]
    featmaps = [jnp.transpose(f, (1, 0, 2, 3)).astype(jnp.float32) for f in neck_outs]  # NCHW

    # ---- Efficient decoupled Detect head (inference decode, anchor-free) ----
    cls_list, reg_list, shapes = [], [], []
    for f, harr, hsp in zip(neck_outs, params["head"], specs["head"]):
        st = conv2d(f, harr["stem"], hsp["stem"])
        cr = conv2d(st, harr["cls_reg"], hsp["cls_reg"])   # fused cls_conv | reg_conv
        pr = conv2d(cr, harr["pred"], hsp["pred"])         # fused preds, row-masked sigmoid in-kernel
        _, nb, h, w = pr.shape
        shapes.append((h, w))
        pr = jnp.transpose(pr, (1, 2, 3, 0)).reshape(nb, h * w, NUM_CLASSES + 4).astype(jnp.float32)
        cls_list.append(pr[..., :NUM_CLASSES])
        reg_list.append(pr[..., NUM_CLASSES:])
    cls_scores = jnp.concatenate(cls_list, axis=1)
    reg_dists = jnp.concatenate(reg_list, axis=1)

    anchor_points, stride_tensor = make_anchors(shapes, STRIDES)
    lt, rb = reg_dists[..., :2], reg_dists[..., 2:]
    x1y1 = anchor_points[None] - lt
    x2y2 = anchor_points[None] + rb
    bboxes = jnp.concatenate([(x1y1 + x2y2) * 0.5, x2y2 - x1y1], -1) * stride_tensor[None]
    nb, na = cls_scores.shape[:2]
    detections = jnp.concatenate(
        [bboxes, jnp.ones((nb, na, 1), jnp.float32), cls_scores], axis=-1)

    return detections, featmaps, gdc_logits


if __name__ == "__main__":
    key = jax.random.PRNGKey(0)
    pkey, xkey = jax.random.split(key)
    params, specs = init_model(pkey)
    x = jax.random.normal(xkey, (2, 3, 64, 64), jnp.float32)  # NCHW, strides 8/16/32 valid

    fwd = jax.jit(functools.partial(model_forward, specs))    # statics baked in, arrays traced
    detections, featmaps, gdc_logits = fwd(params, x)
    jax.block_until_ready(detections)
    jax.block_until_ready(featmaps)
    jax.block_until_ready(gdc_logits)

    assert detections.shape == (2, 8 * 8 + 4 * 4 + 2 * 2, 4 + 1 + NUM_CLASSES)
    assert [f.shape for f in featmaps] == [(2, N0, 8, 8), (2, N1, 4, 4), (2, N2, 2, 2)]
    assert [g.shape for g in gdc_logits] == [(2, 1, 8, 8), (2, 1, 4, 4), (2, 1, 2, 2)]
    print("KERNEL_OK")
</pallas_src>

<mosaic_0001>
module attributes {stable_mosaic.version = 11 : i64} {
  func.func @_mm_bias_act_kernel(%arg0: i32, %arg1: memref<8x27xbf16, #tpu.memory_space<vmem>>, %arg2: memref<27x512xbf16, #tpu.memory_space<vmem>>, %arg3: memref<8x1xf32, #tpu.memory_space<vmem>>, %arg4: memref<8x512xbf16, #tpu.memory_space<vmem>>) attributes {dimension_semantics = [#tpu.dimension_semantics<parallel>], iteration_bounds = array<i64: 4>, scalar_prefetch = 0 : i64, scratch_operands = 0 : i64, tpu.core_type = #tpu.core_type<tc>, window_params = [{pipeline_mode = #tpu.pipeline_mode<synchronous>, transform_indices = @transform_0, window_bounds = array<i64: 8, 27>}, {transform_indices = @transform_1, window_bounds = array<i64: 27, 512>}, {pipeline_mode = #tpu.pipeline_mode<synchronous>, transform_indices = @transform_2, window_bounds = array<i64: 8, 1>}, {transform_indices = @transform_3, window_bounds = array<i64: 8, 512>}]} {
    %c0 = arith.constant 0 : index
    %c0_0 = arith.constant 0 : index
    %0 = vector.load %arg1[%c0, %c0_0] : memref<8x27xbf16, #tpu.memory_space<vmem>>, vector<8x27xbf16>
    %c0_1 = arith.constant 0 : index
    %c0_2 = arith.constant 0 : index
    %1 = vector.load %arg2[%c0_1, %c0_2] : memref<27x512xbf16, #tpu.memory_space<vmem>>, vector<27x512xbf16>
    %cst = arith.constant dense<0.000000e+00> : vector<8x512xf32>
    %2 = tpu.matmul %0, %1, %cst {dimension_numbers = #tpu.dot_dimension_numbers<[1], [0], [0], [1], [0, 0, 1, 1], [], []>} : vector<8x27xbf16>, vector<27x512xbf16>, vector<8x512xf32> -> vector<8x512xf32>
    %c0_3 = arith.constant 0 : index
    %c0_4 = arith.constant 0 : index
    %3 = vector.load %arg3[%c0_3, %c0_4] : memref<8x1xf32, #tpu.memory_space<vmem>>, vector<8x1xf32>
    %4 = vector.broadcast %3 : vector<8x1xf32> to vector<8x512xf32>
    %5 = arith.addf %2, %4 : vector<8x512xf32>
    %6 = arith.negf %5 : vector<8x512xf32>
    %7 = math.exp %6 : vector<8x512xf32>
    %cst_5 = arith.constant 1.000000e+00 : f32
    %8 = vector.broadcast %cst_5 : f32 to vector<8x512xf32>
    %9 = arith.addf %8, %7 : vector<8x512xf32>
    %10 = arith.divf %8, %9 : vector<8x512xf32>
    %11 = arith.mulf %5, %10 : vector<8x512xf32>
    %12 = arith.truncf %11 : vector<8x512xf32> to vector<8x512xbf16>
    %c0_6 = arith.constant 0 : index
    %c0_7 = arith.constant 0 : index
    %13 = vector.load %arg4[%c0_6, %c0_7] : memref<8x512xbf16, #tpu.memory_space<vmem>>, vector<8x512xbf16>
    tpu.vector_store %arg4[%c0_6, %c0_7], %12 {strides = array<i32>} : memref<8x512xbf16, #tpu.memory_space<vmem>>, vector<8x512xbf16>,
    return
  }
  func.func @transform_0(%arg0: i32) -> (i32, i32) {
    %c0_i32 = arith.constant 0 : i32
    %c0_i32_0 = arith.constant 0 : i32
    %c0_i32_1 = arith.constant 0 : i32
    return %c0_i32, %c0_i32_0 : i32, i32
  }
  func.func @transform_1(%arg0: i32) -> (i32, i32) {
    %c0_i32 = arith.constant 0 : i32
    %c0_i32_0 = arith.constant 0 : i32
    return %c0_i32, %arg0 : i32, i32
  }
  func.func @transform_2(%arg0: i32) -> (i32, i32) {
    %c0_i32 = arith.constant 0 : i32
    %c0_i32_0 = arith.constant 0 : i32
    %c0_i32_1 = arith.constant 0 : i32
    return %c0_i32, %c0_i32_0 : i32, i32
  }
  func.func @transform_3(%arg0: i32) -> (i32, i32) {
    %c0_i32 = arith.constant 0 : i32
    %c0_i32_0 = arith.constant 0 : i32
    return %c0_i32, %arg0 : i32, i32
  }
}

module attributes {stable_mosaic.version = 11 : i64} {
  func.func @_mm_bias_act_kernel(%arg0: i32, %arg1: memref<16x72xbf16, #tpu.memory_space<vmem>>, %arg2: memref<72x256xbf16, #tpu.memory_space<vmem>>, %arg3: memref<16x1xf32, #tpu.memory_space<vmem>>, %arg4: memref<16x256xbf16, #tpu.memory_space<vmem>>) attributes {dimension_semantics = [#tpu.dimension_semantics<parallel>], iteration_bounds = array<i64: 2>, scalar_prefetch = 0 : i64, scratch_operands = 0 : i64, tpu.core_type = #tpu.core_type<tc>, window_params = [{pipeline_mode = #tpu.pipeline_mode<synchronous>, transform_indices = @transform_0, window_bounds = array<i64: 16, 72>}, {transform_indices = @transform_1, window_bounds = array<i64: 72, 256>}, {pipeline_mode = #tpu.pipeline_mode<synchronous>, transform_indices = @transform_2, window_bounds = array<i64: 16, 1>}, {transform_indices = @transform_3, window_bounds = array<i64: 16, 256>}]} {
    %c0 = arith.constant 0 : index
    %c0_0 = arith.constant 0 : index
    %0 = vector.load %arg1[%c0, %c0_0] : memref<16x72xbf16, #tpu.memory_space<vmem>>, vector<16x72xbf16>
    %c0_1 = arith.constant 0 : index
    %c0_2 = arith.constant 0 : index
    %1 = vector.load %arg2[%c0_1, %c0_2] : memref<72x256xbf16, #tpu.memory_space<vmem>>, vector<72x256xbf16>
    %cst = arith.constant dense<0.000000e+00> : vector<16x256xf32>
    %2 = tpu.matmul %0, %1, %cst {dimension_numbers = #tpu.dot_dimension_numbers<[1], [0], [0], [1], [0, 0, 1, 1], [], []>} : vector<16x72xbf16>, vector<72x256xbf16>, vector<16x256xf32> -> vector<16x256xf32>
    %c0_3 = arith.constant 0 : index
    %c0_4 = arith.constant 0 : index
    %3 = vector.load %arg3[%c0_3, %c0_4] : memref<16x1xf32, #tpu.memory_space<vmem>>, vector<16x1xf32>
    %4 = vector.broadcast %3 : vector<16x1xf32> to vector<16x256xf32>
    %5 = arith.addf %2, %4 : vector<16x256xf32>
    %6 = arith.negf %5 : vector<16x256xf32>
    %7 = math.exp %6 : vector<16x256xf32>
    %cst_5 = arith.constant 1.000000e+00 : f32
    %8 = vector.broadcast %cst_5 : f32 to vector<16x256xf32>
    %9 = arith.addf %8, %7 : vector<16x256xf32>
    %10 = arith.divf %8, %9 : vector<16x256xf32>
    %11 = arith.mulf %5, %10 : vector<16x256xf32>
    %12 = arith.truncf %11 : vector<16x256xf32> to vector<16x256xbf16>
    %c0_6 = arith.constant 0 : index
    %c0_7 = arith.constant 0 : index
    %13 = vector.load %arg4[%c0_6, %c0_7] : memref<16x256xbf16, #tpu.memory_space<vmem>>, vector<16x256xbf16>
    tpu.vector_store %arg4[%c0_6, %c0_7], %12 {strides = array<i32>} : memref<16x256xbf16, #tpu.memory_space<vmem>>, vector<16x256xbf16>,
    return
  }
  func.func @transform_0(%arg0: i32) -> (i32, i32) {
    %c0_i32 = arith.constant 0 : i32
    %c0_i32_0 = arith.constant 0 : i32
    %c0_i32_1 = arith.constant 0 : i32
    return %c0_i32, %c0_i32_0 : i32, i32
  }
  func.func @transform_1(%arg0: i32) -> (i32, i32) {
    %c0_i32 = arith.constant 0 : i32
    %c0_i32_0 = arith.constant 0 : i32
    return %c0_i32, %arg0 : i32, i32
  }
  func.func @transform_2(%arg0: i32) -> (i32, i32) {
    %c0_i32 = arith.constant 0 : i32
    %c0_i32_0 = arith.constant 0 : i32
    %c0_i32_1 = arith.constant 0 : i32
    return %c0_i32, %c0_i32_0 : i32, i32
  }
  func.func @transform_3(%arg0: i32) -> (i32, i32) {
    %c0_i32 = arith.constant 0 : i32
    %c0_i32_0 = arith.constant 0 : i32
    return %c0_i32, %arg0 : i32, i32
  }
}

module attributes {stable_mosaic.version = 11 : i64} {
  func.func @_mm_bias_act_kernel(%arg0: i32, %arg1: memref<32x144xbf16, #tpu.memory_space<vmem>>, %arg2: memref<144x128xbf16, #tpu.memory_space<vmem>>, %arg3: memref<32x1xf32, #tpu.memory_space<vmem>>, %arg4: memref<32x128xbf16, #tpu.memory_space<vmem>>) attributes {dimension_semantics = [#tpu.dimension_semantics<parallel>], iteration_bounds = array<i64: 1>, scalar_prefetch = 0 : i64, scratch_operands = 0 : i64, tpu.core_type = #tpu.core_type<tc>, window_params = [{pipeline_mode = #tpu.pipeline_mode<synchronous>, transform_indices = @transform_0, window_bounds = array<i64: 32, 144>}, {transform_indices = @transform_1, window_bounds = array<i64: 144, 128>}, {pipeline_mode = #tpu.pipeline_mode<synchronous>, transform_indices = @transform_2, window_bounds = array<i64: 32, 1>}, {transform_indices = @transform_3, window_bounds = array<i64: 32, 128>}]} {
    %c0 = arith.constant 0 : index
    %c0_0 = arith.constant 0 : index
    %0 = vector.load %arg1[%c0, %c0_0] : memref<32x144xbf16, #tpu.memory_space<vmem>>, vector<32x144xbf16>
    %c0_1 = arith.constant 0 : index
    %c0_2 = arith.constant 0 : index
    %1 = vector.load %arg2[%c0_1, %c0_2] : memref<144x128xbf16, #tpu.memory_space<vmem>>, vector<144x128xbf16>
    %cst = arith.constant dense<0.000000e+00> : vector<32x128xf32>
    %2 = tpu.matmul %0, %1, %cst {dimension_numbers = #tpu.dot_dimension_numbers<[1], [0], [0], [1], [0, 0, 1, 1], [], []>} : vector<32x144xbf16>, vector<144x128xbf16>, vector<32x128xf32> -> vector<32x128xf32>
    %c0_3 = arith.constant 0 : index
    %c0_4 = arith.constant 0 : index
    %3 = vector.load %arg3[%c0_3, %c0_4] : memref<32x1xf32, #tpu.memory_space<vmem>>, vector<32x1xf32>
    %4 = vector.broadcast %3 : vector<32x1xf32> to vector<32x128xf32>
    %5 = arith.addf %2, %4 : vector<32x128xf32>
    %6 = arith.negf %5 : vector<32x128xf32>
    %7 = math.exp %6 : vector<32x128xf32>
    %cst_5 = arith.constant 1.000000e+00 : f32
    %8 = vector.broadcast %cst_5 : f32 to vector<32x128xf32>
    %9 = arith.addf %8, %7 : vector<32x128xf32>
    %10 = arith.divf %8, %9 : vector<32x128xf32>
    %11 = arith.mulf %5, %10 : vector<32x128xf32>
    %12 = arith.truncf %11 : vector<32x128xf32> to vector<32x128xbf16>
    %c0_6 = arith.constant 0 : index
    %c0_7 = arith.constant 0 : index
    %13 = vector.load %arg4[%c0_6, %c0_7] : memref<32x128xbf16, #tpu.memory_space<vmem>>, vector<32x128xbf16>
    tpu.vector_store %arg4[%c0_6, %c0_7], %12 {strides = array<i32>} : memref<32x128xbf16, #tpu.memory_space<vmem>>, vector<32x128xbf16>,
    return
  }
  func.func @transform_0(%arg0: i32) -> (i32, i32) {
    %c0_i32 = arith.constant 0 : i32
    %c0_i32_0 = arith.constant 0 : i32
    %c0_i32_1 = arith.constant 0 : i32
    return %c0_i32, %c0_i32_0 : i32, i32
  }
  func.func @transform_1(%arg0: i32) -> (i32, i32) {
    %c0_i32 = arith.constant 0 : i32
    %c0_i32_0 = arith.constant 0 : i32
    return %c0_i32, %arg0 : i32, i32
  }
  func.func @transform_2(%arg0: i32) -> (i32, i32) {
    %c0_i32 = arith.constant 0 : i32
    %c0_i32_0 = arith.constant 0 : i32
    %c0_i32_1 = arith.constant 0 : i32
    return %c0_i32, %c0_i32_0 : i32, i32
  }
  func.func @transform_3(%arg0: i32) -> (i32, i32) {
    %c0_i32 = arith.constant 0 : i32
    %c0_i32_0 = arith.constant 0 : i32
    return %c0_i32, %arg0 : i32, i32
  }
}

module attributes {stable_mosaic.version = 11 : i64} {
  func.func @_mm_bias_act_kernel(%arg0: i32, %arg1: memref<48x288xbf16, #tpu.memory_space<vmem>>, %arg2: memref<288x128xbf16, #tpu.memory_space<vmem>>, %arg3: memref<48x1xf32, #tpu.memory_space<vmem>>, %arg4: memref<48x128xbf16, #tpu.memory_space<vmem>>) attributes {dimension_semantics = [#tpu.dimension_semantics<parallel>], iteration_bounds = array<i64: 1>, scalar_prefetch = 0 : i64, scratch_operands = 0 : i64, tpu.core_type = #tpu.core_type<tc>, window_params = [{pipeline_mode = #tpu.pipeline_mode<synchronous>, transform_indices = @transform_0, window_bounds = array<i64: 48, 288>}, {transform_indices = @transform_1, window_bounds = array<i64: 288, 128>}, {pipeline_mode = #tpu.pipeline_mode<synchronous>, transform_indices = @transform_2, window_bounds = array<i64: 48, 1>}, {transform_indices = @transform_3, window_bounds = array<i64: 48, 128>}]} {
    %c0 = arith.constant 0 : index
    %c0_0 = arith.constant 0 : index
    %0 = vector.load %arg1[%c0, %c0_0] : memref<48x288xbf16, #tpu.memory_space<vmem>>, vector<48x288xbf16>
    %c0_1 = arith.constant 0 : index
    %c0_2 = arith.constant 0 : index
    %1 = vector.load %arg2[%c0_1, %c0_2] : memref<288x128xbf16, #tpu.memory_space<vmem>>, vector<288x128xbf16>
    %cst = arith.constant dense<0.000000e+00> : vector<48x128xf32>
    %2 = tpu.matmul %0, %1, %cst {dimension_numbers = #tpu.dot_dimension_numbers<[1], [0], [0], [1], [0, 0, 1, 1], [], []>} : vector<48x288xbf16>, vector<288x128xbf16>, vector<48x128xf32> -> vector<48x128xf32>
    %c0_3 = arith.constant 0 : index
    %c0_4 = arith.constant 0 : index
    %3 = vector.load %arg3[%c0_3, %c0_4] : memref<48x1xf32, #tpu.memory_space<vmem>>, vector<48x1xf32>
    %4 = vector.broadcast %3 : vector<48x1xf32> to vector<48x128xf32>
    %5 = arith.addf %2, %4 : vector<48x128xf32>
    %6 = arith.negf %5 : vector<48x128xf32>
    %7 = math.exp %6 : vector<48x128xf32>
    %cst_5 = arith.constant 1.000000e+00 : f32
    %8 = vector.broadcast %cst_5 : f32 to vector<48x128xf32>
    %9 = arith.addf %8, %7 : vector<48x128xf32>
    %10 = arith.divf %8, %9 : vector<48x128xf32>
    %11 = arith.mulf %5, %10 : vector<48x128xf32>
    %12 = arith.truncf %11 : vector<48x128xf32> to vector<48x128xbf16>
    %c0_6 = arith.constant 0 : index
    %c0_7 = arith.constant 0 : index
    %13 = vector.load %arg4[%c0_6, %c0_7] : memref<48x128xbf16, #tpu.memory_space<vmem>>, vector<48x128xbf16>
    tpu.vector_store %arg4[%c0_6, %c0_7], %12 {strides = array<i32>} : memref<48x128xbf16, #tpu.memory_space<vmem>>, vector<48x128xbf16>,
    return
  }
  func.func @transform_0(%arg0: i32) -> (i32, i32) {
    %c0_i32 = arith.constant 0 : i32
    %c0_i32_0 = arith.constant 0 : i32
    %c0_i32_1 = arith.constant 0 : i32
    return %c0_i32, %c0_i32_0 : i32, i32
  }
  func.func @transform_1(%arg0: i32) -> (i32, i32) {
    %c0_i32 = arith.constant 0 : i32
    %c0_i32_0 = arith.constant 0 : i32
    return %c0_i32, %arg0 : i32, i32
  }
  func.func @transform_2(%arg0: i32) -> (i32, i32) {
    %c0_i32 = arith.constant 0 : i32
    %c0_i32_0 = arith.constant 0 : i32
    %c0_i32_1 = arith.constant 0 : i32
    return %c0_i32, %c0_i32_0 : i32, i32
  }
  func.func @transform_3(%arg0: i32) -> (i32, i32) {
    %c0_i32 = arith.constant 0 : i32
    %c0_i32_0 = arith.constant 0 : i32
    return %c0_i32, %arg0 : i32, i32
  }
}

module attributes {stable_mosaic.version = 11 : i64} {
  func.func @_mm_bias_act_kernel(%arg0: i32, %arg1: memref<64x432xbf16, #tpu.memory_space<vmem>>, %arg2: memref<432x128xbf16, #tpu.memory_space<vmem>>, %arg3: memref<64x1xf32, #tpu.memory_space<vmem>>, %arg4: memref<64x128xbf16, #tpu.memory_space<vmem>>) attributes {dimension_semantics = [#tpu.dimension_semantics<parallel>], iteration_bounds = array<i64: 1>, scalar_prefetch = 0 : i64, scratch_operands = 0 : i64, tpu.core_type = #tpu.core_type<tc>, window_params = [{pipeline_mode = #tpu.pipeline_mode<synchronous>, transform_indices = @transform_0, window_bounds = array<i64: 64, 432>}, {transform_indices = @transform_1, window_bounds = array<i64: 432, 128>}, {pipeline_mode = #tpu.pipeline_mode<synchronous>, transform_indices = @transform_2, window_bounds = array<i64: 64, 1>}, {transform_indices = @transform_3, window_bounds = array<i64: 64, 128>}]} {
    %c0 = arith.constant 0 : index
    %c0_0 = arith.constant 0 : index
    %0 = vector.load %arg1[%c0, %c0_0] : memref<64x432xbf16, #tpu.memory_space<vmem>>, vector<64x432xbf16>
    %c0_1 = arith.constant 0 : index
    %c0_2 = arith.constant 0 : index
    %1 = vector.load %arg2[%c0_1, %c0_2] : memref<432x128xbf16, #tpu.memory_space<vmem>>, vector<432x128xbf16>
    %cst = arith.constant dense<0.000000e+00> : vector<64x128xf32>
    %2 = tpu.matmul %0, %1, %cst {dimension_numbers = #tpu.dot_dimension_numbers<[1], [0], [0], [1], [0, 0, 1, 1], [], []>} : vector<64x432xbf16>, vector<432x128xbf16>, vector<64x128xf32> -> vector<64x128xf32>
    %c0_3 = arith.constant 0 : index
    %c0_4 = arith.constant 0 : index
    %3 = vector.load %arg3[%c0_3, %c0_4] : memref<64x1xf32, #tpu.memory_space<vmem>>, vector<64x1xf32>
    %4 = vector.broadcast %3 : vector<64x1xf32> to vector<64x128xf32>
    %5 = arith.addf %2, %4 : vector<64x128xf32>
    %6 = arith.negf %5 : vector<64x128xf32>
    %7 = math.exp %6 : vector<64x128xf32>
    %cst_5 = arith.constant 1.000000e+00 : f32
    %8 = vector.broadcast %cst_5 : f32 to vector<64x128xf32>
    %9 = arith.addf %8, %7 : vector<64x128xf32>
    %10 = arith.divf %8, %9 : vector<64x128xf32>
    %11 = arith.mulf %5, %10 : vector<64x128xf32>
    %12 = arith.truncf %11 : vector<64x128xf32> to vector<64x128xbf16>
    %c0_6 = arith.constant 0 : index
    %c0_7 = arith.constant 0 : index
    %13 = vector.load %arg4[%c0_6, %c0_7] : memref<64x128xbf16, #tpu.memory_space<vmem>>, vector<64x128xbf16>
    tpu.vector_store %arg4[%c0_6, %c0_7], %12 {strides = array<i32>} : memref<64x128xbf16, #tpu.memory_space<vmem>>, vector<64x128xbf16>,
    return
  }
  func.func @transform_0(%arg0: i32) -> (i32, i32) {
    %c0_i32 = arith.constant 0 : i32
    %c0_i32_0 = arith.constant 0 : i32
    %c0_i32_1 = arith.constant 0 : i32
    return %c0_i32, %c0_i32_0 : i32, i32
  }
  func.func @transform_1(%arg0: i32) -> (i32, i32) {
    %c0_i32 = arith.constant 0 : i32
    %c0_i32_0 = arith.constant 0 : i32
    return %c0_i32, %arg0 : i32, i32
  }
  func.func @transform_2(%arg0: i32) -> (i32, i32) {
    %c0_i32 = arith.constant 0 : i32
    %c0_i32_0 = arith.constant 0 : i32
    %c0_i32_1 = arith.constant 0 : i32
    return %c0_i32, %c0_i32_0 : i32, i32
  }
  func.func @transform_3(%arg0: i32) -> (i32, i32) {
    %c0_i32 = arith.constant 0 : i32
    %c0_i32_0 = arith.constant 0 : i32
    return %c0_i32, %arg0 : i32, i32
  }
}

module attributes {stable_mosaic.version = 11 : i64} {
  func.func @_mm_bias_act_kernel(%arg0: i32, %arg1: memref<16x576xbf16, #tpu.memory_space<vmem>>, %arg2: memref<576x128xbf16, #tpu.memory_space<vmem>>, %arg3: memref<16x1xf32, #tpu.memory_space<vmem>>, %arg4: memref<16x128xbf16, #tpu.memory_space<vmem>>) attributes {dimension_semantics = [#tpu.dimension_semantics<parallel>], iteration_bounds = array<i64: 1>, scalar_prefetch = 0 : i64, scratch_operands = 0 : i64, tpu.core_type = #tpu.core_type<tc>, window_params = [{pipeline_mode = #tpu.pipeline_mode<synchronous>, transform_indices = @transform_0, window_bounds = array<i64: 16, 576>}, {transform_indices = @transform_1, window_bounds = array<i64: 576, 128>}, {pipeline_mode = #tpu.pipeline_mode<synchronous>, transform_indices = @transform_2, window_bounds = array<i64: 16, 1>}, {transform_indices = @transform_3, window_bounds = array<i64: 16, 128>}]} {
    %c0 = arith.constant 0 : index
    %c0_0 = arith.constant 0 : index
    %0 = vector.load %arg1[%c0, %c0_0] : memref<16x576xbf16, #tpu.memory_space<vmem>>, vector<16x576xbf16>
    %c0_1 = arith.constant 0 : index
    %c0_2 = arith.constant 0 : index
    %1 = vector.load %arg2[%c0_1, %c0_2] : memref<576x128xbf16, #tpu.memory_space<vmem>>, vector<576x128xbf16>
    %cst = arith.constant dense<0.000000e+00> : vector<16x128xf32>
    %2 = tpu.matmul %0, %1, %cst {dimension_numbers = #tpu.dot_dimension_numbers<[1], [0], [0], [1], [0, 0, 1, 1], [], []>} : vector<16x576xbf16>, vector<576x128xbf16>, vector<16x128xf32> -> vector<16x128xf32>
    %c0_3 = arith.constant 0 : index
    %c0_4 = arith.constant 0 : index
    %3 = vector.load %arg3[%c0_3, %c0_4] : memref<16x1xf32, #tpu.memory_space<vmem>>, vector<16x1xf32>
    %4 = vector.broadcast %3 : vector<16x1xf32> to vector<16x128xf32>
    %5 = arith.addf %2, %4 : vector<16x128xf32>
    %6 = arith.negf %5 : vector<16x128xf32>
    %7 = math.exp %6 : vector<16x128xf32>
    %cst_5 = arith.constant 1.000000e+00 : f32
    %8 = vector.broadcast %cst_5 : f32 to vector<16x128xf32>
    %9 = arith.addf %8, %7 : vector<16x128xf32>
    %10 = arith.divf %8, %9 : vector<16x128xf32>
    %11 = arith.mulf %5, %10 : vector<16x128xf32>
    %12 = arith.truncf %11 : vector<16x128xf32> to vector<16x128xbf16>
    %c0_6 = arith.constant 0 : index
    %c0_7 = arith.constant 0 : index
    %13 = vector.load %arg4[%c0_6, %c0_7] : memref<16x128xbf16, #tpu.memory_space<vmem>>, vector<16x128xbf16>
    tpu.vector_store %arg4[%c0_6, %c0_7], %12 {strides = array<i32>} : memref<16x128xbf16, #tpu.memory_space<vmem>>, vector<16x128xbf16>,
    return
  }
  func.func @transform_0(%arg0: i32) -> (i32, i32) {
    %c0_i32 = arith.constant 0 : i32
    %c0_i32_0 = arith.constant 0 : i32
    %c0_i32_1 = arith.constant 0 : i32
    return %c0_i32, %c0_i32_0 : i32, i32
  }
  func.func @transform_1(%arg0: i32) -> (i32, i32) {
    %c0_i32 = arith.constant 0 : i32
    %c0_i32_0 = arith.constant 0 : i32
    return %c0_i32, %arg0 : i32, i32
  }
  func.func @transform_2(%arg0: i32) -> (i32, i32) {
    %c0_i32 = arith.constant 0 : i32
    %c0_i32_0 = arith.constant 0 : i32
    %c0_i32_1 = arith.constant 0 : i32
    return %c0_i32, %c0_i32_0 : i32, i32
  }
  func.func @transform_3(%arg0: i32) -> (i32, i32) {
    %c0_i32 = arith.constant 0 : i32
    %c0_i32_0 = arith.constant 0 : i32
    return %c0_i32, %arg0 : i32, i32
  }
}

module attributes {stable_mosaic.version = 11 : i64} {
  func.func @_mm_bias_act_kernel(%arg0: i32, %arg1: memref<16x144xbf16, #tpu.memory_space<vmem>>, %arg2: memref<144x128xbf16, #tpu.memory_space<vmem>>, %arg3: memref<16x1xf32, #tpu.memory_space<vmem>>, %arg4: memref<16x128xbf16, #tpu.memory_space<vmem>>) attributes {dimension_semantics = [#tpu.dimension_semantics<parallel>], iteration_bounds = array<i64: 1>, scalar_prefetch = 0 : i64, scratch_operands = 0 : i64, tpu.core_type = #tpu.core_type<tc>, window_params = [{pipeline_mode = #tpu.pipeline_mode<synchronous>, transform_indices = @transform_0, window_bounds = array<i64: 16, 144>}, {transform_indices = @transform_1, window_bounds = array<i64: 144, 128>}, {pipeline_mode = #tpu.pipeline_mode<synchronous>, transform_indices = @transform_2, window_bounds = array<i64: 16, 1>}, {transform_indices = @transform_3, window_bounds = array<i64: 16, 128>}]} {
    %c0 = arith.constant 0 : index
    %c0_0 = arith.constant 0 : index
    %0 = vector.load %arg1[%c0, %c0_0] : memref<16x144xbf16, #tpu.memory_space<vmem>>, vector<16x144xbf16>
    %c0_1 = arith.constant 0 : index
    %c0_2 = arith.constant 0 : index
    %1 = vector.load %arg2[%c0_1, %c0_2] : memref<144x128xbf16, #tpu.memory_space<vmem>>, vector<144x128xbf16>
    %cst = arith.constant dense<0.000000e+00> : vector<16x128xf32>
    %2 = tpu.matmul %0, %1, %cst {dimension_numbers = #tpu.dot_dimension_numbers<[1], [0], [0], [1], [0, 0, 1, 1], [], []>} : vector<16x144xbf16>, vector<144x128xbf16>, vector<16x128xf32> -> vector<16x128xf32>
    %c0_3 = arith.constant 0 : index
    %c0_4 = arith.constant 0 : index
    %3 = vector.load %arg3[%c0_3, %c0_4] : memref<16x1xf32, #tpu.memory_space<vmem>>, vector<16x1xf32>
    %4 = vector.broadcast %3 : vector<16x1xf32> to vector<16x128xf32>
    %5 = arith.addf %2, %4 : vector<16x128xf32>
    %6 = arith.negf %5 : vector<16x128xf32>
    %7 = math.exp %6 : vector<16x128xf32>
    %cst_5 = arith.constant 1.000000e+00 : f32
    %8 = vector.broadcast %cst_5 : f32 to vector<16x128xf32>
    %9 = arith.addf %8, %7 : vector<16x128xf32>
    %10 = arith.divf %8, %9 : vector<16x128xf32>
    %11 = arith.mulf %5, %10 : vector<16x128xf32>
    %12 = arith.truncf %11 : vector<16x128xf32> to vector<16x128xbf16>
    %c0_6 = arith.constant 0 : index
    %c0_7 = arith.constant 0 : index
    %13 = vector.load %arg4[%c0_6, %c0_7] : memref<16x128xbf16, #tpu.memory_space<vmem>>, vector<16x128xbf16>
    tpu.vector_store %arg4[%c0_6, %c0_7], %12 {strides = array<i32>} : memref<16x128xbf16, #tpu.memory_space<vmem>>, vector<16x128xbf16>,
    return
  }
  func.func @transform_0(%arg0: i32) -> (i32, i32) {
    %c0_i32 = arith.constant 0 : i32
    %c0_i32_0 = arith.constant 0 : i32
    %c0_i32_1 = arith.constant 0 : i32
    return %c0_i32, %c0_i32_0 : i32, i32
  }
  func.func @transform_1(%arg0: i32) -> (i32, i32) {
    %c0_i32 = arith.constant 0 : i32
    %c0_i32_0 = arith.constant 0 : i32
    return %c0_i32, %arg0 : i32, i32
  }
  func.func @transform_2(%arg0: i32) -> (i32, i32) {
    %c0_i32 = arith.constant 0 : i32
    %c0_i32_0 = arith.constant 0 : i32
    %c0_i32_1 = arith.constant 0 : i32
    return %c0_i32, %c0_i32_0 : i32, i32
  }
  func.func @transform_3(%arg0: i32) -> (i32, i32) {
    %c0_i32 = arith.constant 0 : i32
    %c0_i32_0 = arith.constant 0 : i32
    return %c0_i32, %arg0 : i32, i32
  }
}

module attributes {stable_mosaic.version = 11 : i64} {
  func.func @_mm_bias_act_kernel(%arg0: i32, %arg1: memref<1x16xbf16, #tpu.memory_space<vmem>>, %arg2: memref<16x128xbf16, #tpu.memory_space<vmem>>, %arg3: memref<1x1xf32, #tpu.memory_space<vmem>>, %arg4: memref<1x128xbf16, #tpu.memory_space<vmem>>) attributes {dimension_semantics = [#tpu.dimension_semantics<parallel>], iteration_bounds = array<i64: 1>, scalar_prefetch = 0 : i64, scratch_operands = 0 : i64, tpu.core_type = #tpu.core_type<tc>, window_params = [{pipeline_mode = #tpu.pipeline_mode<synchronous>, transform_indices = @transform_0, window_bounds = array<i64: 1, 16>}, {transform_indices = @transform_1, window_bounds = array<i64: 16, 128>}, {pipeline_mode = #tpu.pipeline_mode<synchronous>, transform_indices = @transform_2, window_bounds = array<i64: 1, 1>}, {transform_indices = @transform_3, window_bounds = array<i64: 1, 128>}]} {
    %c0 = arith.constant 0 : index
    %c0_0 = arith.constant 0 : index
    %0 = vector.load %arg1[%c0, %c0_0] : memref<1x16xbf16, #tpu.memory_space<vmem>>, vector<1x16xbf16>
    %c0_1 = arith.constant 0 : index
    %c0_2 = arith.constant 0 : index
    %1 = vector.load %arg2[%c0_1, %c0_2] : memref<16x128xbf16, #tpu.memory_space<vmem>>, vector<16x128xbf16>
    %cst = arith.constant dense<0.000000e+00> : vector<1x128xf32>
    %2 = tpu.matmul %0, %1, %cst {dimension_numbers = #tpu.dot_dimension_numbers<[1], [0], [0], [1], [0, 0, 1, 1], [], []>} : vector<1x16xbf16>, vector<16x128xbf16>, vector<1x128xf32> -> vector<1x128xf32>
    %c0_3 = arith.constant 0 : index
    %c0_4 = arith.constant 0 : index
    %3 = vector.load %arg3[%c0_3, %c0_4] : memref<1x1xf32, #tpu.memory_space<vmem>>, vector<1x1xf32>
    %4 = vector.broadcast %3 : vector<1x1xf32> to vector<1x128xf32>
    %5 = arith.addf %2, %4 : vector<1x128xf32>
    %6 = arith.truncf %5 : vector<1x128xf32> to vector<1x128xbf16>
    %c0_5 = arith.constant 0 : index
    %c0_6 = arith.constant 0 : index
    %7 = vector.load %arg4[%c0_5, %c0_6] : memref<1x128xbf16, #tpu.memory_space<vmem>>, vector<1x128xbf16>
    tpu.vector_store %arg4[%c0_5, %c0_6], %6 {strides = array<i32>} : memref<1x128xbf16, #tpu.memory_space<vmem>>, vector<1x128xbf16>,
    return
  }
  func.func @transform_0(%arg0: i32) -> (i32, i32) {
    %c0_i32 = arith.constant 0 : i32
    %c0_i32_0 = arith.constant 0 : i32
    %c0_i32_1 = arith.constant 0 : i32
    return %c0_i32, %c0_i32_0 : i32, i32
  }
  func.func @transform_1(%arg0: i32) -> (i32, i32) {
    %c0_i32 = arith.constant 0 : i32
    %c0_i32_0 = arith.constant 0 : i32
    return %c0_i32, %arg0 : i32, i32
  }
  func.func @transform_2(%arg0: i32) -> (i32, i32) {
    %c0_i32 = arith.constant 0 : i32
    %c0_i32_0 = arith.constant 0 : i32
    %c0_i32_1 = arith.constant 0 : i32
    return %c0_i32, %c0_i32_0 : i32, i32
  }
  func.func @transform_3(%arg0: i32) -> (i32, i32) {
    %c0_i32 = arith.constant 0 : i32
    %c0_i32_0 = arith.constant 0 : i32
    return %c0_i32, %arg0 : i32, i32
  }
}

module attributes {stable_mosaic.version = 11 : i64} {
  func.func @_mm_bias_act_kernel(%arg0: i32, %arg1: memref<24x64xbf16, #tpu.memory_space<vmem>>, %arg2: memref<64x128xbf16, #tpu.memory_space<vmem>>, %arg3: memref<24x1xf32, #tpu.memory_space<vmem>>, %arg4: memref<24x128xbf16, #tpu.memory_space<vmem>>) attributes {dimension_semantics = [#tpu.dimension_semantics<parallel>], iteration_bounds = array<i64: 1>, scalar_prefetch = 0 : i64, scratch_operands = 0 : i64, tpu.core_type = #tpu.core_type<tc>, window_params = [{pipeline_mode = #tpu.pipeline_mode<synchronous>, transform_indices = @transform_0, window_bounds = array<i64: 24, 64>}, {transform_indices = @transform_1, window_bounds = array<i64: 64, 128>}, {pipeline_mode = #tpu.pipeline_mode<synchronous>, transform_indices = @transform_2, window_bounds = array<i64: 24, 1>}, {transform_indices = @transform_3, window_bounds = array<i64: 24, 128>}]} {
    %c0 = arith.constant 0 : index
    %c0_0 = arith.constant 0 : index
    %0 = vector.load %arg1[%c0, %c0_0] : memref<24x64xbf16, #tpu.memory_space<vmem>>, vector<24x64xbf16>
    %c0_1 = arith.constant 0 : index
    %c0_2 = arith.constant 0 : index
    %1 = vector.load %arg2[%c0_1, %c0_2] : memref<64x128xbf16, #tpu.memory_space<vmem>>, vector<64x128xbf16>
    %cst = arith.constant dense<0.000000e+00> : vector<24x128xf32>
    %2 = tpu.matmul %0, %1, %cst {dimension_numbers = #tpu.dot_dimension_numbers<[1], [0], [0], [1], [0, 0, 1, 1], [], []>} : vector<24x64xbf16>, vector<64x128xbf16>, vector<24x128xf32> -> vector<24x128xf32>
    %c0_3 = arith.constant 0 : index
    %c0_4 = arith.constant 0 : index
    %3 = vector.load %arg3[%c0_3, %c0_4] : memref<24x1xf32, #tpu.memory_space<vmem>>, vector<24x1xf32>
    %4 = vector.broadcast %3 : vector<24x1xf32> to vector<24x128xf32>
    %5 = arith.addf %2, %4 : vector<24x128xf32>
    %6 = arith.negf %5 : vector<24x128xf32>
    %7 = math.exp %6 : vector<24x128xf32>
    %cst_5 = arith.constant 1.000000e+00 : f32
    %8 = vector.broadcast %cst_5 : f32 to vector<24x128xf32>
    %9 = arith.addf %8, %7 : vector<24x128xf32>
    %10 = arith.divf %8, %9 : vector<24x128xf32>
    %11 = arith.mulf %5, %10 : vector<24x128xf32>
    %12 = arith.truncf %11 : vector<24x128xf32> to vector<24x128xbf16>
    %c0_6 = arith.constant 0 : index
    %c0_7 = arith.constant 0 : index
    %13 = vector.load %arg4[%c0_6, %c0_7] : memref<24x128xbf16, #tpu.memory_space<vmem>>, vector<24x128xbf16>
    tpu.vector_store %arg4[%c0_6, %c0_7], %12 {strides = array<i32>} : memref<24x128xbf16, #tpu.memory_space<vmem>>, vector<24x128xbf16>,
    return
  }
  func.func @transform_0(%arg0: i32) -> (i32, i32) {
    %c0_i32 = arith.constant 0 : i32
    %c0_i32_0 = arith.constant 0 : i32
    %c0_i32_1 = arith.constant 0 : i32
    return %c0_i32, %c0_i32_0 : i32, i32
  }
  func.func @transform_1(%arg0: i32) -> (i32, i32) {
    %c0_i32 = arith.constant 0 : i32
    %c0_i32_0 = arith.constant 0 : i32
    return %c0_i32, %arg0 : i32, i32
  }
  func.func @transform_2(%arg0: i32) -> (i32, i32) {
    %c0_i32 = arith.constant 0 : i32
    %c0_i32_0 = arith.constant 0 : i32
    %c0_i32_1 = arith.constant 0 : i32
    return %c0_i32, %c0_i32_0 : i32, i32
  }
  func.func @transform_3(%arg0: i32) -> (i32, i32) {
    %c0_i32 = arith.constant 0 : i32
    %c0_i32_0 = arith.constant 0 : i32
    return %c0_i32, %arg0 : i32, i32
  }
}

module attributes {stable_mosaic.version = 11 : i64} {
  func.func @_mm_bias_act_kernel(%arg0: i32, %arg1: memref<16x432xbf16, #tpu.memory_space<vmem>>, %arg2: memref<432x128xbf16, #tpu.memory_space<vmem>>, %arg3: memref<16x1xf32, #tpu.memory_space<vmem>>, %arg4: memref<16x128xbf16, #tpu.memory_space<vmem>>) attributes {dimension_semantics = [#tpu.dimension_semantics<parallel>], iteration_bounds = array<i64: 1>, scalar_prefetch = 0 : i64, scratch_operands = 0 : i64, tpu.core_type = #tpu.core_type<tc>, window_params = [{pipeline_mode = #tpu.pipeline_mode<synchronous>, transform_indices = @transform_0, window_bounds = array<i64: 16, 432>}, {transform_indices = @transform_1, window_bounds = array<i64: 432, 128>}, {pipeline_mode = #tpu.pipeline_mode<synchronous>, transform_indices = @transform_2, window_bounds = array<i64: 16, 1>}, {transform_indices = @transform_3, window_bounds = array<i64: 16, 128>}]} {
    %c0 = arith.constant 0 : index
    %c0_0 = arith.constant 0 : index
    %0 = vector.load %arg1[%c0, %c0_0] : memref<16x432xbf16, #tpu.memory_space<vmem>>, vector<16x432xbf16>
    %c0_1 = arith.constant 0 : index
    %c0_2 = arith.constant 0 : index
    %1 = vector.load %arg2[%c0_1, %c0_2] : memref<432x128xbf16, #tpu.memory_space<vmem>>, vector<432x128xbf16>
    %cst = arith.constant dense<0.000000e+00> : vector<16x128xf32>
    %2 = tpu.matmul %0, %1, %cst {dimension_numbers = #tpu.dot_dimension_numbers<[1], [0], [0], [1], [0, 0, 1, 1], [], []>} : vector<16x432xbf16>, vector<432x128xbf16>, vector<16x128xf32> -> vector<16x128xf32>
    %c0_3 = arith.constant 0 : index
    %c0_4 = arith.constant 0 : index
    %3 = vector.load %arg3[%c0_3, %c0_4] : memref<16x1xf32, #tpu.memory_space<vmem>>, vector<16x1xf32>
    %4 = vector.broadcast %3 : vector<16x1xf32> to vector<16x128xf32>
    %5 = arith.addf %2, %4 : vector<16x128xf32>
    %6 = arith.negf %5 : vector<16x128xf32>
    %7 = math.exp %6 : vector<16x128xf32>
    %cst_5 = arith.constant 1.000000e+00 : f32
    %8 = vector.broadcast %cst_5 : f32 to vector<16x128xf32>
    %9 = arith.addf %8, %7 : vector<16x128xf32>
    %10 = arith.divf %8, %9 : vector<16x128xf32>
    %11 = arith.mulf %5, %10 : vector<16x128xf32>
    %12 = arith.truncf %11 : vector<16x128xf32> to vector<16x128xbf16>
    %c0_6 = arith.constant 0 : index
    %c0_7 = arith.constant 0 : index
    %13 = vector.load %arg4[%c0_6, %c0_7] : memref<16x128xbf16, #tpu.memory_space<vmem>>, vector<16x128xbf16>
    tpu.vector_store %arg4[%c0_6, %c0_7], %12 {strides = array<i32>} : memref<16x128xbf16, #tpu.memory_space<vmem>>, vector<16x128xbf16>,
    return
  }
  func.func @transform_0(%arg0: i32) -> (i32, i32) {
    %c0_i32 = arith.constant 0 : i32
    %c0_i32_0 = arith.constant 0 : i32
    %c0_i32_1 = arith.constant 0 : i32
    return %c0_i32, %c0_i32_0 : i32, i32
  }
  func.func @transform_1(%arg0: i32) -> (i32, i32) {
    %c0_i32 = arith.constant 0 : i32
    %c0_i32_0 = arith.constant 0 : i32
    return %c0_i32, %arg0 : i32, i32
  }
  func.func @transform_2(%arg0: i32) -> (i32, i32) {
    %c0_i32 = arith.constant 0 : i32
    %c0_i32_0 = arith.constant 0 : i32
    %c0_i32_1 = arith.constant 0 : i32
    return %c0_i32, %c0_i32_0 : i32, i32
  }
  func.func @transform_3(%arg0: i32) -> (i32, i32) {
    %c0_i32 = arith.constant 0 : i32
    %c0_i32_0 = arith.constant 0 : i32
    return %c0_i32, %arg0 : i32, i32
  }
}

module attributes {stable_mosaic.version = 11 : i64} {
  func.func @_mm_bias_act_kernel(%arg0: i32, %arg1: memref<24x648xbf16, #tpu.memory_space<vmem>>, %arg2: memref<648x128xbf16, #tpu.memory_space<vmem>>, %arg3: memref<24x1xf32, #tpu.memory_space<vmem>>, %arg4: memref<24x128xbf16, #tpu.memory_space<vmem>>) attributes {dimension_semantics = [#tpu.dimension_semantics<parallel>], iteration_bounds = array<i64: 1>, scalar_prefetch = 0 : i64, scratch_operands = 0 : i64, tpu.core_type = #tpu.core_type<tc>, window_params = [{pipeline_mode = #tpu.pipeline_mode<synchronous>, transform_indices = @transform_0, window_bounds = array<i64: 24, 648>}, {transform_indices = @transform_1, window_bounds = array<i64: 648, 128>}, {pipeline_mode = #tpu.pipeline_mode<synchronous>, transform_indices = @transform_2, window_bounds = array<i64: 24, 1>}, {transform_indices = @transform_3, window_bounds = array<i64: 24, 128>}]} {
    %c0 = arith.constant 0 : index
    %c0_0 = arith.constant 0 : index
    %0 = vector.load %arg1[%c0, %c0_0] : memref<24x648xbf16, #tpu.memory_space<vmem>>, vector<24x648xbf16>
    %c0_1 = arith.constant 0 : index
    %c0_2 = arith.constant 0 : index
    %1 = vector.load %arg2[%c0_1, %c0_2] : memref<648x128xbf16, #tpu.memory_space<vmem>>, vector<648x128xbf16>
    %cst = arith.constant dense<0.000000e+00> : vector<24x128xf32>
    %2 = tpu.matmul %0, %1, %cst {dimension_numbers = #tpu.dot_dimension_numbers<[1], [0], [0], [1], [0, 0, 1, 1], [], []>} : vector<24x648xbf16>, vector<648x128xbf16>, vector<24x128xf32> -> vector<24x128xf32>
    %c0_3 = arith.constant 0 : index
    %c0_4 = arith.constant 0 : index
    %3 = vector.load %arg3[%c0_3, %c0_4] : memref<24x1xf32, #tpu.memory_space<vmem>>, vector<24x1xf32>
    %4 = vector.broadcast %3 : vector<24x1xf32> to vector<24x128xf32>
    %5 = arith.addf %2, %4 : vector<24x128xf32>
    %6 = arith.negf %5 : vector<24x128xf32>
    %7 = math.exp %6 : vector<24x128xf32>
    %cst_5 = arith.constant 1.000000e+00 : f32
    %8 = vector.broadcast %cst_5 : f32 to vector<24x128xf32>
    %9 = arith.addf %8, %7 : vector<24x128xf32>
    %10 = arith.divf %8, %9 : vector<24x128xf32>
    %11 = arith.mulf %5, %10 : vector<24x128xf32>
    %12 = arith.truncf %11 : vector<24x128xf32> to vector<24x128xbf16>
    %c0_6 = arith.constant 0 : index
    %c0_7 = arith.constant 0 : index
    %13 = vector.load %arg4[%c0_6, %c0_7] : memref<24x128xbf16, #tpu.memory_space<vmem>>, vector<24x128xbf16>
    tpu.vector_store %arg4[%c0_6, %c0_7], %12 {strides = array<i32>} : memref<24x128xbf16, #tpu.memory_space<vmem>>, vector<24x128xbf16>,
    return
  }
  func.func @transform_0(%arg0: i32) -> (i32, i32) {
    %c0_i32 = arith.constant 0 : i32
    %c0_i32_0 = arith.constant 0 : i32
    %c0_i32_1 = arith.constant 0 : i32
    return %c0_i32, %c0_i32_0 : i32, i32
  }
  func.func @transform_1(%arg0: i32) -> (i32, i32) {
    %c0_i32 = arith.constant 0 : i32
    %c0_i32_0 = arith.constant 0 : i32
    return %c0_i32, %arg0 : i32, i32
  }
  func.func @transform_2(%arg0: i32) -> (i32, i32) {
    %c0_i32 = arith.constant 0 : i32
    %c0_i32_0 = arith.constant 0 : i32
    %c0_i32_1 = arith.constant 0 : i32
    return %c0_i32, %c0_i32_0 : i32, i32
  }
  func.func @transform_3(%arg0: i32) -> (i32, i32) {
    %c0_i32 = arith.constant 0 : i32
    %c0_i32_0 = arith.constant 0 : i32
    return %c0_i32, %arg0 : i32, i32
  }
}

module attributes {stable_mosaic.version = 11 : i64} {
  func.func @_mm_bias_act_kernel(%arg0: i32, %arg1: memref<16x24xbf16, #tpu.memory_space<vmem>>, %arg2: memref<24x128xbf16, #tpu.memory_space<vmem>>, %arg3: memref<16x1xf32, #tpu.memory_space<vmem>>, %arg4: memref<16x128xbf16, #tpu.memory_space<vmem>>) attributes {dimension_semantics = [#tpu.dimension_semantics<parallel>], iteration_bounds = array<i64: 1>, scalar_prefetch = 0 : i64, scratch_operands = 0 : i64, tpu.core_type = #tpu.core_type<tc>, window_params = [{pipeline_mode = #tpu.pipeline_mode<synchronous>, transform_indices = @transform_0, window_bounds = array<i64: 16, 24>}, {transform_indices = @transform_1, window_bounds = array<i64: 24, 128>}, {pipeline_mode = #tpu.pipeline_mode<synchronous>, transform_indices = @transform_2, window_bounds = array<i64: 16, 1>}, {transform_indices = @transform_3, window_bounds = array<i64: 16, 128>}]} {
    %c0 = arith.constant 0 : index
    %c0_0 = arith.constant 0 : index
    %0 = vector.load %arg1[%c0, %c0_0] : memref<16x24xbf16, #tpu.memory_space<vmem>>, vector<16x24xbf16>
    %c0_1 = arith.constant 0 : index
    %c0_2 = arith.constant 0 : index
    %1 = vector.load %arg2[%c0_1, %c0_2] : memref<24x128xbf16, #tpu.memory_space<vmem>>, vector<24x128xbf16>
    %cst = arith.constant dense<0.000000e+00> : vector<16x128xf32>
    %2 = tpu.matmul %0, %1, %cst {dimension_numbers = #tpu.dot_dimension_numbers<[1], [0], [0], [1], [0, 0, 1, 1], [], []>} : vector<16x24xbf16>, vector<24x128xbf16>, vector<16x128xf32> -> vector<16x128xf32>
    %c0_3 = arith.constant 0 : index
    %c0_4 = arith.constant 0 : index
    %3 = vector.load %arg3[%c0_3, %c0_4] : memref<16x1xf32, #tpu.memory_space<vmem>>, vector<16x1xf32>
    %4 = vector.broadcast %3 : vector<16x1xf32> to vector<16x128xf32>
    %5 = arith.addf %2, %4 : vector<16x128xf32>
    %6 = arith.negf %5 : vector<16x128xf32>
    %7 = math.exp %6 : vector<16x128xf32>
    %cst_5 = arith.constant 1.000000e+00 : f32
    %8 = vector.broadcast %cst_5 : f32 to vector<16x128xf32>
    %9 = arith.addf %8, %7 : vector<16x128xf32>
    %10 = arith.divf %8, %9 : vector<16x128xf32>
    %11 = arith.mulf %5, %10 : vector<16x128xf32>
    %12 = arith.truncf %11 : vector<16x128xf32> to vector<16x128xbf16>
    %c0_6 = arith.constant 0 : index
    %c0_7 = arith.constant 0 : index
    %13 = vector.load %arg4[%c0_6, %c0_7] : memref<16x128xbf16, #tpu.memory_space<vmem>>, vector<16x128xbf16>
    tpu.vector_store %arg4[%c0_6, %c0_7], %12 {strides = array<i32>} : memref<16x128xbf16, #tpu.memory_space<vmem>>, vector<16x128xbf16>,
    return
  }
  func.func @transform_0(%arg0: i32) -> (i32, i32) {
    %c0_i32 = arith.constant 0 : i32
    %c0_i32_0 = arith.constant 0 : i32
    %c0_i32_1 = arith.constant 0 : i32
    return %c0_i32, %c0_i32_0 : i32, i32
  }
  func.func @transform_1(%arg0: i32) -> (i32, i32) {
    %c0_i32 = arith.constant 0 : i32
    %c0_i32_0 = arith.constant 0 : i32
    return %c0_i32, %arg0 : i32, i32
  }
  func.func @transform_2(%arg0: i32) -> (i32, i32) {
    %c0_i32 = arith.constant 0 : i32
    %c0_i32_0 = arith.constant 0 : i32
    %c0_i32_1 = arith.constant 0 : i32
    return %c0_i32, %c0_i32_0 : i32, i32
  }
  func.func @transform_3(%arg0: i32) -> (i32, i32) {
    %c0_i32 = arith.constant 0 : i32
    %c0_i32_0 = arith.constant 0 : i32
    return %c0_i32, %arg0 : i32, i32
  }
}

module attributes {stable_mosaic.version = 11 : i64} {
  func.func @_mm_bias_act_kernel(%arg0: i32, %arg1: memref<16x288xbf16, #tpu.memory_space<vmem>>, %arg2: memref<288x128xbf16, #tpu.memory_space<vmem>>, %arg3: memref<16x1xf32, #tpu.memory_space<vmem>>, %arg4: memref<16x128xbf16, #tpu.memory_space<vmem>>) attributes {dimension_semantics = [#tpu.dimension_semantics<parallel>], iteration_bounds = array<i64: 1>, scalar_prefetch = 0 : i64, scratch_operands = 0 : i64, tpu.core_type = #tpu.core_type<tc>, window_params = [{pipeline_mode = #tpu.pipeline_mode<synchronous>, transform_indices = @transform_0, window_bounds = array<i64: 16, 288>}, {transform_indices = @transform_1, window_bounds = array<i64: 288, 128>}, {pipeline_mode = #tpu.pipeline_mode<synchronous>, transform_indices = @transform_2, window_bounds = array<i64: 16, 1>}, {transform_indices = @transform_3, window_bounds = array<i64: 16, 128>}]} {
    %c0 = arith.constant 0 : index
    %c0_0 = arith.constant 0 : index
    %0 = vector.load %arg1[%c0, %c0_0] : memref<16x288xbf16, #tpu.memory_space<vmem>>, vector<16x288xbf16>
    %c0_1 = arith.constant 0 : index
    %c0_2 = arith.constant 0 : index
    %1 = vector.load %arg2[%c0_1, %c0_2] : memref<288x128xbf16, #tpu.memory_space<vmem>>, vector<288x128xbf16>
    %cst = arith.constant dense<0.000000e+00> : vector<16x128xf32>
    %2 = tpu.matmul %0, %1, %cst {dimension_numbers = #tpu.dot_dimension_numbers<[1], [0], [0], [1], [0, 0, 1, 1], [], []>} : vector<16x288xbf16>, vector<288x128xbf16>, vector<16x128xf32> -> vector<16x128xf32>
    %c0_3 = arith.constant 0 : index
    %c0_4 = arith.constant 0 : index
    %3 = vector.load %arg3[%c0_3, %c0_4] : memref<16x1xf32, #tpu.memory_space<vmem>>, vector<16x1xf32>
    %4 = vector.broadcast %3 : vector<16x1xf32> to vector<16x128xf32>
    %5 = arith.addf %2, %4 : vector<16x128xf32>
    %6 = arith.negf %5 : vector<16x128xf32>
    %7 = math.exp %6 : vector<16x128xf32>
    %cst_5 = arith.constant 1.000000e+00 : f32
    %8 = vector.broadcast %cst_5 : f32 to vector<16x128xf32>
    %9 = arith.addf %8, %7 : vector<16x128xf32>
    %10 = arith.divf %8, %9 : vector<16x128xf32>
    %11 = arith.mulf %5, %10 : vector<16x128xf32>
    %12 = arith.truncf %11 : vector<16x128xf32> to vector<16x128xbf16>
    %c0_6 = arith.constant 0 : index
    %c0_7 = arith.constant 0 : index
    %13 = vector.load %arg4[%c0_6, %c0_7] : memref<16x128xbf16, #tpu.memory_space<vmem>>, vector<16x128xbf16>
    tpu.vector_store %arg4[%c0_6, %c0_7], %12 {strides = array<i32>} : memref<16x128xbf16, #tpu.memory_space<vmem>>, vector<16x128xbf16>,
    return
  }
  func.func @transform_0(%arg0: i32) -> (i32, i32) {
    %c0_i32 = arith.constant 0 : i32
    %c0_i32_0 = arith.constant 0 : i32
    %c0_i32_1 = arith.constant 0 : i32
    return %c0_i32, %c0_i32_0 : i32, i32
  }
  func.func @transform_1(%arg0: i32) -> (i32, i32) {
    %c0_i32 = arith.constant 0 : i32
    %c0_i32_0 = arith.constant 0 : i32
    return %c0_i32, %arg0 : i32, i32
  }
  func.func @transform_2(%arg0: i32) -> (i32, i32) {
    %c0_i32 = arith.constant 0 : i32
    %c0_i32_0 = arith.constant 0 : i32
    %c0_i32_1 = arith.constant 0 : i32
    return %c0_i32, %c0_i32_0 : i32, i32
  }
  func.func @transform_3(%arg0: i32) -> (i32, i32) {
    %c0_i32 = arith.constant 0 : i32
    %c0_i32_0 = arith.constant 0 : i32
    return %c0_i32, %arg0 : i32, i32
  }
}

module attributes {stable_mosaic.version = 11 : i64} {
  func.func @_mm_bias_act_kernel(%arg0: i32, %arg1: memref<16x16xbf16, #tpu.memory_space<vmem>>, %arg2: memref<16x128xbf16, #tpu.memory_space<vmem>>, %arg3: memref<16x1xf32, #tpu.memory_space<vmem>>, %arg4: memref<16x128xbf16, #tpu.memory_space<vmem>>) attributes {dimension_semantics = [#tpu.dimension_semantics<parallel>], iteration_bounds = array<i64: 1>, scalar_prefetch = 0 : i64, scratch_operands = 0 : i64, tpu.core_type = #tpu.core_type<tc>, window_params = [{pipeline_mode = #tpu.pipeline_mode<synchronous>, transform_indices = @transform_0, window_bounds = array<i64: 16, 16>}, {transform_indices = @transform_1, window_bounds = array<i64: 16, 128>}, {pipeline_mode = #tpu.pipeline_mode<synchronous>, transform_indices = @transform_2, window_bounds = array<i64: 16, 1>}, {transform_indices = @transform_3, window_bounds = array<i64: 16, 128>}]} {
    %c0 = arith.constant 0 : index
    %c0_0 = arith.constant 0 : index
    %0 = vector.load %arg1[%c0, %c0_0] : memref<16x16xbf16, #tpu.memory_space<vmem>>, vector<16x16xbf16>
    %c0_1 = arith.constant 0 : index
    %c0_2 = arith.constant 0 : index
    %1 = vector.load %arg2[%c0_1, %c0_2] : memref<16x128xbf16, #tpu.memory_space<vmem>>, vector<16x128xbf16>
    %cst = arith.constant dense<0.000000e+00> : vector<16x128xf32>
    %2 = tpu.matmul %0, %1, %cst {dimension_numbers = #tpu.dot_dimension_numbers<[1], [0], [0], [1], [0, 0, 1, 1], [], []>} : vector<16x16xbf16>, vector<16x128xbf16>, vector<16x128xf32> -> vector<16x128xf32>
    %c0_3 = arith.constant 0 : index
    %c0_4 = arith.constant 0 : index
    %3 = vector.load %arg3[%c0_3, %c0_4] : memref<16x1xf32, #tpu.memory_space<vmem>>, vector<16x1xf32>
    %4 = vector.broadcast %3 : vector<16x1xf32> to vector<16x128xf32>
    %5 = arith.addf %2, %4 : vector<16x128xf32>
    %6 = arith.negf %5 : vector<16x128xf32>
    %7 = math.exp %6 : vector<16x128xf32>
    %cst_5 = arith.constant 1.000000e+00 : f32
    %8 = vector.broadcast %cst_5 : f32 to vector<16x128xf32>
    %9 = arith.addf %8, %7 : vector<16x128xf32>
    %10 = arith.divf %8, %9 : vector<16x128xf32>
    %11 = arith.mulf %5, %10 : vector<16x128xf32>
    %12 = arith.truncf %11 : vector<16x128xf32> to vector<16x128xbf16>
    %c0_6 = arith.constant 0 : index
    %c0_7 = arith.constant 0 : index
    %13 = vector.load %arg4[%c0_6, %c0_7] : memref<16x128xbf16, #tpu.memory_space<vmem>>, vector<16x128xbf16>
    tpu.vector_store %arg4[%c0_6, %c0_7], %12 {strides = array<i32>} : memref<16x128xbf16, #tpu.memory_space<vmem>>, vector<16x128xbf16>,
    return
  }
  func.func @transform_0(%arg0: i32) -> (i32, i32) {
    %c0_i32 = arith.constant 0 : i32
    %c0_i32_0 = arith.constant 0 : i32
    %c0_i32_1 = arith.constant 0 : i32
    return %c0_i32, %c0_i32_0 : i32, i32
  }
  func.func @transform_1(%arg0: i32) -> (i32, i32) {
    %c0_i32 = arith.constant 0 : i32
    %c0_i32_0 = arith.constant 0 : i32
    return %c0_i32, %arg0 : i32, i32
  }
  func.func @transform_2(%arg0: i32) -> (i32, i32) {
    %c0_i32 = arith.constant 0 : i32
    %c0_i32_0 = arith.constant 0 : i32
    %c0_i32_1 = arith.constant 0 : i32
    return %c0_i32, %c0_i32_0 : i32, i32
  }
  func.func @transform_3(%arg0: i32) -> (i32, i32) {
    %c0_i32 = arith.constant 0 : i32
    %c0_i32_0 = arith.constant 0 : i32
    return %c0_i32, %arg0 : i32, i32
  }
}

module attributes {stable_mosaic.version = 11 : i64} {
  func.func @_mm_bias_act_kernel(%arg0: i32, %arg1: memref<8x32xbf16, #tpu.memory_space<vmem>>, %arg2: memref<32x128xbf16, #tpu.memory_space<vmem>>, %arg3: memref<8x1xf32, #tpu.memory_space<vmem>>, %arg4: memref<8x128xbf16, #tpu.memory_space<vmem>>) attributes {dimension_semantics = [#tpu.dimension_semantics<parallel>], iteration_bounds = array<i64: 1>, scalar_prefetch = 0 : i64, scratch_operands = 0 : i64, tpu.core_type = #tpu.core_type<tc>, window_params = [{pipeline_mode = #tpu.pipeline_mode<synchronous>, transform_indices = @transform_0, window_bounds = array<i64: 8, 32>}, {transform_indices = @transform_1, window_bounds = array<i64: 32, 128>}, {pipeline_mode = #tpu.pipeline_mode<synchronous>, transform_indices = @transform_2, window_bounds = array<i64: 8, 1>}, {transform_indices = @transform_3, window_bounds = array<i64: 8, 128>}]} {
    %c0 = arith.constant 0 : index
    %c0_0 = arith.constant 0 : index
    %0 = vector.load %arg1[%c0, %c0_0] : memref<8x32xbf16, #tpu.memory_space<vmem>>, vector<8x32xbf16>
    %c0_1 = arith.constant 0 : index
    %c0_2 = arith.constant 0 : index
    %1 = vector.load %arg2[%c0_1, %c0_2] : memref<32x128xbf16, #tpu.memory_space<vmem>>, vector<32x128xbf16>
    %cst = arith.constant dense<0.000000e+00> : vector<8x128xf32>
    %2 = tpu.matmul %0, %1, %cst {dimension_numbers = #tpu.dot_dimension_numbers<[1], [0], [0], [1], [0, 0, 1, 1], [], []>} : vector<8x32xbf16>, vector<32x128xbf16>, vector<8x128xf32> -> vector<8x128xf32>
    %c0_3 = arith.constant 0 : index
    %c0_4 = arith.constant 0 : index
    %3 = vector.load %arg3[%c0_3, %c0_4] : memref<8x1xf32, #tpu.memory_space<vmem>>, vector<8x1xf32>
    %4 = vector.broadcast %3 : vector<8x1xf32> to vector<8x128xf32>
    %5 = arith.addf %2, %4 : vector<8x128xf32>
    %6 = tpu.iota {dimensions = array<i32: 0>} : vector<8x128xi32>
    %c4_i32 = arith.constant 4 : i32
    %7 = vector.broadcast %c4_i32 : i32 to vector<8x128xi32>
    %8 = arith.cmpi slt, %6, %7 : vector<8x128xi32>
    %9 = arith.negf %5 : vector<8x128xf32>
    %10 = math.exp %9 : vector<8x128xf32>
    %cst_5 = arith.constant 1.000000e+00 : f32
    %11 = vector.broadcast %cst_5 : f32 to vector<8x128xf32>
    %12 = arith.addf %11, %10 : vector<8x128xf32>
    %13 = arith.divf %11, %12 : vector<8x128xf32>
    %14 = arith.select %8, %13, %5 : vector<8x128xi1>, vector<8x128xf32>
    %15 = arith.truncf %14 : vector<8x128xf32> to vector<8x128xbf16>
    %c0_6 = arith.constant 0 : index
    %c0_7 = arith.constant 0 : index
    %16 = vector.load %arg4[%c0_6, %c0_7] : memref<8x128xbf16, #tpu.memory_space<vmem>>, vector<8x128xbf16>
    tpu.vector_store %arg4[%c0_6, %c0_7], %15 {strides = array<i32>} : memref<8x128xbf16, #tpu.memory_space<vmem>>, vector<8x128xbf16>,
    return
  }
  func.func @transform_0(%arg0: i32) -> (i32, i32) {
    %c0_i32 = arith.constant 0 : i32
    %c0_i32_0 = arith.constant 0 : i32
    %c0_i32_1 = arith.constant 0 : i32
    return %c0_i32, %c0_i32_0 : i32, i32
  }
  func.func @transform_1(%arg0: i32) -> (i32, i32) {
    %c0_i32 = arith.constant 0 : i32
    %c0_i32_0 = arith.constant 0 : i32
    return %c0_i32, %arg0 : i32, i32
  }
  func.func @transform_2(%arg0: i32) -> (i32, i32) {
    %c0_i32 = arith.constant 0 : i32
    %c0_i32_0 = arith.constant 0 : i32
    %c0_i32_1 = arith.constant 0 : i32
    return %c0_i32, %c0_i32_0 : i32, i32
  }
  func.func @transform_3(%arg0: i32) -> (i32, i32) {
    %c0_i32 = arith.constant 0 : i32
    %c0_i32_0 = arith.constant 0 : i32
    return %c0_i32, %arg0 : i32, i32
  }
}

module attributes {stable_mosaic.version = 11 : i64} {
  func.func @_mm_bias_act_kernel(%arg0: i32, %arg1: memref<24x24xbf16, #tpu.memory_space<vmem>>, %arg2: memref<24x128xbf16, #tpu.memory_space<vmem>>, %arg3: memref<24x1xf32, #tpu.memory_space<vmem>>, %arg4: memref<24x128xbf16, #tpu.memory_space<vmem>>) attributes {dimension_semantics = [#tpu.dimension_semantics<parallel>], iteration_bounds = array<i64: 1>, scalar_prefetch = 0 : i64, scratch_operands = 0 : i64, tpu.core_type = #tpu.core_type<tc>, window_params = [{pipeline_mode = #tpu.pipeline_mode<synchronous>, transform_indices = @transform_0, window_bounds = array<i64: 24, 24>}, {transform_indices = @transform_1, window_bounds = array<i64: 24, 128>}, {pipeline_mode = #tpu.pipeline_mode<synchronous>, transform_indices = @transform_2, window_bounds = array<i64: 24, 1>}, {transform_indices = @transform_3, window_bounds = array<i64: 24, 128>}]} {
    %c0 = arith.constant 0 : index
    %c0_0 = arith.constant 0 : index
    %0 = vector.load %arg1[%c0, %c0_0] : memref<24x24xbf16, #tpu.memory_space<vmem>>, vector<24x24xbf16>
    %c0_1 = arith.constant 0 : index
    %c0_2 = arith.constant 0 : index
    %1 = vector.load %arg2[%c0_1, %c0_2] : memref<24x128xbf16, #tpu.memory_space<vmem>>, vector<24x128xbf16>
    %cst = arith.constant dense<0.000000e+00> : vector<24x128xf32>
    %2 = tpu.matmul %0, %1, %cst {dimension_numbers = #tpu.dot_dimension_numbers<[1], [0], [0], [1], [0, 0, 1, 1], [], []>} : vector<24x24xbf16>, vector<24x128xbf16>, vector<24x128xf32> -> vector<24x128xf32>
    %c0_3 = arith.constant 0 : index
    %c0_4 = arith.constant 0 : index
    %3 = vector.load %arg3[%c0_3, %c0_4] : memref<24x1xf32, #tpu.memory_space<vmem>>, vector<24x1xf32>
    %4 = vector.broadcast %3 : vector<24x1xf32> to vector<24x128xf32>
    %5 = arith.addf %2, %4 : vector<24x128xf32>
    %6 = arith.negf %5 : vector<24x128xf32>
    %7 = math.exp %6 : vector<24x128xf32>
    %cst_5 = arith.constant 1.000000e+00 : f32
    %8 = vector.broadcast %cst_5 : f32 to vector<24x128xf32>
    %9 = arith.addf %8, %7 : vector<24x128xf32>
    %10 = arith.divf %8, %9 : vector<24x128xf32>
    %11 = arith.mulf %5, %10 : vector<24x128xf32>
    %12 = arith.truncf %11 : vector<24x128xf32> to vector<24x128xbf16>
    %c0_6 = arith.constant 0 : index
    %c0_7 = arith.constant 0 : index
    %13 = vector.load %arg4[%c0_6, %c0_7] : memref<24x128xbf16, #tpu.memory_space<vmem>>, vector<24x128xbf16>
    tpu.vector_store %arg4[%c0_6, %c0_7], %12 {strides = array<i32>} : memref<24x128xbf16, #tpu.memory_space<vmem>>, vector<24x128xbf16>,
    return
  }
  func.func @transform_0(%arg0: i32) -> (i32, i32) {
    %c0_i32 = arith.constant 0 : i32
    %c0_i32_0 = arith.constant 0 : i32
    %c0_i32_1 = arith.constant 0 : i32
    return %c0_i32, %c0_i32_0 : i32, i32
  }
  func.func @transform_1(%arg0: i32) -> (i32, i32) {
    %c0_i32 = arith.constant 0 : i32
    %c0_i32_0 = arith.constant 0 : i32
    return %c0_i32, %arg0 : i32, i32
  }
  func.func @transform_2(%arg0: i32) -> (i32, i32) {
    %c0_i32 = arith.constant 0 : i32
    %c0_i32_0 = arith.constant 0 : i32
    %c0_i32_1 = arith.constant 0 : i32
    return %c0_i32, %c0_i32_0 : i32, i32
  }
  func.func @transform_3(%arg0: i32) -> (i32, i32) {
    %c0_i32 = arith.constant 0 : i32
    %c0_i32_0 = arith.constant 0 : i32
    return %c0_i32, %arg0 : i32, i32
  }
}

module attributes {stable_mosaic.version = 11 : i64} {
  func.func @_mm_bias_act_kernel(%arg0: i32, %arg1: memref<24x288xbf16, #tpu.memory_space<vmem>>, %arg2: memref<288x128xbf16, #tpu.memory_space<vmem>>, %arg3: memref<24x1xf32, #tpu.memory_space<vmem>>, %arg4: memref<24x128xbf16, #tpu.memory_space<vmem>>) attributes {dimension_semantics = [#tpu.dimension_semantics<parallel>], iteration_bounds = array<i64: 1>, scalar_prefetch = 0 : i64, scratch_operands = 0 : i64, tpu.core_type = #tpu.core_type<tc>, window_params = [{pipeline_mode = #tpu.pipeline_mode<synchronous>, transform_indices = @transform_0, window_bounds = array<i64: 24, 288>}, {transform_indices = @transform_1, window_bounds = array<i64: 288, 128>}, {pipeline_mode = #tpu.pipeline_mode<synchronous>, transform_indices = @transform_2, window_bounds = array<i64: 24, 1>}, {transform_indices = @transform_3, window_bounds = array<i64: 24, 128>}]} {
    %c0 = arith.constant 0 : index
    %c0_0 = arith.constant 0 : index
    %0 = vector.load %arg1[%c0, %c0_0] : memref<24x288xbf16, #tpu.memory_space<vmem>>, vector<24x288xbf16>
    %c0_1 = arith.constant 0 : index
    %c0_2 = arith.constant 0 : index
    %1 = vector.load %arg2[%c0_1, %c0_2] : memref<288x128xbf16, #tpu.memory_space<vmem>>, vector<288x128xbf16>
    %cst = arith.constant dense<0.000000e+00> : vector<24x128xf32>
    %2 = tpu.matmul %0, %1, %cst {dimension_numbers = #tpu.dot_dimension_numbers<[1], [0], [0], [1], [0, 0, 1, 1], [], []>} : vector<24x288xbf16>, vector<288x128xbf16>, vector<24x128xf32> -> vector<24x128xf32>
    %c0_3 = arith.constant 0 : index
    %c0_4 = arith.constant 0 : index
    %3 = vector.load %arg3[%c0_3, %c0_4] : memref<24x1xf32, #tpu.memory_space<vmem>>, vector<24x1xf32>
    %4 = vector.broadcast %3 : vector<24x1xf32> to vector<24x128xf32>
    %5 = arith.addf %2, %4 : vector<24x128xf32>
    %6 = arith.negf %5 : vector<24x128xf32>
    %7 = math.exp %6 : vector<24x128xf32>
    %cst_5 = arith.constant 1.000000e+00 : f32
    %8 = vector.broadcast %cst_5 : f32 to vector<24x128xf32>
    %9 = arith.addf %8, %7 : vector<24x128xf32>
    %10 = arith.divf %8, %9 : vector<24x128xf32>
    %11 = arith.mulf %5, %10 : vector<24x128xf32>
    %12 = arith.truncf %11 : vector<24x128xf32> to vector<24x128xbf16>
    %c0_6 = arith.constant 0 : index
    %c0_7 = arith.constant 0 : index
    %13 = vector.load %arg4[%c0_6, %c0_7] : memref<24x128xbf16, #tpu.memory_space<vmem>>, vector<24x128xbf16>
    tpu.vector_store %arg4[%c0_6, %c0_7], %12 {strides = array<i32>} : memref<24x128xbf16, #tpu.memory_space<vmem>>, vector<24x128xbf16>,
    return
  }
  func.func @transform_0(%arg0: i32) -> (i32, i32) {
    %c0_i32 = arith.constant 0 : i32
    %c0_i32_0 = arith.constant 0 : i32
    %c0_i32_1 = arith.constant 0 : i32
    return %c0_i32, %c0_i32_0 : i32, i32
  }
  func.func @transform_1(%arg0: i32) -> (i32, i32) {
    %c0_i32 = arith.constant 0 : i32
    %c0_i32_0 = arith.constant 0 : i32
    return %c0_i32, %arg0 : i32, i32
  }
  func.func @transform_2(%arg0: i32) -> (i32, i32) {
    %c0_i32 = arith.constant 0 : i32
    %c0_i32_0 = arith.constant 0 : i32
    %c0_i32_1 = arith.constant 0 : i32
    return %c0_i32, %c0_i32_0 : i32, i32
  }
  func.func @transform_3(%arg0: i32) -> (i32, i32) {
    %c0_i32 = arith.constant 0 : i32
    %c0_i32_0 = arith.constant 0 : i32
    return %c0_i32, %arg0 : i32, i32
  }
}

module attributes {stable_mosaic.version = 11 : i64} {
  func.func @_mm_bias_act_kernel(%arg0: i32, %arg1: memref<48x216xbf16, #tpu.memory_space<vmem>>, %arg2: memref<216x128xbf16, #tpu.memory_space<vmem>>, %arg3: memref<48x1xf32, #tpu.memory_space<vmem>>, %arg4: memref<48x128xbf16, #tpu.memory_space<vmem>>) attributes {dimension_semantics = [#tpu.dimension_semantics<parallel>], iteration_bounds = array<i64: 1>, scalar_prefetch = 0 : i64, scratch_operands = 0 : i64, tpu.core_type = #tpu.core_type<tc>, window_params = [{pipeline_mode = #tpu.pipeline_mode<synchronous>, transform_indices = @transform_0, window_bounds = array<i64: 48, 216>}, {transform_indices = @transform_1, window_bounds = array<i64: 216, 128>}, {pipeline_mode = #tpu.pipeline_mode<synchronous>, transform_indices = @transform_2, window_bounds = array<i64: 48, 1>}, {transform_indices = @transform_3, window_bounds = array<i64: 48, 128>}]} {
    %c0 = arith.constant 0 : index
    %c0_0 = arith.constant 0 : index
    %0 = vector.load %arg1[%c0, %c0_0] : memref<48x216xbf16, #tpu.memory_space<vmem>>, vector<48x216xbf16>
    %c0_1 = arith.constant 0 : index
    %c0_2 = arith.constant 0 : index
    %1 = vector.load %arg2[%c0_1, %c0_2] : memref<216x128xbf16, #tpu.memory_space<vmem>>, vector<216x128xbf16>
    %cst = arith.constant dense<0.000000e+00> : vector<48x128xf32>
    %2 = tpu.matmul %0, %1, %cst {dimension_numbers = #tpu.dot_dimension_numbers<[1], [0], [0], [1], [0, 0, 1, 1], [], []>} : vector<48x216xbf16>, vector<216x128xbf16>, vector<48x128xf32> -> vector<48x128xf32>
    %c0_3 = arith.constant 0 : index
    %c0_4 = arith.constant 0 : index
    %3 = vector.load %arg3[%c0_3, %c0_4] : memref<48x1xf32, #tpu.memory_space<vmem>>, vector<48x1xf32>
    %4 = vector.broadcast %3 : vector<48x1xf32> to vector<48x128xf32>
    %5 = arith.addf %2, %4 : vector<48x128xf32>
    %6 = arith.negf %5 : vector<48x128xf32>
    %7 = math.exp %6 : vector<48x128xf32>
    %cst_5 = arith.constant 1.000000e+00 : f32
    %8 = vector.broadcast %cst_5 : f32 to vector<48x128xf32>
    %9 = arith.addf %8, %7 : vector<48x128xf32>
    %10 = arith.divf %8, %9 : vector<48x128xf32>
    %11 = arith.mulf %5, %10 : vector<48x128xf32>
    %12 = arith.truncf %11 : vector<48x128xf32> to vector<48x128xbf16>
    %c0_6 = arith.constant 0 : index
    %c0_7 = arith.constant 0 : index
    %13 = vector.load %arg4[%c0_6, %c0_7] : memref<48x128xbf16, #tpu.memory_space<vmem>>, vector<48x128xbf16>
    tpu.vector_store %arg4[%c0_6, %c0_7], %12 {strides = array<i32>} : memref<48x128xbf16, #tpu.memory_space<vmem>>, vector<48x128xbf16>,
    return
  }
  func.func @transform_0(%arg0: i32) -> (i32, i32) {
    %c0_i32 = arith.constant 0 : i32
    %c0_i32_0 = arith.constant 0 : i32
    %c0_i32_1 = arith.constant 0 : i32
    return %c0_i32, %c0_i32_0 : i32, i32
  }
  func.func @transform_1(%arg0: i32) -> (i32, i32) {
    %c0_i32 = arith.constant 0 : i32
    %c0_i32_0 = arith.constant 0 : i32
    return %c0_i32, %arg0 : i32, i32
  }
  func.func @transform_2(%arg0: i32) -> (i32, i32) {
    %c0_i32 = arith.constant 0 : i32
    %c0_i32_0 = arith.constant 0 : i32
    %c0_i32_1 = arith.constant 0 : i32
    return %c0_i32, %c0_i32_0 : i32, i32
  }
  func.func @transform_3(%arg0: i32) -> (i32, i32) {
    %c0_i32 = arith.constant 0 : i32
    %c0_i32_0 = arith.constant 0 : i32
    return %c0_i32, %arg0 : i32, i32
  }
}

module attributes {stable_mosaic.version = 11 : i64} {
  func.func @_mm_bias_act_kernel(%arg0: i32, %arg1: memref<8x48xbf16, #tpu.memory_space<vmem>>, %arg2: memref<48x128xbf16, #tpu.memory_space<vmem>>, %arg3: memref<8x1xf32, #tpu.memory_space<vmem>>, %arg4: memref<8x128xbf16, #tpu.memory_space<vmem>>) attributes {dimension_semantics = [#tpu.dimension_semantics<parallel>], iteration_bounds = array<i64: 1>, scalar_prefetch = 0 : i64, scratch_operands = 0 : i64, tpu.core_type = #tpu.core_type<tc>, window_params = [{pipeline_mode = #tpu.pipeline_mode<synchronous>, transform_indices = @transform_0, window_bounds = array<i64: 8, 48>}, {transform_indices = @transform_1, window_bounds = array<i64: 48, 128>}, {pipeline_mode = #tpu.pipeline_mode<synchronous>, transform_indices = @transform_2, window_bounds = array<i64: 8, 1>}, {transform_indices = @transform_3, window_bounds = array<i64: 8, 128>}]} {
    %c0 = arith.constant 0 : index
    %c0_0 = arith.constant 0 : index
    %0 = vector.load %arg1[%c0, %c0_0] : memref<8x48xbf16, #tpu.memory_space<vmem>>, vector<8x48xbf16>
    %c0_1 = arith.constant 0 : index
    %c0_2 = arith.constant 0 : index
    %1 = vector.load %arg2[%c0_1, %c0_2] : memref<48x128xbf16, #tpu.memory_space<vmem>>, vector<48x128xbf16>
    %cst = arith.constant dense<0.000000e+00> : vector<8x128xf32>
    %2 = tpu.matmul %0, %1, %cst {dimension_numbers = #tpu.dot_dimension_numbers<[1], [0], [0], [1], [0, 0, 1, 1], [], []>} : vector<8x48xbf16>, vector<48x128xbf16>, vector<8x128xf32> -> vector<8x128xf32>
    %c0_3 = arith.constant 0 : index
    %c0_4 = arith.constant 0 : index
    %3 = vector.load %arg3[%c0_3, %c0_4] : memref<8x1xf32, #tpu.memory_space<vmem>>, vector<8x1xf32>
    %4 = vector.broadcast %3 : vector<8x1xf32> to vector<8x128xf32>
    %5 = arith.addf %2, %4 : vector<8x128xf32>
    %6 = tpu.iota {dimensions = array<i32: 0>} : vector<8x128xi32>
    %c4_i32 = arith.constant 4 : i32
    %7 = vector.broadcast %c4_i32 : i32 to vector<8x128xi32>
    %8 = arith.cmpi slt, %6, %7 : vector<8x128xi32>
    %9 = arith.negf %5 : vector<8x128xf32>
    %10 = math.exp %9 : vector<8x128xf32>
    %cst_5 = arith.constant 1.000000e+00 : f32
    %11 = vector.broadcast %cst_5 : f32 to vector<8x128xf32>
    %12 = arith.addf %11, %10 : vector<8x128xf32>
    %13 = arith.divf %11, %12 : vector<8x128xf32>
    %14 = arith.select %8, %13, %5 : vector<8x128xi1>, vector<8x128xf32>
    %15 = arith.truncf %14 : vector<8x128xf32> to vector<8x128xbf16>
    %c0_6 = arith.constant 0 : index
    %c0_7 = arith.constant 0 : index
    %16 = vector.load %arg4[%c0_6, %c0_7] : memref<8x128xbf16, #tpu.memory_space<vmem>>, vector<8x128xbf16>
    tpu.vector_store %arg4[%c0_6, %c0_7], %15 {strides = array<i32>} : memref<8x128xbf16, #tpu.memory_space<vmem>>, vector<8x128xbf16>,
    return
  }
  func.func @transform_0(%arg0: i32) -> (i32, i32) {
    %c0_i32 = arith.constant 0 : i32
    %c0_i32_0 = arith.constant 0 : i32
    %c0_i32_1 = arith.constant 0 : i32
    return %c0_i32, %c0_i32_0 : i32, i32
  }
  func.func @transform_1(%arg0: i32) -> (i32, i32) {
    %c0_i32 = arith.constant 0 : i32
    %c0_i32_0 = arith.constant 0 : i32
    return %c0_i32, %arg0 : i32, i32
  }
  func.func @transform_2(%arg0: i32) -> (i32, i32) {
    %c0_i32 = arith.constant 0 : i32
    %c0_i32_0 = arith.constant 0 : i32
    %c0_i32_1 = arith.constant 0 : i32
    return %c0_i32, %c0_i32_0 : i32, i32
  }
  func.func @transform_3(%arg0: i32) -> (i32, i32) {
    %c0_i32 = arith.constant 0 : i32
    %c0_i32_0 = arith.constant 0 : i32
    return %c0_i32, %arg0 : i32, i32
  }
}

module attributes {stable_mosaic.version = 11 : i64} {
  func.func @_mm_bias_act_kernel(%arg0: i32, %arg1: memref<24x216xbf16, #tpu.memory_space<vmem>>, %arg2: memref<216x128xbf16, #tpu.memory_space<vmem>>, %arg3: memref<24x1xf32, #tpu.memory_space<vmem>>, %arg4: memref<24x128xbf16, #tpu.memory_space<vmem>>) attributes {dimension_semantics = [#tpu.dimension_semantics<parallel>], iteration_bounds = array<i64: 1>, scalar_prefetch = 0 : i64, scratch_operands = 0 : i64, tpu.core_type = #tpu.core_type<tc>, window_params = [{pipeline_mode = #tpu.pipeline_mode<synchronous>, transform_indices = @transform_0, window_bounds = array<i64: 24, 216>}, {transform_indices = @transform_1, window_bounds = array<i64: 216, 128>}, {pipeline_mode = #tpu.pipeline_mode<synchronous>, transform_indices = @transform_2, window_bounds = array<i64: 24, 1>}, {transform_indices = @transform_3, window_bounds = array<i64: 24, 128>}]} {
    %c0 = arith.constant 0 : index
    %c0_0 = arith.constant 0 : index
    %0 = vector.load %arg1[%c0, %c0_0] : memref<24x216xbf16, #tpu.memory_space<vmem>>, vector<24x216xbf16>
    %c0_1 = arith.constant 0 : index
    %c0_2 = arith.constant 0 : index
    %1 = vector.load %arg2[%c0_1, %c0_2] : memref<216x128xbf16, #tpu.memory_space<vmem>>, vector<216x128xbf16>
    %cst = arith.constant dense<0.000000e+00> : vector<24x128xf32>
    %2 = tpu.matmul %0, %1, %cst {dimension_numbers = #tpu.dot_dimension_numbers<[1], [0], [0], [1], [0, 0, 1, 1], [], []>} : vector<24x216xbf16>, vector<216x128xbf16>, vector<24x128xf32> -> vector<24x128xf32>
    %c0_3 = arith.constant 0 : index
    %c0_4 = arith.constant 0 : index
    %3 = vector.load %arg3[%c0_3, %c0_4] : memref<24x1xf32, #tpu.memory_space<vmem>>, vector<24x1xf32>
    %4 = vector.broadcast %3 : vector<24x1xf32> to vector<24x128xf32>
    %5 = arith.addf %2, %4 : vector<24x128xf32>
    %6 = arith.negf %5 : vector<24x128xf32>
    %7 = math.exp %6 : vector<24x128xf32>
    %cst_5 = arith.constant 1.000000e+00 : f32
    %8 = vector.broadcast %cst_5 : f32 to vector<24x128xf32>
    %9 = arith.addf %8, %7 : vector<24x128xf32>
    %10 = arith.divf %8, %9 : vector<24x128xf32>
    %11 = arith.mulf %5, %10 : vector<24x128xf32>
    %12 = arith.truncf %11 : vector<24x128xf32> to vector<24x128xbf16>
    %c0_6 = arith.constant 0 : index
    %c0_7 = arith.constant 0 : index
    %13 = vector.load %arg4[%c0_6, %c0_7] : memref<24x128xbf16, #tpu.memory_space<vmem>>, vector<24x128xbf16>
    tpu.vector_store %arg4[%c0_6, %c0_7], %12 {strides = array<i32>} : memref<24x128xbf16, #tpu.memory_space<vmem>>, vector<24x128xbf16>,
    return
  }
  func.func @transform_0(%arg0: i32) -> (i32, i32) {
    %c0_i32 = arith.constant 0 : i32
    %c0_i32_0 = arith.constant 0 : i32
    %c0_i32_1 = arith.constant 0 : i32
    return %c0_i32, %c0_i32_0 : i32, i32
  }
  func.func @transform_1(%arg0: i32) -> (i32, i32) {
    %c0_i32 = arith.constant 0 : i32
    %c0_i32_0 = arith.constant 0 : i32
    return %c0_i32, %arg0 : i32, i32
  }
  func.func @transform_2(%arg0: i32) -> (i32, i32) {
    %c0_i32 = arith.constant 0 : i32
    %c0_i32_0 = arith.constant 0 : i32
    %c0_i32_1 = arith.constant 0 : i32
    return %c0_i32, %c0_i32_0 : i32, i32
  }
  func.func @transform_3(%arg0: i32) -> (i32, i32) {
    %c0_i32 = arith.constant 0 : i32
    %c0_i32_0 = arith.constant 0 : i32
    return %c0_i32, %arg0 : i32, i32
  }
}

module attributes {stable_mosaic.version = 11 : i64} {
  func.func @_mm_bias_act_kernel(%arg0: i32, %arg1: memref<32x432xbf16, #tpu.memory_space<vmem>>, %arg2: memref<432x128xbf16, #tpu.memory_space<vmem>>, %arg3: memref<32x1xf32, #tpu.memory_space<vmem>>, %arg4: memref<32x128xbf16, #tpu.memory_space<vmem>>) attributes {dimension_semantics = [#tpu.dimension_semantics<parallel>], iteration_bounds = array<i64: 1>, scalar_prefetch = 0 : i64, scratch_operands = 0 : i64, tpu.core_type = #tpu.core_type<tc>, window_params = [{pipeline_mode = #tpu.pipeline_mode<synchronous>, transform_indices = @transform_0, window_bounds = array<i64: 32, 432>}, {transform_indices = @transform_1, window_bounds = array<i64: 432, 128>}, {pipeline_mode = #tpu.pipeline_mode<synchronous>, transform_indices = @transform_2, window_bounds = array<i64: 32, 1>}, {transform_indices = @transform_3, window_bounds = array<i64: 32, 128>}]} {
    %c0 = arith.constant 0 : index
    %c0_0 = arith.constant 0 : index
    %0 = vector.load %arg1[%c0, %c0_0] : memref<32x432xbf16, #tpu.memory_space<vmem>>, vector<32x432xbf16>
    %c0_1 = arith.constant 0 : index
    %c0_2 = arith.constant 0 : index
    %1 = vector.load %arg2[%c0_1, %c0_2] : memref<432x128xbf16, #tpu.memory_space<vmem>>, vector<432x128xbf16>
    %cst = arith.constant dense<0.000000e+00> : vector<32x128xf32>
    %2 = tpu.matmul %0, %1, %cst {dimension_numbers = #tpu.dot_dimension_numbers<[1], [0], [0], [1], [0, 0, 1, 1], [], []>} : vector<32x432xbf16>, vector<432x128xbf16>, vector<32x128xf32> -> vector<32x128xf32>
    %c0_3 = arith.constant 0 : index
    %c0_4 = arith.constant 0 : index
    %3 = vector.load %arg3[%c0_3, %c0_4] : memref<32x1xf32, #tpu.memory_space<vmem>>, vector<32x1xf32>
    %4 = vector.broadcast %3 : vector<32x1xf32> to vector<32x128xf32>
    %5 = arith.addf %2, %4 : vector<32x128xf32>
    %6 = arith.negf %5 : vector<32x128xf32>
    %7 = math.exp %6 : vector<32x128xf32>
    %cst_5 = arith.constant 1.000000e+00 : f32
    %8 = vector.broadcast %cst_5 : f32 to vector<32x128xf32>
    %9 = arith.addf %8, %7 : vector<32x128xf32>
    %10 = arith.divf %8, %9 : vector<32x128xf32>
    %11 = arith.mulf %5, %10 : vector<32x128xf32>
    %12 = arith.truncf %11 : vector<32x128xf32> to vector<32x128xbf16>
    %c0_6 = arith.constant 0 : index
    %c0_7 = arith.constant 0 : index
    %13 = vector.load %arg4[%c0_6, %c0_7] : memref<32x128xbf16, #tpu.memory_space<vmem>>, vector<32x128xbf16>
    tpu.vector_store %arg4[%c0_6, %c0_7], %12 {strides = array<i32>} : memref<32x128xbf16, #tpu.memory_space<vmem>>, vector<32x128xbf16>,
    return
  }
  func.func @transform_0(%arg0: i32) -> (i32, i32) {
    %c0_i32 = arith.constant 0 : i32
    %c0_i32_0 = arith.constant 0 : i32
    %c0_i32_1 = arith.constant 0 : i32
    return %c0_i32, %c0_i32_0 : i32, i32
  }
  func.func @transform_1(%arg0: i32) -> (i32, i32) {
    %c0_i32 = arith.constant 0 : i32
    %c0_i32_0 = arith.constant 0 : i32
    return %c0_i32, %arg0 : i32, i32
  }
  func.func @transform_2(%arg0: i32) -> (i32, i32) {
    %c0_i32 = arith.constant 0 : i32
    %c0_i32_0 = arith.constant 0 : i32
    %c0_i32_1 = arith.constant 0 : i32
    return %c0_i32, %c0_i32_0 : i32, i32
  }
  func.func @transform_3(%arg0: i32) -> (i32, i32) {
    %c0_i32 = arith.constant 0 : i32
    %c0_i32_0 = arith.constant 0 : i32
    return %c0_i32, %arg0 : i32, i32
  }
}

module attributes {stable_mosaic.version = 11 : i64} {
  func.func @_mm_bias_act_kernel(%arg0: i32, %arg1: memref<32x32xbf16, #tpu.memory_space<vmem>>, %arg2: memref<32x128xbf16, #tpu.memory_space<vmem>>, %arg3: memref<32x1xf32, #tpu.memory_space<vmem>>, %arg4: memref<32x128xbf16, #tpu.memory_space<vmem>>) attributes {dimension_semantics = [#tpu.dimension_semantics<parallel>], iteration_bounds = array<i64: 1>, scalar_prefetch = 0 : i64, scratch_operands = 0 : i64, tpu.core_type = #tpu.core_type<tc>, window_params = [{pipeline_mode = #tpu.pipeline_mode<synchronous>, transform_indices = @transform_0, window_bounds = array<i64: 32, 32>}, {transform_indices = @transform_1, window_bounds = array<i64: 32, 128>}, {pipeline_mode = #tpu.pipeline_mode<synchronous>, transform_indices = @transform_2, window_bounds = array<i64: 32, 1>}, {transform_indices = @transform_3, window_bounds = array<i64: 32, 128>}]} {
    %c0 = arith.constant 0 : index
    %c0_0 = arith.constant 0 : index
    %0 = vector.load %arg1[%c0, %c0_0] : memref<32x32xbf16, #tpu.memory_space<vmem>>, vector<32x32xbf16>
    %c0_1 = arith.constant 0 : index
    %c0_2 = arith.constant 0 : index
    %1 = vector.load %arg2[%c0_1, %c0_2] : memref<32x128xbf16, #tpu.memory_space<vmem>>, vector<32x128xbf16>
    %cst = arith.constant dense<0.000000e+00> : vector<32x128xf32>
    %2 = tpu.matmul %0, %1, %cst {dimension_numbers = #tpu.dot_dimension_numbers<[1], [0], [0], [1], [0, 0, 1, 1], [], []>} : vector<32x32xbf16>, vector<32x128xbf16>, vector<32x128xf32> -> vector<32x128xf32>
    %c0_3 = arith.constant 0 : index
    %c0_4 = arith.constant 0 : index
    %3 = vector.load %arg3[%c0_3, %c0_4] : memref<32x1xf32, #tpu.memory_space<vmem>>, vector<32x1xf32>
    %4 = vector.broadcast %3 : vector<32x1xf32> to vector<32x128xf32>
    %5 = arith.addf %2, %4 : vector<32x128xf32>
    %6 = arith.negf %5 : vector<32x128xf32>
    %7 = math.exp %6 : vector<32x128xf32>
    %cst_5 = arith.constant 1.000000e+00 : f32
    %8 = vector.broadcast %cst_5 : f32 to vector<32x128xf32>
    %9 = arith.addf %8, %7 : vector<32x128xf32>
    %10 = arith.divf %8, %9 : vector<32x128xf32>
    %11 = arith.mulf %5, %10 : vector<32x128xf32>
    %12 = arith.truncf %11 : vector<32x128xf32> to vector<32x128xbf16>
    %c0_6 = arith.constant 0 : index
    %c0_7 = arith.constant 0 : index
    %13 = vector.load %arg4[%c0_6, %c0_7] : memref<32x128xbf16, #tpu.memory_space<vmem>>, vector<32x128xbf16>
    tpu.vector_store %arg4[%c0_6, %c0_7], %12 {strides = array<i32>} : memref<32x128xbf16, #tpu.memory_space<vmem>>, vector<32x128xbf16>,
    return
  }
  func.func @transform_0(%arg0: i32) -> (i32, i32) {
    %c0_i32 = arith.constant 0 : i32
    %c0_i32_0 = arith.constant 0 : i32
    %c0_i32_1 = arith.constant 0 : i32
    return %c0_i32, %c0_i32_0 : i32, i32
  }
  func.func @transform_1(%arg0: i32) -> (i32, i32) {
    %c0_i32 = arith.constant 0 : i32
    %c0_i32_0 = arith.constant 0 : i32
    return %c0_i32, %arg0 : i32, i32
  }
  func.func @transform_2(%arg0: i32) -> (i32, i32) {
    %c0_i32 = arith.constant 0 : i32
    %c0_i32_0 = arith.constant 0 : i32
    %c0_i32_1 = arith.constant 0 : i32
    return %c0_i32, %c0_i32_0 : i32, i32
  }
  func.func @transform_3(%arg0: i32) -> (i32, i32) {
    %c0_i32 = arith.constant 0 : i32
    %c0_i32_0 = arith.constant 0 : i32
    return %c0_i32, %arg0 : i32, i32
  }
}

module attributes {stable_mosaic.version = 11 : i64} {
  func.func @_mm_bias_act_kernel(%arg0: i32, %arg1: memref<64x288xbf16, #tpu.memory_space<vmem>>, %arg2: memref<288x128xbf16, #tpu.memory_space<vmem>>, %arg3: memref<64x1xf32, #tpu.memory_space<vmem>>, %arg4: memref<64x128xbf16, #tpu.memory_space<vmem>>) attributes {dimension_semantics = [#tpu.dimension_semantics<parallel>], iteration_bounds = array<i64: 1>, scalar_prefetch = 0 : i64, scratch_operands = 0 : i64, tpu.core_type = #tpu.core_type<tc>, window_params = [{pipeline_mode = #tpu.pipeline_mode<synchronous>, transform_indices = @transform_0, window_bounds = array<i64: 64, 288>}, {transform_indices = @transform_1, window_bounds = array<i64: 288, 128>}, {pipeline_mode = #tpu.pipeline_mode<synchronous>, transform_indices = @transform_2, window_bounds = array<i64: 64, 1>}, {transform_indices = @transform_3, window_bounds = array<i64: 64, 128>}]} {
    %c0 = arith.constant 0 : index
    %c0_0 = arith.constant 0 : index
    %0 = vector.load %arg1[%c0, %c0_0] : memref<64x288xbf16, #tpu.memory_space<vmem>>, vector<64x288xbf16>
    %c0_1 = arith.constant 0 : index
    %c0_2 = arith.constant 0 : index
    %1 = vector.load %arg2[%c0_1, %c0_2] : memref<288x128xbf16, #tpu.memory_space<vmem>>, vector<288x128xbf16>
    %cst = arith.constant dense<0.000000e+00> : vector<64x128xf32>
    %2 = tpu.matmul %0, %1, %cst {dimension_numbers = #tpu.dot_dimension_numbers<[1], [0], [0], [1], [0, 0, 1, 1], [], []>} : vector<64x288xbf16>, vector<288x128xbf16>, vector<64x128xf32> -> vector<64x128xf32>
    %c0_3 = arith.constant 0 : index
    %c0_4 = arith.constant 0 : index
    %3 = vector.load %arg3[%c0_3, %c0_4] : memref<64x1xf32, #tpu.memory_space<vmem>>, vector<64x1xf32>
    %4 = vector.broadcast %3 : vector<64x1xf32> to vector<64x128xf32>
    %5 = arith.addf %2, %4 : vector<64x128xf32>
    %6 = arith.negf %5 : vector<64x128xf32>
    %7 = math.exp %6 : vector<64x128xf32>
    %cst_5 = arith.constant 1.000000e+00 : f32
    %8 = vector.broadcast %cst_5 : f32 to vector<64x128xf32>
    %9 = arith.addf %8, %7 : vector<64x128xf32>
    %10 = arith.divf %8, %9 : vector<64x128xf32>
    %11 = arith.mulf %5, %10 : vector<64x128xf32>
    %12 = arith.truncf %11 : vector<64x128xf32> to vector<64x128xbf16>
    %c0_6 = arith.constant 0 : index
    %c0_7 = arith.constant 0 : index
    %13 = vector.load %arg4[%c0_6, %c0_7] : memref<64x128xbf16, #tpu.memory_space<vmem>>, vector<64x128xbf16>
    tpu.vector_store %arg4[%c0_6, %c0_7], %12 {strides = array<i32>} : memref<64x128xbf16, #tpu.memory_space<vmem>>, vector<64x128xbf16>,
    return
  }
  func.func @transform_0(%arg0: i32) -> (i32, i32) {
    %c0_i32 = arith.constant 0 : i32
    %c0_i32_0 = arith.constant 0 : i32
    %c0_i32_1 = arith.constant 0 : i32
    return %c0_i32, %c0_i32_0 : i32, i32
  }
  func.func @transform_1(%arg0: i32) -> (i32, i32) {
    %c0_i32 = arith.constant 0 : i32
    %c0_i32_0 = arith.constant 0 : i32
    return %c0_i32, %arg0 : i32, i32
  }
  func.func @transform_2(%arg0: i32) -> (i32, i32) {
    %c0_i32 = arith.constant 0 : i32
    %c0_i32_0 = arith.constant 0 : i32
    %c0_i32_1 = arith.constant 0 : i32
    return %c0_i32, %c0_i32_0 : i32, i32
  }
  func.func @transform_3(%arg0: i32) -> (i32, i32) {
    %c0_i32 = arith.constant 0 : i32
    %c0_i32_0 = arith.constant 0 : i32
    return %c0_i32, %arg0 : i32, i32
  }
}

module attributes {stable_mosaic.version = 11 : i64} {
  func.func @_mm_bias_act_kernel(%arg0: i32, %arg1: memref<8x64xbf16, #tpu.memory_space<vmem>>, %arg2: memref<64x128xbf16, #tpu.memory_space<vmem>>, %arg3: memref<8x1xf32, #tpu.memory_space<vmem>>, %arg4: memref<8x128xbf16, #tpu.memory_space<vmem>>) attributes {dimension_semantics = [#tpu.dimension_semantics<parallel>], iteration_bounds = array<i64: 1>, scalar_prefetch = 0 : i64, scratch_operands = 0 : i64, tpu.core_type = #tpu.core_type<tc>, window_params = [{pipeline_mode = #tpu.pipeline_mode<synchronous>, transform_indices = @transform_0, window_bounds = array<i64: 8, 64>}, {transform_indices = @transform_1, window_bounds = array<i64: 64, 128>}, {pipeline_mode = #tpu.pipeline_mode<synchronous>, transform_indices = @transform_2, window_bounds = array<i64: 8, 1>}, {transform_indices = @transform_3, window_bounds = array<i64: 8, 128>}]} {
    %c0 = arith.constant 0 : index
    %c0_0 = arith.constant 0 : index
    %0 = vector.load %arg1[%c0, %c0_0] : memref<8x64xbf16, #tpu.memory_space<vmem>>, vector<8x64xbf16>
    %c0_1 = arith.constant 0 : index
    %c0_2 = arith.constant 0 : index
    %1 = vector.load %arg2[%c0_1, %c0_2] : memref<64x128xbf16, #tpu.memory_space<vmem>>, vector<64x128xbf16>
    %cst = arith.constant dense<0.000000e+00> : vector<8x128xf32>
    %2 = tpu.matmul %0, %1, %cst {dimension_numbers = #tpu.dot_dimension_numbers<[1], [0], [0], [1], [0, 0, 1, 1], [], []>} : vector<8x64xbf16>, vector<64x128xbf16>, vector<8x128xf32> -> vector<8x128xf32>
    %c0_3 = arith.constant 0 : index
    %c0_4 = arith.constant 0 : index
    %3 = vector.load %arg3[%c0_3, %c0_4] : memref<8x1xf32, #tpu.memory_space<vmem>>, vector<8x1xf32>
    %4 = vector.broadcast %3 : vector<8x1xf32> to vector<8x128xf32>
    %5 = arith.addf %2, %4 : vector<8x128xf32>
    %6 = tpu.iota {dimensions = array<i32: 0>} : vector<8x128xi32>
    %c4_i32 = arith.constant 4 : i32
    %7 = vector.broadcast %c4_i32 : i32 to vector<8x128xi32>
    %8 = arith.cmpi slt, %6, %7 : vector<8x128xi32>
    %9 = arith.negf %5 : vector<8x128xf32>
    %10 = math.exp %9 : vector<8x128xf32>
    %cst_5 = arith.constant 1.000000e+00 : f32
    %11 = vector.broadcast %cst_5 : f32 to vector<8x128xf32>
    %12 = arith.addf %11, %10 : vector<8x128xf32>
    %13 = arith.divf %11, %12 : vector<8x128xf32>
    %14 = arith.select %8, %13, %5 : vector<8x128xi1>, vector<8x128xf32>
    %15 = arith.truncf %14 : vector<8x128xf32> to vector<8x128xbf16>
    %c0_6 = arith.constant 0 : index
    %c0_7 = arith.constant 0 : index
    %16 = vector.load %arg4[%c0_6, %c0_7] : memref<8x128xbf16, #tpu.memory_space<vmem>>, vector<8x128xbf16>
    tpu.vector_store %arg4[%c0_6, %c0_7], %15 {strides = array<i32>} : memref<8x128xbf16, #tpu.memory_space<vmem>>, vector<8x128xbf16>,
    return
  }
  func.func @transform_0(%arg0: i32) -> (i32, i32) {
    %c0_i32 = arith.constant 0 : i32
    %c0_i32_0 = arith.constant 0 : i32
    %c0_i32_1 = arith.constant 0 : i32
    return %c0_i32, %c0_i32_0 : i32, i32
  }
  func.func @transform_1(%arg0: i32) -> (i32, i32) {
    %c0_i32 = arith.constant 0 : i32
    %c0_i32_0 = arith.constant 0 : i32
    return %c0_i32, %arg0 : i32, i32
  }
  func.func @transform_2(%arg0: i32) -> (i32, i32) {
    %c0_i32 = arith.constant 0 : i32
    %c0_i32_0 = arith.constant 0 : i32
    %c0_i32_1 = arith.constant 0 : i32
    return %c0_i32, %c0_i32_0 : i32, i32
  }
  func.func @transform_3(%arg0: i32) -> (i32, i32) {
    %c0_i32 = arith.constant 0 : i32
    %c0_i32_0 = arith.constant 0 : i32
    return %c0_i32, %arg0 : i32, i32
  }
}

</mosaic_0001>

<llo_original>
// kernel: model_forward.31
$region0: #{model_forward.31}
  #allocation0 [shape = 'u32[]', space=smem, size = 0x4, offset = 0x4, fixed_abs, tag = 'smem constant byte address 0x4 - core index']
  #allocation1 [shape = 'u32[144,128]{1,0:T(1,128)}', space=vmem, size = 0x12000, scoped, tag = 'internal scratch']
  %s0 = inlined_call_operand.vmem [shape: bf16[8,27], index: 0, kind: input, shape index: {}]
  %s1 = inlined_call_operand.vmem [shape: bf16[27,2048], index: 1, kind: input, shape index: {}]
  %s2 = inlined_call_operand.vmem [shape: f32[8,1], index: 2, kind: input, shape index: {}]
  %s3 = inlined_call_operand.vmem [shape: bf16[8,2048], index: 3, kind: output, shape index: {}]
  %s4 = sld [smem:[#allocation0]]
  $region68: #{model_forward.31} parent=0
    _
  %s6 = ssub.s32 1, %s4
  %s7 = scalar_select 0, %s6, %s4
  $region1: #{model_forward.31} parent=0
    #allocation2 [shape = 'u8[65536]{0}', space=vmem, size = 0x10000, scoped, tag = 'input window, operand 1']
    loop: start=0, step=1, limit=6
    $region2: #{model_forward.31} parent=1 // loop_pre_header
      _
    $region3: #{model_forward.31} parent=1 // loop_header
      %s9 = sphi 0, %s13
      %p10 = scmp.ge.s32.totalorder %s9, 6
      %s17 = sphi 0, %s17
      %s19 = sphi 0, %s17
      %s20 = sphi 0, %s19
      %s34 = sphi 0, %s20
      %s40 = sphi 0, %s42
      %s43 = sphi 0, %s40
      %s44 = sphi 0, %s43
      %s60 = sphi 0, %s44
      %s64 = sphi 0, %s64
      %s66 = sphi 0, %s64
      %s67 = sphi 0, %s66
      %s81 = sphi 0, %s67
      %s87 = sphi 0, %s89
      %s90 = sphi 0, %s87
      %s91 = sphi 0, %s90
      %s107 = sphi 0, %s91
    $region4: #{model_forward.31} parent=1 // loop_header_branch
      %12 = sbr.rel (%p10) target = $region8
    $region5: #{model_forward.31} parent=1 // loop_body
      %s14 = ssub.s32 %s9, 1
      %s15 = ssub.s32 %s9, 2
      %s16 = sadd.s32 %s9, 1
      %s18 = sadd.s32 %s17, 1
      %p21 = scmp.eq.s32.totalorder %s9, 3
      %p22 = scmp.ne.s32.totalorder %s17, %s19
      %p23 = scmp.eq.s32.totalorder %s9, 0
      %p24 = por %p22, %p23
      %p25 = scmp.ne.s32.totalorder %s17, %s19
      %p26 = scmp.eq.s32.totalorder %s14, 3
      %p27 = por %p25, %p26
      %p28 = scmp.ne.s32.totalorder %s19, %s20
      %p29 = scmp.eq.s32.totalorder %s14, 0
      %p30 = por %p28, %p29
      %p31 = scmp.ne.s32.totalorder %s19, %s20
      %p32 = scmp.eq.s32.totalorder %s15, 3
      %p33 = por %p31, %p32
      %p35 = scmp.ne.s32.totalorder %s20, %s34
      %p36 = scmp.eq.s32.totalorder %s15, 0
      %p37 = por %p35, %p36
      %s38 = ssub.s32 %s9, %s16
      %p39 = scmp.eq.s32.totalorder %s38, 0
      %s41 = sadd.s32 %s40, 1
      %s42 = scalar_select %p39, %s40, %s41
      %p45 = pneg %p39
      %p46 = scmp.eq.s32.totalorder %s9, 3
      %p47 = por %p45, %p46
      %p48 = scmp.ne.s32.totalorder %s40, %s43
      %p49 = scmp.eq.s32.totalorder %s9, 0
      %p50 = por %p48, %p49
      %p51 = scmp.ne.s32.totalorder %s40, %s43
      %p52 = scmp.eq.s32.totalorder %s14, 3
      %p53 = por %p51, %p52
      %p54 = scmp.ne.s32.totalorder %s43, %s44
      %p55 = scmp.eq.s32.totalorder %s14, 0
      %p56 = por %p54, %p55
      %p57 = scmp.ne.s32.totalorder %s43, %s44
      %p58 = scmp.eq.s32.totalorder %s15, 3
      %p59 = por %p57, %p58
      %p61 = scmp.ne.s32.totalorder %s44, %s60
      %p62 = scmp.eq.s32.totalorder %s15, 0
      %p63 = por %p61, %p62
      %s65 = sadd.s32 %s64, 1
      %p68 = scmp.eq.s32.totalorder %s9, 3
      %p69 = scmp.ne.s32.totalorder %s64, %s66
      %p70 = scmp.eq.s32.totalorder %s9, 0
      %p71 = por %p69, %p70
      %p72 = scmp.ne.s32.totalorder %s64, %s66
      %p73 = scmp.eq.s32.totalorder %s14, 3
      %p74 = por %p72, %p73
      %p75 = scmp.ne.s32.totalorder %s66, %s67
      %p76 = scmp.eq.s32.totalorder %s14, 0
      %p77 = por %p75, %p76
      %p78 = scmp.ne.s32.totalorder %s66, %s67
      %p79 = scmp.eq.s32.totalorder %s15, 3
      %p80 = por %p78, %p79
      %p82 = scmp.ne.s32.totalorder %s67, %s81
      %p83 = scmp.eq.s32.totalorder %s15, 0
      %p84 = por %p82, %p83
      %s85 = ssub.s32 %s9, %s16
      %p86 = scmp.eq.s32.totalorder %s85, 0
      %s88 = sadd.s32 %s87, 1
      %s89 = scalar_select %p86, %s87, %s88
      %p92 = pneg %p86
      %p93 = scmp.eq.s32.totalorder %s9, 3
      %p94 = por %p92, %p93
      %p95 = scmp.ne.s32.totalorder %s87, %s90
      %p96 = scmp.eq.s32.totalorder %s9, 0
      %p97 = por %p95, %p96
      %p98 = scmp.ne.s32.totalorder %s87, %s90
      %p99 = scmp.eq.s32.totalorder %s14, 3
      %p100 = por %p98, %p99
      %p101 = scmp.ne.s32.totalorder %s90, %s91
      %p102 = scmp.eq.s32.totalorder %s14, 0
      %p103 = por %p101, %p102
      %p104 = scmp.ne.s32.totalorder %s90, %s91
      %p105 = scmp.eq.s32.totalorder %s15, 3
      %p106 = por %p104, %p105
      %p108 = scmp.ne.s32.totalorder %s91, %s107
      %p109 = scmp.eq.s32.totalorder %s15, 0
      %p110 = por %p108, %p109
      %p111 = scmp.le.s32.totalorder 1, %s9
      %p112 = scmp.lt.s32.totalorder %s9, 5
      %p113 = pnand %p111, %p112
      %p114 = pneg %p113
      // Predicated region
      $region9: #{model_forward.31} parent=5 // pred_check
        _
      $region10: #{model_forward.31} parent=5 // pred_check_branch
        %116 = sbr.rel (%p113) target = $region12
      $region11: #{model_forward.31} parent=5 // pred_region
        %s117 = ssub.s32 %s9, 1
        // Predicated region
        $region13: #{model_forward.31} parent=11 // pred_check
          %p118 = pneg %p30
        $region14: #{model_forward.31} parent=11 // pred_check_branch
          %120 = sbr.rel (%p118) target = $region16
        $region15: #{model_forward.31} parent=11 // pred_region
          _
        $region16: #{model_forward.31} parent=11 // pred_fallthru
          _
        // Predicated region
        $region17: #{model_forward.31} parent=11 // pred_check
          %p121 = pneg %p77
        $region18: #{model_forward.31} parent=11 // pred_check_branch
          %123 = sbr.rel (%p121) target = $region20
        $region19: #{model_forward.31} parent=11 // pred_region
          _
        $region20: #{model_forward.31} parent=11 // pred_fallthru
          _
      $region12: #{model_forward.31} parent=5 // pred_fallthru
        _
      %p124 = scmp.lt.s32.totalorder %s9, 4
      // Predicated region
      $region21: #{model_forward.31} parent=5 // pred_check
        %p125 = pneg %p124
      $region22: #{model_forward.31} parent=5 // pred_check_branch
        %127 = sbr.rel (%p125) target = $region24
      $region23: #{model_forward.31} parent=5 // pred_region
        // Predicated region
        $region25: #{model_forward.31} parent=23 // pred_check
          %p128 = pneg %p50
        $region26: #{model_forward.31} parent=23 // pred_check_branch
          %130 = sbr.rel (%p128) target = $region28
        $region27: #{model_forward.31} parent=23 // pred_region
          %s131 = sand.u32 %s40, 1
          %s132 = sand.u32 %s40, 1
          %s133 = smul.addr %s132, 64
          %s134 = scalar_lea.vmem [#allocation2], %s133
          %s135 = smul.u32 4, %s9
          %s136 = smul.addr %s135, 4
          %s137 = scalar_lea.vmem %s1, %s136
          // Predicated region
          $region29: #{model_forward.31} parent=27 // pred_check
            _
          $region30: #{model_forward.31} parent=27 // pred_check_branch
            %139 = sbr.rel (0) target = $region32
          $region31: #{model_forward.31} parent=27 // pred_region
            // Predicated region
            $region33: #{model_forward.31} parent=31 // pred_check
              _
            $region34: #{model_forward.31} parent=31 // pred_check_branch
              %141 = sbr.rel (0) target = $region36
            $region35: #{model_forward.31} parent=31 // pred_region
              loop: start=0, step=1, limit=1
              $region37: #{model_forward.31} parent=35 // loop_pre_header
                _
              $region38: #{model_forward.31} parent=35 // loop_header
                %s143 = sphi 0, %s147
                %p144 = scmp.ge.s32.totalorder %s143, 1
                %s148 = sphi %s137, %s137
                %s149 = sphi %s134, %s134
              $region39: #{model_forward.31} parent=35 // loop_header_branch
                %146 = sbr.rel (%p144) target = $region43
              $region40: #{model_forward.31} parent=35 // loop_body
                %v150 = vld [vmem:[%s148] sm:$0xff]
                %151 = vst [vmem:[%s149] sm:$0xff] %v150
                %v152 = vld [vmem:[%s148 + $0x8] sm:$0xff]
                %153 = vst [vmem:[%s149 + $0x8] sm:$0xff] %v152
                %v154 = vld [vmem:[%s148 + $0x40] sm:$0xff]
                %155 = vst [vmem:[%s149 + $0x10] sm:$0xff] %v154
                %v156 = vld [vmem:[%s148 + $0x48] sm:$0xff]
                %157 = vst [vmem:[%s149 + $0x18] sm:$0xff] %v156
                %v158 = vld [vmem:[%s148 + $0x80] sm:$0xff]
                %159 = vst [vmem:[%s149 + $0x20] sm:$0xff] %v158
                %v160 = vld [vmem:[%s148 + $0x88] sm:$0xff]
                %161 = vst [vmem:[%s149 + $0x28] sm:$0xff] %v160
                %v162 = vld [vmem:[%s148 + $0xc0] sm:$0xff]
                %163 = vst [vmem:[%s149 + $0x30] sm:$0xff] %v162
                %v164 = vld [vmem:[%s148 + $0xc8] sm:$0xff]
                %165 = vst [vmem:[%s149 + $0x38] sm:$0xff] %v164
              $region41: #{model_forward.31} parent=35 // loop_footer
                %s147 = sadd.s32 1, %s143
              $region42: #{model_forward.31} parent=35 // loop_footer_branch
                %142 = sbr.rel target = $region38
              $region43: #{model_forward.31} parent=35 // loop_exit
                _
            $region36: #{model_forward.31} parent=31 // pred_fallthru
              _
            // Predicated region
            $region44: #{model_forward.31} parent=31 // pred_check
              _
            $region45: #{model_forward.31} parent=31 // pred_check_branch
              %167 = sbr.rel target = $region47
            $region46: #{model_forward.31} parent=31 // pred_region
              _
            $region47: #{model_forward.31} parent=31 // pred_fallthru
              _
          $region32: #{model_forward.31} parent=27 // pred_fallthru
            _
          %168 = vnop
        $region28: #{model_forward.31} parent=23 // pred_fallthru
          _
      $region24: #{model_forward.31} parent=5 // pred_fallthru
        _
      %p169 = scmp.le.s32.totalorder 1, %s9
      %p170 = scmp.lt.s32.totalorder %s9, 5
      %p171 = pnand %p169, %p170
      %p172 = pneg %p171
      // Predicated region
      $region48: #{model_forward.31} parent=5 // pred_check
        _
      $region49: #{model_forward.31} parent=5 // pred_check_branch
        %174 = sbr.rel (%p171) target = $region51
      $region50: #{model_forward.31} parent=5 // pred_region
        %s175 = ssub.s32 %s9, 1
        %s176 = sand.u32 %s43, 1
        %s177 = sand.u32 %s43, 1
        %s178 = smul.addr %s177, 64
        %s179 = scalar_lea.vmem [#allocation2], %s178
        // Predicated region
        $region52: #{model_forward.31} parent=50 // pred_check
          %p180 = pneg %p56
        $region53: #{model_forward.31} parent=50 // pred_check_branch
          %182 = sbr.rel (%p180) target = $region55
        $region54: #{model_forward.31} parent=50 // pred_region
          _
        $region55: #{model_forward.31} parent=50 // pred_fallthru
          _
        %p183 = pneg %p30
        %p184 = pneg %p27
        %s185 = sand.u32 %s43, 1
        %s186 = sand.u32 %s43, 1
        %s187 = smul.addr %s186, 64
        %s188 = scalar_lea.vmem [#allocation2], %s187
        %p189 = pneg %p56
        %p190 = pneg %p53
        %p191 = pneg %p77
        %p192 = pneg %p74
        %p193 = pneg %p103
        %p194 = pneg %p100
        %s195 = smul.u32 4, %s14
        %p196 = scmp.lt.s32.totalorder %s195, 15
        %s197 = scalar_select %p196, %s195, 15
        %s198 = smul.addr %s197, 4
        %s199 = scalar_lea.vmem %s3, %s198
        %s200 = smul.u32 4, %s14
        %s201 = smul.u32 4, %s14
        %p202 = scmp.lt.s32.totalorder %s201, 15
        %s203 = scalar_select %p202, %s201, 15
        %s204 = smul.addr %s203, 4
        %s205 = scalar_lea.vmem %s3, %s204
        %s206 = smul.u32 4, %s14
        %v208 = vld [vmem:[%s0] sm:$0xf]
        %v209 = vld [vmem:[%s179] sm:$0xff]
        %v210 = vld [vmem:[%s179 + $0x8] sm:$0xff]
        %v211 = vld [vmem:[%s179 + $0x10] sm:$0xff]
        %v212 = vld [vmem:[%s179 + $0x18] sm:$0xff]
        %v213 = vld [vmem:[%s179 + $0x20] sm:$0xff]
        %v214 = vld [vmem:[%s179 + $0x28] sm:$0xff]
        %v215 = vld [vmem:[%s179 + $0x30] sm:$0x33]
        %v216 = vld [vmem:[%s179 + $0x38] sm:$0x33]
        %v217 = vld [vmem:[%s2] sm:$0xff]
        %219 = vset.pattern.permute.xlu0 0
        %220 = vperm.xlu0 %219, %v217
        %v221 = vpop.permute.xlu0 %220
        %v231 = vunpack.c.l.b16 %v209
        %v232 = vunpack.c.h.b16 %v209
        %v233 = vunpack.c.l.b16 %v210
        %v234 = vunpack.c.h.b16 %v210
        %v235 = vunpack.c.l.b16 %v211
        %v236 = vunpack.c.h.b16 %v211
        %v237 = vunpack.c.l.b16 %v212
        %v238 = vunpack.c.h.b16 %v212
        %v239 = vunpack.c.l.b16 %v213
        %v240 = vunpack.c.h.b16 %v213
        %v241 = vunpack.c.l.b16 %v214
        %v242 = vunpack.c.h.b16 %v214
        %v243 = vunpack.c.l.b16 %v215
        %v244 = vunpack.c.h.b16 %v215
        %v245 = vunpack.c.l.b16 %v216
        %v246 = vunpack.c.h.b16 %v216
        %v247 = vpack.c.b16 %v235, %v231
        %v248 = vpack.c.b16 %v236, %v232
        %v249 = vpack.c.b16 %v237, %v233
        %v250 = vpack.c.b16 %v238, %v234
        %v251 = vpack.c.b16 %v243, %v239
        %v252 = vpack.c.b16 %v244, %v240
        %v253 = vpack.c.b16 %v245, %v241
        %v254 = vpack.c.b16 %v246, %v242
        %vm259 = vcmask 220160
        %v261 = vsel %vm259, %v208, 0
        %vm263 = vcmask 1044480
        %vm264 = vcmask 1045504
        %v265 = vsel %vm263, 4294967295, 65535
        %v266 = vsel %vm264, %v265, 0
        %v268 = vand.u32 %v251, %v266
        %v271 = vand.u32 %v252, %v266
        %v274 = vand.u32 %v253, %v266
        %v277 = vand.u32 %v254, %v266
        %279 = vmatprep.subr.bf16.mxu0 %v248
        %280 = vmatpush1.bf16.msra.mxu0 %v247
        %281 = vmatprep.subr.bf16.mxu0 %v271
        %282 = vmatpush1.bf16.msra.mxu0 %v268
        %283 = vmatprep.subr.bf16.mxu0 0
        %284 = vmatpush1.bf16.msra.mxu0 0
        %285 = vmatprep.subr.bf16.mxu0 0
        %286 = vmatpush1.bf16.msra.mxu0 0
        %287 = vmatprep.subr.bf16.mxu0 0
        %288 = vmatpush1.bf16.msra.mxu0 0
        %289 = vmatprep.subr.bf16.mxu0 0
        %290 = vmatpush1.bf16.msra.mxu0 0
        %291 = vmatprep.subr.bf16.mxu0 0
        %292 = vmatpush1.bf16.msra.mxu0 0
        %293 = vmatprep.subr.bf16.mxu0 0
        %294 = vmatpush1.bf16.msra.mxu0 0
        %295 = vmatprep.subr.bf16.mxu0 0
        %296 = vmatpush1.bf16.msra.mxu0 0
        %297 = vmatprep.subr.bf16.mxu0 0
        %298 = vmatpush1.bf16.msra.mxu0 0
        %299 = vmatprep.subr.bf16.mxu0 0
        %300 = vmatpush1.bf16.msra.mxu0 0
        %301 = vmatprep.subr.bf16.mxu0 0
        %302 = vmatpush1.bf16.msra.mxu0 0
        %303 = vmatprep.subr.bf16.mxu0 0
        %304 = vmatpush1.bf16.msra.mxu0 0
        %305 = vmatprep.subr.bf16.mxu0 0
        %306 = vmatpush1.bf16.msra.mxu0 0
        %307 = vmatprep.subr.bf16.mxu0 0
        %308 = vmatpush1.bf16.msra.mxu0 0
        %309 = vmatprep.subr.bf16.mxu0 0
        %310 = vmatpush1.bf16.msra.mxu0 0
        %311 = vmatprep.mubr.bf16.mxu0 0
        %312 = vmatmul.mubr.bf16.gmra.mrb[0].mxu0 %v261
        %v313 = vpop.f32.mrb[0].mxu0
        %v314 = vadd.f32 %v221, %v313
        %v315 = vpop.f32.mrb[0].mxu0
        %v316 = vadd.f32 %v221, %v315
        %v317 = vpop.f32.mrb[0].mxu0
        %v318 = vpop.f32.mrb[0].mxu0
        %319 = vdwg.mxu0
        %320 = vmatprep.subr.bf16.mxu0 %v250
        %321 = vmatpush1.bf16.msra.mxu0 %v249
        %322 = vmatprep.subr.bf16.mxu0 %v277
        %323 = vmatpush1.bf16.msra.mxu0 %v274
        %324 = vmatprep.subr.bf16.mxu0 0
        %325 = vmatpush1.bf16.msra.mxu0 0
        %326 = vmatprep.subr.bf16.mxu0 0
        %327 = vmatpush1.bf16.msra.mxu0 0
        %328 = vmatprep.subr.bf16.mxu0 0
        %329 = vmatpush1.bf16.msra.mxu0 0
        %330 = vmatprep.subr.bf16.mxu0 0
        %331 = vmatpush1.bf16.msra.mxu0 0
        %332 = vmatprep.subr.bf16.mxu0 0
        %333 = vmatpush1.bf16.msra.mxu0 0
        %334 = vmatprep.subr.bf16.mxu0 0
        %335 = vmatpush1.bf16.msra.mxu0 0
        %336 = vmatprep.subr.bf16.mxu0 0
        %337 = vmatpush1.bf16.msra.mxu0 0
        %338 = vmatprep.subr.bf16.mxu0 0
        %339 = vmatpush1.bf16.msra.mxu0 0
        %340 = vmatprep.subr.bf16.mxu0 0
        %341 = vmatpush1.bf16.msra.mxu0 0
        %342 = vmatprep.subr.bf16.mxu0 0
        %343 = vmatpush1.bf16.msra.mxu0 0
        %344 = vmatprep.subr.bf16.mxu0 0
        %345 = vmatpush1.bf16.msra.mxu0 0
        %346 = vmatprep.subr.bf16.mxu0 0
        %347 = vmatpush1.bf16.msra.mxu0 0
        %348 = vmatprep.subr.bf16.mxu0 0
        %349 = vmatpush1.bf16.msra.mxu0 0
        %350 = vmatprep.subr.bf16.mxu0 0
        %351 = vmatpush1.bf16.msra.mxu0 0
        %352 = vmatprep.mubr.bf16.mxu0 0
        %353 = vmatmul.mubr.bf16.gmra.mrb[0].mxu0 %v261
        %v354 = vpop.f32.mrb[0].mxu0
        %v355 = vadd.f32 %v221, %v354
        %v356 = vpop.f32.mrb[0].mxu0
        %v357 = vadd.f32 %v221, %v356
        %v358 = vpop.f32.mrb[0].mxu0
        %v359 = vpop.f32.mrb[0].mxu0
        %360 = vdwg.mxu0
        %v361 = vxor.u32 %v314, 2147483648
        %v362 = vxor.u32 %v316, 2147483648
        %v363 = vxor.u32 %v355, 2147483648
        %v364 = vxor.u32 %v357, 2147483648
        %v365 = vmul.f32 %v361, 1.442695
        %v366 = vpow.pop %v365
        %v367 = vmul.f32 %v362, 1.442695
        %v368 = vpow.pop %v367
        %v369 = vmul.f32 %v363, 1.442695
        %v370 = vpow.pop %v369
        %v371 = vmul.f32 %v364, 1.442695
        %v372 = vpow.pop %v371
        %v373 = vadd.f32 %v366, 1.0
        %v374 = vadd.f32 %v368, 1.0
        %v375 = vadd.f32 %v370, 1.0
        %v376 = vadd.f32 %v372, 1.0
        %v377 = vrcp.pop %v373
        %v378 = vmul.f32 1.0, %v377
        %v379 = vrcp.pop %v374
        %v380 = vmul.f32 1.0, %v379
        %v381 = vrcp.pop %v375
        %v382 = vmul.f32 1.0, %v381
        %v383 = vrcp.pop %v376
        %v384 = vmul.f32 1.0, %v383
        %v385 = vmul.f32 %v314, %v378
        %v386 = vmul.f32 %v316, %v380
        %v387 = vmul.f32 %v355, %v382
        %v388 = vmul.f32 %v357, %v384
        %v389 = vpack.c.bf16 %v385, %v385
        %v390 = vpack.c.bf16 %v386, %v386
        %v391 = vpack.c.bf16 %v387, %v387
        %v392 = vpack.c.bf16 %v388, %v388
        %v397 = vunpack.c.l.b16 %v389
        %v398 = vunpack.c.l.b16 %v390
        %v399 = vunpack.c.l.b16 %v391
        %v400 = vunpack.c.l.b16 %v392
        %v401 = vpack.c.b16 %v398, %v397
        %v402 = vpack.c.b16 %v400, %v399
        %405 = vst [vmem:[%s205] sm:$0xff] %v401
        %406 = vst [vmem:[%s205 + $0x8] sm:$0xff] %v402
        %s407 = smul.u32 4, %s14
        %p408 = scmp.lt.s32.totalorder %s407, 15
        %s409 = scalar_select %p408, %s407, 15
        %s410 = smul.addr %s409, 4
        %s411 = scalar_lea.vmem %s3, %s410
        // Predicated region
        $region56: #{model_forward.31} parent=50 // pred_check
          %p412 = pneg %p100
        $region57: #{model_forward.31} parent=50 // pred_check_branch
          %414 = sbr.rel (%p412) target = $region59
        $region58: #{model_forward.31} parent=50 // pred_region
          %s415 = smul.u32 4, %s14
        $region59: #{model_forward.31} parent=50 // pred_fallthru
          _
      $region51: #{model_forward.31} parent=5 // pred_fallthru
        _
      %p416 = scmp.le.s32.totalorder 2, %s9
      // Predicated region
      $region60: #{model_forward.31} parent=5 // pred_check
        %p417 = pneg %p416
      $region61: #{model_forward.31} parent=5 // pred_check_branch
        %419 = sbr.rel (%p417) target = $region63
      $region62: #{model_forward.31} parent=5 // pred_region
        %s420 = ssub.s32 %s9, 2
        // Predicated region
        $region64: #{model_forward.31} parent=62 // pred_check
          %p421 = pneg %p106
        $region65: #{model_forward.31} parent=62 // pred_check_branch
          %423 = sbr.rel (%p421) target = $region67
        $region66: #{model_forward.31} parent=62 // pred_region
          %s424 = smul.u32 4, %s15
          %p425 = scmp.lt.s32.totalorder %s424, 15
          %s426 = scalar_select %p425, %s424, 15
          %s427 = smul.addr %s426, 4
          %s428 = scalar_lea.vmem %s3, %s427
        $region67: #{model_forward.31} parent=62 // pred_fallthru
          _
      $region63: #{model_forward.31} parent=5 // pred_fallthru
        _
    $region6: #{model_forward.31} parent=1 // loop_footer
      %s13 = sadd.s32 1, %s9
    $region7: #{model_forward.31} parent=1 // loop_footer_branch
      %8 = sbr.rel target = $region3
    $region8: #{model_forward.31} parent=1 // loop_exit
      _

// kernel: model_forward.32
$region0: #{model_forward.32}
  #allocation0 [shape = 'u32[]', space=smem, size = 0x4, offset = 0x4, fixed_abs, tag = 'smem constant byte address 0x4 - core index']
  #allocation1 [shape = 'u32[144,128]{1,0:T(1,128)}', space=vmem, size = 0x12000, scoped, tag = 'internal scratch']
  %s0 = inlined_call_operand.vmem [shape: bf16[16,72], index: 0, kind: input, shape index: {}]
  %s1 = inlined_call_operand.vmem [shape: bf16[72,512], index: 1, kind: input, shape index: {}]
  %s2 = inlined_call_operand.vmem [shape: f32[16,1], index: 2, kind: input, shape index: {}]
  %s3 = inlined_call_operand.vmem [shape: bf16[16,512], index: 3, kind: output, shape index: {}]
  %s4 = sld [smem:[#allocation0]]
  $region117: #{model_forward.32} parent=0
    _
  %s6 = ssub.s32 1, %s4
  %s7 = scalar_select 0, %s6, %s4
  $region1: #{model_forward.32} parent=0
    #allocation2 [shape = 'u8[73728]{0}', space=vmem, size = 0x12000, scoped, tag = 'input window, operand 1']
    #allocation3 [shape = 'u8[16384]{0}', space=vmem, size = 0x4000, scoped, tag = 'output window, operand 0']
    loop: start=0, step=1, limit=4
    $region2: #{model_forward.32} parent=1 // loop_pre_header
      _
    $region3: #{model_forward.32} parent=1 // loop_header
      %s9 = sphi 0, %s13
      %p10 = scmp.ge.s32.totalorder %s9, 4
      %s17 = sphi 0, %s17
      %s19 = sphi 0, %s17
      %s20 = sphi 0, %s19
      %s34 = sphi 0, %s20
      %s40 = sphi 0, %s42
      %s43 = sphi 0, %s40
      %s44 = sphi 0, %s43
      %s60 = sphi 0, %s44
      %s64 = sphi 0, %s64
      %s66 = sphi 0, %s64
      %s67 = sphi 0, %s66
      %s81 = sphi 0, %s67
      %s87 = sphi 0, %s89
      %s90 = sphi 0, %s87
      %s91 = sphi 0, %s90
      %s107 = sphi 0, %s91
    $region4: #{model_forward.32} parent=1 // loop_header_branch
      %12 = sbr.rel (%p10) target = $region8
    $region5: #{model_forward.32} parent=1 // loop_body
      %s14 = ssub.s32 %s9, 1
      %s15 = ssub.s32 %s9, 2
      %s16 = sadd.s32 %s9, 1
      %s18 = sadd.s32 %s17, 1
      %p21 = scmp.eq.s32.totalorder %s9, 1
      %p22 = scmp.ne.s32.totalorder %s17, %s19
      %p23 = scmp.eq.s32.totalorder %s9, 0
      %p24 = por %p22, %p23
      %p25 = scmp.ne.s32.totalorder %s17, %s19
      %p26 = scmp.eq.s32.totalorder %s14, 1
      %p27 = por %p25, %p26
      %p28 = scmp.ne.s32.totalorder %s19, %s20
      %p29 = scmp.eq.s32.totalorder %s14, 0
      %p30 = por %p28, %p29
      %p31 = scmp.ne.s32.totalorder %s19, %s20
      %p32 = scmp.eq.s32.totalorder %s15, 1
      %p33 = por %p31, %p32
      %p35 = scmp.ne.s32.totalorder %s20, %s34
      %p36 = scmp.eq.s32.totalorder %s15, 0
      %p37 = por %p35, %p36
      %s38 = ssub.s32 %s9, %s16
      %p39 = scmp.eq.s32.totalorder %s38, 0
      %s41 = sadd.s32 %s40, 1
      %s42 = scalar_select %p39, %s40, %s41
      %p45 = pneg %p39
      %p46 = scmp.eq.s32.totalorder %s9, 1
      %p47 = por %p45, %p46
      %p48 = scmp.ne.s32.totalorder %s40, %s43
      %p49 = scmp.eq.s32.totalorder %s9, 0
      %p50 = por %p48, %p49
      %p51 = scmp.ne.s32.totalorder %s40, %s43
      %p52 = scmp.eq.s32.totalorder %s14, 1
      %p53 = por %p51, %p52
      %p54 = scmp.ne.s32.totalorder %s43, %s44
      %p55 = scmp.eq.s32.totalorder %s14, 0
      %p56 = por %p54, %p55
      %p57 = scmp.ne.s32.totalorder %s43, %s44
      %p58 = scmp.eq.s32.totalorder %s15, 1
      %p59 = por %p57, %p58
      %p61 = scmp.ne.s32.totalorder %s44, %s60
      %p62 = scmp.eq.s32.totalorder %s15, 0
      %p63 = por %p61, %p62
      %s65 = sadd.s32 %s64, 1
      %p68 = scmp.eq.s32.totalorder %s9, 1
      %p69 = scmp.ne.s32.totalorder %s64, %s66
      %p70 = scmp.eq.s32.totalorder %s9, 0
      %p71 = por %p69, %p70
      %p72 = scmp.ne.s32.totalorder %s64, %s66
      %p73 = scmp.eq.s32.totalorder %s14, 1
      %p74 = por %p72, %p73
      %p75 = scmp.ne.s32.totalorder %s66, %s67
      %p76 = scmp.eq.s32.totalorder %s14, 0
      %p77 = por %p75, %p76
      %p78 = scmp.ne.s32.totalorder %s66, %s67
      %p79 = scmp.eq.s32.totalorder %s15, 1
      %p80 = por %p78, %p79
      %p82 = scmp.ne.s32.totalorder %s67, %s81
      %p83 = scmp.eq.s32.totalorder %s15, 0
      %p84 = por %p82, %p83
      %s85 = ssub.s32 %s9, %s16
      %p86 = scmp.eq.s32.totalorder %s85, 0
      %s88 = sadd.s32 %s87, 1
      %s89 = scalar_select %p86, %s87, %s88
      %p92 = pneg %p86
      %p93 = scmp.eq.s32.totalorder %s9, 1
      %p94 = por %p92, %p93
      %p95 = scmp.ne.s32.totalorder %s87, %s90
      %p96 = scmp.eq.s32.totalorder %s9, 0
      %p97 = por %p95, %p96
      %p98 = scmp.ne.s32.totalorder %s87, %s90
      %p99 = scmp.eq.s32.totalorder %s14, 1
      %p100 = por %p98, %p99
      %p101 = scmp.ne.s32.totalorder %s90, %s91
      %p102 = scmp.eq.s32.totalorder %s14, 0
      %p103 = por %p101, %p102
      %p104 = scmp.ne.s32.totalorder %s90, %s91
      %p105 = scmp.eq.s32.totalorder %s15, 1
      %p106 = por %p104, %p105
      %p108 = scmp.ne.s32.totalorder %s91, %s107
      %p109 = scmp.eq.s32.totalorder %s15, 0
      %p110 = por %p108, %p109
      %p111 = scmp.le.s32.totalorder 1, %s9
      %p112 = scmp.lt.s32.totalorder %s9, 3
      %p113 = pnand %p111, %p112
      %p114 = pneg %p113
      // Predicated region
      $region9: #{model_forward.32} parent=5 // pred_check
        _
      $region10: #{model_forward.32} parent=5 // pred_check_branch
        %116 = sbr.rel (%p113) target = $region12
      $region11: #{model_forward.32} parent=5 // pred_region
        %s117 = ssub.s32 %s9, 1
        // Predicated region
        $region13: #{model_forward.32} parent=11 // pred_check
          %p118 = pneg %p30
        $region14: #{model_forward.32} parent=11 // pred_check_branch
          %120 = sbr.rel (%p118) target = $region16
        $region15: #{model_forward.32} parent=11 // pred_region
          _
        $region16: #{model_forward.32} parent=11 // pred_fallthru
          _
        // Predicated region
        $region17: #{model_forward.32} parent=11 // pred_check
          %p121 = pneg %p77
        $region18: #{model_forward.32} parent=11 // pred_check_branch
          %123 = sbr.rel (%p121) target = $region20
        $region19: #{model_forward.32} parent=11 // pred_region
          _
        $region20: #{model_forward.32} parent=11 // pred_fallthru
          _
      $region12: #{model_forward.32} parent=5 // pred_fallthru
        _
      %p124 = scmp.lt.s32.totalorder %s9, 2
      // Predicated region
      $region21: #{model_forward.32} parent=5 // pred_check
        %p125 = pneg %p124
      $region22: #{model_forward.32} parent=5 // pred_check_branch
        %127 = sbr.rel (%p125) target = $region24
      $region23: #{model_forward.32} parent=5 // pred_region
        // Predicated region
        $region25: #{model_forward.32} parent=23 // pred_check
          %p128 = pneg %p50
        $region26: #{model_forward.32} parent=23 // pred_check_branch
          %130 = sbr.rel (%p128) target = $region28
        $region27: #{model_forward.32} parent=23 // pred_region
          %s131 = sand.u32 %s40, 1
          %s132 = sand.u32 %s40, 1
          %s133 = smul.addr %s132, 72
          %s134 = scalar_lea.vmem [#allocation2], %s133
          %s135 = smul.u32 2, %s9
          %s136 = smul.addr %s135, 4
          %s137 = scalar_lea.vmem %s1, %s136
          // Predicated region
          $region29: #{model_forward.32} parent=27 // pred_check
            _
          $region30: #{model_forward.32} parent=27 // pred_check_branch
            %139 = sbr.rel (0) target = $region32
          $region31: #{model_forward.32} parent=27 // pred_region
            // Predicated region
            $region33: #{model_forward.32} parent=31 // pred_check
              _
            $region34: #{model_forward.32} parent=31 // pred_check_branch
              %141 = sbr.rel (0) target = $region36
            $region35: #{model_forward.32} parent=31 // pred_region
              // Predicated region
              $region48: #{model_forward.32} parent=35 // pred_check
                _
              $region49: #{model_forward.32} parent=35 // pred_check_branch
                %172 = sbr.rel (0) target = $region51
              $region50: #{model_forward.32} parent=35 // pred_region
                loop: start=0, step=1, limit=1
                $region52: #{model_forward.32} parent=50 // loop_pre_header
                  _
                $region53: #{model_forward.32} parent=50 // loop_header
                  %s174 = sphi 0, %s178
                  %p175 = scmp.ge.s32.totalorder %s174, 1
                  %s179 = sphi %s137, %s137
                  %s180 = sphi %s134, %s134
                $region54: #{model_forward.32} parent=50 // loop_header_branch
                  %177 = sbr.rel (%p175) target = $region58
                $region55: #{model_forward.32} parent=50 // loop_body
                  %v181 = vld [vmem:[%s179] sm:$0xff]
                  %182 = vst [vmem:[%s180] sm:$0xff] %v181
                  %v183 = vld [vmem:[%s179 + $0x10] sm:$0xff]
                  %184 = vst [vmem:[%s180 + $0x8] sm:$0xff] %v183
                  %v185 = vld [vmem:[%s179 + $0x20] sm:$0xff]
                  %186 = vst [vmem:[%s180 + $0x10] sm:$0xff] %v185
                  %v187 = vld [vmem:[%s179 + $0x30] sm:$0xff]
                  %188 = vst [vmem:[%s180 + $0x18] sm:$0xff] %v187
                  %v189 = vld [vmem:[%s179 + $0x40] sm:$0xff]
                  %190 = vst [vmem:[%s180 + $0x20] sm:$0xff] %v189
                  %v191 = vld [vmem:[%s179 + $0x50] sm:$0xff]
                  %192 = vst [vmem:[%s180 + $0x28] sm:$0xff] %v191
                  %v193 = vld [vmem:[%s179 + $0x60] sm:$0xff]
                  %194 = vst [vmem:[%s180 + $0x30] sm:$0xff] %v193
                  %v195 = vld [vmem:[%s179 + $0x70] sm:$0xff]
                  %196 = vst [vmem:[%s180 + $0x38] sm:$0xff] %v195
                  %v197 = vld [vmem:[%s179 + $0x80] sm:$0xff]
                  %198 = vst [vmem:[%s180 + $0x40] sm:$0xff] %v197
                $region56: #{model_forward.32} parent=50 // loop_footer
                  %s178 = sadd.s32 1, %s174
                $region57: #{model_forward.32} parent=50 // loop_footer_branch
                  %173 = sbr.rel target = $region53
                $region58: #{model_forward.32} parent=50 // loop_exit
                  _
              $region51: #{model_forward.32} parent=35 // pred_fallthru
                _
              // Predicated region
              $region59: #{model_forward.32} parent=35 // pred_check
                _
              $region60: #{model_forward.32} parent=35 // pred_check_branch
                %200 = sbr.rel target = $region62
              $region61: #{model_forward.32} parent=35 // pred_region
                _
              $region62: #{model_forward.32} parent=35 // pred_fallthru
                _
            $region36: #{model_forward.32} parent=31 // pred_fallthru
              _
            // Predicated region
            $region37: #{model_forward.32} parent=31 // pred_check
              _
            $region38: #{model_forward.32} parent=31 // pred_check_branch
              %143 = sbr.rel target = $region40
            $region39: #{model_forward.32} parent=31 // pred_region
              loop: start=0, step=1, limit=1
              $region41: #{model_forward.32} parent=39 // loop_pre_header
                _
              $region42: #{model_forward.32} parent=39 // loop_header
                %s146 = sphi 0, %s150
                %p147 = scmp.ge.s32.totalorder %s146, 1
                %s151 = sphi %s137, %s137
                %s152 = sphi %s134, %s134
              $region43: #{model_forward.32} parent=39 // loop_header_branch
                %149 = sbr.rel (%p147) target = $region47
              $region44: #{model_forward.32} parent=39 // loop_body
                %v153 = vld [vmem:[%s151] sm:$0xff]
                %154 = vst [vmem:[%s152] sm:$0xff] %v153
                %v155 = vld [vmem:[%s151 + $0x10] sm:$0xff]
                %156 = vst [vmem:[%s152 + $0x8] sm:$0xff] %v155
                %v157 = vld [vmem:[%s151 + $0x20] sm:$0xff]
                %158 = vst [vmem:[%s152 + $0x10] sm:$0xff] %v157
                %v159 = vld [vmem:[%s151 + $0x30] sm:$0xff]
                %160 = vst [vmem:[%s152 + $0x18] sm:$0xff] %v159
                %v161 = vld [vmem:[%s151 + $0x40] sm:$0xff]
                %162 = vst [vmem:[%s152 + $0x20] sm:$0xff] %v161
                %v163 = vld [vmem:[%s151 + $0x50] sm:$0xff]
                %164 = vst [vmem:[%s152 + $0x28] sm:$0xff] %v163
                %v165 = vld [vmem:[%s151 + $0x60] sm:$0xff]
                %166 = vst [vmem:[%s152 + $0x30] sm:$0xff] %v165
                %v167 = vld [vmem:[%s151 + $0x70] sm:$0xff]
                %168 = vst [vmem:[%s152 + $0x38] sm:$0xff] %v167
                %v169 = vld [vmem:[%s151 + $0x80] sm:$0xff]
                %170 = vst [vmem:[%s152 + $0x40] sm:$0xff] %v169
              $region45: #{model_forward.32} parent=39 // loop_footer
                %s150 = sadd.s32 1, %s146
              $region46: #{model_forward.32} parent=39 // loop_footer_branch
                %145 = sbr.rel target = $region42
              $region47: #{model_forward.32} parent=39 // loop_exit
                _
            $region40: #{model_forward.32} parent=31 // pred_fallthru
              _
          $region32: #{model_forward.32} parent=27 // pred_fallthru
            _
          %201 = vnop
        $region28: #{model_forward.32} parent=23 // pred_fallthru
          _
      $region24: #{model_forward.32} parent=5 // pred_fallthru
        _
      %p202 = scmp.le.s32.totalorder 1, %s9
      %p203 = scmp.lt.s32.totalorder %s9, 3
      %p204 = pnand %p202, %p203
      %p205 = pneg %p204
      // Predicated region
      $region63: #{model_forward.32} parent=5 // pred_check
        _
      $region64: #{model_forward.32} parent=5 // pred_check_branch
        %207 = sbr.rel (%p204) target = $region66
      $region65: #{model_forward.32} parent=5 // pred_region
        %s208 = ssub.s32 %s9, 1
        %s209 = sand.u32 %s43, 1
        %s210 = sand.u32 %s43, 1
        %s211 = smul.addr %s210, 72
        %s212 = scalar_lea.vmem [#allocation2], %s211
        // Predicated region
        $region67: #{model_forward.32} parent=65 // pred_check
          %p213 = pneg %p56
        $region68: #{model_forward.32} parent=65 // pred_check_branch
          %215 = sbr.rel (%p213) target = $region70
        $region69: #{model_forward.32} parent=65 // pred_region
          _
        $region70: #{model_forward.32} parent=65 // pred_fallthru
          _
        %p216 = pneg %p30
        %p217 = pneg %p27
        %s218 = sand.u32 %s43, 1
        %s219 = sand.u32 %s43, 1
        %s220 = smul.addr %s219, 72
        %s221 = scalar_lea.vmem [#allocation2], %s220
        %p222 = pneg %p56
        %p223 = pneg %p53
        %p224 = pneg %p77
        %p225 = pneg %p74
        %p226 = pneg %p103
        %p227 = pneg %p100
        %s228 = sand.u32 %s90, 1
        %s229 = sand.u32 %s90, 1
        %s230 = smul.addr %s229, 16
        %s231 = scalar_lea.vmem [#allocation3], %s230
        %s232 = smul.u32 2, %s14
        %s233 = smul.u32 2, %s14
        %v235 = vld [vmem:[%s0] sm:$0xf]
        %v236 = vld [vmem:[%s0 + $0x4] sm:$0xf]
        %v237 = vld [vmem:[%s212] sm:$0xff]
        %v238 = vld [vmem:[%s212 + $0x8] sm:$0xff]
        %v239 = vld [vmem:[%s212 + $0x10] sm:$0xff]
        %v240 = vld [vmem:[%s212 + $0x18] sm:$0xff]
        %v241 = vld [vmem:[%s212 + $0x20] sm:$0xff]
        %v242 = vld [vmem:[%s212 + $0x28] sm:$0xff]
        %v243 = vld [vmem:[%s212 + $0x30] sm:$0xff]
        %v244 = vld [vmem:[%s212 + $0x38] sm:$0xff]
        %v245 = vld [vmem:[%s212 + $0x40] sm:$0xff]
        %v246 = vld [vmem:[%s2] sm:$0xff]
        %v247 = vld [vmem:[%s2 + $0x8] sm:$0xff]
        %249 = vset.pattern.permute.xlu0 0
        %250 = vperm.xlu0 %249, %v246
        %v251 = vpop.permute.xlu0 %250
        %254 = vset.pattern.permute.xlu0 0
        %255 = vperm.xlu0 %254, %v247
        %v256 = vpop.permute.xlu0 %255
        %v260 = vunpack.c.l.b16 %v235
        %v261 = vunpack.c.l.b16 %v236
        %v262 = vpack.c.b16 %v261, %v260
        %v272 = vunpack.c.l.b16 %v237
        %v273 = vunpack.c.h.b16 %v237
        %v274 = vunpack.c.l.b16 %v238
        %v275 = vunpack.c.h.b16 %v238
        %v276 = vunpack.c.l.b16 %v239
        %v277 = vunpack.c.h.b16 %v239
        %v278 = vunpack.c.l.b16 %v240
        %v279 = vunpack.c.h.b16 %v240
        %v280 = vunpack.c.l.b16 %v241
        %v281 = vunpack.c.h.b16 %v241
        %v282 = vunpack.c.l.b16 %v242
        %v283 = vunpack.c.h.b16 %v242
        %v284 = vunpack.c.l.b16 %v243
        %v285 = vunpack.c.h.b16 %v243
        %v286 = vunpack.c.l.b16 %v244
        %v287 = vunpack.c.h.b16 %v244
        %v288 = vunpack.c.l.b16 %v245
        %v289 = vunpack.c.h.b16 %v245
        %v290 = vpack.c.b16 %v274, %v272
        %v291 = vpack.c.b16 %v275, %v273
        %v292 = vpack.c.b16 %v278, %v276
        %v293 = vpack.c.b16 %v279, %v277
        %v294 = vpack.c.b16 %v282, %v280
        %v295 = vpack.c.b16 %v283, %v281
        %v296 = vpack.c.b16 %v286, %v284
        %v297 = vpack.c.b16 %v287, %v285
        %v298 = vpack.c.b16 %v288, %v288
        %v299 = vpack.c.b16 %v289, %v289
        %vm308 = vcmask 588800
        %v310 = vsel %vm308, %v262, 0
        %vm312 = vcmask 1043456
        %v314 = vsel %vm312, %v298, 0
        %v317 = vsel %vm312, %v299, 0
        %319 = vmatprep.subr.bf16.mxu0 %v291
        %320 = vmatpush1.bf16.msra.mxu0 %v290
        %321 = vmatprep.subr.bf16.mxu0 %v293
        %322 = vmatpush1.bf16.msra.mxu0 %v292
        %323 = vmatprep.subr.bf16.mxu0 %v295
        %324 = vmatpush1.bf16.msra.mxu0 %v294
        %325 = vmatprep.subr.bf16.mxu0 %v297
        %326 = vmatpush1.bf16.msra.mxu0 %v296
        %327 = vmatprep.subr.bf16.mxu0 %v317
        %328 = vmatpush1.bf16.msra.mxu0 %v314
        %329 = vmatprep.subr.bf16.mxu0 0
        %330 = vmatpush1.bf16.msra.mxu0 0
        %331 = vmatprep.subr.bf16.mxu0 0
        %332 = vmatpush1.bf16.msra.mxu0 0
        %333 = vmatprep.subr.bf16.mxu0 0
        %334 = vmatpush1.bf16.msra.mxu0 0
        %335 = vmatprep.subr.bf16.mxu0 0
        %336 = vmatpush1.bf16.msra.mxu0 0
        %337 = vmatprep.subr.bf16.mxu0 0
        %338 = vmatpush1.bf16.msra.mxu0 0
        %339 = vmatprep.subr.bf16.mxu0 0
        %340 = vmatpush1.bf16.msra.mxu0 0
        %341 = vmatprep.subr.bf16.mxu0 0
        %342 = vmatpush1.bf16.msra.mxu0 0
        %343 = vmatprep.subr.bf16.mxu0 0
        %344 = vmatpush1.bf16.msra.mxu0 0
        %345 = vmatprep.subr.bf16.mxu0 0
        %346 = vmatpush1.bf16.msra.mxu0 0
        %347 = vmatprep.subr.bf16.mxu0 0
        %348 = vmatpush1.bf16.msra.mxu0 0
        %349 = vmatprep.subr.bf16.mxu0 0
        %350 = vmatpush1.bf16.msra.mxu0 0
        %351 = vmatprep.mubr.bf16.mxu0 0
        %352 = vmatmul.mubr.bf16.gmra.mrb[0].mxu0 %v310
        %v353 = vpop.f32.mrb[0].mxu0
        %v354 = vadd.f32 %v251, %v353
        %v355 = vpop.f32.mrb[0].mxu0
        %v356 = vadd.f32 %v251, %v355
        %v357 = vpop.f32.mrb[0].mxu0
        %v358 = vadd.f32 %v256, %v357
        %v359 = vpop.f32.mrb[0].mxu0
        %v360 = vadd.f32 %v256, %v359
        %361 = vdwg.mxu0
        %v362 = vxor.u32 %v354, 2147483648
        %v363 = vxor.u32 %v356, 2147483648
        %v364 = vxor.u32 %v358, 2147483648
        %v365 = vxor.u32 %v360, 2147483648
        %v366 = vmul.f32 %v362, 1.442695
        %v367 = vpow.pop %v366
        %v368 = vmul.f32 %v363, 1.442695
        %v369 = vpow.pop %v368
        %v370 = vmul.f32 %v364, 1.442695
        %v371 = vpow.pop %v370
        %v372 = vmul.f32 %v365, 1.442695
        %v373 = vpow.pop %v372
        %v374 = vadd.f32 %v367, 1.0
        %v375 = vadd.f32 %v369, 1.0
        %v376 = vadd.f32 %v371, 1.0
        %v377 = vadd.f32 %v373, 1.0
        %v378 = vrcp.pop %v374
        %v379 = vmul.f32 1.0, %v378
        %v380 = vrcp.pop %v375
        %v381 = vmul.f32 1.0, %v380
        %v382 = vrcp.pop %v376
        %v383 = vmul.f32 1.0, %v382
        %v384 = vrcp.pop %v377
        %v385 = vmul.f32 1.0, %v384
        %v386 = vmul.f32 %v354, %v379
        %v387 = vmul.f32 %v356, %v381
        %v388 = vmul.f32 %v358, %v383
        %v389 = vmul.f32 %v360, %v385
        %v390 = vpack.c.bf16 %v388, %v386
        %v391 = vpack.c.bf16 %v389, %v387
        %v394 = vunpack.c.l.b16 %v390
        %v395 = vunpack.c.l.b16 %v391
        %v396 = vunpack.c.h.b16 %v390
        %v397 = vunpack.c.h.b16 %v391
        %v398 = vpack.c.b16 %v395, %v394
        %v399 = vpack.c.b16 %v397, %v396
        %402 = vst [vmem:[%s231] sm:$0xff] %v398
        %403 = vst [vmem:[%s231 + $0x8] sm:$0xff] %v399
        %s404 = sand.u32 %s90, 1
        %s405 = sand.u32 %s90, 1
        %s406 = smul.addr %s405, 16
        %s407 = scalar_lea.vmem [#allocation3], %s406
        // Predicated region
        $region71: #{model_forward.32} parent=65 // pred_check
          %p408 = pneg %p100
        $region72: #{model_forward.32} parent=65 // pred_check_branch
          %410 = sbr.rel (%p408) target = $region74
        $region73: #{model_forward.32} parent=65 // pred_region
          %s411 = smul.u32 2, %s14
          %s412 = smul.addr %s411, 4
          %s413 = scalar_lea.vmem %s3, %s412
          // Predicated region
          $region75: #{model_forward.32} parent=73 // pred_check
            _
          $region76: #{model_forward.32} parent=73 // pred_check_branch
            %415 = sbr.rel (0) target = $region78
          $region77: #{model_forward.32} parent=73 // pred_region
            // Predicated region
            $region79: #{model_forward.32} parent=77 // pred_check
              _
            $region80: #{model_forward.32} parent=77 // pred_check_branch
              %417 = sbr.rel (0) target = $region82
            $region81: #{model_forward.32} parent=77 // pred_region
              // Predicated region
              $region94: #{model_forward.32} parent=81 // pred_check
                _
              $region95: #{model_forward.32} parent=81 // pred_check_branch
                %434 = sbr.rel (0) target = $region97
              $region96: #{model_forward.32} parent=81 // pred_region
                loop: start=0, step=1, limit=1
                $region98: #{model_forward.32} parent=96 // loop_pre_header
                  _
                $region99: #{model_forward.32} parent=96 // loop_header
                  %s436 = sphi 0, %s440
                  %p437 = scmp.ge.s32.totalorder %s436, 1
                  %s441 = sphi %s407, %s407
                  %s442 = sphi %s413, %s413
                $region100: #{model_forward.32} parent=96 // loop_header_branch
                  %439 = sbr.rel (%p437) target = $region104
                $region101: #{model_forward.32} parent=96 // loop_body
                  %v443 = vld [vmem:[%s441] sm:$0xff]
                  %444 = vst [vmem:[%s442] sm:$0xff] %v443
                  %v445 = vld [vmem:[%s441 + $0x8] sm:$0xff]
                  %446 = vst [vmem:[%s442 + $0x10] sm:$0xff] %v445
                $region102: #{model_forward.32} parent=96 // loop_footer
                  %s440 = sadd.s32 1, %s436
                $region103: #{model_forward.32} parent=96 // loop_footer_branch
                  %435 = sbr.rel target = $region99
                $region104: #{model_forward.32} parent=96 // loop_exit
                  _
              $region97: #{model_forward.32} parent=81 // pred_fallthru
                _
              // Predicated region
              $region105: #{model_forward.32} parent=81 // pred_check
                _
              $region106: #{model_forward.32} parent=81 // pred_check_branch
                %448 = sbr.rel target = $region108
              $region107: #{model_forward.32} parent=81 // pred_region
                _
              $region108: #{model_forward.32} parent=81 // pred_fallthru
                _
            $region82: #{model_forward.32} parent=77 // pred_fallthru
              _
            // Predicated region
            $region83: #{model_forward.32} parent=77 // pred_check
              _
            $region84: #{model_forward.32} parent=77 // pred_check_branch
              %419 = sbr.rel target = $region86
            $region85: #{model_forward.32} parent=77 // pred_region
              loop: start=0, step=1, limit=1
              $region87: #{model_forward.32} parent=85 // loop_pre_header
                _
              $region88: #{model_forward.32} parent=85 // loop_header
                %s422 = sphi 0, %s426
                %p423 = scmp.ge.s32.totalorder %s422, 1
                %s427 = sphi %s407, %s407
                %s428 = sphi %s413, %s413
              $region89: #{model_forward.32} parent=85 // loop_header_branch
                %425 = sbr.rel (%p423) target = $region93
              $region90: #{model_forward.32} parent=85 // loop_body
                %v429 = vld [vmem:[%s427] sm:$0xff]
                %430 = vst [vmem:[%s428] sm:$0xff] %v429
                %v431 = vld [vmem:[%s427 + $0x8] sm:$0xff]
                %432 = vst [vmem:[%s428 + $0x10] sm:$0xff] %v431
              $region91: #{model_forward.32} parent=85 // loop_footer
                %s426 = sadd.s32 1, %s422
              $region92: #{model_forward.32} parent=85 // loop_footer_branch
                %421 = sbr.rel target = $region88
              $region93: #{model_forward.32} parent=85 // loop_exit
                _
            $region86: #{model_forward.32} parent=77 // pred_fallthru
              _
          $region78: #{model_forward.32} parent=73 // pred_fallthru
            _
          %449 = vnop
        $region74: #{model_forward.32} parent=65 // pred_fallthru
          _
      $region66: #{model_forward.32} parent=5 // pred_fallthru
        _
      %p450 = scmp.le.s32.totalorder 2, %s9
      // Predicated region
      $region109: #{model_forward.32} parent=5 // pred_check
        %p451 = pneg %p450
      $region110: #{model_forward.32} parent=5 // pred_check_branch
        %453 = sbr.rel (%p451) target = $region112
      $region111: #{model_forward.32} parent=5 // pred_region
        %s454 = ssub.s32 %s9, 2
        // Predicated region
        $region113: #{model_forward.32} parent=111 // pred_check
          %p455 = pneg %p106
        $region114: #{model_forward.32} parent=111 // pred_check_branch
          %457 = sbr.rel (%p455) target = $region116
        $region115: #{model_forward.32} parent=111 // pred_region
          %s458 = sand.u32 %s91, 1
          %s459 = sand.u32 %s91, 1
          %s460 = smul.addr %s459, 16
          %s461 = scalar_lea.vmem [#allocation3], %s460
        $region116: #{model_forward.32} parent=111 // pred_fallthru
          _
      $region112: #{model_forward.32} parent=5 // pred_fallthru
        _
    $region6: #{model_forward.32} parent=1 // loop_footer
      %s13 = sadd.s32 1, %s9
    $region7: #{model_forward.32} parent=1 // loop_footer_branch
      %8 = sbr.rel target = $region3
    $region8: #{model_forward.32} parent=1 // loop_exit
      _

// kernel: model_forward.33
$region0: #{model_forward.33}
  #allocation0 [shape = 'u32[]', space=smem, size = 0x4, offset = 0x4, fixed_abs, tag = 'smem constant byte address 0x4 - core index']
  #allocation1 [shape = 'u32[144,128]{1,0:T(1,128)}', space=vmem, size = 0x12000, scoped, tag = 'internal scratch']
  %s0 = inlined_call_operand.vmem [shape: bf16[32,144], index: 0, kind: input, shape index: {}]
  %s1 = inlined_call_operand.vmem [shape: bf16[144,128], index: 1, kind: input, shape index: {}]
  %s2 = inlined_call_operand.vmem [shape: f32[32,1], index: 2, kind: input, shape index: {}]
  %s3 = inlined_call_operand.vmem [shape: bf16[32,128], index: 3, kind: output, shape index: {}]
  %s4 = sld [smem:[#allocation0]]
  $region22: #{model_forward.33} parent=0
    _
  %s6 = ssub.s32 1, %s4
  %s7 = scalar_select 0, %s6, %s4
  // Predicated region
  $region2: #{model_forward.33} parent=0 // pred_check
    _
  $region3: #{model_forward.33} parent=0 // pred_check_branch
    %9 = sbr.rel (0) target = $region5
  $region4: #{model_forward.33} parent=0 // pred_region
    _
  $region5: #{model_forward.33} parent=0 // pred_fallthru
    _
  // Predicated region
  $region6: #{model_forward.33} parent=0 // pred_check
    _
  $region7: #{model_forward.33} parent=0 // pred_check_branch
    %11 = sbr.rel (0) target = $region9
  $region8: #{model_forward.33} parent=0 // pred_region
    _
  $region9: #{model_forward.33} parent=0 // pred_fallthru
    _
  // Predicated region
  $region10: #{model_forward.33} parent=0 // pred_check
    _
  $region11: #{model_forward.33} parent=0 // pred_check_branch
    %13 = sbr.rel (0) target = $region13
  $region12: #{model_forward.33} parent=0 // pred_region
    _
  $region13: #{model_forward.33} parent=0 // pred_fallthru
    _
  %v15 = vld [vmem:[%s0] sm:$0xff]
  %v16 = vld [vmem:[%s0 + $0x8] sm:$0xff]
  %v17 = vld [vmem:[%s0 + $0x10] sm:$0xff]
  %v18 = vld [vmem:[%s0 + $0x18] sm:$0xff]
  %v19 = vld [vmem:[%s1] sm:$0xf]
  %v20 = vld [vmem:[%s1 + $0x4] sm:$0xf]
  %v21 = vld [vmem:[%s1 + $0x8] sm:$0xf]
  %v22 = vld [vmem:[%s1 + $0xc] sm:$0xf]
  %v23 = vld [vmem:[%s1 + $0x10] sm:$0xf]
  %v24 = vld [vmem:[%s1 + $0x14] sm:$0xf]
  %v25 = vld [vmem:[%s1 + $0x18] sm:$0xf]
  %v26 = vld [vmem:[%s1 + $0x1c] sm:$0xf]
  %v27 = vld [vmem:[%s1 + $0x20] sm:$0xf]
  %v28 = vld [vmem:[%s1 + $0x24] sm:$0xf]
  %v29 = vld [vmem:[%s1 + $0x28] sm:$0xf]
  %v30 = vld [vmem:[%s1 + $0x2c] sm:$0xf]
  %v31 = vld [vmem:[%s1 + $0x30] sm:$0xf]
  %v32 = vld [vmem:[%s1 + $0x34] sm:$0xf]
  %v33 = vld [vmem:[%s1 + $0x38] sm:$0xf]
  %v34 = vld [vmem:[%s1 + $0x3c] sm:$0xf]
  %v35 = vld [vmem:[%s1 + $0x40] sm:$0xf]
  %v36 = vld [vmem:[%s1 + $0x44] sm:$0xf]
  %v37 = vld [vmem:[%s2] sm:$0xff]
  %v38 = vld [vmem:[%s2 + $0x8] sm:$0xff]
  %v39 = vld [vmem:[%s2 + $0x10] sm:$0xff]
  %v40 = vld [vmem:[%s2 + $0x18] sm:$0xff]
  %42 = vset.pattern.permute.xlu0 0
  %43 = vperm.xlu0 %42, %v37
  %v44 = vpop.permute.xlu0 %43
  %47 = vset.pattern.permute.xlu0 0
  %48 = vperm.xlu0 %47, %v38
  %v49 = vpop.permute.xlu0 %48
  %52 = vset.pattern.permute.xlu0 0
  %53 = vperm.xlu0 %52, %v39
  %v54 = vpop.permute.xlu0 %53
  %57 = vset.pattern.permute.xlu0 0
  %58 = vperm.xlu0 %57, %v40
  %v59 = vpop.permute.xlu0 %58
  %v65 = vunpack.c.l.b16 %v15
  %v66 = vunpack.c.h.b16 %v15
  %v67 = vunpack.c.l.b16 %v16
  %v68 = vunpack.c.h.b16 %v16
  %v69 = vunpack.c.l.b16 %v17
  %v70 = vunpack.c.h.b16 %v17
  %v71 = vunpack.c.l.b16 %v18
  %v72 = vunpack.c.h.b16 %v18
  %v73 = vpack.c.b16 %v67, %v65
  %v74 = vpack.c.b16 %v68, %v66
  %v75 = vpack.c.b16 %v71, %v69
  %v76 = vpack.c.b16 %v72, %v70
  %v97 = vunpack.c.l.b16 %v19
  %v98 = vunpack.c.l.b16 %v20
  %v99 = vunpack.c.l.b16 %v21
  %v100 = vunpack.c.l.b16 %v22
  %v101 = vunpack.c.l.b16 %v23
  %v102 = vunpack.c.l.b16 %v24
  %v103 = vunpack.c.l.b16 %v25
  %v104 = vunpack.c.l.b16 %v26
  %v105 = vunpack.c.l.b16 %v27
  %v106 = vunpack.c.l.b16 %v28
  %v107 = vunpack.c.l.b16 %v29
  %v108 = vunpack.c.l.b16 %v30
  %v109 = vunpack.c.l.b16 %v31
  %v110 = vunpack.c.l.b16 %v32
  %v111 = vunpack.c.l.b16 %v33
  %v112 = vunpack.c.l.b16 %v34
  %v113 = vunpack.c.l.b16 %v35
  %v114 = vunpack.c.l.b16 %v36
  %v115 = vpack.c.b16 %v98, %v97
  %v116 = vpack.c.b16 %v100, %v99
  %v117 = vpack.c.b16 %v102, %v101
  %v118 = vpack.c.b16 %v104, %v103
  %v119 = vpack.c.b16 %v106, %v105
  %v120 = vpack.c.b16 %v108, %v107
  %v121 = vpack.c.b16 %v110, %v109
  %v122 = vpack.c.b16 %v112, %v111
  %v123 = vpack.c.b16 %v114, %v113
  %vm133 = vcmask 130048
  %v135 = vsel %vm133, %v74, 0
  %v138 = vsel %vm133, %v76, 0
  %140 = vmatprep.subr.bf16.mxu0 0
  %141 = vmatpush1.bf16.msra.mxu0 %v115
  %142 = vmatprep.subr.bf16.mxu0 0
  %143 = vmatpush1.bf16.msra.mxu0 %v116
  %144 = vmatprep.subr.bf16.mxu0 0
  %145 = vmatpush1.bf16.msra.mxu0 %v117
  %146 = vmatprep.subr.bf16.mxu0 0
  %147 = vmatpush1.bf16.msra.mxu0 %v118
  %148 = vmatprep.subr.bf16.mxu0 0
  %149 = vmatpush1.bf16.msra.mxu0 %v119
  %150 = vmatprep.subr.bf16.mxu0 0
  %151 = vmatpush1.bf16.msra.mxu0 %v120
  %152 = vmatprep.subr.bf16.mxu0 0
  %153 = vmatpush1.bf16.msra.mxu0 %v121
  %154 = vmatprep.subr.bf16.mxu0 0
  %155 = vmatpush1.bf16.msra.mxu0 %v122
  %156 = vmatprep.subr.bf16.mxu0 0
  %157 = vmatpush1.bf16.msra.mxu0 %v123
  %158 = vmatprep.subr.bf16.mxu0 0
  %159 = vmatpush1.bf16.msra.mxu0 0
  %160 = vmatprep.subr.bf16.mxu0 0
  %161 = vmatpush1.bf16.msra.mxu0 0
  %162 = vmatprep.subr.bf16.mxu0 0
  %163 = vmatpush1.bf16.msra.mxu0 0
  %164 = vmatprep.subr.bf16.mxu0 0
  %165 = vmatpush1.bf16.msra.mxu0 0
  %166 = vmatprep.subr.bf16.mxu0 0
  %167 = vmatpush1.bf16.msra.mxu0 0
  %168 = vmatprep.subr.bf16.mxu0 0
  %169 = vmatpush1.bf16.msra.mxu0 0
  %170 = vmatprep.subr.bf16.mxu0 0
  %171 = vmatpush1.bf16.msra.mxu0 0
  %172 = vmatprep.mubr.bf16.mxu0 %v135
  %173 = vmatmul.mubr.bf16.gmra.mrb[0].mxu0 %v73
  %v174 = vpop.f32.mrb[0].mxu0
  %v175 = vadd.f32 %v44, %v174
  %v176 = vpop.f32.mrb[0].mxu0
  %v177 = vpop.f32.mrb[0].mxu0
  %v178 = vadd.f32 %v49, %v177
  %v179 = vpop.f32.mrb[0].mxu0
  %180 = vmatprep.mubr.bf16.mxu0 %v138
  %181 = vmatmul.mubr.bf16.gmra.mrb[0].mxu0 %v75
  %v182 = vpop.f32.mrb[0].mxu0
  %v183 = vadd.f32 %v54, %v182
  %v184 = vpop.f32.mrb[0].mxu0
  %v185 = vpop.f32.mrb[0].mxu0
  %v186 = vadd.f32 %v59, %v185
  %v187 = vpop.f32.mrb[0].mxu0
  %188 = vdwg.mxu0
  %v189 = vxor.u32 %v175, 2147483648
  %v190 = vxor.u32 %v178, 2147483648
  %v191 = vxor.u32 %v183, 2147483648
  %v192 = vxor.u32 %v186, 2147483648
  %v193 = vmul.f32 %v189, 1.442695
  %v194 = vpow.pop %v193
  %v195 = vmul.f32 %v190, 1.442695
  %v196 = vpow.pop %v195
  %v197 = vmul.f32 %v191, 1.442695
  %v198 = vpow.pop %v197
  %v199 = vmul.f32 %v192, 1.442695
  %v200 = vpow.pop %v199
  %v201 = vadd.f32 %v194, 1.0
  %v202 = vadd.f32 %v196, 1.0
  %v203 = vadd.f32 %v198, 1.0
  %v204 = vadd.f32 %v200, 1.0
  %v205 = vrcp.pop %v201
  %v206 = vmul.f32 1.0, %v205
  %v207 = vrcp.pop %v202
  %v208 = vmul.f32 1.0, %v207
  %v209 = vrcp.pop %v203
  %v210 = vmul.f32 1.0, %v209
  %v211 = vrcp.pop %v204
  %v212 = vmul.f32 1.0, %v211
  %v213 = vmul.f32 %v175, %v206
  %v214 = vmul.f32 %v178, %v208
  %v215 = vmul.f32 %v183, %v210
  %v216 = vmul.f32 %v186, %v212
  %v217 = vpack.c.bf16 %v214, %v213
  %v218 = vpack.c.bf16 %v216, %v215
  %v221 = vunpack.c.l.b16 %v217
  %v222 = vunpack.c.h.b16 %v217
  %v223 = vunpack.c.l.b16 %v218
  %v224 = vunpack.c.h.b16 %v218
  %v225 = vpack.c.b16 %v221, %v221
  %v226 = vpack.c.b16 %v222, %v222
  %v227 = vpack.c.b16 %v223, %v223
  %v228 = vpack.c.b16 %v224, %v224
  %233 = vst [vmem:[%s3] sm:$0xf] %v225
  %234 = vst [vmem:[%s3 + $0x4] sm:$0xf] %v226
  %235 = vst [vmem:[%s3 + $0x8] sm:$0xf] %v227
  %236 = vst [vmem:[%s3 + $0xc] sm:$0xf] %v228
  // Predicated region
  $region14: #{model_forward.33} parent=0 // pred_check
    _
  $region15: #{model_forward.33} parent=0 // pred_check_branch
    %238 = sbr.rel (0) target = $region17
  $region16: #{model_forward.33} parent=0 // pred_region
    _
  $region17: #{model_forward.33} parent=0 // pred_fallthru
    _
  // Predicated region
  $region18: #{model_forward.33} parent=0 // pred_check
    _
  $region19: #{model_forward.33} parent=0 // pred_check_branch
    %240 = sbr.rel (0) target = $region21
  $region20: #{model_forward.33} parent=0 // pred_region
    _
  $region21: #{model_forward.33} parent=0 // pred_fallthru
    _

// kernel: model_forward.34
$region0: #{model_forward.34}
  #allocation0 [shape = 'u32[]', space=smem, size = 0x4, offset = 0x4, fixed_abs, tag = 'smem constant byte address 0x4 - core index']
  #allocation1 [shape = 'u32[144,128]{1,0:T(1,128)}', space=vmem, size = 0x12000, scoped, tag = 'internal scratch']
  %s0 = inlined_call_operand.vmem [shape: bf16[48,288], index: 0, kind: input, shape index: {}]
  %s1 = inlined_call_operand.vmem [shape: bf16[288,128], index: 1, kind: input, shape index: {}]
  %s2 = inlined_call_operand.vmem [shape: f32[48,1], index: 2, kind: input, shape index: {}]
  %s3 = inlined_call_operand.vmem [shape: bf16[48,128], index: 3, kind: output, shape index: {}]
  %s4 = sld [smem:[#allocation0]]
  $region22: #{model_forward.34} parent=0
    _
  %s6 = ssub.s32 1, %s4
  %s7 = scalar_select 0, %s6, %s4
  // Predicated region
  $region2: #{model_forward.34} parent=0 // pred_check
    _
  $region3: #{model_forward.34} parent=0 // pred_check_branch
    %9 = sbr.rel (0) target = $region5
  $region4: #{model_forward.34} parent=0 // pred_region
    _
  $region5: #{model_forward.34} parent=0 // pred_fallthru
    _
  // Predicated region
  $region6: #{model_forward.34} parent=0 // pred_check
    _
  $region7: #{model_forward.34} parent=0 // pred_check_branch
    %11 = sbr.rel (0) target = $region9
  $region8: #{model_forward.34} parent=0 // pred_region
    _
  $region9: #{model_forward.34} parent=0 // pred_fallthru
    _
  // Predicated region
  $region10: #{model_forward.34} parent=0 // pred_check
    _
  $region11: #{model_forward.34} parent=0 // pred_check_branch
    %13 = sbr.rel (0) target = $region13
  $region12: #{model_forward.34} parent=0 // pred_region
    _
  $region13: #{model_forward.34} parent=0 // pred_fallthru
    _
  %v15 = vld [vmem:[%s0] sm:$0xff]
  %v16 = vld [vmem:[%s0 + $0x8] sm:$0xf]
  %v17 = vld [vmem:[%s0 + $0xc] sm:$0xff]
  %v18 = vld [vmem:[%s0 + $0x14] sm:$0xf]
  %v19 = vld [vmem:[%s0 + $0x18] sm:$0xff]
  %v20 = vld [vmem:[%s0 + $0x20] sm:$0xf]
  %v21 = vld [vmem:[%s0 + $0x24] sm:$0xff]
  %v22 = vld [vmem:[%s0 + $0x2c] sm:$0xf]
  %v23 = vld [vmem:[%s0 + $0x30] sm:$0xff]
  %v24 = vld [vmem:[%s0 + $0x38] sm:$0xf]
  %v25 = vld [vmem:[%s0 + $0x3c] sm:$0xff]
  %v26 = vld [vmem:[%s0 + $0x44] sm:$0xf]
  %v27 = vld [vmem:[%s1] sm:$0xf]
  %v28 = vld [vmem:[%s1 + $0x4] sm:$0xf]
  %v29 = vld [vmem:[%s1 + $0x8] sm:$0xf]
  %v30 = vld [vmem:[%s1 + $0xc] sm:$0xf]
  %v31 = vld [vmem:[%s1 + $0x10] sm:$0xf]
  %v32 = vld [vmem:[%s1 + $0x14] sm:$0xf]
  %v33 = vld [vmem:[%s1 + $0x18] sm:$0xf]
  %v34 = vld [vmem:[%s1 + $0x1c] sm:$0xf]
  %v35 = vld [vmem:[%s1 + $0x20] sm:$0xf]
  %v36 = vld [vmem:[%s1 + $0x24] sm:$0xf]
  %v37 = vld [vmem:[%s1 + $0x28] sm:$0xf]
  %v38 = vld [vmem:[%s1 + $0x2c] sm:$0xf]
  %v39 = vld [vmem:[%s1 + $0x30] sm:$0xf]
  %v40 = vld [vmem:[%s1 + $0x34] sm:$0xf]
  %v41 = vld [vmem:[%s1 + $0x38] sm:$0xf]
  %v42 = vld [vmem:[%s1 + $0x3c] sm:$0xf]
  %v43 = vld [vmem:[%s1 + $0x40] sm:$0xf]
  %v44 = vld [vmem:[%s1 + $0x44] sm:$0xf]
  %v45 = vld [vmem:[%s1 + $0x48] sm:$0xf]
  %v46 = vld [vmem:[%s1 + $0x4c] sm:$0xf]
  %v47 = vld [vmem:[%s1 + $0x50] sm:$0xf]
  %v48 = vld [vmem:[%s1 + $0x54] sm:$0xf]
  %v49 = vld [vmem:[%s1 + $0x58] sm:$0xf]
  %v50 = vld [vmem:[%s1 + $0x5c] sm:$0xf]
  %v51 = vld [vmem:[%s1 + $0x60] sm:$0xf]
  %v52 = vld [vmem:[%s1 + $0x64] sm:$0xf]
  %v53 = vld [vmem:[%s1 + $0x68] sm:$0xf]
  %v54 = vld [vmem:[%s1 + $0x6c] sm:$0xf]
  %v55 = vld [vmem:[%s1 + $0x70] sm:$0xf]
  %v56 = vld [vmem:[%s1 + $0x74] sm:$0xf]
  %v57 = vld [vmem:[%s1 + $0x78] sm:$0xf]
  %v58 = vld [vmem:[%s1 + $0x7c] sm:$0xf]
  %v59 = vld [vmem:[%s1 + $0x80] sm:$0xf]
  %v60 = vld [vmem:[%s1 + $0x84] sm:$0xf]
  %v61 = vld [vmem:[%s1 + $0x88] sm:$0xf]
  %v62 = vld [vmem:[%s1 + $0x8c] sm:$0xf]
  %v63 = vld [vmem:[%s2] sm:$0xff]
  %v64 = vld [vmem:[%s2 + $0x8] sm:$0xff]
  %v65 = vld [vmem:[%s2 + $0x10] sm:$0xff]
  %v66 = vld [vmem:[%s2 + $0x18] sm:$0xff]
  %v67 = vld [vmem:[%s2 + $0x20] sm:$0xff]
  %v68 = vld [vmem:[%s2 + $0x28] sm:$0xff]
  %70 = vset.pattern.permute.xlu0 0
  %71 = vperm.xlu0 %70, %v63
  %v72 = vpop.permute.xlu0 %71
  %75 = vset.pattern.permute.xlu0 0
  %76 = vperm.xlu0 %75, %v64
  %v77 = vpop.permute.xlu0 %76
  %80 = vset.pattern.permute.xlu0 0
  %81 = vperm.xlu0 %80, %v65
  %v82 = vpop.permute.xlu0 %81
  %85 = vset.pattern.permute.xlu0 0
  %86 = vperm.xlu0 %85, %v66
  %v87 = vpop.permute.xlu0 %86
  %90 = vset.pattern.permute.xlu0 0
  %91 = vperm.xlu0 %90, %v67
  %v92 = vpop.permute.xlu0 %91
  %95 = vset.pattern.permute.xlu0 0
  %96 = vperm.xlu0 %95, %v68
  %v97 = vpop.permute.xlu0 %96
  %v111 = vunpack.c.l.b16 %v15
  %v112 = vunpack.c.h.b16 %v15
  %v113 = vunpack.c.l.b16 %v16
  %v114 = vunpack.c.l.b16 %v17
  %v115 = vunpack.c.h.b16 %v17
  %v116 = vunpack.c.l.b16 %v18
  %v117 = vunpack.c.l.b16 %v19
  %v118 = vunpack.c.h.b16 %v19
  %v119 = vunpack.c.l.b16 %v20
  %v120 = vunpack.c.l.b16 %v21
  %v121 = vunpack.c.h.b16 %v21
  %v122 = vunpack.c.l.b16 %v22
  %v123 = vunpack.c.l.b16 %v23
  %v124 = vunpack.c.h.b16 %v23
  %v125 = vunpack.c.l.b16 %v24
  %v126 = vunpack.c.l.b16 %v25
  %v127 = vunpack.c.h.b16 %v25
  %v128 = vunpack.c.l.b16 %v26
  %v129 = vpack.c.b16 %v114, %v111
  %v130 = vpack.c.b16 %v115, %v112
  %v131 = vpack.c.b16 %v116, %v113
  %v132 = vpack.c.b16 %v120, %v117
  %v133 = vpack.c.b16 %v121, %v118
  %v134 = vpack.c.b16 %v122, %v119
  %v135 = vpack.c.b16 %v126, %v123
  %v136 = vpack.c.b16 %v127, %v124
  %v137 = vpack.c.b16 %v128, %v125
  %v180 = vunpack.c.l.b16 %v27
  %v181 = vunpack.c.l.b16 %v28
  %v182 = vunpack.c.l.b16 %v29
  %v183 = vunpack.c.l.b16 %v30
  %v184 = vunpack.c.l.b16 %v31
  %v185 = vunpack.c.l.b16 %v32
  %v186 = vunpack.c.l.b16 %v33
  %v187 = vunpack.c.l.b16 %v34
  %v188 = vunpack.c.l.b16 %v35
  %v189 = vunpack.c.l.b16 %v36
  %v190 = vunpack.c.l.b16 %v37
  %v191 = vunpack.c.l.b16 %v38
  %v192 = vunpack.c.l.b16 %v39
  %v193 = vunpack.c.l.b16 %v40
  %v194 = vunpack.c.l.b16 %v41
  %v195 = vunpack.c.l.b16 %v42
  %v196 = vunpack.c.l.b16 %v43
  %v197 = vunpack.c.l.b16 %v44
  %v198 = vunpack.c.l.b16 %v45
  %v199 = vunpack.c.l.b16 %v46
  %v200 = vunpack.c.l.b16 %v47
  %v201 = vunpack.c.l.b16 %v48
  %v202 = vunpack.c.l.b16 %v49
  %v203 = vunpack.c.l.b16 %v50
  %v204 = vunpack.c.l.b16 %v51
  %v205 = vunpack.c.l.b16 %v52
  %v206 = vunpack.c.l.b16 %v53
  %v207 = vunpack.c.l.b16 %v54
  %v208 = vunpack.c.l.b16 %v55
  %v209 = vunpack.c.l.b16 %v56
  %v210 = vunpack.c.l.b16 %v57
  %v211 = vunpack.c.l.b16 %v58
  %v212 = vunpack.c.l.b16 %v59
  %v213 = vunpack.c.l.b16 %v60
  %v214 = vunpack.c.l.b16 %v61
  %v215 = vunpack.c.l.b16 %v62
  %v216 = vpack.c.b16 %v181, %v180
  %v217 = vpack.c.b16 %v183, %v182
  %v218 = vpack.c.b16 %v185, %v184
  %v219 = vpack.c.b16 %v187, %v186
  %v220 = vpack.c.b16 %v189, %v188
  %v221 = vpack.c.b16 %v191, %v190
  %v222 = vpack.c.b16 %v193, %v192
  %v223 = vpack.c.b16 %v195, %v194
  %v224 = vpack.c.b16 %v197, %v196
  %v225 = vpack.c.b16 %v199, %v198
  %v226 = vpack.c.b16 %v201, %v200
  %v227 = vpack.c.b16 %v203, %v202
  %v228 = vpack.c.b16 %v205, %v204
  %v229 = vpack.c.b16 %v207, %v206
  %v230 = vpack.c.b16 %v209, %v208
  %v231 = vpack.c.b16 %v211, %v210
  %v232 = vpack.c.b16 %v213, %v212
  %v233 = vpack.c.b16 %v215, %v214
  %vm252 = vcmask 261120
  %v254 = vsel %vm252, %v131, 0
  %v257 = vsel %vm252, %v134, 0
  %v260 = vsel %vm252, %v137, 0
  %262 = vmatprep.subr.bf16.mxu0 0
  %263 = vmatpush1.bf16.msra.mxu0 %v216
  %264 = vmatprep.subr.bf16.mxu0 0
  %265 = vmatpush1.bf16.msra.mxu0 %v217
  %266 = vmatprep.subr.bf16.mxu0 0
  %267 = vmatpush1.bf16.msra.mxu0 %v218
  %268 = vmatprep.subr.bf16.mxu0 0
  %269 = vmatpush1.bf16.msra.mxu0 %v219
  %270 = vmatprep.subr.bf16.mxu0 0
  %271 = vmatpush1.bf16.msra.mxu0 %v220
  %272 = vmatprep.subr.bf16.mxu0 0
  %273 = vmatpush1.bf16.msra.mxu0 %v221
  %274 = vmatprep.subr.bf16.mxu0 0
  %275 = vmatpush1.bf16.msra.mxu0 %v222
  %276 = vmatprep.subr.bf16.mxu0 0
  %277 = vmatpush1.bf16.msra.mxu0 %v223
  %278 = vmatprep.subr.bf16.mxu0 0
  %279 = vmatpush1.bf16.msra.mxu0 %v224
  %280 = vmatprep.subr.bf16.mxu0 0
  %281 = vmatpush1.bf16.msra.mxu0 %v225
  %282 = vmatprep.subr.bf16.mxu0 0
  %283 = vmatpush1.bf16.msra.mxu0 %v226
  %284 = vmatprep.subr.bf16.mxu0 0
  %285 = vmatpush1.bf16.msra.mxu0 %v227
  %286 = vmatprep.subr.bf16.mxu0 0
  %287 = vmatpush1.bf16.msra.mxu0 %v228
  %288 = vmatprep.subr.bf16.mxu0 0
  %289 = vmatpush1.bf16.msra.mxu0 %v229
  %290 = vmatprep.subr.bf16.mxu0 0
  %291 = vmatpush1.bf16.msra.mxu0 %v230
  %292 = vmatprep.subr.bf16.mxu0 0
  %293 = vmatpush1.bf16.msra.mxu0 %v231
  %294 = vmatprep.mubr.bf16.mxu0 %v130
  %295 = vmatmul.mubr.bf16.gmra.mrb[0].mxu0 %v129
  %v296 = vpop.f32.mrb[0].mxu0
  %v297 = vadd.f32 %v72, %v296
  %v298 = vpop.f32.mrb[0].mxu0
  %v299 = vpop.f32.mrb[0].mxu0
  %v300 = vadd.f32 %v77, %v299
  %v301 = vpop.f32.mrb[0].mxu0
  %302 = vmatprep.mubr.bf16.mxu0 %v133
  %303 = vmatmul.mubr.bf16.gmra.mrb[0].mxu0 %v132
  %v304 = vpop.f32.mrb[0].mxu0
  %v305 = vadd.f32 %v82, %v304
  %v306 = vpop.f32.mrb[0].mxu0
  %v307 = vpop.f32.mrb[0].mxu0
  %v308 = vadd.f32 %v87, %v307
  %v309 = vpop.f32.mrb[0].mxu0
  %310 = vmatprep.mubr.bf16.mxu0 %v136
  %311 = vmatmul.mubr.bf16.gmra.mrb[0].mxu0 %v135
  %v312 = vpop.f32.mrb[0].mxu0
  %v313 = vadd.f32 %v92, %v312
  %v314 = vpop.f32.mrb[0].mxu0
  %v315 = vpop.f32.mrb[0].mxu0
  %v316 = vadd.f32 %v97, %v315
  %v317 = vpop.f32.mrb[0].mxu0
  %318 = vdwg.mxu0
  %319 = vmatprep.subr.bf16.mxu0 0
  %320 = vmatpush1.bf16.msra.mxu0 %v232
  %321 = vmatprep.subr.bf16.mxu0 0
  %322 = vmatpush1.bf16.msra.mxu0 %v233
  %323 = vmatprep.subr.bf16.mxu0 0
  %324 = vmatpush1.bf16.msra.mxu0 0
  %325 = vmatprep.subr.bf16.mxu0 0
  %326 = vmatpush1.bf16.msra.mxu0 0
  %327 = vmatprep.subr.bf16.mxu0 0
  %328 = vmatpush1.bf16.msra.mxu0 0
  %329 = vmatprep.subr.bf16.mxu0 0
  %330 = vmatpush1.bf16.msra.mxu0 0
  %331 = vmatprep.subr.bf16.mxu0 0
  %332 = vmatpush1.bf16.msra.mxu0 0
  %333 = vmatprep.subr.bf16.mxu0 0
  %334 = vmatpush1.bf16.msra.mxu0 0
  %335 = vmatprep.subr.bf16.mxu0 0
  %336 = vmatpush1.bf16.msra.mxu0 0
  %337 = vmatprep.subr.bf16.mxu0 0
  %338 = vmatpush1.bf16.msra.mxu0 0
  %339 = vmatprep.subr.bf16.mxu0 0
  %340 = vmatpush1.bf16.msra.mxu0 0
  %341 = vmatprep.subr.bf16.mxu0 0
  %342 = vmatpush1.bf16.msra.mxu0 0
  %343 = vmatprep.subr.bf16.mxu0 0
  %344 = vmatpush1.bf16.msra.mxu0 0
  %345 = vmatprep.subr.bf16.mxu0 0
  %346 = vmatpush1.bf16.msra.mxu0 0
  %347 = vmatprep.subr.bf16.mxu0 0
  %348 = vmatpush1.bf16.msra.mxu0 0
  %349 = vmatprep.subr.bf16.mxu0 0
  %350 = vmatpush1.bf16.msra.mxu0 0
  %351 = vmatprep.mubr.bf16.mxu0 0
  %352 = vmatmul.mubr.bf16.gmra.mrb[0].mxu0 %v254
  %v353 = vpop.f32.mrb[0].mxu0
  %v354 = vadd.f32 %v297, %v353
  %v355 = vpop.f32.mrb[0].mxu0
  %v356 = vpop.f32.mrb[0].mxu0
  %v357 = vadd.f32 %v300, %v356
  %v358 = vpop.f32.mrb[0].mxu0
  %359 = vmatprep.mubr.bf16.mxu0 0
  %360 = vmatmul.mubr.bf16.gmra.mrb[0].mxu0 %v257
  %v361 = vpop.f32.mrb[0].mxu0
  %v362 = vadd.f32 %v305, %v361
  %v363 = vpop.f32.mrb[0].mxu0
  %v364 = vpop.f32.mrb[0].mxu0
  %v365 = vadd.f32 %v308, %v364
  %v366 = vpop.f32.mrb[0].mxu0
  %367 = vmatprep.mubr.bf16.mxu0 0
  %368 = vmatmul.mubr.bf16.gmra.mrb[0].mxu0 %v260
  %v369 = vpop.f32.mrb[0].mxu0
  %v370 = vadd.f32 %v313, %v369
  %v371 = vpop.f32.mrb[0].mxu0
  %v372 = vpop.f32.mrb[0].mxu0
  %v373 = vadd.f32 %v316, %v372
  %v374 = vpop.f32.mrb[0].mxu0
  %375 = vdwg.mxu0
  %v376 = vxor.u32 %v354, 2147483648
  %v377 = vxor.u32 %v357, 2147483648
  %v378 = vxor.u32 %v362, 2147483648
  %v379 = vxor.u32 %v365, 2147483648
  %v380 = vxor.u32 %v370, 2147483648
  %v381 = vxor.u32 %v373, 2147483648
  %v382 = vmul.f32 %v376, 1.442695
  %v383 = vpow.pop %v382
  %v384 = vmul.f32 %v377, 1.442695
  %v385 = vpow.pop %v384
  %v386 = vmul.f32 %v378, 1.442695
  %v387 = vpow.pop %v386
  %v388 = vmul.f32 %v379, 1.442695
  %v389 = vpow.pop %v388
  %v390 = vmul.f32 %v380, 1.442695
  %v391 = vpow.pop %v390
  %v392 = vmul.f32 %v381, 1.442695
  %v393 = vpow.pop %v392
  %v394 = vadd.f32 %v383, 1.0
  %v395 = vadd.f32 %v385, 1.0
  %v396 = vadd.f32 %v387, 1.0
  %v397 = vadd.f32 %v389, 1.0
  %v398 = vadd.f32 %v391, 1.0
  %v399 = vadd.f32 %v393, 1.0
  %v400 = vrcp.pop %v394
  %v401 = vmul.f32 1.0, %v400
  %v402 = vrcp.pop %v395
  %v403 = vmul.f32 1.0, %v402
  %v404 = vrcp.pop %v396
  %v405 = vmul.f32 1.0, %v404
  %v406 = vrcp.pop %v397
  %v407 = vmul.f32 1.0, %v406
  %v408 = vrcp.pop %v398
  %v409 = vmul.f32 1.0, %v408
  %v410 = vrcp.pop %v399
  %v411 = vmul.f32 1.0, %v410
  %v412 = vmul.f32 %v354, %v401
  %v413 = vmul.f32 %v357, %v403
  %v414 = vmul.f32 %v362, %v405
  %v415 = vmul.f32 %v365, %v407
  %v416 = vmul.f32 %v370, %v409
  %v417 = vmul.f32 %v373, %v411
  %v418 = vpack.c.bf16 %v413, %v412
  %v419 = vpack.c.bf16 %v415, %v414
  %v420 = vpack.c.bf16 %v417, %v416
  %v424 = vunpack.c.l.b16 %v418
  %v425 = vunpack.c.h.b16 %v418
  %v426 = vunpack.c.l.b16 %v419
  %v427 = vunpack.c.h.b16 %v419
  %v428 = vunpack.c.l.b16 %v420
  %v429 = vunpack.c.h.b16 %v420
  %v430 = vpack.c.b16 %v424, %v424
  %v431 = vpack.c.b16 %v425, %v425
  %v432 = vpack.c.b16 %v426, %v426
  %v433 = vpack.c.b16 %v427, %v427
  %v434 = vpack.c.b16 %v428, %v428
  %v435 = vpack.c.b16 %v429, %v429
  %442 = vst [vmem:[%s3] sm:$0xf] %v430
  %443 = vst [vmem:[%s3 + $0x4] sm:$0xf] %v431
  %444 = vst [vmem:[%s3 + $0x8] sm:$0xf] %v432
  %445 = vst [vmem:[%s3 + $0xc] sm:$0xf] %v433
  %446 = vst [vmem:[%s3 + $0x10] sm:$0xf] %v434
  %447 = vst [vmem:[%s3 + $0x14] sm:$0xf] %v435
  // Predicated region
  $region14: #{model_forward.34} parent=0 // pred_check
    _
  $region15: #{model_forward.34} parent=0 // pred_check_branch
    %449 = sbr.rel (0) target = $region17
  $region16: #{model_forward.34} parent=0 // pred_region
    _
  $region17: #{model_forward.34} parent=0 // pred_fallthru
    _
  // Predicated region
  $region18: #{model_forward.34} parent=0 // pred_check
    _
  $region19: #{model_forward.34} parent=0 // pred_check_branch
    %451 = sbr.rel (0) target = $region21
  $region20: #{model_forward.34} parent=0 // pred_region
    _
  $region21: #{model_forward.34} parent=0 // pred_fallthru
    _

// kernel: model_forward.35
$region0: #{model_forward.35}
  #allocation0 [shape = 'u32[]', space=smem, size = 0x4, offset = 0x4, fixed_abs, tag = 'smem constant byte address 0x4 - core index']
  #allocation1 [shape = 'u32[144,128]{1,0:T(1,128)}', space=vmem, size = 0x12000, scoped, tag = 'internal scratch']
  %s0 = inlined_call_operand.vmem [shape: bf16[64,432], index: 0, kind: input, shape index: {}]
  %s1 = inlined_call_operand.vmem [shape: bf16[432,128], index: 1, kind: input, shape index: {}]
  %s2 = inlined_call_operand.vmem [shape: f32[64,1], index: 2, kind: input, shape index: {}]
  %s3 = inlined_call_operand.vmem [shape: bf16[64,128], index: 3, kind: output, shape index: {}]
  %s4 = sld [smem:[#allocation0]]
  $region22: #{model_forward.35} parent=0
    _
  %s6 = ssub.s32 1, %s4
  %s7 = scalar_select 0, %s6, %s4
  // Predicated region
  $region2: #{model_forward.35} parent=0 // pred_check
    _
  $region3: #{model_forward.35} parent=0 // pred_check_branch
    %9 = sbr.rel (0) target = $region5
  $region4: #{model_forward.35} parent=0 // pred_region
    _
  $region5: #{model_forward.35} parent=0 // pred_fallthru
    _
  // Predicated region
  $region6: #{model_forward.35} parent=0 // pred_check
    _
  $region7: #{model_forward.35} parent=0 // pred_check_branch
    %11 = sbr.rel (0) target = $region9
  $region8: #{model_forward.35} parent=0 // pred_region
    _
  $region9: #{model_forward.35} parent=0 // pred_fallthru
    _
  // Predicated region
  $region10: #{model_forward.35} parent=0 // pred_check
    _
  $region11: #{model_forward.35} parent=0 // pred_check_branch
    %13 = sbr.rel (0) target = $region13
  $region12: #{model_forward.35} parent=0 // pred_region
    _
  $region13: #{model_forward.35} parent=0 // pred_fallthru
    _
  %v15 = vld [vmem:[%s0] sm:$0xff]
  %v16 = vld [vmem:[%s0 + $0x8] sm:$0xff]
  %v17 = vld [vmem:[%s0 + $0x10] sm:$0xff]
  %v18 = vld [vmem:[%s0 + $0x18] sm:$0xff]
  %v19 = vld [vmem:[%s0 + $0x20] sm:$0xff]
  %v20 = vld [vmem:[%s0 + $0x28] sm:$0xff]
  %v21 = vld [vmem:[%s0 + $0x30] sm:$0xff]
  %v22 = vld [vmem:[%s0 + $0x38] sm:$0xff]
  %v23 = vld [vmem:[%s0 + $0x40] sm:$0xff]
  %v24 = vld [vmem:[%s0 + $0x48] sm:$0xff]
  %v25 = vld [vmem:[%s0 + $0x50] sm:$0xff]
  %v26 = vld [vmem:[%s0 + $0x58] sm:$0xff]
  %v27 = vld [vmem:[%s0 + $0x60] sm:$0xff]
  %v28 = vld [vmem:[%s0 + $0x68] sm:$0xff]
  %v29 = vld [vmem:[%s0 + $0x70] sm:$0xff]
  %v30 = vld [vmem:[%s0 + $0x78] sm:$0xff]
  %v31 = vld [vmem:[%s1] sm:$0xf]
  %v32 = vld [vmem:[%s1 + $0x4] sm:$0xf]
  %v33 = vld [vmem:[%s1 + $0x8] sm:$0xf]
  %v34 = vld [vmem:[%s1 + $0xc] sm:$0xf]
  %v35 = vld [vmem:[%s1 + $0x10] sm:$0xf]
  %v36 = vld [vmem:[%s1 + $0x14] sm:$0xf]
  %v37 = vld [vmem:[%s1 + $0x18] sm:$0xf]
  %v38 = vld [vmem:[%s1 + $0x1c] sm:$0xf]
  %v39 = vld [vmem:[%s1 + $0x20] sm:$0xf]
  %v40 = vld [vmem:[%s1 + $0x24] sm:$0xf]
  %v41 = vld [vmem:[%s1 + $0x28] sm:$0xf]
  %v42 = vld [vmem:[%s1 + $0x2c] sm:$0xf]
  %v43 = vld [vmem:[%s1 + $0x30] sm:$0xf]
  %v44 = vld [vmem:[%s1 + $0x34] sm:$0xf]
  %v45 = vld [vmem:[%s1 + $0x38] sm:$0xf]
  %v46 = vld [vmem:[%s1 + $0x3c] sm:$0xf]
  %v47 = vld [vmem:[%s1 + $0x40] sm:$0xf]
  %v48 = vld [vmem:[%s1 + $0x44] sm:$0xf]
  %v49 = vld [vmem:[%s1 + $0x48] sm:$0xf]
  %v50 = vld [vmem:[%s1 + $0x4c] sm:$0xf]
  %v51 = vld [vmem:[%s1 + $0x50] sm:$0xf]
  %v52 = vld [vmem:[%s1 + $0x54] sm:$0xf]
  %v53 = vld [vmem:[%s1 + $0x58] sm:$0xf]
  %v54 = vld [vmem:[%s1 + $0x5c] sm:$0xf]
  %v55 = vld [vmem:[%s1 + $0x60] sm:$0xf]
  %v56 = vld [vmem:[%s1 + $0x64] sm:$0xf]
  %v57 = vld [vmem:[%s1 + $0x68] sm:$0xf]
  %v58 = vld [vmem:[%s1 + $0x6c] sm:$0xf]
  %v59 = vld [vmem:[%s1 + $0x70] sm:$0xf]
  %v60 = vld [vmem:[%s1 + $0x74] sm:$0xf]
  %v61 = vld [vmem:[%s1 + $0x78] sm:$0xf]
  %v62 = vld [vmem:[%s1 + $0x7c] sm:$0xf]
  %v63 = vld [vmem:[%s1 + $0x80] sm:$0xf]
  %v64 = vld [vmem:[%s1 + $0x84] sm:$0xf]
  %v65 = vld [vmem:[%s1 + $0x88] sm:$0xf]
  %v66 = vld [vmem:[%s1 + $0x8c] sm:$0xf]
  %v67 = vld [vmem:[%s1 + $0x90] sm:$0xf]
  %v68 = vld [vmem:[%s1 + $0x94] sm:$0xf]
  %v69 = vld [vmem:[%s1 + $0x98] sm:$0xf]
  %v70 = vld [vmem:[%s1 + $0x9c] sm:$0xf]
  %v71 = vld [vmem:[%s1 + $0xa0] sm:$0xf]
  %v72 = vld [vmem:[%s1 + $0xa4] sm:$0xf]
  %v73 = vld [vmem:[%s1 + $0xa8] sm:$0xf]
  %v74 = vld [vmem:[%s1 + $0xac] sm:$0xf]
  %v75 = vld [vmem:[%s1 + $0xb0] sm:$0xf]
  %v76 = vld [vmem:[%s1 + $0xb4] sm:$0xf]
  %v77 = vld [vmem:[%s1 + $0xb8] sm:$0xf]
  %v78 = vld [vmem:[%s1 + $0xbc] sm:$0xf]
  %v79 = vld [vmem:[%s1 + $0xc0] sm:$0xf]
  %v80 = vld [vmem:[%s1 + $0xc4] sm:$0xf]
  %v81 = vld [vmem:[%s1 + $0xc8] sm:$0xf]
  %v82 = vld [vmem:[%s1 + $0xcc] sm:$0xf]
  %v83 = vld [vmem:[%s1 + $0xd0] sm:$0xf]
  %v84 = vld [vmem:[%s1 + $0xd4] sm:$0xf]
  %v85 = vld [vmem:[%s2] sm:$0xff]
  %v86 = vld [vmem:[%s2 + $0x8] sm:$0xff]
  %v87 = vld [vmem:[%s2 + $0x10] sm:$0xff]
  %v88 = vld [vmem:[%s2 + $0x18] sm:$0xff]
  %v89 = vld [vmem:[%s2 + $0x20] sm:$0xff]
  %v90 = vld [vmem:[%s2 + $0x28] sm:$0xff]
  %v91 = vld [vmem:[%s2 + $0x30] sm:$0xff]
  %v92 = vld [vmem:[%s2 + $0x38] sm:$0xff]
  %94 = vset.pattern.permute.xlu0 0
  %95 = vperm.xlu0 %94, %v85
  %v96 = vpop.permute.xlu0 %95
  %99 = vset.pattern.permute.xlu0 0
  %100 = vperm.xlu0 %99, %v86
  %v101 = vpop.permute.xlu0 %100
  %104 = vset.pattern.permute.xlu0 0
  %105 = vperm.xlu0 %104, %v87
  %v106 = vpop.permute.xlu0 %105
  %109 = vset.pattern.permute.xlu0 0
  %110 = vperm.xlu0 %109, %v88
  %v111 = vpop.permute.xlu0 %110
  %114 = vset.pattern.permute.xlu0 0
  %115 = vperm.xlu0 %114, %v89
  %v116 = vpop.permute.xlu0 %115
  %119 = vset.pattern.permute.xlu0 0
  %120 = vperm.xlu0 %119, %v90
  %v121 = vpop.permute.xlu0 %120
  %124 = vset.pattern.permute.xlu0 0
  %125 = vperm.xlu0 %124, %v91
  %v126 = vpop.permute.xlu0 %125
  %129 = vset.pattern.permute.xlu0 0
  %130 = vperm.xlu0 %129, %v92
  %v131 = vpop.permute.xlu0 %130
  %v149 = vunpack.c.l.b16 %v15
  %v150 = vunpack.c.h.b16 %v15
  %v151 = vunpack.c.l.b16 %v16
  %v152 = vunpack.c.h.b16 %v16
  %v153 = vunpack.c.l.b16 %v17
  %v154 = vunpack.c.h.b16 %v17
  %v155 = vunpack.c.l.b16 %v18
  %v156 = vunpack.c.h.b16 %v18
  %v157 = vunpack.c.l.b16 %v19
  %v158 = vunpack.c.h.b16 %v19
  %v159 = vunpack.c.l.b16 %v20
  %v160 = vunpack.c.h.b16 %v20
  %v161 = vunpack.c.l.b16 %v21
  %v162 = vunpack.c.h.b16 %v21
  %v163 = vunpack.c.l.b16 %v22
  %v164 = vunpack.c.h.b16 %v22
  %v165 = vunpack.c.l.b16 %v23
  %v166 = vunpack.c.h.b16 %v23
  %v167 = vunpack.c.l.b16 %v24
  %v168 = vunpack.c.h.b16 %v24
  %v169 = vunpack.c.l.b16 %v25
  %v170 = vunpack.c.h.b16 %v25
  %v171 = vunpack.c.l.b16 %v26
  %v172 = vunpack.c.h.b16 %v26
  %v173 = vunpack.c.l.b16 %v27
  %v174 = vunpack.c.h.b16 %v27
  %v175 = vunpack.c.l.b16 %v28
  %v176 = vunpack.c.h.b16 %v28
  %v177 = vunpack.c.l.b16 %v29
  %v178 = vunpack.c.h.b16 %v29
  %v179 = vunpack.c.l.b16 %v30
  %v180 = vunpack.c.h.b16 %v30
  %v181 = vpack.c.b16 %v153, %v149
  %v182 = vpack.c.b16 %v154, %v150
  %v183 = vpack.c.b16 %v155, %v151
  %v184 = vpack.c.b16 %v156, %v152
  %v185 = vpack.c.b16 %v161, %v157
  %v186 = vpack.c.b16 %v162, %v158
  %v187 = vpack.c.b16 %v163, %v159
  %v188 = vpack.c.b16 %v164, %v160
  %v189 = vpack.c.b16 %v169, %v165
  %v190 = vpack.c.b16 %v170, %v166
  %v191 = vpack.c.b16 %v171, %v167
  %v192 = vpack.c.b16 %v172, %v168
  %v193 = vpack.c.b16 %v177, %v173
  %v194 = vpack.c.b16 %v178, %v174
  %v195 = vpack.c.b16 %v179, %v175
  %v196 = vpack.c.b16 %v180, %v176
  %v263 = vunpack.c.l.b16 %v31
  %v264 = vunpack.c.l.b16 %v32
  %v265 = vunpack.c.l.b16 %v33
  %v266 = vunpack.c.l.b16 %v34
  %v267 = vunpack.c.l.b16 %v35
  %v268 = vunpack.c.l.b16 %v36
  %v269 = vunpack.c.l.b16 %v37
  %v270 = vunpack.c.l.b16 %v38
  %v271 = vunpack.c.l.b16 %v39
  %v272 = vunpack.c.l.b16 %v40
  %v273 = vunpack.c.l.b16 %v41
  %v274 = vunpack.c.l.b16 %v42
  %v275 = vunpack.c.l.b16 %v43
  %v276 = vunpack.c.l.b16 %v44
  %v277 = vunpack.c.l.b16 %v45
  %v278 = vunpack.c.l.b16 %v46
  %v279 = vunpack.c.l.b16 %v47
  %v280 = vunpack.c.l.b16 %v48
  %v281 = vunpack.c.l.b16 %v49
  %v282 = vunpack.c.l.b16 %v50
  %v283 = vunpack.c.l.b16 %v51
  %v284 = vunpack.c.l.b16 %v52
  %v285 = vunpack.c.l.b16 %v53
  %v286 = vunpack.c.l.b16 %v54
  %v287 = vunpack.c.l.b16 %v55
  %v288 = vunpack.c.l.b16 %v56
  %v289 = vunpack.c.l.b16 %v57
  %v290 = vunpack.c.l.b16 %v58
  %v291 = vunpack.c.l.b16 %v59
  %v292 = vunpack.c.l.b16 %v60
  %v293 = vunpack.c.l.b16 %v61
  %v294 = vunpack.c.l.b16 %v62
  %v295 = vunpack.c.l.b16 %v63
  %v296 = vunpack.c.l.b16 %v64
  %v297 = vunpack.c.l.b16 %v65
  %v298 = vunpack.c.l.b16 %v66
  %v299 = vunpack.c.l.b16 %v67
  %v300 = vunpack.c.l.b16 %v68
  %v301 = vunpack.c.l.b16 %v69
  %v302 = vunpack.c.l.b16 %v70
  %v303 = vunpack.c.l.b16 %v71
  %v304 = vunpack.c.l.b16 %v72
  %v305 = vunpack.c.l.b16 %v73
  %v306 = vunpack.c.l.b16 %v74
  %v307 = vunpack.c.l.b16 %v75
  %v308 = vunpack.c.l.b16 %v76
  %v309 = vunpack.c.l.b16 %v77
  %v310 = vunpack.c.l.b16 %v78
  %v311 = vunpack.c.l.b16 %v79
  %v312 = vunpack.c.l.b16 %v80
  %v313 = vunpack.c.l.b16 %v81
  %v314 = vunpack.c.l.b16 %v82
  %v315 = vunpack.c.l.b16 %v83
  %v316 = vunpack.c.l.b16 %v84
  %v317 = vpack.c.b16 %v264, %v263
  %v318 = vpack.c.b16 %v266, %v265
  %v319 = vpack.c.b16 %v268, %v267
  %v320 = vpack.c.b16 %v270, %v269
  %v321 = vpack.c.b16 %v272, %v271
  %v322 = vpack.c.b16 %v274, %v273
  %v323 = vpack.c.b16 %v276, %v275
  %v324 = vpack.c.b16 %v278, %v277
  %v325 = vpack.c.b16 %v280, %v279
  %v326 = vpack.c.b16 %v282, %v281
  %v327 = vpack.c.b16 %v284, %v283
  %v328 = vpack.c.b16 %v286, %v285
  %v329 = vpack.c.b16 %v288, %v287
  %v330 = vpack.c.b16 %v290, %v289
  %v331 = vpack.c.b16 %v292, %v291
  %v332 = vpack.c.b16 %v294, %v293
  %v333 = vpack.c.b16 %v296, %v295
  %v334 = vpack.c.b16 %v298, %v297
  %v335 = vpack.c.b16 %v300, %v299
  %v336 = vpack.c.b16 %v302, %v301
  %v337 = vpack.c.b16 %v304, %v303
  %v338 = vpack.c.b16 %v306, %v305
  %v339 = vpack.c.b16 %v308, %v307
  %v340 = vpack.c.b16 %v310, %v309
  %v341 = vpack.c.b16 %v312, %v311
  %v342 = vpack.c.b16 %v314, %v313
  %v343 = vpack.c.b16 %v316, %v315
  %vm371 = vcmask 392192
  %v373 = vsel %vm371, %v184, 0
  %v376 = vsel %vm371, %v188, 0
  %v379 = vsel %vm371, %v192, 0
  %v382 = vsel %vm371, %v196, 0
  %384 = vmatprep.subr.bf16.mxu0 0
  %385 = vmatpush1.bf16.msra.mxu0 %v317
  %386 = vmatprep.subr.bf16.mxu0 0
  %387 = vmatpush1.bf16.msra.mxu0 %v318
  %388 = vmatprep.subr.bf16.mxu0 0
  %389 = vmatpush1.bf16.msra.mxu0 %v319
  %390 = vmatprep.subr.bf16.mxu0 0
  %391 = vmatpush1.bf16.msra.mxu0 %v320
  %392 = vmatprep.subr.bf16.mxu0 0
  %393 = vmatpush1.bf16.msra.mxu0 %v321
  %394 = vmatprep.subr.bf16.mxu0 0
  %395 = vmatpush1.bf16.msra.mxu0 %v322
  %396 = vmatprep.subr.bf16.mxu0 0
  %397 = vmatpush1.bf16.msra.mxu0 %v323
  %398 = vmatprep.subr.bf16.mxu0 0
  %399 = vmatpush1.bf16.msra.mxu0 %v324
  %400 = vmatprep.subr.bf16.mxu0 0
  %401 = vmatpush1.bf16.msra.mxu0 %v325
  %402 = vmatprep.subr.bf16.mxu0 0
  %403 = vmatpush1.bf16.msra.mxu0 %v326
  %404 = vmatprep.subr.bf16.mxu0 0
  %405 = vmatpush1.bf16.msra.mxu0 %v327
  %406 = vmatprep.subr.bf16.mxu0 0
  %407 = vmatpush1.bf16.msra.mxu0 %v328
  %408 = vmatprep.subr.bf16.mxu0 0
  %409 = vmatpush1.bf16.msra.mxu0 %v329
  %410 = vmatprep.subr.bf16.mxu0 0
  %411 = vmatpush1.bf16.msra.mxu0 %v330
  %412 = vmatprep.subr.bf16.mxu0 0
  %413 = vmatpush1.bf16.msra.mxu0 %v331
  %414 = vmatprep.subr.bf16.mxu0 0
  %415 = vmatpush1.bf16.msra.mxu0 %v332
  %416 = vmatprep.mubr.bf16.mxu0 %v182
  %417 = vmatmul.mubr.bf16.gmra.mrb[0].mxu0 %v181
  %v418 = vpop.f32.mrb[0].mxu0
  %v419 = vadd.f32 %v96, %v418
  %v420 = vpop.f32.mrb[0].mxu0
  %v421 = vpop.f32.mrb[0].mxu0
  %v422 = vadd.f32 %v101, %v421
  %v423 = vpop.f32.mrb[0].mxu0
  %424 = vmatprep.mubr.bf16.mxu0 %v186
  %425 = vmatmul.mubr.bf16.gmra.mrb[0].mxu0 %v185
  %v426 = vpop.f32.mrb[0].mxu0
  %v427 = vadd.f32 %v106, %v426
  %v428 = vpop.f32.mrb[0].mxu0
  %v429 = vpop.f32.mrb[0].mxu0
  %v430 = vadd.f32 %v111, %v429
  %v431 = vpop.f32.mrb[0].mxu0
  %432 = vmatprep.mubr.bf16.mxu0 %v190
  %433 = vmatmul.mubr.bf16.gmra.mrb[0].mxu0 %v189
  %v434 = vpop.f32.mrb[0].mxu0
  %v435 = vadd.f32 %v116, %v434
  %v436 = vpop.f32.mrb[0].mxu0
  %v437 = vpop.f32.mrb[0].mxu0
  %v438 = vadd.f32 %v121, %v437
  %v439 = vpop.f32.mrb[0].mxu0
  %440 = vmatprep.mubr.bf16.mxu0 %v194
  %441 = vmatmul.mubr.bf16.gmra.mrb[0].mxu0 %v193
  %v442 = vpop.f32.mrb[0].mxu0
  %v443 = vadd.f32 %v126, %v442
  %v444 = vpop.f32.mrb[0].mxu0
  %v445 = vpop.f32.mrb[0].mxu0
  %v446 = vadd.f32 %v131, %v445
  %v447 = vpop.f32.mrb[0].mxu0
  %448 = vdwg.mxu0
  %449 = vmatprep.subr.bf16.mxu0 0
  %450 = vmatpush1.bf16.msra.mxu0 %v333
  %451 = vmatprep.subr.bf16.mxu0 0
  %452 = vmatpush1.bf16.msra.mxu0 %v334
  %453 = vmatprep.subr.bf16.mxu0 0
  %454 = vmatpush1.bf16.msra.mxu0 %v335
  %455 = vmatprep.subr.bf16.mxu0 0
  %456 = vmatpush1.bf16.msra.mxu0 %v336
  %457 = vmatprep.subr.bf16.mxu0 0
  %458 = vmatpush1.bf16.msra.mxu0 %v337
  %459 = vmatprep.subr.bf16.mxu0 0
  %460 = vmatpush1.bf16.msra.mxu0 %v338
  %461 = vmatprep.subr.bf16.mxu0 0
  %462 = vmatpush1.bf16.msra.mxu0 %v339
  %463 = vmatprep.subr.bf16.mxu0 0
  %464 = vmatpush1.bf16.msra.mxu0 %v340
  %465 = vmatprep.subr.bf16.mxu0 0
  %466 = vmatpush1.bf16.msra.mxu0 %v341
  %467 = vmatprep.subr.bf16.mxu0 0
  %468 = vmatpush1.bf16.msra.mxu0 %v342
  %469 = vmatprep.subr.bf16.mxu0 0
  %470 = vmatpush1.bf16.msra.mxu0 %v343
  %471 = vmatprep.subr.bf16.mxu0 0
  %472 = vmatpush1.bf16.msra.mxu0 0
  %473 = vmatprep.subr.bf16.mxu0 0
  %474 = vmatpush1.bf16.msra.mxu0 0
  %475 = vmatprep.subr.bf16.mxu0 0
  %476 = vmatpush1.bf16.msra.mxu0 0
  %477 = vmatprep.subr.bf16.mxu0 0
  %478 = vmatpush1.bf16.msra.mxu0 0
  %479 = vmatprep.subr.bf16.mxu0 0
  %480 = vmatpush1.bf16.msra.mxu0 0
  %481 = vmatprep.mubr.bf16.mxu0 %v373
  %482 = vmatmul.mubr.bf16.gmra.mrb[0].mxu0 %v183
  %v483 = vpop.f32.mrb[0].mxu0
  %v484 = vadd.f32 %v419, %v483
  %v485 = vpop.f32.mrb[0].mxu0
  %v486 = vpop.f32.mrb[0].mxu0
  %v487 = vadd.f32 %v422, %v486
  %v488 = vpop.f32.mrb[0].mxu0
  %489 = vmatprep.mubr.bf16.mxu0 %v376
  %490 = vmatmul.mubr.bf16.gmra.mrb[0].mxu0 %v187
  %v491 = vpop.f32.mrb[0].mxu0
  %v492 = vadd.f32 %v427, %v491
  %v493 = vpop.f32.mrb[0].mxu0
  %v494 = vpop.f32.mrb[0].mxu0
  %v495 = vadd.f32 %v430, %v494
  %v496 = vpop.f32.mrb[0].mxu0
  %497 = vmatprep.mubr.bf16.mxu0 %v379
  %498 = vmatmul.mubr.bf16.gmra.mrb[0].mxu0 %v191
  %v499 = vpop.f32.mrb[0].mxu0
  %v500 = vadd.f32 %v435, %v499
  %v501 = vpop.f32.mrb[0].mxu0
  %v502 = vpop.f32.mrb[0].mxu0
  %v503 = vadd.f32 %v438, %v502
  %v504 = vpop.f32.mrb[0].mxu0
  %505 = vmatprep.mubr.bf16.mxu0 %v382
  %506 = vmatmul.mubr.bf16.gmra.mrb[0].mxu0 %v195
  %v507 = vpop.f32.mrb[0].mxu0
  %v508 = vadd.f32 %v443, %v507
  %v509 = vpop.f32.mrb[0].mxu0
  %v510 = vpop.f32.mrb[0].mxu0
  %v511 = vadd.f32 %v446, %v510
  %v512 = vpop.f32.mrb[0].mxu0
  %513 = vdwg.mxu0
  %v514 = vxor.u32 %v484, 2147483648
  %v515 = vxor.u32 %v487, 2147483648
  %v516 = vxor.u32 %v492, 2147483648
  %v517 = vxor.u32 %v495, 2147483648
  %v518 = vxor.u32 %v500, 2147483648
  %v519 = vxor.u32 %v503, 2147483648
  %v520 = vxor.u32 %v508, 2147483648
  %v521 = vxor.u32 %v511, 2147483648
  %v522 = vmul.f32 %v514, 1.442695
  %v523 = vpow.pop %v522
  %v524 = vmul.f32 %v515, 1.442695
  %v525 = vpow.pop %v524
  %v526 = vmul.f32 %v516, 1.442695
  %v527 = vpow.pop %v526
  %v528 = vmul.f32 %v517, 1.442695
  %v529 = vpow.pop %v528
  %v530 = vmul.f32 %v518, 1.442695
  %v531 = vpow.pop %v530
  %v532 = vmul.f32 %v519, 1.442695
  %v533 = vpow.pop %v532
  %v534 = vmul.f32 %v520, 1.442695
  %v535 = vpow.pop %v534
  %v536 = vmul.f32 %v521, 1.442695
  %v537 = vpow.pop %v536
  %v538 = vadd.f32 %v523, 1.0
  %v539 = vadd.f32 %v525, 1.0
  %v540 = vadd.f32 %v527, 1.0
  %v541 = vadd.f32 %v529, 1.0
  %v542 = vadd.f32 %v531, 1.0
  %v543 = vadd.f32 %v533, 1.0
  %v544 = vadd.f32 %v535, 1.0
  %v545 = vadd.f32 %v537, 1.0
  %v546 = vrcp.pop %v538
  %v547 = vmul.f32 1.0, %v546
  %v548 = vrcp.pop %v539
  %v549 = vmul.f32 1.0, %v548
  %v550 = vrcp.pop %v540
  %v551 = vmul.f32 1.0, %v550
  %v552 = vrcp.pop %v541
  %v553 = vmul.f32 1.0, %v552
  %v554 = vrcp.pop %v542
  %v555 = vmul.f32 1.0, %v554
  %v556 = vrcp.pop %v543
  %v557 = vmul.f32 1.0, %v556
  %v558 = vrcp.pop %v544
  %v559 = vmul.f32 1.0, %v558
  %v560 = vrcp.pop %v545
  %v561 = vmul.f32 1.0, %v560
  %v562 = vmul.f32 %v484, %v547
  %v563 = vmul.f32 %v487, %v549
  %v564 = vmul.f32 %v492, %v551
  %v565 = vmul.f32 %v495, %v553
  %v566 = vmul.f32 %v500, %v555
  %v567 = vmul.f32 %v503, %v557
  %v568 = vmul.f32 %v508, %v559
  %v569 = vmul.f32 %v511, %v561
  %v570 = vpack.c.bf16 %v563, %v562
  %v571 = vpack.c.bf16 %v565, %v564
  %v572 = vpack.c.bf16 %v567, %v566
  %v573 = vpack.c.bf16 %v569, %v568
  %v578 = vunpack.c.l.b16 %v570
  %v579 = vunpack.c.h.b16 %v570
  %v580 = vunpack.c.l.b16 %v571
  %v581 = vunpack.c.h.b16 %v571
  %v582 = vunpack.c.l.b16 %v572
  %v583 = vunpack.c.h.b16 %v572
  %v584 = vunpack.c.l.b16 %v573
  %v585 = vunpack.c.h.b16 %v573
  %v586 = vpack.c.b16 %v578, %v578
  %v587 = vpack.c.b16 %v579, %v579
  %v588 = vpack.c.b16 %v580, %v580
  %v589 = vpack.c.b16 %v581, %v581
  %v590 = vpack.c.b16 %v582, %v582
  %v591 = vpack.c.b16 %v583, %v583
  %v592 = vpack.c.b16 %v584, %v584
  %v593 = vpack.c.b16 %v585, %v585
  %602 = vst [vmem:[%s3] sm:$0xf] %v586
  %603 = vst [vmem:[%s3 + $0x4] sm:$0xf] %v587
  %604 = vst [vmem:[%s3 + $0x8] sm:$0xf] %v588
  %605 = vst [vmem:[%s3 + $0xc] sm:$0xf] %v589
  %606 = vst [vmem:[%s3 + $0x10] sm:$0xf] %v590
  %607 = vst [vmem:[%s3 + $0x14] sm:$0xf] %v591
  %608 = vst [vmem:[%s3 + $0x18] sm:$0xf] %v592
  %609 = vst [vmem:[%s3 + $0x1c] sm:$0xf] %v593
  // Predicated region
  $region14: #{model_forward.35} parent=0 // pred_check
    _
  $region15: #{model_forward.35} parent=0 // pred_check_branch
    %611 = sbr.rel (0) target = $region17
  $region16: #{model_forward.35} parent=0 // pred_region
    _
  $region17: #{model_forward.35} parent=0 // pred_fallthru
    _
  // Predicated region
  $region18: #{model_forward.35} parent=0 // pred_check
    _
  $region19: #{model_forward.35} parent=0 // pred_check_branch
    %613 = sbr.rel (0) target = $region21
  $region20: #{model_forward.35} parent=0 // pred_region
    _
  $region21: #{model_forward.35} parent=0 // pred_fallthru
    _

// kernel: model_forward.42
$region0: #{model_forward.42}
  #allocation0 [shape = 'u32[]', space=smem, size = 0x4, offset = 0x4, fixed_abs, tag = 'smem constant byte address 0x4 - core index']
  #allocation1 [shape = 'u32[144,128]{1,0:T(1,128)}', space=vmem, size = 0x12000, scoped, tag = 'internal scratch']
  %s0 = inlined_call_operand.vmem [shape: bf16[16,576], index: 0, kind: input, shape index: {}]
  %s1 = inlined_call_operand.vmem [shape: bf16[576,128], index: 1, kind: input, shape index: {}]
  %s2 = inlined_call_operand.vmem [shape: f32[16,1], index: 2, kind: input, shape index: {}]
  %s3 = inlined_call_operand.vmem [shape: bf16[16,128], index: 3, kind: output, shape index: {}]
  %s4 = sld [smem:[#allocation0]]
  $region22: #{model_forward.42} parent=0
    _
  %s6 = ssub.s32 1, %s4
  %s7 = scalar_select 0, %s6, %s4
  // Predicated region
  $region2: #{model_forward.42} parent=0 // pred_check
    _
  $region3: #{model_forward.42} parent=0 // pred_check_branch
    %9 = sbr.rel (0) target = $region5
  $region4: #{model_forward.42} parent=0 // pred_region
    _
  $region5: #{model_forward.42} parent=0 // pred_fallthru
    _
  // Predicated region
  $region6: #{model_forward.42} parent=0 // pred_check
    _
  $region7: #{model_forward.42} parent=0 // pred_check_branch
    %11 = sbr.rel (0) target = $region9
  $region8: #{model_forward.42} parent=0 // pred_region
    _
  $region9: #{model_forward.42} parent=0 // pred_fallthru
    _
  // Predicated region
  $region10: #{model_forward.42} parent=0 // pred_check
    _
  $region11: #{model_forward.42} parent=0 // pred_check_branch
    %13 = sbr.rel (0) target = $region13
  $region12: #{model_forward.42} parent=0 // pred_region
    _
  $region13: #{model_forward.42} parent=0 // pred_fallthru
    _
  %v15 = vld [vmem:[%s0] sm:$0xff]
  %v16 = vld [vmem:[%s0 + $0x8] sm:$0xff]
  %v17 = vld [vmem:[%s0 + $0x10] sm:$0xf]
  %v18 = vld [vmem:[%s0 + $0x14] sm:$0xff]
  %v19 = vld [vmem:[%s0 + $0x1c] sm:$0xff]
  %v20 = vld [vmem:[%s0 + $0x24] sm:$0xf]
  %v21 = vld [vmem:[%s1] sm:$0xf]
  %v22 = vld [vmem:[%s1 + $0x4] sm:$0xf]
  %v23 = vld [vmem:[%s1 + $0x8] sm:$0xf]
  %v24 = vld [vmem:[%s1 + $0xc] sm:$0xf]
  %v25 = vld [vmem:[%s1 + $0x10] sm:$0xf]
  %v26 = vld [vmem:[%s1 + $0x14] sm:$0xf]
  %v27 = vld [vmem:[%s1 + $0x18] sm:$0xf]
  %v28 = vld [vmem:[%s1 + $0x1c] sm:$0xf]
  %v29 = vld [vmem:[%s1 + $0x20] sm:$0xf]
  %v30 = vld [vmem:[%s1 + $0x24] sm:$0xf]
  %v31 = vld [vmem:[%s1 + $0x28] sm:$0xf]
  %v32 = vld [vmem:[%s1 + $0x2c] sm:$0xf]
  %v33 = vld [vmem:[%s1 + $0x30] sm:$0xf]
  %v34 = vld [vmem:[%s1 + $0x34] sm:$0xf]
  %v35 = vld [vmem:[%s1 + $0x38] sm:$0xf]
  %v36 = vld [vmem:[%s1 + $0x3c] sm:$0xf]
  %v37 = vld [vmem:[%s1 + $0x40] sm:$0xf]
  %v38 = vld [vmem:[%s1 + $0x44] sm:$0xf]
  %v39 = vld [vmem:[%s1 + $0x48] sm:$0xf]
  %v40 = vld [vmem:[%s1 + $0x4c] sm:$0xf]
  %v41 = vld [vmem:[%s1 + $0x50] sm:$0xf]
  %v42 = vld [vmem:[%s1 + $0x54] sm:$0xf]
  %v43 = vld [vmem:[%s1 + $0x58] sm:$0xf]
  %v44 = vld [vmem:[%s1 + $0x5c] sm:$0xf]
  %v45 = vld [vmem:[%s1 + $0x60] sm:$0xf]
  %v46 = vld [vmem:[%s1 + $0x64] sm:$0xf]
  %v47 = vld [vmem:[%s1 + $0x68] sm:$0xf]
  %v48 = vld [vmem:[%s1 + $0x6c] sm:$0xf]
  %v49 = vld [vmem:[%s1 + $0x70] sm:$0xf]
  %v50 = vld [vmem:[%s1 + $0x74] sm:$0xf]
  %v51 = vld [vmem:[%s1 + $0x78] sm:$0xf]
  %v52 = vld [vmem:[%s1 + $0x7c] sm:$0xf]
  %v53 = vld [vmem:[%s1 + $0x80] sm:$0xf]
  %v54 = vld [vmem:[%s1 + $0x84] sm:$0xf]
  %v55 = vld [vmem:[%s1 + $0x88] sm:$0xf]
  %v56 = vld [vmem:[%s1 + $0x8c] sm:$0xf]
  %v57 = vld [vmem:[%s1 + $0x90] sm:$0xf]
  %v58 = vld [vmem:[%s1 + $0x94] sm:$0xf]
  %v59 = vld [vmem:[%s1 + $0x98] sm:$0xf]
  %v60 = vld [vmem:[%s1 + $0x9c] sm:$0xf]
  %v61 = vld [vmem:[%s1 + $0xa0] sm:$0xf]
  %v62 = vld [vmem:[%s1 + $0xa4] sm:$0xf]
  %v63 = vld [vmem:[%s1 + $0xa8] sm:$0xf]
  %v64 = vld [vmem:[%s1 + $0xac] sm:$0xf]
  %v65 = vld [vmem:[%s1 + $0xb0] sm:$0xf]
  %v66 = vld [vmem:[%s1 + $0xb4] sm:$0xf]
  %v67 = vld [vmem:[%s1 + $0xb8] sm:$0xf]
  %v68 = vld [vmem:[%s1 + $0xbc] sm:$0xf]
  %v69 = vld [vmem:[%s1 + $0xc0] sm:$0xf]
  %v70 = vld [vmem:[%s1 + $0xc4] sm:$0xf]
  %v71 = vld [vmem:[%s1 + $0xc8] sm:$0xf]
  %v72 = vld [vmem:[%s1 + $0xcc] sm:$0xf]
  %v73 = vld [vmem:[%s1 + $0xd0] sm:$0xf]
  %v74 = vld [vmem:[%s1 + $0xd4] sm:$0xf]
  %v75 = vld [vmem:[%s1 + $0xd8] sm:$0xf]
  %v76 = vld [vmem:[%s1 + $0xdc] sm:$0xf]
  %v77 = vld [vmem:[%s1 + $0xe0] sm:$0xf]
  %v78 = vld [vmem:[%s1 + $0xe4] sm:$0xf]
  %v79 = vld [vmem:[%s1 + $0xe8] sm:$0xf]
  %v80 = vld [vmem:[%s1 + $0xec] sm:$0xf]
  %v81 = vld [vmem:[%s1 + $0xf0] sm:$0xf]
  %v82 = vld [vmem:[%s1 + $0xf4] sm:$0xf]
  %v83 = vld [vmem:[%s1 + $0xf8] sm:$0xf]
  %v84 = vld [vmem:[%s1 + $0xfc] sm:$0xf]
  %v85 = vld [vmem:[%s1 + $0x100] sm:$0xf]
  %v86 = vld [vmem:[%s1 + $0x104] sm:$0xf]
  %v87 = vld [vmem:[%s1 + $0x108] sm:$0xf]
  %v88 = vld [vmem:[%s1 + $0x10c] sm:$0xf]
  %v89 = vld [vmem:[%s1 + $0x110] sm:$0xf]
  %v90 = vld [vmem:[%s1 + $0x114] sm:$0xf]
  %v91 = vld [vmem:[%s1 + $0x118] sm:$0xf]
  %v92 = vld [vmem:[%s1 + $0x11c] sm:$0xf]
  %v93 = vld [vmem:[%s2] sm:$0xff]
  %v94 = vld [vmem:[%s2 + $0x8] sm:$0xff]
  %96 = vset.pattern.permute.xlu0 0
  %97 = vperm.xlu0 %96, %v93
  %v98 = vpop.permute.xlu0 %97
  %101 = vset.pattern.permute.xlu0 0
  %102 = vperm.xlu0 %101, %v94
  %v103 = vpop.permute.xlu0 %102
  %v111 = vunpack.c.l.b16 %v15
  %v112 = vunpack.c.h.b16 %v15
  %v113 = vunpack.c.l.b16 %v16
  %v114 = vunpack.c.h.b16 %v16
  %v115 = vunpack.c.l.b16 %v17
  %v116 = vunpack.c.l.b16 %v18
  %v117 = vunpack.c.h.b16 %v18
  %v118 = vunpack.c.l.b16 %v19
  %v119 = vunpack.c.h.b16 %v19
  %v120 = vunpack.c.l.b16 %v20
  %v121 = vpack.c.b16 %v116, %v111
  %v122 = vpack.c.b16 %v117, %v112
  %v123 = vpack.c.b16 %v118, %v113
  %v124 = vpack.c.b16 %v119, %v114
  %v125 = vpack.c.b16 %v120, %v115
  %v202 = vunpack.c.l.b16 %v21
  %v203 = vunpack.c.l.b16 %v22
  %v204 = vunpack.c.l.b16 %v23
  %v205 = vunpack.c.l.b16 %v24
  %v206 = vunpack.c.l.b16 %v25
  %v207 = vunpack.c.l.b16 %v26
  %v208 = vunpack.c.l.b16 %v27
  %v209 = vunpack.c.l.b16 %v28
  %v210 = vunpack.c.l.b16 %v29
  %v211 = vunpack.c.l.b16 %v30
  %v212 = vunpack.c.l.b16 %v31
  %v213 = vunpack.c.l.b16 %v32
  %v214 = vunpack.c.l.b16 %v33
  %v215 = vunpack.c.l.b16 %v34
  %v216 = vunpack.c.l.b16 %v35
  %v217 = vunpack.c.l.b16 %v36
  %v218 = vunpack.c.l.b16 %v37
  %v219 = vunpack.c.l.b16 %v38
  %v220 = vunpack.c.l.b16 %v39
  %v221 = vunpack.c.l.b16 %v40
  %v222 = vunpack.c.l.b16 %v41
  %v223 = vunpack.c.l.b16 %v42
  %v224 = vunpack.c.l.b16 %v43
  %v225 = vunpack.c.l.b16 %v44
  %v226 = vunpack.c.l.b16 %v45
  %v227 = vunpack.c.l.b16 %v46
  %v228 = vunpack.c.l.b16 %v47
  %v229 = vunpack.c.l.b16 %v48
  %v230 = vunpack.c.l.b16 %v49
  %v231 = vunpack.c.l.b16 %v50
  %v232 = vunpack.c.l.b16 %v51
  %v233 = vunpack.c.l.b16 %v52
  %v234 = vunpack.c.l.b16 %v53
  %v235 = vunpack.c.l.b16 %v54
  %v236 = vunpack.c.l.b16 %v55
  %v237 = vunpack.c.l.b16 %v56
  %v238 = vunpack.c.l.b16 %v57
  %v239 = vunpack.c.l.b16 %v58
  %v240 = vunpack.c.l.b16 %v59
  %v241 = vunpack.c.l.b16 %v60
  %v242 = vunpack.c.l.b16 %v61
  %v243 = vunpack.c.l.b16 %v62
  %v244 = vunpack.c.l.b16 %v63
  %v245 = vunpack.c.l.b16 %v64
  %v246 = vunpack.c.l.b16 %v65
  %v247 = vunpack.c.l.b16 %v66
  %v248 = vunpack.c.l.b16 %v67
  %v249 = vunpack.c.l.b16 %v68
  %v250 = vunpack.c.l.b16 %v69
  %v251 = vunpack.c.l.b16 %v70
  %v252 = vunpack.c.l.b16 %v71
  %v253 = vunpack.c.l.b16 %v72
  %v254 = vunpack.c.l.b16 %v73
  %v255 = vunpack.c.l.b16 %v74
  %v256 = vunpack.c.l.b16 %v75
  %v257 = vunpack.c.l.b16 %v76
  %v258 = vunpack.c.l.b16 %v77
  %v259 = vunpack.c.l.b16 %v78
  %v260 = vunpack.c.l.b16 %v79
  %v261 = vunpack.c.l.b16 %v80
  %v262 = vunpack.c.l.b16 %v81
  %v263 = vunpack.c.l.b16 %v82
  %v264 = vunpack.c.l.b16 %v83
  %v265 = vunpack.c.l.b16 %v84
  %v266 = vunpack.c.l.b16 %v85
  %v267 = vunpack.c.l.b16 %v86
  %v268 = vunpack.c.l.b16 %v87
  %v269 = vunpack.c.l.b16 %v88
  %v270 = vunpack.c.l.b16 %v89
  %v271 = vunpack.c.l.b16 %v90
  %v272 = vunpack.c.l.b16 %v91
  %v273 = vunpack.c.l.b16 %v92
  %v274 = vpack.c.b16 %v203, %v202
  %v275 = vpack.c.b16 %v205, %v204
  %v276 = vpack.c.b16 %v207, %v206
  %v277 = vpack.c.b16 %v209, %v208
  %v278 = vpack.c.b16 %v211, %v210
  %v279 = vpack.c.b16 %v213, %v212
  %v280 = vpack.c.b16 %v215, %v214
  %v281 = vpack.c.b16 %v217, %v216
  %v282 = vpack.c.b16 %v219, %v218
  %v283 = vpack.c.b16 %v221, %v220
  %v284 = vpack.c.b16 %v223, %v222
  %v285 = vpack.c.b16 %v225, %v224
  %v286 = vpack.c.b16 %v227, %v226
  %v287 = vpack.c.b16 %v229, %v228
  %v288 = vpack.c.b16 %v231, %v230
  %v289 = vpack.c.b16 %v233, %v232
  %v290 = vpack.c.b16 %v235, %v234
  %v291 = vpack.c.b16 %v237, %v236
  %v292 = vpack.c.b16 %v239, %v238
  %v293 = vpack.c.b16 %v241, %v240
  %v294 = vpack.c.b16 %v243, %v242
  %v295 = vpack.c.b16 %v245, %v244
  %v296 = vpack.c.b16 %v247, %v246
  %v297 = vpack.c.b16 %v249, %v248
  %v298 = vpack.c.b16 %v251, %v250
  %v299 = vpack.c.b16 %v253, %v252
  %v300 = vpack.c.b16 %v255, %v254
  %v301 = vpack.c.b16 %v257, %v256
  %v302 = vpack.c.b16 %v259, %v258
  %v303 = vpack.c.b16 %v261, %v260
  %v304 = vpack.c.b16 %v263, %v262
  %v305 = vpack.c.b16 %v265, %v264
  %v306 = vpack.c.b16 %v267, %v266
  %v307 = vpack.c.b16 %v269, %v268
  %v308 = vpack.c.b16 %v271, %v270
  %v309 = vpack.c.b16 %v273, %v272
  %vm346 = vcmask 523264
  %v348 = vsel %vm346, %v125, 0
  %350 = vmatprep.subr.bf16.mxu0 0
  %351 = vmatpush1.bf16.msra.mxu0 %v274
  %352 = vmatprep.subr.bf16.mxu0 0
  %353 = vmatpush1.bf16.msra.mxu0 %v275
  %354 = vmatprep.subr.bf16.mxu0 0
  %355 = vmatpush1.bf16.msra.mxu0 %v276
  %356 = vmatprep.subr.bf16.mxu0 0
  %357 = vmatpush1.bf16.msra.mxu0 %v277
  %358 = vmatprep.subr.bf16.mxu0 0
  %359 = vmatpush1.bf16.msra.mxu0 %v278
  %360 = vmatprep.subr.bf16.mxu0 0
  %361 = vmatpush1.bf16.msra.mxu0 %v279
  %362 = vmatprep.subr.bf16.mxu0 0
  %363 = vmatpush1.bf16.msra.mxu0 %v280
  %364 = vmatprep.subr.bf16.mxu0 0
  %365 = vmatpush1.bf16.msra.mxu0 %v281
  %366 = vmatprep.subr.bf16.mxu0 0
  %367 = vmatpush1.bf16.msra.mxu0 %v282
  %368 = vmatprep.subr.bf16.mxu0 0
  %369 = vmatpush1.bf16.msra.mxu0 %v283
  %370 = vmatprep.subr.bf16.mxu0 0
  %371 = vmatpush1.bf16.msra.mxu0 %v284
  %372 = vmatprep.subr.bf16.mxu0 0
  %373 = vmatpush1.bf16.msra.mxu0 %v285
  %374 = vmatprep.subr.bf16.mxu0 0
  %375 = vmatpush1.bf16.msra.mxu0 %v286
  %376 = vmatprep.subr.bf16.mxu0 0
  %377 = vmatpush1.bf16.msra.mxu0 %v287
  %378 = vmatprep.subr.bf16.mxu0 0
  %379 = vmatpush1.bf16.msra.mxu0 %v288
  %380 = vmatprep.subr.bf16.mxu0 0
  %381 = vmatpush1.bf16.msra.mxu0 %v289
  %382 = vmatprep.mubr.bf16.mxu0 %v122
  %383 = vmatmul.mubr.bf16.gmra.mrb[0].mxu0 %v121
  %v384 = vpop.f32.mrb[0].mxu0
  %v385 = vadd.f32 %v98, %v384
  %v386 = vpop.f32.mrb[0].mxu0
  %v387 = vpop.f32.mrb[0].mxu0
  %v388 = vadd.f32 %v103, %v387
  %v389 = vpop.f32.mrb[0].mxu0
  %390 = vdwg.mxu0
  %391 = vmatprep.subr.bf16.mxu0 0
  %392 = vmatpush1.bf16.msra.mxu0 %v290
  %393 = vmatprep.subr.bf16.mxu0 0
  %394 = vmatpush1.bf16.msra.mxu0 %v291
  %395 = vmatprep.subr.bf16.mxu0 0
  %396 = vmatpush1.bf16.msra.mxu0 %v292
  %397 = vmatprep.subr.bf16.mxu0 0
  %398 = vmatpush1.bf16.msra.mxu0 %v293
  %399 = vmatprep.subr.bf16.mxu0 0
  %400 = vmatpush1.bf16.msra.mxu0 %v294
  %401 = vmatprep.subr.bf16.mxu0 0
  %402 = vmatpush1.bf16.msra.mxu0 %v295
  %403 = vmatprep.subr.bf16.mxu0 0
  %404 = vmatpush1.bf16.msra.mxu0 %v296
  %405 = vmatprep.subr.bf16.mxu0 0
  %406 = vmatpush1.bf16.msra.mxu0 %v297
  %407 = vmatprep.subr.bf16.mxu0 0
  %408 = vmatpush1.bf16.msra.mxu0 %v298
  %409 = vmatprep.subr.bf16.mxu0 0
  %410 = vmatpush1.bf16.msra.mxu0 %v299
  %411 = vmatprep.subr.bf16.mxu0 0
  %412 = vmatpush1.bf16.msra.mxu0 %v300
  %413 = vmatprep.subr.bf16.mxu0 0
  %414 = vmatpush1.bf16.msra.mxu0 %v301
  %415 = vmatprep.subr.bf16.mxu0 0
  %416 = vmatpush1.bf16.msra.mxu0 %v302
  %417 = vmatprep.subr.bf16.mxu0 0
  %418 = vmatpush1.bf16.msra.mxu0 %v303
  %419 = vmatprep.subr.bf16.mxu0 0
  %420 = vmatpush1.bf16.msra.mxu0 %v304
  %421 = vmatprep.subr.bf16.mxu0 0
  %422 = vmatpush1.bf16.msra.mxu0 %v305
  %423 = vmatprep.mubr.bf16.mxu0 %v124
  %424 = vmatmul.mubr.bf16.gmra.mrb[0].mxu0 %v123
  %v425 = vpop.f32.mrb[0].mxu0
  %v426 = vadd.f32 %v385, %v425
  %v427 = vpop.f32.mrb[0].mxu0
  %v428 = vpop.f32.mrb[0].mxu0
  %v429 = vadd.f32 %v388, %v428
  %v430 = vpop.f32.mrb[0].mxu0
  %431 = vdwg.mxu0
  %432 = vmatprep.subr.bf16.mxu0 0
  %433 = vmatpush1.bf16.msra.mxu0 %v306
  %434 = vmatprep.subr.bf16.mxu0 0
  %435 = vmatpush1.bf16.msra.mxu0 %v307
  %436 = vmatprep.subr.bf16.mxu0 0
  %437 = vmatpush1.bf16.msra.mxu0 %v308
  %438 = vmatprep.subr.bf16.mxu0 0
  %439 = vmatpush1.bf16.msra.mxu0 %v309
  %440 = vmatprep.subr.bf16.mxu0 0
  %441 = vmatpush1.bf16.msra.mxu0 0
  %442 = vmatprep.subr.bf16.mxu0 0
  %443 = vmatpush1.bf16.msra.mxu0 0
  %444 = vmatprep.subr.bf16.mxu0 0
  %445 = vmatpush1.bf16.msra.mxu0 0
  %446 = vmatprep.subr.bf16.mxu0 0
  %447 = vmatpush1.bf16.msra.mxu0 0
  %448 = vmatprep.subr.bf16.mxu0 0
  %449 = vmatpush1.bf16.msra.mxu0 0
  %450 = vmatprep.subr.bf16.mxu0 0
  %451 = vmatpush1.bf16.msra.mxu0 0
  %452 = vmatprep.subr.bf16.mxu0 0
  %453 = vmatpush1.bf16.msra.mxu0 0
  %454 = vmatprep.subr.bf16.mxu0 0
  %455 = vmatpush1.bf16.msra.mxu0 0
  %456 = vmatprep.subr.bf16.mxu0 0
  %457 = vmatpush1.bf16.msra.mxu0 0
  %458 = vmatprep.subr.bf16.mxu0 0
  %459 = vmatpush1.bf16.msra.mxu0 0
  %460 = vmatprep.subr.bf16.mxu0 0
  %461 = vmatpush1.bf16.msra.mxu0 0
  %462 = vmatprep.subr.bf16.mxu0 0
  %463 = vmatpush1.bf16.msra.mxu0 0
  %464 = vmatprep.mubr.bf16.mxu0 0
  %465 = vmatmul.mubr.bf16.gmra.mrb[0].mxu0 %v348
  %v466 = vpop.f32.mrb[0].mxu0
  %v467 = vadd.f32 %v426, %v466
  %v468 = vpop.f32.mrb[0].mxu0
  %v469 = vpop.f32.mrb[0].mxu0
  %v470 = vadd.f32 %v429, %v469
  %v471 = vpop.f32.mrb[0].mxu0
  %472 = vdwg.mxu0
  %v473 = vxor.u32 %v467, 2147483648
  %v474 = vxor.u32 %v470, 2147483648
  %v475 = vmul.f32 %v473, 1.442695
  %v476 = vpow.pop %v475
  %v477 = vmul.f32 %v474, 1.442695
  %v478 = vpow.pop %v477
  %v479 = vadd.f32 %v476, 1.0
  %v480 = vadd.f32 %v478, 1.0
  %v481 = vrcp.pop %v479
  %v482 = vmul.f32 1.0, %v481
  %v483 = vrcp.pop %v480
  %v484 = vmul.f32 1.0, %v483
  %v485 = vmul.f32 %v467, %v482
  %v486 = vmul.f32 %v470, %v484
  %v487 = vpack.c.bf16 %v486, %v485
  %v489 = vunpack.c.l.b16 %v487
  %v490 = vunpack.c.h.b16 %v487
  %v491 = vpack.c.b16 %v489, %v489
  %v492 = vpack.c.b16 %v490, %v490
  %495 = vst [vmem:[%s3] sm:$0xf] %v491
  %496 = vst [vmem:[%s3 + $0x4] sm:$0xf] %v492
  // Predicated region
  $region14: #{model_forward.42} parent=0 // pred_check
    _
  $region15: #{model_forward.42} parent=0 // pred_check_branch
    %498 = sbr.rel (0) target = $region17
  $region16: #{model_forward.42} parent=0 // pred_region
    _
  $region17: #{model_forward.42} parent=0 // pred_fallthru
    _
  // Predicated region
  $region18: #{model_forward.42} parent=0 // pred_check
    _
  $region19: #{model_forward.42} parent=0 // pred_check_branch
    %500 = sbr.rel (0) target = $region21
  $region20: #{model_forward.42} parent=0 // pred_region
    _
  $region21: #{model_forward.42} parent=0 // pred_fallthru
    _

// kernel: model_forward.43
$region0: #{model_forward.43}
  #allocation0 [shape = 'u32[]', space=smem, size = 0x4, offset = 0x4, fixed_abs, tag = 'smem constant byte address 0x4 - core index']
  #allocation1 [shape = 'u32[144,128]{1,0:T(1,128)}', space=vmem, size = 0x12000, scoped, tag = 'internal scratch']
  %s0 = inlined_call_operand.vmem [shape: bf16[16,144], index: 0, kind: input, shape index: {}]
  %s1 = inlined_call_operand.vmem [shape: bf16[144,128], index: 1, kind: input, shape index: {}]
  %s2 = inlined_call_operand.vmem [shape: f32[16,1], index: 2, kind: input, shape index: {}]
  %s3 = inlined_call_operand.vmem [shape: bf16[16,128], index: 3, kind: output, shape index: {}]
  %s4 = sld [smem:[#allocation0]]
  $region22: #{model_forward.43} parent=0
    _
  %s6 = ssub.s32 1, %s4
  %s7 = scalar_select 0, %s6, %s4
  // Predicated region
  $region2: #{model_forward.43} parent=0 // pred_check
    _
  $region3: #{model_forward.43} parent=0 // pred_check_branch
    %9 = sbr.rel (0) target = $region5
  $region4: #{model_forward.43} parent=0 // pred_region
    _
  $region5: #{model_forward.43} parent=0 // pred_fallthru
    _
  // Predicated region
  $region6: #{model_forward.43} parent=0 // pred_check
    _
  $region7: #{model_forward.43} parent=0 // pred_check_branch
    %11 = sbr.rel (0) target = $region9
  $region8: #{model_forward.43} parent=0 // pred_region
    _
  $region9: #{model_forward.43} parent=0 // pred_fallthru
    _
  // Predicated region
  $region10: #{model_forward.43} parent=0 // pred_check
    _
  $region11: #{model_forward.43} parent=0 // pred_check_branch
    %13 = sbr.rel (0) target = $region13
  $region12: #{model_forward.43} parent=0 // pred_region
    _
  $region13: #{model_forward.43} parent=0 // pred_fallthru
    _
  %v15 = vld [vmem:[%s0] sm:$0xff]
  %v16 = vld [vmem:[%s0 + $0x8] sm:$0xff]
  %v17 = vld [vmem:[%s1] sm:$0xf]
  %v18 = vld [vmem:[%s1 + $0x4] sm:$0xf]
  %v19 = vld [vmem:[%s1 + $0x8] sm:$0xf]
  %v20 = vld [vmem:[%s1 + $0xc] sm:$0xf]
  %v21 = vld [vmem:[%s1 + $0x10] sm:$0xf]
  %v22 = vld [vmem:[%s1 + $0x14] sm:$0xf]
  %v23 = vld [vmem:[%s1 + $0x18] sm:$0xf]
  %v24 = vld [vmem:[%s1 + $0x1c] sm:$0xf]
  %v25 = vld [vmem:[%s1 + $0x20] sm:$0xf]
  %v26 = vld [vmem:[%s1 + $0x24] sm:$0xf]
  %v27 = vld [vmem:[%s1 + $0x28] sm:$0xf]
  %v28 = vld [vmem:[%s1 + $0x2c] sm:$0xf]
  %v29 = vld [vmem:[%s1 + $0x30] sm:$0xf]
  %v30 = vld [vmem:[%s1 + $0x34] sm:$0xf]
  %v31 = vld [vmem:[%s1 + $0x38] sm:$0xf]
  %v32 = vld [vmem:[%s1 + $0x3c] sm:$0xf]
  %v33 = vld [vmem:[%s1 + $0x40] sm:$0xf]
  %v34 = vld [vmem:[%s1 + $0x44] sm:$0xf]
  %v35 = vld [vmem:[%s2] sm:$0xff]
  %v36 = vld [vmem:[%s2 + $0x8] sm:$0xff]
  %38 = vset.pattern.permute.xlu0 0
  %39 = vperm.xlu0 %38, %v35
  %v40 = vpop.permute.xlu0 %39
  %43 = vset.pattern.permute.xlu0 0
  %44 = vperm.xlu0 %43, %v36
  %v45 = vpop.permute.xlu0 %44
  %v49 = vunpack.c.l.b16 %v15
  %v50 = vunpack.c.h.b16 %v15
  %v51 = vunpack.c.l.b16 %v16
  %v52 = vunpack.c.h.b16 %v16
  %v53 = vpack.c.b16 %v51, %v49
  %v54 = vpack.c.b16 %v52, %v50
  %v74 = vunpack.c.l.b16 %v17
  %v75 = vunpack.c.l.b16 %v18
  %v76 = vunpack.c.l.b16 %v19
  %v77 = vunpack.c.l.b16 %v20
  %v78 = vunpack.c.l.b16 %v21
  %v79 = vunpack.c.l.b16 %v22
  %v80 = vunpack.c.l.b16 %v23
  %v81 = vunpack.c.l.b16 %v24
  %v82 = vunpack.c.l.b16 %v25
  %v83 = vunpack.c.l.b16 %v26
  %v84 = vunpack.c.l.b16 %v27
  %v85 = vunpack.c.l.b16 %v28
  %v86 = vunpack.c.l.b16 %v29
  %v87 = vunpack.c.l.b16 %v30
  %v88 = vunpack.c.l.b16 %v31
  %v89 = vunpack.c.l.b16 %v32
  %v90 = vunpack.c.l.b16 %v33
  %v91 = vunpack.c.l.b16 %v34
  %v92 = vpack.c.b16 %v75, %v74
  %v93 = vpack.c.b16 %v77, %v76
  %v94 = vpack.c.b16 %v79, %v78
  %v95 = vpack.c.b16 %v81, %v80
  %v96 = vpack.c.b16 %v83, %v82
  %v97 = vpack.c.b16 %v85, %v84
  %v98 = vpack.c.b16 %v87, %v86
  %v99 = vpack.c.b16 %v89, %v88
  %v100 = vpack.c.b16 %v91, %v90
  %vm110 = vcmask 130048
  %v112 = vsel %vm110, %v54, 0
  %114 = vmatprep.subr.bf16.mxu0 0
  %115 = vmatpush1.bf16.msra.mxu0 %v92
  %116 = vmatprep.subr.bf16.mxu0 0
  %117 = vmatpush1.bf16.msra.mxu0 %v93
  %118 = vmatprep.subr.bf16.mxu0 0
  %119 = vmatpush1.bf16.msra.mxu0 %v94
  %120 = vmatprep.subr.bf16.mxu0 0
  %121 = vmatpush1.bf16.msra.mxu0 %v95
  %122 = vmatprep.subr.bf16.mxu0 0
  %123 = vmatpush1.bf16.msra.mxu0 %v96
  %124 = vmatprep.subr.bf16.mxu0 0
  %125 = vmatpush1.bf16.msra.mxu0 %v97
  %126 = vmatprep.subr.bf16.mxu0 0
  %127 = vmatpush1.bf16.msra.mxu0 %v98
  %128 = vmatprep.subr.bf16.mxu0 0
  %129 = vmatpush1.bf16.msra.mxu0 %v99
  %130 = vmatprep.subr.bf16.mxu0 0
  %131 = vmatpush1.bf16.msra.mxu0 %v100
  %132 = vmatprep.subr.bf16.mxu0 0
  %133 = vmatpush1.bf16.msra.mxu0 0
  %134 = vmatprep.subr.bf16.mxu0 0
  %135 = vmatpush1.bf16.msra.mxu0 0
  %136 = vmatprep.subr.bf16.mxu0 0
  %137 = vmatpush1.bf16.msra.mxu0 0
  %138 = vmatprep.subr.bf16.mxu0 0
  %139 = vmatpush1.bf16.msra.mxu0 0
  %140 = vmatprep.subr.bf16.mxu0 0
  %141 = vmatpush1.bf16.msra.mxu0 0
  %142 = vmatprep.subr.bf16.mxu0 0
  %143 = vmatpush1.bf16.msra.mxu0 0
  %144 = vmatprep.subr.bf16.mxu0 0
  %145 = vmatpush1.bf16.msra.mxu0 0
  %146 = vmatprep.mubr.bf16.mxu0 %v112
  %147 = vmatmul.mubr.bf16.gmra.mrb[0].mxu0 %v53
  %v148 = vpop.f32.mrb[0].mxu0
  %v149 = vadd.f32 %v40, %v148
  %v150 = vpop.f32.mrb[0].mxu0
  %v151 = vpop.f32.mrb[0].mxu0
  %v152 = vadd.f32 %v45, %v151
  %v153 = vpop.f32.mrb[0].mxu0
  %154 = vdwg.mxu0
  %v155 = vxor.u32 %v149, 2147483648
  %v156 = vxor.u32 %v152, 2147483648
  %v157 = vmul.f32 %v155, 1.442695
  %v158 = vpow.pop %v157
  %v159 = vmul.f32 %v156, 1.442695
  %v160 = vpow.pop %v159
  %v161 = vadd.f32 %v158, 1.0
  %v162 = vadd.f32 %v160, 1.0
  %v163 = vrcp.pop %v161
  %v164 = vmul.f32 1.0, %v163
  %v165 = vrcp.pop %v162
  %v166 = vmul.f32 1.0, %v165
  %v167 = vmul.f32 %v149, %v164
  %v168 = vmul.f32 %v152, %v166
  %v169 = vpack.c.bf16 %v168, %v167
  %v171 = vunpack.c.l.b16 %v169
  %v172 = vunpack.c.h.b16 %v169
  %v173 = vpack.c.b16 %v171, %v171
  %v174 = vpack.c.b16 %v172, %v172
  %177 = vst [vmem:[%s3] sm:$0xf] %v173
  %178 = vst [vmem:[%s3 + $0x4] sm:$0xf] %v174
  // Predicated region
  $region14: #{model_forward.43} parent=0 // pred_check
    _
  $region15: #{model_forward.43} parent=0 // pred_check_branch
    %180 = sbr.rel (0) target = $region17
  $region16: #{model_forward.43} parent=0 // pred_region
    _
  $region17: #{model_forward.43} parent=0 // pred_fallthru
    _
  // Predicated region
  $region18: #{model_forward.43} parent=0 // pred_check
    _
  $region19: #{model_forward.43} parent=0 // pred_check_branch
    %182 = sbr.rel (0) target = $region21
  $region20: #{model_forward.43} parent=0 // pred_region
    _
  $region21: #{model_forward.43} parent=0 // pred_fallthru
    _

// kernel: model_forward.44
$region0: #{model_forward.44}
  #allocation0 [shape = 'u32[]', space=smem, size = 0x4, offset = 0x4, fixed_abs, tag = 'smem constant byte address 0x4 - core index']
  #allocation1 [shape = 'u32[144,128]{1,0:T(1,128)}', space=vmem, size = 0x12000, scoped, tag = 'internal scratch']
  #allocation2 [shape = 'f32[1,1]{1,0:T(1,128)S(1)}', space=vmem, size = 0x200, scoped, tag = 'scoped memory for model_forward.44']
  %s0 = inlined_call_operand.vmem [shape: bf16[1,16], index: 0, kind: input, shape index: {}]
  %s1 = inlined_call_operand.vmem [shape: bf16[16,128], index: 1, kind: input, shape index: {}]
  %s2 = inlined_call_operand.<no memory space> [shape: f32[1,1], index: 2, kind: input, shape index: {}]
  %s3 = inlined_call_operand.vmem [shape: bf16[1,128], index: 3, kind: output, shape index: {}]
  %s4 = sld [smem:[#allocation0]]
  $region22: #{model_forward.44} parent=0
    _
  %s6 = ssub.s32 1, %s4
  %s7 = scalar_select 0, %s6, %s4
  %v8 = vstv %s2
  %9 = vst [vmem:[#allocation2] sm:$0x1] %v8
  // Predicated region
  $region2: #{model_forward.44} parent=0 // pred_check
    _
  $region3: #{model_forward.44} parent=0 // pred_check_branch
    %11 = sbr.rel (0) target = $region5
  $region4: #{model_forward.44} parent=0 // pred_region
    _
  $region5: #{model_forward.44} parent=0 // pred_fallthru
    _
  // Predicated region
  $region6: #{model_forward.44} parent=0 // pred_check
    _
  $region7: #{model_forward.44} parent=0 // pred_check_branch
    %13 = sbr.rel (0) target = $region9
  $region8: #{model_forward.44} parent=0 // pred_region
    _
  $region9: #{model_forward.44} parent=0 // pred_fallthru
    _
  // Predicated region
  $region10: #{model_forward.44} parent=0 // pred_check
    _
  $region11: #{model_forward.44} parent=0 // pred_check_branch
    %15 = sbr.rel (0) target = $region13
  $region12: #{model_forward.44} parent=0 // pred_region
    _
  $region13: #{model_forward.44} parent=0 // pred_fallthru
    _
  %v17 = vld [vmem:[%s0] sm:$0x1]
  %v18 = vld [vmem:[%s1] sm:$0xf]
  %v19 = vld [vmem:[%s1 + $0x4] sm:$0xf]
  %v20 = vld [vmem:[#allocation2] sm:$0x1]
  %22 = vset.pattern.permute.xlu0 0
  %23 = vperm.xlu0 %22, %v20
  %v24 = vpop.permute.xlu0 %23
  %v26 = vlaneseq
  %v27 = vshrl.u32 %v26, 7
  %v28 = vsub.s32 0, %v27
  %v29 = vrot.slane %v24, %v28
  %v32 = vunpack.c.l.b16 %v18
  %v33 = vunpack.c.l.b16 %v19
  %v34 = vpack.c.b16 %v33, %v32
  %vm36 = vcmask 130048
  %v38 = vsel %vm36, %v17, 0
  %40 = vmatprep.subr.bf16.mxu0 0
  %41 = vmatpush1.bf16.msra.mxu0 %v34
  %42 = vmatprep.subr.bf16.mxu0 0
  %43 = vmatpush1.bf16.msra.mxu0 0
  %44 = vmatprep.subr.bf16.mxu0 0
  %45 = vmatpush1.bf16.msra.mxu0 0
  %46 = vmatprep.subr.bf16.mxu0 0
  %47 = vmatpush1.bf16.msra.mxu0 0
  %48 = vmatprep.subr.bf16.mxu0 0
  %49 = vmatpush1.bf16.msra.mxu0 0
  %50 = vmatprep.subr.bf16.mxu0 0
  %51 = vmatpush1.bf16.msra.mxu0 0
  %52 = vmatprep.subr.bf16.mxu0 0
  %53 = vmatpush1.bf16.msra.mxu0 0
  %54 = vmatprep.subr.bf16.mxu0 0
  %55 = vmatpush1.bf16.msra.mxu0 0
  %56 = vmatprep.subr.bf16.mxu0 0
  %57 = vmatpush1.bf16.msra.mxu0 0
  %58 = vmatprep.subr.bf16.mxu0 0
  %59 = vmatpush1.bf16.msra.mxu0 0
  %60 = vmatprep.subr.bf16.mxu0 0
  %61 = vmatpush1.bf16.msra.mxu0 0
  %62 = vmatprep.subr.bf16.mxu0 0
  %63 = vmatpush1.bf16.msra.mxu0 0
  %64 = vmatprep.subr.bf16.mxu0 0
  %65 = vmatpush1.bf16.msra.mxu0 0
  %66 = vmatprep.subr.bf16.mxu0 0
  %67 = vmatpush1.bf16.msra.mxu0 0
  %68 = vmatprep.subr.bf16.mxu0 0
  %69 = vmatpush1.bf16.msra.mxu0 0
  %70 = vmatprep.subr.bf16.mxu0 0
  %71 = vmatpush1.bf16.msra.mxu0 0
  %72 = vmatprep.mubr.bf16.mxu0 0
  %73 = vmatmul.mubr.bf16.gmra.mrb[0].mxu0 %v38
  %v74 = vpop.f32.mrb[0].mxu0
  %v75 = vadd.f32 %v29, %v74
  %v76 = vpop.f32.mrb[0].mxu0
  %v77 = vpop.f32.mrb[0].mxu0
  %v78 = vpop.f32.mrb[0].mxu0
  %79 = vdwg.mxu0
  %v80 = vpack.c.bf16 %v75, %v75
  %vm81 = vcmask 1040384
  %vm82 = vsmask.f32 256
  %vm83 = vmand %vm81, %vm82
  %v84 = vld [vmem:[%s3] sm:$0x1]
  %v85 = vsel %vm83, %v80, %v84
  %86 = vst [vmem:[%s3] sm:$0x1] %v85
  // Predicated region
  $region14: #{model_forward.44} parent=0 // pred_check
    _
  $region15: #{model_forward.44} parent=0 // pred_check_branch
    %88 = sbr.rel (0) target = $region17
  $region16: #{model_forward.44} parent=0 // pred_region
    _
  $region17: #{model_forward.44} parent=0 // pred_fallthru
    _
  // Predicated region
  $region18: #{model_forward.44} parent=0 // pred_check
    _
  $region19: #{model_forward.44} parent=0 // pred_check_branch
    %90 = sbr.rel (0) target = $region21
  $region20: #{model_forward.44} parent=0 // pred_region
    _
  $region21: #{model_forward.44} parent=0 // pred_fallthru
    _

// kernel: model_forward.45
$region0: #{model_forward.45}
  #allocation0 [shape = 'u32[]', space=smem, size = 0x4, offset = 0x4, fixed_abs, tag = 'smem constant byte address 0x4 - core index']
  #allocation1 [shape = 'u32[144,128]{1,0:T(1,128)}', space=vmem, size = 0x12000, scoped, tag = 'internal scratch']
  %s0 = inlined_call_operand.vmem [shape: bf16[24,64], index: 0, kind: input, shape index: {}]
  %s1 = inlined_call_operand.vmem [shape: bf16[64,128], index: 1, kind: input, shape index: {}]
  %s2 = inlined_call_operand.vmem [shape: f32[24,1], index: 2, kind: input, shape index: {}]
  %s3 = inlined_call_operand.vmem [shape: bf16[24,128], index: 3, kind: output, shape index: {}]
  %s4 = sld [smem:[#allocation0]]
  $region22: #{model_forward.45} parent=0
    _
  %s6 = ssub.s32 1, %s4
  %s7 = scalar_select 0, %s6, %s4
  // Predicated region
  $region2: #{model_forward.45} parent=0 // pred_check
    _
  $region3: #{model_forward.45} parent=0 // pred_check_branch
    %9 = sbr.rel (0) target = $region5
  $region4: #{model_forward.45} parent=0 // pred_region
    _
  $region5: #{model_forward.45} parent=0 // pred_fallthru
    _
  // Predicated region
  $region6: #{model_forward.45} parent=0 // pred_check
    _
  $region7: #{model_forward.45} parent=0 // pred_check_branch
    %11 = sbr.rel (0) target = $region9
  $region8: #{model_forward.45} parent=0 // pred_region
    _
  $region9: #{model_forward.45} parent=0 // pred_fallthru
    _
  // Predicated region
  $region10: #{model_forward.45} parent=0 // pred_check
    _
  $region11: #{model_forward.45} parent=0 // pred_check_branch
    %13 = sbr.rel (0) target = $region13
  $region12: #{model_forward.45} parent=0 // pred_region
    _
  $region13: #{model_forward.45} parent=0 // pred_fallthru
    _
  %v15 = vld [vmem:[%s0] sm:$0xf]
  %v16 = vld [vmem:[%s0 + $0x4] sm:$0xf]
  %v17 = vld [vmem:[%s0 + $0x8] sm:$0xf]
  %v18 = vld [vmem:[%s1] sm:$0xf]
  %v19 = vld [vmem:[%s1 + $0x4] sm:$0xf]
  %v20 = vld [vmem:[%s1 + $0x8] sm:$0xf]
  %v21 = vld [vmem:[%s1 + $0xc] sm:$0xf]
  %v22 = vld [vmem:[%s1 + $0x10] sm:$0xf]
  %v23 = vld [vmem:[%s1 + $0x14] sm:$0xf]
  %v24 = vld [vmem:[%s1 + $0x18] sm:$0xf]
  %v25 = vld [vmem:[%s1 + $0x1c] sm:$0xf]
  %v26 = vld [vmem:[%s2] sm:$0xff]
  %v27 = vld [vmem:[%s2 + $0x8] sm:$0xff]
  %v28 = vld [vmem:[%s2 + $0x10] sm:$0xff]
  %30 = vset.pattern.permute.xlu0 0
  %31 = vperm.xlu0 %30, %v26
  %v32 = vpop.permute.xlu0 %31
  %35 = vset.pattern.permute.xlu0 0
  %36 = vperm.xlu0 %35, %v27
  %v37 = vpop.permute.xlu0 %36
  %40 = vset.pattern.permute.xlu0 0
  %41 = vperm.xlu0 %40, %v28
  %v42 = vpop.permute.xlu0 %41
  %v47 = vunpack.c.l.b16 %v15
  %v48 = vunpack.c.l.b16 %v16
  %v49 = vunpack.c.l.b16 %v17
  %v50 = vpack.c.b16 %v48, %v47
  %v51 = vpack.c.b16 %v49, %v49
  %v60 = vunpack.c.l.b16 %v18
  %v61 = vunpack.c.l.b16 %v19
  %v62 = vunpack.c.l.b16 %v20
  %v63 = vunpack.c.l.b16 %v21
  %v64 = vunpack.c.l.b16 %v22
  %v65 = vunpack.c.l.b16 %v23
  %v66 = vunpack.c.l.b16 %v24
  %v67 = vunpack.c.l.b16 %v25
  %v68 = vpack.c.b16 %v61, %v60
  %v69 = vpack.c.b16 %v63, %v62
  %v70 = vpack.c.b16 %v65, %v64
  %v71 = vpack.c.b16 %v67, %v66
  %vm76 = vcmask 523264
  %v78 = vsel %vm76, %v50, 0
  %v81 = vsel %vm76, %v51, 0
  %83 = vmatprep.subr.bf16.mxu0 0
  %84 = vmatpush1.bf16.msra.mxu0 %v68
  %85 = vmatprep.subr.bf16.mxu0 0
  %86 = vmatpush1.bf16.msra.mxu0 %v69
  %87 = vmatprep.subr.bf16.mxu0 0
  %88 = vmatpush1.bf16.msra.mxu0 %v70
  %89 = vmatprep.subr.bf16.mxu0 0
  %90 = vmatpush1.bf16.msra.mxu0 %v71
  %91 = vmatprep.subr.bf16.mxu0 0
  %92 = vmatpush1.bf16.msra.mxu0 0
  %93 = vmatprep.subr.bf16.mxu0 0
  %94 = vmatpush1.bf16.msra.mxu0 0
  %95 = vmatprep.subr.bf16.mxu0 0
  %96 = vmatpush1.bf16.msra.mxu0 0
  %97 = vmatprep.subr.bf16.mxu0 0
  %98 = vmatpush1.bf16.msra.mxu0 0
  %99 = vmatprep.subr.bf16.mxu0 0
  %100 = vmatpush1.bf16.msra.mxu0 0
  %101 = vmatprep.subr.bf16.mxu0 0
  %102 = vmatpush1.bf16.msra.mxu0 0
  %103 = vmatprep.subr.bf16.mxu0 0
  %104 = vmatpush1.bf16.msra.mxu0 0
  %105 = vmatprep.subr.bf16.mxu0 0
  %106 = vmatpush1.bf16.msra.mxu0 0
  %107 = vmatprep.subr.bf16.mxu0 0
  %108 = vmatpush1.bf16.msra.mxu0 0
  %109 = vmatprep.subr.bf16.mxu0 0
  %110 = vmatpush1.bf16.msra.mxu0 0
  %111 = vmatprep.subr.bf16.mxu0 0
  %112 = vmatpush1.bf16.msra.mxu0 0
  %113 = vmatprep.subr.bf16.mxu0 0
  %114 = vmatpush1.bf16.msra.mxu0 0
  %115 = vmatprep.mubr.bf16.mxu0 0
  %116 = vmatmul.mubr.bf16.gmra.mrb[0].mxu0 %v78
  %v117 = vpop.f32.mrb[0].mxu0
  %v118 = vadd.f32 %v32, %v117
  %v119 = vpop.f32.mrb[0].mxu0
  %v120 = vpop.f32.mrb[0].mxu0
  %v121 = vadd.f32 %v37, %v120
  %v122 = vpop.f32.mrb[0].mxu0
  %123 = vmatprep.mubr.bf16.mxu0 0
  %124 = vmatmul.mubr.bf16.gmra.mrb[0].mxu0 %v81
  %v125 = vpop.f32.mrb[0].mxu0
  %v126 = vadd.f32 %v42, %v125
  %v127 = vpop.f32.mrb[0].mxu0
  %v128 = vpop.f32.mrb[0].mxu0
  %v129 = vpop.f32.mrb[0].mxu0
  %130 = vdwg.mxu0
  %v131 = vxor.u32 %v118, 2147483648
  %v132 = vxor.u32 %v121, 2147483648
  %v133 = vxor.u32 %v126, 2147483648
  %v134 = vmul.f32 %v131, 1.442695
  %v135 = vpow.pop %v134
  %v136 = vmul.f32 %v132, 1.442695
  %v137 = vpow.pop %v136
  %v138 = vmul.f32 %v133, 1.442695
  %v139 = vpow.pop %v138
  %v140 = vadd.f32 %v135, 1.0
  %v141 = vadd.f32 %v137, 1.0
  %v142 = vadd.f32 %v139, 1.0
  %v143 = vrcp.pop %v140
  %v144 = vmul.f32 1.0, %v143
  %v145 = vrcp.pop %v141
  %v146 = vmul.f32 1.0, %v145
  %v147 = vrcp.pop %v142
  %v148 = vmul.f32 1.0, %v147
  %v149 = vmul.f32 %v118, %v144
  %v150 = vmul.f32 %v121, %v146
  %v151 = vmul.f32 %v126, %v148
  %v152 = vpack.c.bf16 %v150, %v149
  %v153 = vpack.c.bf16 %v151, %v151
  %v156 = vunpack.c.l.b16 %v152
  %v157 = vunpack.c.h.b16 %v152
  %v158 = vunpack.c.l.b16 %v153
  %v159 = vpack.c.b16 %v156, %v156
  %v160 = vpack.c.b16 %v157, %v157
  %v161 = vpack.c.b16 %v158, %v158
  %165 = vst [vmem:[%s3] sm:$0xf] %v159
  %166 = vst [vmem:[%s3 + $0x4] sm:$0xf] %v160
  %167 = vst [vmem:[%s3 + $0x8] sm:$0xf] %v161
  // Predicated region
  $region14: #{model_forward.45} parent=0 // pred_check
    _
  $region15: #{model_forward.45} parent=0 // pred_check_branch
    %169 = sbr.rel (0) target = $region17
  $region16: #{model_forward.45} parent=0 // pred_region
    _
  $region17: #{model_forward.45} parent=0 // pred_fallthru
    _
  // Predicated region
  $region18: #{model_forward.45} parent=0 // pred_check
    _
  $region19: #{model_forward.45} parent=0 // pred_check_branch
    %171 = sbr.rel (0) target = $region21
  $region20: #{model_forward.45} parent=0 // pred_region
    _
  $region21: #{model_forward.45} parent=0 // pred_fallthru
    _

// kernel: model_forward.39
$region0: #{model_forward.39}
  #allocation0 [shape = 'u32[]', space=smem, size = 0x4, offset = 0x4, fixed_abs, tag = 'smem constant byte address 0x4 - core index']
  #allocation1 [shape = 'u32[144,128]{1,0:T(1,128)}', space=vmem, size = 0x12000, scoped, tag = 'internal scratch']
  %s0 = inlined_call_operand.vmem [shape: bf16[16,432], index: 0, kind: input, shape index: {}]
  %s1 = inlined_call_operand.vmem [shape: bf16[432,128], index: 1, kind: input, shape index: {}]
  %s2 = inlined_call_operand.vmem [shape: f32[16,1], index: 2, kind: input, shape index: {}]
  %s3 = inlined_call_operand.vmem [shape: bf16[16,128], index: 3, kind: output, shape index: {}]
  %s4 = sld [smem:[#allocation0]]
  $region22: #{model_forward.39} parent=0
    _
  %s6 = ssub.s32 1, %s4
  %s7 = scalar_select 0, %s6, %s4
  // Predicated region
  $region2: #{model_forward.39} parent=0 // pred_check
    _
  $region3: #{model_forward.39} parent=0 // pred_check_branch
    %9 = sbr.rel (0) target = $region5
  $region4: #{model_forward.39} parent=0 // pred_region
    _
  $region5: #{model_forward.39} parent=0 // pred_fallthru
    _
  // Predicated region
  $region6: #{model_forward.39} parent=0 // pred_check
    _
  $region7: #{model_forward.39} parent=0 // pred_check_branch
    %11 = sbr.rel (0) target = $region9
  $region8: #{model_forward.39} parent=0 // pred_region
    _
  $region9: #{model_forward.39} parent=0 // pred_fallthru
    _
  // Predicated region
  $region10: #{model_forward.39} parent=0 // pred_check
    _
  $region11: #{model_forward.39} parent=0 // pred_check_branch
    %13 = sbr.rel (0) target = $region13
  $region12: #{model_forward.39} parent=0 // pred_region
    _
  $region13: #{model_forward.39} parent=0 // pred_fallthru
    _
  %v15 = vld [vmem:[%s0] sm:$0xff]
  %v16 = vld [vmem:[%s0 + $0x8] sm:$0xff]
  %v17 = vld [vmem:[%s0 + $0x10] sm:$0xff]
  %v18 = vld [vmem:[%s0 + $0x18] sm:$0xff]
  %v19 = vld [vmem:[%s1] sm:$0xf]
  %v20 = vld [vmem:[%s1 + $0x4] sm:$0xf]
  %v21 = vld [vmem:[%s1 + $0x8] sm:$0xf]
  %v22 = vld [vmem:[%s1 + $0xc] sm:$0xf]
  %v23 = vld [vmem:[%s1 + $0x10] sm:$0xf]
  %v24 = vld [vmem:[%s1 + $0x14] sm:$0xf]
  %v25 = vld [vmem:[%s1 + $0x18] sm:$0xf]
  %v26 = vld [vmem:[%s1 + $0x1c] sm:$0xf]
  %v27 = vld [vmem:[%s1 + $0x20] sm:$0xf]
  %v28 = vld [vmem:[%s1 + $0x24] sm:$0xf]
  %v29 = vld [vmem:[%s1 + $0x28] sm:$0xf]
  %v30 = vld [vmem:[%s1 + $0x2c] sm:$0xf]
  %v31 = vld [vmem:[%s1 + $0x30] sm:$0xf]
  %v32 = vld [vmem:[%s1 + $0x34] sm:$0xf]
  %v33 = vld [vmem:[%s1 + $0x38] sm:$0xf]
  %v34 = vld [vmem:[%s1 + $0x3c] sm:$0xf]
  %v35 = vld [vmem:[%s1 + $0x40] sm:$0xf]
  %v36 = vld [vmem:[%s1 + $0x44] sm:$0xf]
  %v37 = vld [vmem:[%s1 + $0x48] sm:$0xf]
  %v38 = vld [vmem:[%s1 + $0x4c] sm:$0xf]
  %v39 = vld [vmem:[%s1 + $0x50] sm:$0xf]
  %v40 = vld [vmem:[%s1 + $0x54] sm:$0xf]
  %v41 = vld [vmem:[%s1 + $0x58] sm:$0xf]
  %v42 = vld [vmem:[%s1 + $0x5c] sm:$0xf]
  %v43 = vld [vmem:[%s1 + $0x60] sm:$0xf]
  %v44 = vld [vmem:[%s1 + $0x64] sm:$0xf]
  %v45 = vld [vmem:[%s1 + $0x68] sm:$0xf]
  %v46 = vld [vmem:[%s1 + $0x6c] sm:$0xf]
  %v47 = vld [vmem:[%s1 + $0x70] sm:$0xf]
  %v48 = vld [vmem:[%s1 + $0x74] sm:$0xf]
  %v49 = vld [vmem:[%s1 + $0x78] sm:$0xf]
  %v50 = vld [vmem:[%s1 + $0x7c] sm:$0xf]
  %v51 = vld [vmem:[%s1 + $0x80] sm:$0xf]
  %v52 = vld [vmem:[%s1 + $0x84] sm:$0xf]
  %v53 = vld [vmem:[%s1 + $0x88] sm:$0xf]
  %v54 = vld [vmem:[%s1 + $0x8c] sm:$0xf]
  %v55 = vld [vmem:[%s1 + $0x90] sm:$0xf]
  %v56 = vld [vmem:[%s1 + $0x94] sm:$0xf]
  %v57 = vld [vmem:[%s1 + $0x98] sm:$0xf]
  %v58 = vld [vmem:[%s1 + $0x9c] sm:$0xf]
  %v59 = vld [vmem:[%s1 + $0xa0] sm:$0xf]
  %v60 = vld [vmem:[%s1 + $0xa4] sm:$0xf]
  %v61 = vld [vmem:[%s1 + $0xa8] sm:$0xf]
  %v62 = vld [vmem:[%s1 + $0xac] sm:$0xf]
  %v63 = vld [vmem:[%s1 + $0xb0] sm:$0xf]
  %v64 = vld [vmem:[%s1 + $0xb4] sm:$0xf]
  %v65 = vld [vmem:[%s1 + $0xb8] sm:$0xf]
  %v66 = vld [vmem:[%s1 + $0xbc] sm:$0xf]
  %v67 = vld [vmem:[%s1 + $0xc0] sm:$0xf]
  %v68 = vld [vmem:[%s1 + $0xc4] sm:$0xf]
  %v69 = vld [vmem:[%s1 + $0xc8] sm:$0xf]
  %v70 = vld [vmem:[%s1 + $0xcc] sm:$0xf]
  %v71 = vld [vmem:[%s1 + $0xd0] sm:$0xf]
  %v72 = vld [vmem:[%s1 + $0xd4] sm:$0xf]
  %v73 = vld [vmem:[%s2] sm:$0xff]
  %v74 = vld [vmem:[%s2 + $0x8] sm:$0xff]
  %76 = vset.pattern.permute.xlu0 0
  %77 = vperm.xlu0 %76, %v73
  %v78 = vpop.permute.xlu0 %77
  %81 = vset.pattern.permute.xlu0 0
  %82 = vperm.xlu0 %81, %v74
  %v83 = vpop.permute.xlu0 %82
  %v89 = vunpack.c.l.b16 %v15
  %v90 = vunpack.c.h.b16 %v15
  %v91 = vunpack.c.l.b16 %v16
  %v92 = vunpack.c.h.b16 %v16
  %v93 = vunpack.c.l.b16 %v17
  %v94 = vunpack.c.h.b16 %v17
  %v95 = vunpack.c.l.b16 %v18
  %v96 = vunpack.c.h.b16 %v18
  %v97 = vpack.c.b16 %v93, %v89
  %v98 = vpack.c.b16 %v94, %v90
  %v99 = vpack.c.b16 %v95, %v91
  %v100 = vpack.c.b16 %v96, %v92
  %v158 = vunpack.c.l.b16 %v19
  %v159 = vunpack.c.l.b16 %v20
  %v160 = vunpack.c.l.b16 %v21
  %v161 = vunpack.c.l.b16 %v22
  %v162 = vunpack.c.l.b16 %v23
  %v163 = vunpack.c.l.b16 %v24
  %v164 = vunpack.c.l.b16 %v25
  %v165 = vunpack.c.l.b16 %v26
  %v166 = vunpack.c.l.b16 %v27
  %v167 = vunpack.c.l.b16 %v28
  %v168 = vunpack.c.l.b16 %v29
  %v169 = vunpack.c.l.b16 %v30
  %v170 = vunpack.c.l.b16 %v31
  %v171 = vunpack.c.l.b16 %v32
  %v172 = vunpack.c.l.b16 %v33
  %v173 = vunpack.c.l.b16 %v34
  %v174 = vunpack.c.l.b16 %v35
  %v175 = vunpack.c.l.b16 %v36
  %v176 = vunpack.c.l.b16 %v37
  %v177 = vunpack.c.l.b16 %v38
  %v178 = vunpack.c.l.b16 %v39
  %v179 = vunpack.c.l.b16 %v40
  %v180 = vunpack.c.l.b16 %v41
  %v181 = vunpack.c.l.b16 %v42
  %v182 = vunpack.c.l.b16 %v43
  %v183 = vunpack.c.l.b16 %v44
  %v184 = vunpack.c.l.b16 %v45
  %v185 = vunpack.c.l.b16 %v46
  %v186 = vunpack.c.l.b16 %v47
  %v187 = vunpack.c.l.b16 %v48
  %v188 = vunpack.c.l.b16 %v49
  %v189 = vunpack.c.l.b16 %v50
  %v190 = vunpack.c.l.b16 %v51
  %v191 = vunpack.c.l.b16 %v52
  %v192 = vunpack.c.l.b16 %v53
  %v193 = vunpack.c.l.b16 %v54
  %v194 = vunpack.c.l.b16 %v55
  %v195 = vunpack.c.l.b16 %v56
  %v196 = vunpack.c.l.b16 %v57
  %v197 = vunpack.c.l.b16 %v58
  %v198 = vunpack.c.l.b16 %v59
  %v199 = vunpack.c.l.b16 %v60
  %v200 = vunpack.c.l.b16 %v61
  %v201 = vunpack.c.l.b16 %v62
  %v202 = vunpack.c.l.b16 %v63
  %v203 = vunpack.c.l.b16 %v64
  %v204 = vunpack.c.l.b16 %v65
  %v205 = vunpack.c.l.b16 %v66
  %v206 = vunpack.c.l.b16 %v67
  %v207 = vunpack.c.l.b16 %v68
  %v208 = vunpack.c.l.b16 %v69
  %v209 = vunpack.c.l.b16 %v70
  %v210 = vunpack.c.l.b16 %v71
  %v211 = vunpack.c.l.b16 %v72
  %v212 = vpack.c.b16 %v159, %v158
  %v213 = vpack.c.b16 %v161, %v160
  %v214 = vpack.c.b16 %v163, %v162
  %v215 = vpack.c.b16 %v165, %v164
  %v216 = vpack.c.b16 %v167, %v166
  %v217 = vpack.c.b16 %v169, %v168
  %v218 = vpack.c.b16 %v171, %v170
  %v219 = vpack.c.b16 %v173, %v172
  %v220 = vpack.c.b16 %v175, %v174
  %v221 = vpack.c.b16 %v177, %v176
  %v222 = vpack.c.b16 %v179, %v178
  %v223 = vpack.c.b16 %v181, %v180
  %v224 = vpack.c.b16 %v183, %v182
  %v225 = vpack.c.b16 %v185, %v184
  %v226 = vpack.c.b16 %v187, %v186
  %v227 = vpack.c.b16 %v189, %v188
  %v228 = vpack.c.b16 %v191, %v190
  %v229 = vpack.c.b16 %v193, %v192
  %v230 = vpack.c.b16 %v195, %v194
  %v231 = vpack.c.b16 %v197, %v196
  %v232 = vpack.c.b16 %v199, %v198
  %v233 = vpack.c.b16 %v201, %v200
  %v234 = vpack.c.b16 %v203, %v202
  %v235 = vpack.c.b16 %v205, %v204
  %v236 = vpack.c.b16 %v207, %v206
  %v237 = vpack.c.b16 %v209, %v208
  %v238 = vpack.c.b16 %v211, %v210
  %vm266 = vcmask 392192
  %v268 = vsel %vm266, %v100, 0
  %270 = vmatprep.subr.bf16.mxu0 0
  %271 = vmatpush1.bf16.msra.mxu0 %v212
  %272 = vmatprep.subr.bf16.mxu0 0
  %273 = vmatpush1.bf16.msra.mxu0 %v213
  %274 = vmatprep.subr.bf16.mxu0 0
  %275 = vmatpush1.bf16.msra.mxu0 %v214
  %276 = vmatprep.subr.bf16.mxu0 0
  %277 = vmatpush1.bf16.msra.mxu0 %v215
  %278 = vmatprep.subr.bf16.mxu0 0
  %279 = vmatpush1.bf16.msra.mxu0 %v216
  %280 = vmatprep.subr.bf16.mxu0 0
  %281 = vmatpush1.bf16.msra.mxu0 %v217
  %282 = vmatprep.subr.bf16.mxu0 0
  %283 = vmatpush1.bf16.msra.mxu0 %v218
  %284 = vmatprep.subr.bf16.mxu0 0
  %285 = vmatpush1.bf16.msra.mxu0 %v219
  %286 = vmatprep.subr.bf16.mxu0 0
  %287 = vmatpush1.bf16.msra.mxu0 %v220
  %288 = vmatprep.subr.bf16.mxu0 0
  %289 = vmatpush1.bf16.msra.mxu0 %v221
  %290 = vmatprep.subr.bf16.mxu0 0
  %291 = vmatpush1.bf16.msra.mxu0 %v222
  %292 = vmatprep.subr.bf16.mxu0 0
  %293 = vmatpush1.bf16.msra.mxu0 %v223
  %294 = vmatprep.subr.bf16.mxu0 0
  %295 = vmatpush1.bf16.msra.mxu0 %v224
  %296 = vmatprep.subr.bf16.mxu0 0
  %297 = vmatpush1.bf16.msra.mxu0 %v225
  %298 = vmatprep.subr.bf16.mxu0 0
  %299 = vmatpush1.bf16.msra.mxu0 %v226
  %300 = vmatprep.subr.bf16.mxu0 0
  %301 = vmatpush1.bf16.msra.mxu0 %v227
  %302 = vmatprep.mubr.bf16.mxu0 %v98
  %303 = vmatmul.mubr.bf16.gmra.mrb[0].mxu0 %v97
  %v304 = vpop.f32.mrb[0].mxu0
  %v305 = vadd.f32 %v78, %v304
  %v306 = vpop.f32.mrb[0].mxu0
  %v307 = vpop.f32.mrb[0].mxu0
  %v308 = vadd.f32 %v83, %v307
  %v309 = vpop.f32.mrb[0].mxu0
  %310 = vdwg.mxu0
  %311 = vmatprep.subr.bf16.mxu0 0
  %312 = vmatpush1.bf16.msra.mxu0 %v228
  %313 = vmatprep.subr.bf16.mxu0 0
  %314 = vmatpush1.bf16.msra.mxu0 %v229
  %315 = vmatprep.subr.bf16.mxu0 0
  %316 = vmatpush1.bf16.msra.mxu0 %v230
  %317 = vmatprep.subr.bf16.mxu0 0
  %318 = vmatpush1.bf16.msra.mxu0 %v231
  %319 = vmatprep.subr.bf16.mxu0 0
  %320 = vmatpush1.bf16.msra.mxu0 %v232
  %321 = vmatprep.subr.bf16.mxu0 0
  %322 = vmatpush1.bf16.msra.mxu0 %v233
  %323 = vmatprep.subr.bf16.mxu0 0
  %324 = vmatpush1.bf16.msra.mxu0 %v234
  %325 = vmatprep.subr.bf16.mxu0 0
  %326 = vmatpush1.bf16.msra.mxu0 %v235
  %327 = vmatprep.subr.bf16.mxu0 0
  %328 = vmatpush1.bf16.msra.mxu0 %v236
  %329 = vmatprep.subr.bf16.mxu0 0
  %330 = vmatpush1.bf16.msra.mxu0 %v237
  %331 = vmatprep.subr.bf16.mxu0 0
  %332 = vmatpush1.bf16.msra.mxu0 %v238
  %333 = vmatprep.subr.bf16.mxu0 0
  %334 = vmatpush1.bf16.msra.mxu0 0
  %335 = vmatprep.subr.bf16.mxu0 0
  %336 = vmatpush1.bf16.msra.mxu0 0
  %337 = vmatprep.subr.bf16.mxu0 0
  %338 = vmatpush1.bf16.msra.mxu0 0
  %339 = vmatprep.subr.bf16.mxu0 0
  %340 = vmatpush1.bf16.msra.mxu0 0
  %341 = vmatprep.subr.bf16.mxu0 0
  %342 = vmatpush1.bf16.msra.mxu0 0
  %343 = vmatprep.mubr.bf16.mxu0 %v268
  %344 = vmatmul.mubr.bf16.gmra.mrb[0].mxu0 %v99
  %v345 = vpop.f32.mrb[0].mxu0
  %v346 = vadd.f32 %v305, %v345
  %v347 = vpop.f32.mrb[0].mxu0
  %v348 = vpop.f32.mrb[0].mxu0
  %v349 = vadd.f32 %v308, %v348
  %v350 = vpop.f32.mrb[0].mxu0
  %351 = vdwg.mxu0
  %v352 = vxor.u32 %v346, 2147483648
  %v353 = vxor.u32 %v349, 2147483648
  %v354 = vmul.f32 %v352, 1.442695
  %v355 = vpow.pop %v354
  %v356 = vmul.f32 %v353, 1.442695
  %v357 = vpow.pop %v356
  %v358 = vadd.f32 %v355, 1.0
  %v359 = vadd.f32 %v357, 1.0
  %v360 = vrcp.pop %v358
  %v361 = vmul.f32 1.0, %v360
  %v362 = vrcp.pop %v359
  %v363 = vmul.f32 1.0, %v362
  %v364 = vmul.f32 %v346, %v361
  %v365 = vmul.f32 %v349, %v363
  %v366 = vpack.c.bf16 %v365, %v364
  %v368 = vunpack.c.l.b16 %v366
  %v369 = vunpack.c.h.b16 %v366
  %v370 = vpack.c.b16 %v368, %v368
  %v371 = vpack.c.b16 %v369, %v369
  %374 = vst [vmem:[%s3] sm:$0xf] %v370
  %375 = vst [vmem:[%s3 + $0x4] sm:$0xf] %v371
  // Predicated region
  $region14: #{model_forward.39} parent=0 // pred_check
    _
  $region15: #{model_forward.39} parent=0 // pred_check_branch
    %377 = sbr.rel (0) target = $region17
  $region16: #{model_forward.39} parent=0 // pred_region
    _
  $region17: #{model_forward.39} parent=0 // pred_fallthru
    _
  // Predicated region
  $region18: #{model_forward.39} parent=0 // pred_check
    _
  $region19: #{model_forward.39} parent=0 // pred_check_branch
    %379 = sbr.rel (0) target = $region21
  $region20: #{model_forward.39} parent=0 // pred_region
    _
  $region21: #{model_forward.39} parent=0 // pred_fallthru
    _

// kernel: model_forward.47
$region0: #{model_forward.47}
  #allocation0 [shape = 'u32[]', space=smem, size = 0x4, offset = 0x4, fixed_abs, tag = 'smem constant byte address 0x4 - core index']
  #allocation1 [shape = 'u32[144,128]{1,0:T(1,128)}', space=vmem, size = 0x12000, scoped, tag = 'internal scratch']
  %s0 = inlined_call_operand.vmem [shape: bf16[16,24], index: 0, kind: input, shape index: {}]
  %s1 = inlined_call_operand.vmem [shape: bf16[24,128], index: 1, kind: input, shape index: {}]
  %s2 = inlined_call_operand.vmem [shape: f32[16,1], index: 2, kind: input, shape index: {}]
  %s3 = inlined_call_operand.vmem [shape: bf16[16,128], index: 3, kind: output, shape index: {}]
  %s4 = sld [smem:[#allocation0]]
  $region22: #{model_forward.47} parent=0
    _
  %s6 = ssub.s32 1, %s4
  %s7 = scalar_select 0, %s6, %s4
  // Predicated region
  $region2: #{model_forward.47} parent=0 // pred_check
    _
  $region3: #{model_forward.47} parent=0 // pred_check_branch
    %9 = sbr.rel (0) target = $region5
  $region4: #{model_forward.47} parent=0 // pred_region
    _
  $region5: #{model_forward.47} parent=0 // pred_fallthru
    _
  // Predicated region
  $region6: #{model_forward.47} parent=0 // pred_check
    _
  $region7: #{model_forward.47} parent=0 // pred_check_branch
    %11 = sbr.rel (0) target = $region9
  $region8: #{model_forward.47} parent=0 // pred_region
    _
  $region9: #{model_forward.47} parent=0 // pred_fallthru
    _
  // Predicated region
  $region10: #{model_forward.47} parent=0 // pred_check
    _
  $region11: #{model_forward.47} parent=0 // pred_check_branch
    %13 = sbr.rel (0) target = $region13
  $region12: #{model_forward.47} parent=0 // pred_region
    _
  $region13: #{model_forward.47} parent=0 // pred_fallthru
    _
  %v15 = vld [vmem:[%s0] sm:$0xf]
  %v16 = vld [vmem:[%s0 + $0x4] sm:$0xf]
  %v17 = vld [vmem:[%s1] sm:$0xf]
  %v18 = vld [vmem:[%s1 + $0x4] sm:$0xf]
  %v19 = vld [vmem:[%s1 + $0x8] sm:$0xf]
  %v20 = vld [vmem:[%s2] sm:$0xff]
  %v21 = vld [vmem:[%s2 + $0x8] sm:$0xff]
  %23 = vset.pattern.permute.xlu0 0
  %24 = vperm.xlu0 %23, %v20
  %v25 = vpop.permute.xlu0 %24
  %28 = vset.pattern.permute.xlu0 0
  %29 = vperm.xlu0 %28, %v21
  %v30 = vpop.permute.xlu0 %29
  %v34 = vunpack.c.l.b16 %v15
  %v35 = vunpack.c.l.b16 %v16
  %v36 = vpack.c.b16 %v35, %v34
  %v40 = vunpack.c.l.b16 %v17
  %v41 = vunpack.c.l.b16 %v18
  %v42 = vunpack.c.l.b16 %v19
  %v43 = vpack.c.b16 %v41, %v40
  %v44 = vpack.c.b16 %v42, %v42
  %vm46 = vcmask 195584
  %v48 = vsel %vm46, %v36, 0
  %vm50 = vcmask 1043456
  %v52 = vsel %vm50, %v44, 0
  %54 = vmatprep.subr.bf16.mxu0 0
  %55 = vmatpush1.bf16.msra.mxu0 %v43
  %56 = vmatprep.subr.bf16.mxu0 0
  %57 = vmatpush1.bf16.msra.mxu0 %v52
  %58 = vmatprep.subr.bf16.mxu0 0
  %59 = vmatpush1.bf16.msra.mxu0 0
  %60 = vmatprep.subr.bf16.mxu0 0
  %61 = vmatpush1.bf16.msra.mxu0 0
  %62 = vmatprep.subr.bf16.mxu0 0
  %63 = vmatpush1.bf16.msra.mxu0 0
  %64 = vmatprep.subr.bf16.mxu0 0
  %65 = vmatpush1.bf16.msra.mxu0 0
  %66 = vmatprep.subr.bf16.mxu0 0
  %67 = vmatpush1.bf16.msra.mxu0 0
  %68 = vmatprep.subr.bf16.mxu0 0
  %69 = vmatpush1.bf16.msra.mxu0 0
  %70 = vmatprep.subr.bf16.mxu0 0
  %71 = vmatpush1.bf16.msra.mxu0 0
  %72 = vmatprep.subr.bf16.mxu0 0
  %73 = vmatpush1.bf16.msra.mxu0 0
  %74 = vmatprep.subr.bf16.mxu0 0
  %75 = vmatpush1.bf16.msra.mxu0 0
  %76 = vmatprep.subr.bf16.mxu0 0
  %77 = vmatpush1.bf16.msra.mxu0 0
  %78 = vmatprep.subr.bf16.mxu0 0
  %79 = vmatpush1.bf16.msra.mxu0 0
  %80 = vmatprep.subr.bf16.mxu0 0
  %81 = vmatpush1.bf16.msra.mxu0 0
  %82 = vmatprep.subr.bf16.mxu0 0
  %83 = vmatpush1.bf16.msra.mxu0 0
  %84 = vmatprep.subr.bf16.mxu0 0
  %85 = vmatpush1.bf16.msra.mxu0 0
  %86 = vmatprep.mubr.bf16.mxu0 0
  %87 = vmatmul.mubr.bf16.gmra.mrb[0].mxu0 %v48
  %v88 = vpop.f32.mrb[0].mxu0
  %v89 = vadd.f32 %v25, %v88
  %v90 = vpop.f32.mrb[0].mxu0
  %v91 = vpop.f32.mrb[0].mxu0
  %v92 = vadd.f32 %v30, %v91
  %v93 = vpop.f32.mrb[0].mxu0
  %94 = vdwg.mxu0
  %v95 = vxor.u32 %v89, 2147483648
  %v96 = vxor.u32 %v92, 2147483648
  %v97 = vmul.f32 %v95, 1.442695
  %v98 = vpow.pop %v97
  %v99 = vmul.f32 %v96, 1.442695
  %v100 = vpow.pop %v99
  %v101 = vadd.f32 %v98, 1.0
  %v102 = vadd.f32 %v100, 1.0
  %v103 = vrcp.pop %v101
  %v104 = vmul.f32 1.0, %v103
  %v105 = vrcp.pop %v102
  %v106 = vmul.f32 1.0, %v105
  %v107 = vmul.f32 %v89, %v104
  %v108 = vmul.f32 %v92, %v106
  %v109 = vpack.c.bf16 %v108, %v107
  %v111 = vunpack.c.l.b16 %v109
  %v112 = vunpack.c.h.b16 %v109
  %v113 = vpack.c.b16 %v111, %v111
  %v114 = vpack.c.b16 %v112, %v112
  %117 = vst [vmem:[%s3] sm:$0xf] %v113
  %118 = vst [vmem:[%s3 + $0x4] sm:$0xf] %v114
  // Predicated region
  $region14: #{model_forward.47} parent=0 // pred_check
    _
  $region15: #{model_forward.47} parent=0 // pred_check_branch
    %120 = sbr.rel (0) target = $region17
  $region16: #{model_forward.47} parent=0 // pred_region
    _
  $region17: #{model_forward.47} parent=0 // pred_fallthru
    _
  // Predicated region
  $region18: #{model_forward.47} parent=0 // pred_check
    _
  $region19: #{model_forward.47} parent=0 // pred_check_branch
    %122 = sbr.rel (0) target = $region21
  $region20: #{model_forward.47} parent=0 // pred_region
    _
  $region21: #{model_forward.47} parent=0 // pred_fallthru
    _

// kernel: model_forward.46
$region0: #{model_forward.46}
  #allocation0 [shape = 'u32[]', space=smem, size = 0x4, offset = 0x4, fixed_abs, tag = 'smem constant byte address 0x4 - core index']
  #allocation1 [shape = 'u32[144,128]{1,0:T(1,128)}', space=vmem, size = 0x12000, scoped, tag = 'internal scratch']
  %s0 = inlined_call_operand.vmem [shape: bf16[24,648], index: 0, kind: input, shape index: {}]
  %s1 = inlined_call_operand.vmem [shape: bf16[648,128], index: 1, kind: input, shape index: {}]
  %s2 = inlined_call_operand.vmem [shape: f32[24,1], index: 2, kind: input, shape index: {}]
  %s3 = inlined_call_operand.vmem [shape: bf16[24,128], index: 3, kind: output, shape index: {}]
  %s4 = sld [smem:[#allocation0]]
  $region22: #{model_forward.46} parent=0
    _
  %s6 = ssub.s32 1, %s4
  %s7 = scalar_select 0, %s6, %s4
  // Predicated region
  $region2: #{model_forward.46} parent=0 // pred_check
    _
  $region3: #{model_forward.46} parent=0 // pred_check_branch
    %9 = sbr.rel (0) target = $region5
  $region4: #{model_forward.46} parent=0 // pred_region
    _
  $region5: #{model_forward.46} parent=0 // pred_fallthru
    _
  // Predicated region
  $region6: #{model_forward.46} parent=0 // pred_check
    _
  $region7: #{model_forward.46} parent=0 // pred_check_branch
    %11 = sbr.rel (0) target = $region9
  $region8: #{model_forward.46} parent=0 // pred_region
    _
  $region9: #{model_forward.46} parent=0 // pred_fallthru
    _
  // Predicated region
  $region10: #{model_forward.46} parent=0 // pred_check
    _
  $region11: #{model_forward.46} parent=0 // pred_check_branch
    %13 = sbr.rel (0) target = $region13
  $region12: #{model_forward.46} parent=0 // pred_region
    _
  $region13: #{model_forward.46} parent=0 // pred_fallthru
    _
  %v15 = vld [vmem:[%s0] sm:$0xff]
  %v16 = vld [vmem:[%s0 + $0x8] sm:$0xff]
  %v17 = vld [vmem:[%s0 + $0x10] sm:$0xff]
  %v18 = vld [vmem:[%s0 + $0x18] sm:$0xff]
  %v19 = vld [vmem:[%s0 + $0x20] sm:$0xff]
  %v20 = vld [vmem:[%s0 + $0x28] sm:$0xff]
  %v21 = vld [vmem:[%s0 + $0x30] sm:$0xff]
  %v22 = vld [vmem:[%s0 + $0x38] sm:$0xff]
  %v23 = vld [vmem:[%s0 + $0x40] sm:$0xff]
  %v24 = vld [vmem:[%s1] sm:$0xf]
  %v25 = vld [vmem:[%s1 + $0x4] sm:$0xf]
  %v26 = vld [vmem:[%s1 + $0x8] sm:$0xf]
  %v27 = vld [vmem:[%s1 + $0xc] sm:$0xf]
  %v28 = vld [vmem:[%s1 + $0x10] sm:$0xf]
  %v29 = vld [vmem:[%s1 + $0x14] sm:$0xf]
  %v30 = vld [vmem:[%s1 + $0x18] sm:$0xf]
  %v31 = vld [vmem:[%s1 + $0x1c] sm:$0xf]
  %v32 = vld [vmem:[%s1 + $0x20] sm:$0xf]
  %v33 = vld [vmem:[%s1 + $0x24] sm:$0xf]
  %v34 = vld [vmem:[%s1 + $0x28] sm:$0xf]
  %v35 = vld [vmem:[%s1 + $0x2c] sm:$0xf]
  %v36 = vld [vmem:[%s1 + $0x30] sm:$0xf]
  %v37 = vld [vmem:[%s1 + $0x34] sm:$0xf]
  %v38 = vld [vmem:[%s1 + $0x38] sm:$0xf]
  %v39 = vld [vmem:[%s1 + $0x3c] sm:$0xf]
  %v40 = vld [vmem:[%s1 + $0x40] sm:$0xf]
  %v41 = vld [vmem:[%s1 + $0x44] sm:$0xf]
  %v42 = vld [vmem:[%s1 + $0x48] sm:$0xf]
  %v43 = vld [vmem:[%s1 + $0x4c] sm:$0xf]
  %v44 = vld [vmem:[%s1 + $0x50] sm:$0xf]
  %v45 = vld [vmem:[%s1 + $0x54] sm:$0xf]
  %v46 = vld [vmem:[%s1 + $0x58] sm:$0xf]
  %v47 = vld [vmem:[%s1 + $0x5c] sm:$0xf]
  %v48 = vld [vmem:[%s1 + $0x60] sm:$0xf]
  %v49 = vld [vmem:[%s1 + $0x64] sm:$0xf]
  %v50 = vld [vmem:[%s1 + $0x68] sm:$0xf]
  %v51 = vld [vmem:[%s1 + $0x6c] sm:$0xf]
  %v52 = vld [vmem:[%s1 + $0x70] sm:$0xf]
  %v53 = vld [vmem:[%s1 + $0x74] sm:$0xf]
  %v54 = vld [vmem:[%s1 + $0x78] sm:$0xf]
  %v55 = vld [vmem:[%s1 + $0x7c] sm:$0xf]
  %v56 = vld [vmem:[%s1 + $0x80] sm:$0xf]
  %v57 = vld [vmem:[%s1 + $0x84] sm:$0xf]
  %v58 = vld [vmem:[%s1 + $0x88] sm:$0xf]
  %v59 = vld [vmem:[%s1 + $0x8c] sm:$0xf]
  %v60 = vld [vmem:[%s1 + $0x90] sm:$0xf]
  %v61 = vld [vmem:[%s1 + $0x94] sm:$0xf]
  %v62 = vld [vmem:[%s1 + $0x98] sm:$0xf]
  %v63 = vld [vmem:[%s1 + $0x9c] sm:$0xf]
  %v64 = vld [vmem:[%s1 + $0xa0] sm:$0xf]
  %v65 = vld [vmem:[%s1 + $0xa4] sm:$0xf]
  %v66 = vld [vmem:[%s1 + $0xa8] sm:$0xf]
  %v67 = vld [vmem:[%s1 + $0xac] sm:$0xf]
  %v68 = vld [vmem:[%s1 + $0xb0] sm:$0xf]
  %v69 = vld [vmem:[%s1 + $0xb4] sm:$0xf]
  %v70 = vld [vmem:[%s1 + $0xb8] sm:$0xf]
  %v71 = vld [vmem:[%s1 + $0xbc] sm:$0xf]
  %v72 = vld [vmem:[%s1 + $0xc0] sm:$0xf]
  %v73 = vld [vmem:[%s1 + $0xc4] sm:$0xf]
  %v74 = vld [vmem:[%s1 + $0xc8] sm:$0xf]
  %v75 = vld [vmem:[%s1 + $0xcc] sm:$0xf]
  %v76 = vld [vmem:[%s1 + $0xd0] sm:$0xf]
  %v77 = vld [vmem:[%s1 + $0xd4] sm:$0xf]
  %v78 = vld [vmem:[%s1 + $0xd8] sm:$0xf]
  %v79 = vld [vmem:[%s1 + $0xdc] sm:$0xf]
  %v80 = vld [vmem:[%s1 + $0xe0] sm:$0xf]
  %v81 = vld [vmem:[%s1 + $0xe4] sm:$0xf]
  %v82 = vld [vmem:[%s1 + $0xe8] sm:$0xf]
  %v83 = vld [vmem:[%s1 + $0xec] sm:$0xf]
  %v84 = vld [vmem:[%s1 + $0xf0] sm:$0xf]
  %v85 = vld [vmem:[%s1 + $0xf4] sm:$0xf]
  %v86 = vld [vmem:[%s1 + $0xf8] sm:$0xf]
  %v87 = vld [vmem:[%s1 + $0xfc] sm:$0xf]
  %v88 = vld [vmem:[%s1 + $0x100] sm:$0xf]
  %v89 = vld [vmem:[%s1 + $0x104] sm:$0xf]
  %v90 = vld [vmem:[%s1 + $0x108] sm:$0xf]
  %v91 = vld [vmem:[%s1 + $0x10c] sm:$0xf]
  %v92 = vld [vmem:[%s1 + $0x110] sm:$0xf]
  %v93 = vld [vmem:[%s1 + $0x114] sm:$0xf]
  %v94 = vld [vmem:[%s1 + $0x118] sm:$0xf]
  %v95 = vld [vmem:[%s1 + $0x11c] sm:$0xf]
  %v96 = vld [vmem:[%s1 + $0x120] sm:$0xf]
  %v97 = vld [vmem:[%s1 + $0x124] sm:$0xf]
  %v98 = vld [vmem:[%s1 + $0x128] sm:$0xf]
  %v99 = vld [vmem:[%s1 + $0x12c] sm:$0xf]
  %v100 = vld [vmem:[%s1 + $0x130] sm:$0xf]
  %v101 = vld [vmem:[%s1 + $0x134] sm:$0xf]
  %v102 = vld [vmem:[%s1 + $0x138] sm:$0xf]
  %v103 = vld [vmem:[%s1 + $0x13c] sm:$0xf]
  %v104 = vld [vmem:[%s1 + $0x140] sm:$0xf]
  %v105 = vld [vmem:[%s2] sm:$0xff]
  %v106 = vld [vmem:[%s2 + $0x8] sm:$0xff]
  %v107 = vld [vmem:[%s2 + $0x10] sm:$0xff]
  %109 = vset.pattern.permute.xlu0 0
  %110 = vperm.xlu0 %109, %v105
  %v111 = vpop.permute.xlu0 %110
  %114 = vset.pattern.permute.xlu0 0
  %115 = vperm.xlu0 %114, %v106
  %v116 = vpop.permute.xlu0 %115
  %119 = vset.pattern.permute.xlu0 0
  %120 = vperm.xlu0 %119, %v107
  %v121 = vpop.permute.xlu0 %120
  %v132 = vunpack.c.l.b16 %v15
  %v133 = vunpack.c.h.b16 %v15
  %v134 = vunpack.c.l.b16 %v16
  %v135 = vunpack.c.h.b16 %v16
  %v136 = vunpack.c.l.b16 %v17
  %v137 = vunpack.c.h.b16 %v17
  %v138 = vunpack.c.l.b16 %v18
  %v139 = vunpack.c.h.b16 %v18
  %v140 = vunpack.c.l.b16 %v19
  %v141 = vunpack.c.h.b16 %v19
  %v142 = vunpack.c.l.b16 %v20
  %v143 = vunpack.c.h.b16 %v20
  %v144 = vunpack.c.l.b16 %v21
  %v145 = vunpack.c.h.b16 %v21
  %v146 = vunpack.c.l.b16 %v22
  %v147 = vunpack.c.h.b16 %v22
  %v148 = vunpack.c.l.b16 %v23
  %v149 = vunpack.c.h.b16 %v23
  %v150 = vpack.c.b16 %v138, %v132
  %v151 = vpack.c.b16 %v139, %v133
  %v152 = vpack.c.b16 %v140, %v134
  %v153 = vpack.c.b16 %v141, %v135
  %v154 = vpack.c.b16 %v142, %v136
  %v155 = vpack.c.b16 %v143, %v137
  %v156 = vpack.c.b16 %v144, %v144
  %v157 = vpack.c.b16 %v145, %v145
  %v158 = vpack.c.b16 %v146, %v146
  %v159 = vpack.c.b16 %v147, %v147
  %v160 = vpack.c.b16 %v148, %v148
  %v161 = vpack.c.b16 %v149, %v149
  %v253 = vunpack.c.l.b16 %v24
  %v254 = vunpack.c.l.b16 %v25
  %v255 = vunpack.c.l.b16 %v26
  %v256 = vunpack.c.l.b16 %v27
  %v257 = vunpack.c.l.b16 %v28
  %v258 = vunpack.c.l.b16 %v29
  %v259 = vunpack.c.l.b16 %v30
  %v260 = vunpack.c.l.b16 %v31
  %v261 = vunpack.c.l.b16 %v32
  %v262 = vunpack.c.l.b16 %v33
  %v263 = vunpack.c.l.b16 %v34
  %v264 = vunpack.c.l.b16 %v35
  %v265 = vunpack.c.l.b16 %v36
  %v266 = vunpack.c.l.b16 %v37
  %v267 = vunpack.c.l.b16 %v38
  %v268 = vunpack.c.l.b16 %v39
  %v269 = vunpack.c.l.b16 %v40
  %v270 = vunpack.c.l.b16 %v41
  %v271 = vunpack.c.l.b16 %v42
  %v272 = vunpack.c.l.b16 %v43
  %v273 = vunpack.c.l.b16 %v44
  %v274 = vunpack.c.l.b16 %v45
  %v275 = vunpack.c.l.b16 %v46
  %v276 = vunpack.c.l.b16 %v47
  %v277 = vunpack.c.l.b16 %v48
  %v278 = vunpack.c.l.b16 %v49
  %v279 = vunpack.c.l.b16 %v50
  %v280 = vunpack.c.l.b16 %v51
  %v281 = vunpack.c.l.b16 %v52
  %v282 = vunpack.c.l.b16 %v53
  %v283 = vunpack.c.l.b16 %v54
  %v284 = vunpack.c.l.b16 %v55
  %v285 = vunpack.c.l.b16 %v56
  %v286 = vunpack.c.l.b16 %v57
  %v287 = vunpack.c.l.b16 %v58
  %v288 = vunpack.c.l.b16 %v59
  %v289 = vunpack.c.l.b16 %v60
  %v290 = vunpack.c.l.b16 %v61
  %v291 = vunpack.c.l.b16 %v62
  %v292 = vunpack.c.l.b16 %v63
  %v293 = vunpack.c.l.b16 %v64
  %v294 = vunpack.c.l.b16 %v65
  %v295 = vunpack.c.l.b16 %v66
  %v296 = vunpack.c.l.b16 %v67
  %v297 = vunpack.c.l.b16 %v68
  %v298 = vunpack.c.l.b16 %v69
  %v299 = vunpack.c.l.b16 %v70
  %v300 = vunpack.c.l.b16 %v71
  %v301 = vunpack.c.l.b16 %v72
  %v302 = vunpack.c.l.b16 %v73
  %v303 = vunpack.c.l.b16 %v74
  %v304 = vunpack.c.l.b16 %v75
  %v305 = vunpack.c.l.b16 %v76
  %v306 = vunpack.c.l.b16 %v77
  %v307 = vunpack.c.l.b16 %v78
  %v308 = vunpack.c.l.b16 %v79
  %v309 = vunpack.c.l.b16 %v80
  %v310 = vunpack.c.l.b16 %v81
  %v311 = vunpack.c.l.b16 %v82
  %v312 = vunpack.c.l.b16 %v83
  %v313 = vunpack.c.l.b16 %v84
  %v314 = vunpack.c.l.b16 %v85
  %v315 = vunpack.c.l.b16 %v86
  %v316 = vunpack.c.l.b16 %v87
  %v317 = vunpack.c.l.b16 %v88
  %v318 = vunpack.c.l.b16 %v89
  %v319 = vunpack.c.l.b16 %v90
  %v320 = vunpack.c.l.b16 %v91
  %v321 = vunpack.c.l.b16 %v92
  %v322 = vunpack.c.l.b16 %v93
  %v323 = vunpack.c.l.b16 %v94
  %v324 = vunpack.c.l.b16 %v95
  %v325 = vunpack.c.l.b16 %v96
  %v326 = vunpack.c.l.b16 %v97
  %v327 = vunpack.c.l.b16 %v98
  %v328 = vunpack.c.l.b16 %v99
  %v329 = vunpack.c.l.b16 %v100
  %v330 = vunpack.c.l.b16 %v101
  %v331 = vunpack.c.l.b16 %v102
  %v332 = vunpack.c.l.b16 %v103
  %v333 = vunpack.c.l.b16 %v104
  %v334 = vpack.c.b16 %v254, %v253
  %v335 = vpack.c.b16 %v256, %v255
  %v336 = vpack.c.b16 %v258, %v257
  %v337 = vpack.c.b16 %v260, %v259
  %v338 = vpack.c.b16 %v262, %v261
  %v339 = vpack.c.b16 %v264, %v263
  %v340 = vpack.c.b16 %v266, %v265
  %v341 = vpack.c.b16 %v268, %v267
  %v342 = vpack.c.b16 %v270, %v269
  %v343 = vpack.c.b16 %v272, %v271
  %v344 = vpack.c.b16 %v274, %v273
  %v345 = vpack.c.b16 %v276, %v275
  %v346 = vpack.c.b16 %v278, %v277
  %v347 = vpack.c.b16 %v280, %v279
  %v348 = vpack.c.b16 %v282, %v281
  %v349 = vpack.c.b16 %v284, %v283
  %v350 = vpack.c.b16 %v286, %v285
  %v351 = vpack.c.b16 %v288, %v287
  %v352 = vpack.c.b16 %v290, %v289
  %v353 = vpack.c.b16 %v292, %v291
  %v354 = vpack.c.b16 %v294, %v293
  %v355 = vpack.c.b16 %v296, %v295
  %v356 = vpack.c.b16 %v298, %v297
  %v357 = vpack.c.b16 %v300, %v299
  %v358 = vpack.c.b16 %v302, %v301
  %v359 = vpack.c.b16 %v304, %v303
  %v360 = vpack.c.b16 %v306, %v305
  %v361 = vpack.c.b16 %v308, %v307
  %v362 = vpack.c.b16 %v310, %v309
  %v363 = vpack.c.b16 %v312, %v311
  %v364 = vpack.c.b16 %v314, %v313
  %v365 = vpack.c.b16 %v316, %v315
  %v366 = vpack.c.b16 %v318, %v317
  %v367 = vpack.c.b16 %v320, %v319
  %v368 = vpack.c.b16 %v322, %v321
  %v369 = vpack.c.b16 %v324, %v323
  %v370 = vpack.c.b16 %v326, %v325
  %v371 = vpack.c.b16 %v328, %v327
  %v372 = vpack.c.b16 %v330, %v329
  %v373 = vpack.c.b16 %v332, %v331
  %v374 = vpack.c.b16 %v333, %v333
  %vm415 = vcmask 64512
  %v417 = vsel %vm415, %v155, 0
  %v420 = vsel %vm415, %v161, 0
  %vm422 = vcmask 1043456
  %v424 = vsel %vm422, %v374, 0
  %426 = vmatprep.subr.bf16.mxu0 0
  %427 = vmatpush1.bf16.msra.mxu0 %v334
  %428 = vmatprep.subr.bf16.mxu0 0
  %429 = vmatpush1.bf16.msra.mxu0 %v335
  %430 = vmatprep.subr.bf16.mxu0 0
  %431 = vmatpush1.bf16.msra.mxu0 %v336
  %432 = vmatprep.subr.bf16.mxu0 0
  %433 = vmatpush1.bf16.msra.mxu0 %v337
  %434 = vmatprep.subr.bf16.mxu0 0
  %435 = vmatpush1.bf16.msra.mxu0 %v338
  %436 = vmatprep.subr.bf16.mxu0 0
  %437 = vmatpush1.bf16.msra.mxu0 %v339
  %438 = vmatprep.subr.bf16.mxu0 0
  %439 = vmatpush1.bf16.msra.mxu0 %v340
  %440 = vmatprep.subr.bf16.mxu0 0
  %441 = vmatpush1.bf16.msra.mxu0 %v341
  %442 = vmatprep.subr.bf16.mxu0 0
  %443 = vmatpush1.bf16.msra.mxu0 %v342
  %444 = vmatprep.subr.bf16.mxu0 0
  %445 = vmatpush1.bf16.msra.mxu0 %v343
  %446 = vmatprep.subr.bf16.mxu0 0
  %447 = vmatpush1.bf16.msra.mxu0 %v344
  %448 = vmatprep.subr.bf16.mxu0 0
  %449 = vmatpush1.bf16.msra.mxu0 %v345
  %450 = vmatprep.subr.bf16.mxu0 0
  %451 = vmatpush1.bf16.msra.mxu0 %v346
  %452 = vmatprep.subr.bf16.mxu0 0
  %453 = vmatpush1.bf16.msra.mxu0 %v347
  %454 = vmatprep.subr.bf16.mxu0 0
  %455 = vmatpush1.bf16.msra.mxu0 %v348
  %456 = vmatprep.subr.bf16.mxu0 0
  %457 = vmatpush1.bf16.msra.mxu0 %v349
  %458 = vmatprep.mubr.bf16.mxu0 %v151
  %459 = vmatmul.mubr.bf16.gmra.mrb[0].mxu0 %v150
  %v460 = vpop.f32.mrb[0].mxu0
  %v461 = vadd.f32 %v111, %v460
  %v462 = vpop.f32.mrb[0].mxu0
  %v463 = vpop.f32.mrb[0].mxu0
  %v464 = vadd.f32 %v116, %v463
  %v465 = vpop.f32.mrb[0].mxu0
  %466 = vmatprep.mubr.bf16.mxu0 %v157
  %467 = vmatmul.mubr.bf16.gmra.mrb[0].mxu0 %v156
  %v468 = vpop.f32.mrb[0].mxu0
  %v469 = vadd.f32 %v121, %v468
  %v470 = vpop.f32.mrb[0].mxu0
  %v471 = vpop.f32.mrb[0].mxu0
  %v472 = vpop.f32.mrb[0].mxu0
  %473 = vdwg.mxu0
  %474 = vmatprep.subr.bf16.mxu0 0
  %475 = vmatpush1.bf16.msra.mxu0 %v350
  %476 = vmatprep.subr.bf16.mxu0 0
  %477 = vmatpush1.bf16.msra.mxu0 %v351
  %478 = vmatprep.subr.bf16.mxu0 0
  %479 = vmatpush1.bf16.msra.mxu0 %v352
  %480 = vmatprep.subr.bf16.mxu0 0
  %481 = vmatpush1.bf16.msra.mxu0 %v353
  %482 = vmatprep.subr.bf16.mxu0 0
  %483 = vmatpush1.bf16.msra.mxu0 %v354
  %484 = vmatprep.subr.bf16.mxu0 0
  %485 = vmatpush1.bf16.msra.mxu0 %v355
  %486 = vmatprep.subr.bf16.mxu0 0
  %487 = vmatpush1.bf16.msra.mxu0 %v356
  %488 = vmatprep.subr.bf16.mxu0 0
  %489 = vmatpush1.bf16.msra.mxu0 %v357
  %490 = vmatprep.subr.bf16.mxu0 0
  %491 = vmatpush1.bf16.msra.mxu0 %v358
  %492 = vmatprep.subr.bf16.mxu0 0
  %493 = vmatpush1.bf16.msra.mxu0 %v359
  %494 = vmatprep.subr.bf16.mxu0 0
  %495 = vmatpush1.bf16.msra.mxu0 %v360
  %496 = vmatprep.subr.bf16.mxu0 0
  %497 = vmatpush1.bf16.msra.mxu0 %v361
  %498 = vmatprep.subr.bf16.mxu0 0
  %499 = vmatpush1.bf16.msra.mxu0 %v362
  %500 = vmatprep.subr.bf16.mxu0 0
  %501 = vmatpush1.bf16.msra.mxu0 %v363
  %502 = vmatprep.subr.bf16.mxu0 0
  %503 = vmatpush1.bf16.msra.mxu0 %v364
  %504 = vmatprep.subr.bf16.mxu0 0
  %505 = vmatpush1.bf16.msra.mxu0 %v365
  %506 = vmatprep.mubr.bf16.mxu0 %v153
  %507 = vmatmul.mubr.bf16.gmra.mrb[0].mxu0 %v152
  %v508 = vpop.f32.mrb[0].mxu0
  %v509 = vadd.f32 %v461, %v508
  %v510 = vpop.f32.mrb[0].mxu0
  %v511 = vpop.f32.mrb[0].mxu0
  %v512 = vadd.f32 %v464, %v511
  %v513 = vpop.f32.mrb[0].mxu0
  %514 = vmatprep.mubr.bf16.mxu0 %v159
  %515 = vmatmul.mubr.bf16.gmra.mrb[0].mxu0 %v158
  %v516 = vpop.f32.mrb[0].mxu0
  %v517 = vadd.f32 %v469, %v516
  %v518 = vpop.f32.mrb[0].mxu0
  %v519 = vpop.f32.mrb[0].mxu0
  %v520 = vpop.f32.mrb[0].mxu0
  %521 = vdwg.mxu0
  %522 = vmatprep.subr.bf16.mxu0 0
  %523 = vmatpush1.bf16.msra.mxu0 %v366
  %524 = vmatprep.subr.bf16.mxu0 0
  %525 = vmatpush1.bf16.msra.mxu0 %v367
  %526 = vmatprep.subr.bf16.mxu0 0
  %527 = vmatpush1.bf16.msra.mxu0 %v368
  %528 = vmatprep.subr.bf16.mxu0 0
  %529 = vmatpush1.bf16.msra.mxu0 %v369
  %530 = vmatprep.subr.bf16.mxu0 0
  %531 = vmatpush1.bf16.msra.mxu0 %v370
  %532 = vmatprep.subr.bf16.mxu0 0
  %533 = vmatpush1.bf16.msra.mxu0 %v371
  %534 = vmatprep.subr.bf16.mxu0 0
  %535 = vmatpush1.bf16.msra.mxu0 %v372
  %536 = vmatprep.subr.bf16.mxu0 0
  %537 = vmatpush1.bf16.msra.mxu0 %v373
  %538 = vmatprep.subr.bf16.mxu0 0
  %539 = vmatpush1.bf16.msra.mxu0 %v424
  %540 = vmatprep.subr.bf16.mxu0 0
  %541 = vmatpush1.bf16.msra.mxu0 0
  %542 = vmatprep.subr.bf16.mxu0 0
  %543 = vmatpush1.bf16.msra.mxu0 0
  %544 = vmatprep.subr.bf16.mxu0 0
  %545 = vmatpush1.bf16.msra.mxu0 0
  %546 = vmatprep.subr.bf16.mxu0 0
  %547 = vmatpush1.bf16.msra.mxu0 0
  %548 = vmatprep.subr.bf16.mxu0 0
  %549 = vmatpush1.bf16.msra.mxu0 0
  %550 = vmatprep.subr.bf16.mxu0 0
  %551 = vmatpush1.bf16.msra.mxu0 0
  %552 = vmatprep.subr.bf16.mxu0 0
  %553 = vmatpush1.bf16.msra.mxu0 0
  %554 = vmatprep.mubr.bf16.mxu0 %v417
  %555 = vmatmul.mubr.bf16.gmra.mrb[0].mxu0 %v154
  %v556 = vpop.f32.mrb[0].mxu0
  %v557 = vadd.f32 %v509, %v556
  %v558 = vpop.f32.mrb[0].mxu0
  %v559 = vpop.f32.mrb[0].mxu0
  %v560 = vadd.f32 %v512, %v559
  %v561 = vpop.f32.mrb[0].mxu0
  %562 = vmatprep.mubr.bf16.mxu0 %v420
  %563 = vmatmul.mubr.bf16.gmra.mrb[0].mxu0 %v160
  %v564 = vpop.f32.mrb[0].mxu0
  %v565 = vadd.f32 %v517, %v564
  %v566 = vpop.f32.mrb[0].mxu0
  %v567 = vpop.f32.mrb[0].mxu0
  %v568 = vpop.f32.mrb[0].mxu0
  %569 = vdwg.mxu0
  %v570 = vxor.u32 %v557, 2147483648
  %v571 = vxor.u32 %v560, 2147483648
  %v572 = vxor.u32 %v565, 2147483648
  %v573 = vmul.f32 %v570, 1.442695
  %v574 = vpow.pop %v573
  %v575 = vmul.f32 %v571, 1.442695
  %v576 = vpow.pop %v575
  %v577 = vmul.f32 %v572, 1.442695
  %v578 = vpow.pop %v577
  %v579 = vadd.f32 %v574, 1.0
  %v580 = vadd.f32 %v576, 1.0
  %v581 = vadd.f32 %v578, 1.0
  %v582 = vrcp.pop %v579
  %v583 = vmul.f32 1.0, %v582
  %v584 = vrcp.pop %v580
  %v585 = vmul.f32 1.0, %v584
  %v586 = vrcp.pop %v581
  %v587 = vmul.f32 1.0, %v586
  %v588 = vmul.f32 %v557, %v583
  %v589 = vmul.f32 %v560, %v585
  %v590 = vmul.f32 %v565, %v587
  %v591 = vpack.c.bf16 %v589, %v588
  %v592 = vpack.c.bf16 %v590, %v590
  %v595 = vunpack.c.l.b16 %v591
  %v596 = vunpack.c.h.b16 %v591
  %v597 = vunpack.c.l.b16 %v592
  %v598 = vpack.c.b16 %v595, %v595
  %v599 = vpack.c.b16 %v596, %v596
  %v600 = vpack.c.b16 %v597, %v597
  %604 = vst [vmem:[%s3] sm:$0xf] %v598
  %605 = vst [vmem:[%s3 + $0x4] sm:$0xf] %v599
  %606 = vst [vmem:[%s3 + $0x8] sm:$0xf] %v600
  // Predicated region
  $region14: #{model_forward.46} parent=0 // pred_check
    _
  $region15: #{model_forward.46} parent=0 // pred_check_branch
    %608 = sbr.rel (0) target = $region17
  $region16: #{model_forward.46} parent=0 // pred_region
    _
  $region17: #{model_forward.46} parent=0 // pred_fallthru
    _
  // Predicated region
  $region18: #{model_forward.46} parent=0 // pred_check
    _
  $region19: #{model_forward.46} parent=0 // pred_check_branch
    %610 = sbr.rel (0) target = $region21
  $region20: #{model_forward.46} parent=0 // pred_region
    _
  $region21: #{model_forward.46} parent=0 // pred_fallthru
    _

// kernel: model_forward.36
$region0: #{model_forward.36}
  #allocation0 [shape = 'u32[]', space=smem, size = 0x4, offset = 0x4, fixed_abs, tag = 'smem constant byte address 0x4 - core index']
  #allocation1 [shape = 'u32[144,128]{1,0:T(1,128)}', space=vmem, size = 0x12000, scoped, tag = 'internal scratch']
  %s0 = inlined_call_operand.vmem [shape: bf16[16,288], index: 0, kind: input, shape index: {}]
  %s1 = inlined_call_operand.vmem [shape: bf16[288,128], index: 1, kind: input, shape index: {}]
  %s2 = inlined_call_operand.vmem [shape: f32[16,1], index: 2, kind: input, shape index: {}]
  %s3 = inlined_call_operand.vmem [shape: bf16[16,128], index: 3, kind: output, shape index: {}]
  %s4 = sld [smem:[#allocation0]]
  $region22: #{model_forward.36} parent=0
    _
  %s6 = ssub.s32 1, %s4
  %s7 = scalar_select 0, %s6, %s4
  // Predicated region
  $region2: #{model_forward.36} parent=0 // pred_check
    _
  $region3: #{model_forward.36} parent=0 // pred_check_branch
    %9 = sbr.rel (0) target = $region5
  $region4: #{model_forward.36} parent=0 // pred_region
    _
  $region5: #{model_forward.36} parent=0 // pred_fallthru
    _
  // Predicated region
  $region6: #{model_forward.36} parent=0 // pred_check
    _
  $region7: #{model_forward.36} parent=0 // pred_check_branch
    %11 = sbr.rel (0) target = $region9
  $region8: #{model_forward.36} parent=0 // pred_region
    _
  $region9: #{model_forward.36} parent=0 // pred_fallthru
    _
  // Predicated region
  $region10: #{model_forward.36} parent=0 // pred_check
    _
  $region11: #{model_forward.36} parent=0 // pred_check_branch
    %13 = sbr.rel (0) target = $region13
  $region12: #{model_forward.36} parent=0 // pred_region
    _
  $region13: #{model_forward.36} parent=0 // pred_fallthru
    _
  %v15 = vld [vmem:[%s0] sm:$0xff]
  %v16 = vld [vmem:[%s0 + $0x8] sm:$0xf]
  %v17 = vld [vmem:[%s0 + $0xc] sm:$0xff]
  %v18 = vld [vmem:[%s0 + $0x14] sm:$0xf]
  %v19 = vld [vmem:[%s1] sm:$0xf]
  %v20 = vld [vmem:[%s1 + $0x4] sm:$0xf]
  %v21 = vld [vmem:[%s1 + $0x8] sm:$0xf]
  %v22 = vld [vmem:[%s1 + $0xc] sm:$0xf]
  %v23 = vld [vmem:[%s1 + $0x10] sm:$0xf]
  %v24 = vld [vmem:[%s1 + $0x14] sm:$0xf]
  %v25 = vld [vmem:[%s1 + $0x18] sm:$0xf]
  %v26 = vld [vmem:[%s1 + $0x1c] sm:$0xf]
  %v27 = vld [vmem:[%s1 + $0x20] sm:$0xf]
  %v28 = vld [vmem:[%s1 + $0x24] sm:$0xf]
  %v29 = vld [vmem:[%s1 + $0x28] sm:$0xf]
  %v30 = vld [vmem:[%s1 + $0x2c] sm:$0xf]
  %v31 = vld [vmem:[%s1 + $0x30] sm:$0xf]
  %v32 = vld [vmem:[%s1 + $0x34] sm:$0xf]
  %v33 = vld [vmem:[%s1 + $0x38] sm:$0xf]
  %v34 = vld [vmem:[%s1 + $0x3c] sm:$0xf]
  %v35 = vld [vmem:[%s1 + $0x40] sm:$0xf]
  %v36 = vld [vmem:[%s1 + $0x44] sm:$0xf]
  %v37 = vld [vmem:[%s1 + $0x48] sm:$0xf]
  %v38 = vld [vmem:[%s1 + $0x4c] sm:$0xf]
  %v39 = vld [vmem:[%s1 + $0x50] sm:$0xf]
  %v40 = vld [vmem:[%s1 + $0x54] sm:$0xf]
  %v41 = vld [vmem:[%s1 + $0x58] sm:$0xf]
  %v42 = vld [vmem:[%s1 + $0x5c] sm:$0xf]
  %v43 = vld [vmem:[%s1 + $0x60] sm:$0xf]
  %v44 = vld [vmem:[%s1 + $0x64] sm:$0xf]
  %v45 = vld [vmem:[%s1 + $0x68] sm:$0xf]
  %v46 = vld [vmem:[%s1 + $0x6c] sm:$0xf]
  %v47 = vld [vmem:[%s1 + $0x70] sm:$0xf]
  %v48 = vld [vmem:[%s1 + $0x74] sm:$0xf]
  %v49 = vld [vmem:[%s1 + $0x78] sm:$0xf]
  %v50 = vld [vmem:[%s1 + $0x7c] sm:$0xf]
  %v51 = vld [vmem:[%s1 + $0x80] sm:$0xf]
  %v52 = vld [vmem:[%s1 + $0x84] sm:$0xf]
  %v53 = vld [vmem:[%s1 + $0x88] sm:$0xf]
  %v54 = vld [vmem:[%s1 + $0x8c] sm:$0xf]
  %v55 = vld [vmem:[%s2] sm:$0xff]
  %v56 = vld [vmem:[%s2 + $0x8] sm:$0xff]
  %58 = vset.pattern.permute.xlu0 0
  %59 = vperm.xlu0 %58, %v55
  %v60 = vpop.permute.xlu0 %59
  %63 = vset.pattern.permute.xlu0 0
  %64 = vperm.xlu0 %63, %v56
  %v65 = vpop.permute.xlu0 %64
  %v71 = vunpack.c.l.b16 %v15
  %v72 = vunpack.c.h.b16 %v15
  %v73 = vunpack.c.l.b16 %v16
  %v74 = vunpack.c.l.b16 %v17
  %v75 = vunpack.c.h.b16 %v17
  %v76 = vunpack.c.l.b16 %v18
  %v77 = vpack.c.b16 %v74, %v71
  %v78 = vpack.c.b16 %v75, %v72
  %v79 = vpack.c.b16 %v76, %v73
  %v118 = vunpack.c.l.b16 %v19
  %v119 = vunpack.c.l.b16 %v20
  %v120 = vunpack.c.l.b16 %v21
  %v121 = vunpack.c.l.b16 %v22
  %v122 = vunpack.c.l.b16 %v23
  %v123 = vunpack.c.l.b16 %v24
  %v124 = vunpack.c.l.b16 %v25
  %v125 = vunpack.c.l.b16 %v26
  %v126 = vunpack.c.l.b16 %v27
  %v127 = vunpack.c.l.b16 %v28
  %v128 = vunpack.c.l.b16 %v29
  %v129 = vunpack.c.l.b16 %v30
  %v130 = vunpack.c.l.b16 %v31
  %v131 = vunpack.c.l.b16 %v32
  %v132 = vunpack.c.l.b16 %v33
  %v133 = vunpack.c.l.b16 %v34
  %v134 = vunpack.c.l.b16 %v35
  %v135 = vunpack.c.l.b16 %v36
  %v136 = vunpack.c.l.b16 %v37
  %v137 = vunpack.c.l.b16 %v38
  %v138 = vunpack.c.l.b16 %v39
  %v139 = vunpack.c.l.b16 %v40
  %v140 = vunpack.c.l.b16 %v41
  %v141 = vunpack.c.l.b16 %v42
  %v142 = vunpack.c.l.b16 %v43
  %v143 = vunpack.c.l.b16 %v44
  %v144 = vunpack.c.l.b16 %v45
  %v145 = vunpack.c.l.b16 %v46
  %v146 = vunpack.c.l.b16 %v47
  %v147 = vunpack.c.l.b16 %v48
  %v148 = vunpack.c.l.b16 %v49
  %v149 = vunpack.c.l.b16 %v50
  %v150 = vunpack.c.l.b16 %v51
  %v151 = vunpack.c.l.b16 %v52
  %v152 = vunpack.c.l.b16 %v53
  %v153 = vunpack.c.l.b16 %v54
  %v154 = vpack.c.b16 %v119, %v118
  %v155 = vpack.c.b16 %v121, %v120
  %v156 = vpack.c.b16 %v123, %v122
  %v157 = vpack.c.b16 %v125, %v124
  %v158 = vpack.c.b16 %v127, %v126
  %v159 = vpack.c.b16 %v129, %v128
  %v160 = vpack.c.b16 %v131, %v130
  %v161 = vpack.c.b16 %v133, %v132
  %v162 = vpack.c.b16 %v135, %v134
  %v163 = vpack.c.b16 %v137, %v136
  %v164 = vpack.c.b16 %v139, %v138
  %v165 = vpack.c.b16 %v141, %v140
  %v166 = vpack.c.b16 %v143, %v142
  %v167 = vpack.c.b16 %v145, %v144
  %v168 = vpack.c.b16 %v147, %v146
  %v169 = vpack.c.b16 %v149, %v148
  %v170 = vpack.c.b16 %v151, %v150
  %v171 = vpack.c.b16 %v153, %v152
  %vm190 = vcmask 261120
  %v192 = vsel %vm190, %v79, 0
  %194 = vmatprep.subr.bf16.mxu0 0
  %195 = vmatpush1.bf16.msra.mxu0 %v154
  %196 = vmatprep.subr.bf16.mxu0 0
  %197 = vmatpush1.bf16.msra.mxu0 %v155
  %198 = vmatprep.subr.bf16.mxu0 0
  %199 = vmatpush1.bf16.msra.mxu0 %v156
  %200 = vmatprep.subr.bf16.mxu0 0
  %201 = vmatpush1.bf16.msra.mxu0 %v157
  %202 = vmatprep.subr.bf16.mxu0 0
  %203 = vmatpush1.bf16.msra.mxu0 %v158
  %204 = vmatprep.subr.bf16.mxu0 0
  %205 = vmatpush1.bf16.msra.mxu0 %v159
  %206 = vmatprep.subr.bf16.mxu0 0
  %207 = vmatpush1.bf16.msra.mxu0 %v160
  %208 = vmatprep.subr.bf16.mxu0 0
  %209 = vmatpush1.bf16.msra.mxu0 %v161
  %210 = vmatprep.subr.bf16.mxu0 0
  %211 = vmatpush1.bf16.msra.mxu0 %v162
  %212 = vmatprep.subr.bf16.mxu0 0
  %213 = vmatpush1.bf16.msra.mxu0 %v163
  %214 = vmatprep.subr.bf16.mxu0 0
  %215 = vmatpush1.bf16.msra.mxu0 %v164
  %216 = vmatprep.subr.bf16.mxu0 0
  %217 = vmatpush1.bf16.msra.mxu0 %v165
  %218 = vmatprep.subr.bf16.mxu0 0
  %219 = vmatpush1.bf16.msra.mxu0 %v166
  %220 = vmatprep.subr.bf16.mxu0 0
  %221 = vmatpush1.bf16.msra.mxu0 %v167
  %222 = vmatprep.subr.bf16.mxu0 0
  %223 = vmatpush1.bf16.msra.mxu0 %v168
  %224 = vmatprep.subr.bf16.mxu0 0
  %225 = vmatpush1.bf16.msra.mxu0 %v169
  %226 = vmatprep.mubr.bf16.mxu0 %v78
  %227 = vmatmul.mubr.bf16.gmra.mrb[0].mxu0 %v77
  %v228 = vpop.f32.mrb[0].mxu0
  %v229 = vadd.f32 %v60, %v228
  %v230 = vpop.f32.mrb[0].mxu0
  %v231 = vpop.f32.mrb[0].mxu0
  %v232 = vadd.f32 %v65, %v231
  %v233 = vpop.f32.mrb[0].mxu0
  %234 = vdwg.mxu0
  %235 = vmatprep.subr.bf16.mxu0 0
  %236 = vmatpush1.bf16.msra.mxu0 %v170
  %237 = vmatprep.subr.bf16.mxu0 0
  %238 = vmatpush1.bf16.msra.mxu0 %v171
  %239 = vmatprep.subr.bf16.mxu0 0
  %240 = vmatpush1.bf16.msra.mxu0 0
  %241 = vmatprep.subr.bf16.mxu0 0
  %242 = vmatpush1.bf16.msra.mxu0 0
  %243 = vmatprep.subr.bf16.mxu0 0
  %244 = vmatpush1.bf16.msra.mxu0 0
  %245 = vmatprep.subr.bf16.mxu0 0
  %246 = vmatpush1.bf16.msra.mxu0 0
  %247 = vmatprep.subr.bf16.mxu0 0
  %248 = vmatpush1.bf16.msra.mxu0 0
  %249 = vmatprep.subr.bf16.mxu0 0
  %250 = vmatpush1.bf16.msra.mxu0 0
  %251 = vmatprep.subr.bf16.mxu0 0
  %252 = vmatpush1.bf16.msra.mxu0 0
  %253 = vmatprep.subr.bf16.mxu0 0
  %254 = vmatpush1.bf16.msra.mxu0 0
  %255 = vmatprep.subr.bf16.mxu0 0
  %256 = vmatpush1.bf16.msra.mxu0 0
  %257 = vmatprep.subr.bf16.mxu0 0
  %258 = vmatpush1.bf16.msra.mxu0 0
  %259 = vmatprep.subr.bf16.mxu0 0
  %260 = vmatpush1.bf16.msra.mxu0 0
  %261 = vmatprep.subr.bf16.mxu0 0
  %262 = vmatpush1.bf16.msra.mxu0 0
  %263 = vmatprep.subr.bf16.mxu0 0
  %264 = vmatpush1.bf16.msra.mxu0 0
  %265 = vmatprep.subr.bf16.mxu0 0
  %266 = vmatpush1.bf16.msra.mxu0 0
  %267 = vmatprep.mubr.bf16.mxu0 0
  %268 = vmatmul.mubr.bf16.gmra.mrb[0].mxu0 %v192
  %v269 = vpop.f32.mrb[0].mxu0
  %v270 = vadd.f32 %v229, %v269
  %v271 = vpop.f32.mrb[0].mxu0
  %v272 = vpop.f32.mrb[0].mxu0
  %v273 = vadd.f32 %v232, %v272
  %v274 = vpop.f32.mrb[0].mxu0
  %275 = vdwg.mxu0
  %v276 = vxor.u32 %v270, 2147483648
  %v277 = vxor.u32 %v273, 2147483648
  %v278 = vmul.f32 %v276, 1.442695
  %v279 = vpow.pop %v278
  %v280 = vmul.f32 %v277, 1.442695
  %v281 = vpow.pop %v280
  %v282 = vadd.f32 %v279, 1.0
  %v283 = vadd.f32 %v281, 1.0
  %v284 = vrcp.pop %v282
  %v285 = vmul.f32 1.0, %v284
  %v286 = vrcp.pop %v283
  %v287 = vmul.f32 1.0, %v286
  %v288 = vmul.f32 %v270, %v285
  %v289 = vmul.f32 %v273, %v287
  %v290 = vpack.c.bf16 %v289, %v288
  %v292 = vunpack.c.l.b16 %v290
  %v293 = vunpack.c.h.b16 %v290
  %v294 = vpack.c.b16 %v292, %v292
  %v295 = vpack.c.b16 %v293, %v293
  %298 = vst [vmem:[%s3] sm:$0xf] %v294
  %299 = vst [vmem:[%s3 + $0x4] sm:$0xf] %v295
  // Predicated region
  $region14: #{model_forward.36} parent=0 // pred_check
    _
  $region15: #{model_forward.36} parent=0 // pred_check_branch
    %301 = sbr.rel (0) target = $region17
  $region16: #{model_forward.36} parent=0 // pred_region
    _
  $region17: #{model_forward.36} parent=0 // pred_fallthru
    _
  // Predicated region
  $region18: #{model_forward.36} parent=0 // pred_check
    _
  $region19: #{model_forward.36} parent=0 // pred_check_branch
    %303 = sbr.rel (0) target = $region21
  $region20: #{model_forward.36} parent=0 // pred_region
    _
  $region21: #{model_forward.36} parent=0 // pred_fallthru
    _

// kernel: model_forward.53
$region0: #{model_forward.53}
  #allocation0 [shape = 'u32[]', space=smem, size = 0x4, offset = 0x4, fixed_abs, tag = 'smem constant byte address 0x4 - core index']
  #allocation1 [shape = 'u32[144,128]{1,0:T(1,128)}', space=vmem, size = 0x12000, scoped, tag = 'internal scratch']
  %s0 = inlined_call_operand.vmem [shape: bf16[16,16], index: 0, kind: input, shape index: {}]
  %s1 = inlined_call_operand.vmem [shape: bf16[16,128], index: 1, kind: input, shape index: {}]
  %s2 = inlined_call_operand.vmem [shape: f32[16,1], index: 2, kind: input, shape index: {}]
  %s3 = inlined_call_operand.vmem [shape: bf16[16,128], index: 3, kind: output, shape index: {}]
  %s4 = sld [smem:[#allocation0]]
  $region22: #{model_forward.53} parent=0
    _
  %s6 = ssub.s32 1, %s4
  %s7 = scalar_select 0, %s6, %s4
  // Predicated region
  $region2: #{model_forward.53} parent=0 // pred_check
    _
  $region3: #{model_forward.53} parent=0 // pred_check_branch
    %9 = sbr.rel (0) target = $region5
  $region4: #{model_forward.53} parent=0 // pred_region
    _
  $region5: #{model_forward.53} parent=0 // pred_fallthru
    _
  // Predicated region
  $region6: #{model_forward.53} parent=0 // pred_check
    _
  $region7: #{model_forward.53} parent=0 // pred_check_branch
    %11 = sbr.rel (0) target = $region9
  $region8: #{model_forward.53} parent=0 // pred_region
    _
  $region9: #{model_forward.53} parent=0 // pred_fallthru
    _
  // Predicated region
  $region10: #{model_forward.53} parent=0 // pred_check
    _
  $region11: #{model_forward.53} parent=0 // pred_check_branch
    %13 = sbr.rel (0) target = $region13
  $region12: #{model_forward.53} parent=0 // pred_region
    _
  $region13: #{model_forward.53} parent=0 // pred_fallthru
    _
  %v15 = vld [vmem:[%s0] sm:$0xf]
  %v16 = vld [vmem:[%s0 + $0x4] sm:$0xf]
  %v17 = vld [vmem:[%s1] sm:$0xf]
  %v18 = vld [vmem:[%s1 + $0x4] sm:$0xf]
  %v19 = vld [vmem:[%s2] sm:$0xff]
  %v20 = vld [vmem:[%s2 + $0x8] sm:$0xff]
  %22 = vset.pattern.permute.xlu0 0
  %23 = vperm.xlu0 %22, %v19
  %v24 = vpop.permute.xlu0 %23
  %27 = vset.pattern.permute.xlu0 0
  %28 = vperm.xlu0 %27, %v20
  %v29 = vpop.permute.xlu0 %28
  %v33 = vunpack.c.l.b16 %v15
  %v34 = vunpack.c.l.b16 %v16
  %v35 = vpack.c.b16 %v34, %v33
  %v38 = vunpack.c.l.b16 %v17
  %v39 = vunpack.c.l.b16 %v18
  %v40 = vpack.c.b16 %v39, %v38
  %vm42 = vcmask 130048
  %v44 = vsel %vm42, %v35, 0
  %46 = vmatprep.subr.bf16.mxu0 0
  %47 = vmatpush1.bf16.msra.mxu0 %v40
  %48 = vmatprep.subr.bf16.mxu0 0
  %49 = vmatpush1.bf16.msra.mxu0 0
  %50 = vmatprep.subr.bf16.mxu0 0
  %51 = vmatpush1.bf16.msra.mxu0 0
  %52 = vmatprep.subr.bf16.mxu0 0
  %53 = vmatpush1.bf16.msra.mxu0 0
  %54 = vmatprep.subr.bf16.mxu0 0
  %55 = vmatpush1.bf16.msra.mxu0 0
  %56 = vmatprep.subr.bf16.mxu0 0
  %57 = vmatpush1.bf16.msra.mxu0 0
  %58 = vmatprep.subr.bf16.mxu0 0
  %59 = vmatpush1.bf16.msra.mxu0 0
  %60 = vmatprep.subr.bf16.mxu0 0
  %61 = vmatpush1.bf16.msra.mxu0 0
  %62 = vmatprep.subr.bf16.mxu0 0
  %63 = vmatpush1.bf16.msra.mxu0 0
  %64 = vmatprep.subr.bf16.mxu0 0
  %65 = vmatpush1.bf16.msra.mxu0 0
  %66 = vmatprep.subr.bf16.mxu0 0
  %67 = vmatpush1.bf16.msra.mxu0 0
  %68 = vmatprep.subr.bf16.mxu0 0
  %69 = vmatpush1.bf16.msra.mxu0 0
  %70 = vmatprep.subr.bf16.mxu0 0
  %71 = vmatpush1.bf16.msra.mxu0 0
  %72 = vmatprep.subr.bf16.mxu0 0
  %73 = vmatpush1.bf16.msra.mxu0 0
  %74 = vmatprep.subr.bf16.mxu0 0
  %75 = vmatpush1.bf16.msra.mxu0 0
  %76 = vmatprep.subr.bf16.mxu0 0
  %77 = vmatpush1.bf16.msra.mxu0 0
  %78 = vmatprep.mubr.bf16.mxu0 0
  %79 = vmatmul.mubr.bf16.gmra.mrb[0].mxu0 %v44
  %v80 = vpop.f32.mrb[0].mxu0
  %v81 = vadd.f32 %v24, %v80
  %v82 = vpop.f32.mrb[0].mxu0
  %v83 = vpop.f32.mrb[0].mxu0
  %v84 = vadd.f32 %v29, %v83
  %v85 = vpop.f32.mrb[0].mxu0
  %86 = vdwg.mxu0
  %v87 = vxor.u32 %v81, 2147483648
  %v88 = vxor.u32 %v84, 2147483648
  %v89 = vmul.f32 %v87, 1.442695
  %v90 = vpow.pop %v89
  %v91 = vmul.f32 %v88, 1.442695
  %v92 = vpow.pop %v91
  %v93 = vadd.f32 %v90, 1.0
  %v94 = vadd.f32 %v92, 1.0
  %v95 = vrcp.pop %v93
  %v96 = vmul.f32 1.0, %v95
  %v97 = vrcp.pop %v94
  %v98 = vmul.f32 1.0, %v97
  %v99 = vmul.f32 %v81, %v96
  %v100 = vmul.f32 %v84, %v98
  %v101 = vpack.c.bf16 %v100, %v99
  %v103 = vunpack.c.l.b16 %v101
  %v104 = vunpack.c.h.b16 %v101
  %v105 = vpack.c.b16 %v103, %v103
  %v106 = vpack.c.b16 %v104, %v104
  %109 = vst [vmem:[%s3] sm:$0xf] %v105
  %110 = vst [vmem:[%s3 + $0x4] sm:$0xf] %v106
  // Predicated region
  $region14: #{model_forward.53} parent=0 // pred_check
    _
  $region15: #{model_forward.53} parent=0 // pred_check_branch
    %112 = sbr.rel (0) target = $region17
  $region16: #{model_forward.53} parent=0 // pred_region
    _
  $region17: #{model_forward.53} parent=0 // pred_fallthru
    _
  // Predicated region
  $region18: #{model_forward.53} parent=0 // pred_check
    _
  $region19: #{model_forward.53} parent=0 // pred_check_branch
    %114 = sbr.rel (0) target = $region21
  $region20: #{model_forward.53} parent=0 // pred_region
    _
  $region21: #{model_forward.53} parent=0 // pred_fallthru
    _

// kernel: model_forward.55
$region0: #{model_forward.55}
  #allocation0 [shape = 'u32[]', space=smem, size = 0x4, offset = 0x4, fixed_abs, tag = 'smem constant byte address 0x4 - core index']
  #allocation1 [shape = 'u32[144,128]{1,0:T(1,128)}', space=vmem, size = 0x12000, scoped, tag = 'internal scratch']
  %s0 = inlined_call_operand.vmem [shape: bf16[8,32], index: 0, kind: input, shape index: {}]
  %s1 = inlined_call_operand.vmem [shape: bf16[32,128], index: 1, kind: input, shape index: {}]
  %s2 = inlined_call_operand.vmem [shape: f32[8,1], index: 2, kind: input, shape index: {}]
  %s3 = inlined_call_operand.vmem [shape: bf16[8,128], index: 3, kind: output, shape index: {}]
  %s4 = sld [smem:[#allocation0]]
  $region22: #{model_forward.55} parent=0
    _
  %s6 = ssub.s32 1, %s4
  %s7 = scalar_select 0, %s6, %s4
  // Predicated region
  $region2: #{model_forward.55} parent=0 // pred_check
    _
  $region3: #{model_forward.55} parent=0 // pred_check_branch
    %9 = sbr.rel (0) target = $region5
  $region4: #{model_forward.55} parent=0 // pred_region
    _
  $region5: #{model_forward.55} parent=0 // pred_fallthru
    _
  // Predicated region
  $region6: #{model_forward.55} parent=0 // pred_check
    _
  $region7: #{model_forward.55} parent=0 // pred_check_branch
    %11 = sbr.rel (0) target = $region9
  $region8: #{model_forward.55} parent=0 // pred_region
    _
  $region9: #{model_forward.55} parent=0 // pred_fallthru
    _
  // Predicated region
  $region10: #{model_forward.55} parent=0 // pred_check
    _
  $region11: #{model_forward.55} parent=0 // pred_check_branch
    %13 = sbr.rel (0) target = $region13
  $region12: #{model_forward.55} parent=0 // pred_region
    _
  $region13: #{model_forward.55} parent=0 // pred_fallthru
    _
  %v15 = vld [vmem:[%s0] sm:$0xf]
  %v16 = vld [vmem:[%s1] sm:$0xf]
  %v17 = vld [vmem:[%s1 + $0x4] sm:$0xf]
  %v18 = vld [vmem:[%s1 + $0x8] sm:$0xf]
  %v19 = vld [vmem:[%s1 + $0xc] sm:$0xf]
  %v20 = vld [vmem:[%s2] sm:$0xff]
  %22 = vset.pattern.permute.xlu0 0
  %23 = vperm.xlu0 %22, %v20
  %v24 = vpop.permute.xlu0 %23
  %v30 = vunpack.c.l.b16 %v16
  %v31 = vunpack.c.l.b16 %v17
  %v32 = vunpack.c.l.b16 %v18
  %v33 = vunpack.c.l.b16 %v19
  %v34 = vpack.c.b16 %v31, %v30
  %v35 = vpack.c.b16 %v33, %v32
  %vm38 = vcmask 261120
  %v40 = vsel %vm38, %v15, 0
  %42 = vmatprep.subr.bf16.mxu0 0
  %43 = vmatpush1.bf16.msra.mxu0 %v34
  %44 = vmatprep.subr.bf16.mxu0 0
  %45 = vmatpush1.bf16.msra.mxu0 %v35
  %46 = vmatprep.subr.bf16.mxu0 0
  %47 = vmatpush1.bf16.msra.mxu0 0
  %48 = vmatprep.subr.bf16.mxu0 0
  %49 = vmatpush1.bf16.msra.mxu0 0
  %50 = vmatprep.subr.bf16.mxu0 0
  %51 = vmatpush1.bf16.msra.mxu0 0
  %52 = vmatprep.subr.bf16.mxu0 0
  %53 = vmatpush1.bf16.msra.mxu0 0
  %54 = vmatprep.subr.bf16.mxu0 0
  %55 = vmatpush1.bf16.msra.mxu0 0
  %56 = vmatprep.subr.bf16.mxu0 0
  %57 = vmatpush1.bf16.msra.mxu0 0
  %58 = vmatprep.subr.bf16.mxu0 0
  %59 = vmatpush1.bf16.msra.mxu0 0
  %60 = vmatprep.subr.bf16.mxu0 0
  %61 = vmatpush1.bf16.msra.mxu0 0
  %62 = vmatprep.subr.bf16.mxu0 0
  %63 = vmatpush1.bf16.msra.mxu0 0
  %64 = vmatprep.subr.bf16.mxu0 0
  %65 = vmatpush1.bf16.msra.mxu0 0
  %66 = vmatprep.subr.bf16.mxu0 0
  %67 = vmatpush1.bf16.msra.mxu0 0
  %68 = vmatprep.subr.bf16.mxu0 0
  %69 = vmatpush1.bf16.msra.mxu0 0
  %70 = vmatprep.subr.bf16.mxu0 0
  %71 = vmatpush1.bf16.msra.mxu0 0
  %72 = vmatprep.subr.bf16.mxu0 0
  %73 = vmatpush1.bf16.msra.mxu0 0
  %74 = vmatprep.mubr.bf16.mxu0 0
  %75 = vmatmul.mubr.bf16.gmra.mrb[0].mxu0 %v40
  %v76 = vpop.f32.mrb[0].mxu0
  %v77 = vadd.f32 %v24, %v76
  %v78 = vpop.f32.mrb[0].mxu0
  %v79 = vpop.f32.mrb[0].mxu0
  %v80 = vpop.f32.mrb[0].mxu0
  %81 = vdwg.mxu0
  %v82 = vlaneseq
  %v83 = vshrl.u32 %v82, 7
  %vm84 = vcmp.lt.s32.totalorder %v83, 4
  %v85 = vxor.u32 %v77, 2147483648
  %v86 = vmul.f32 %v85, 1.442695
  %v87 = vpow.pop %v86
  %v88 = vadd.f32 %v87, 1.0
  %v89 = vrcp.pop %v88
  %v90 = vmul.f32 1.0, %v89
  %v91 = vsel %vm84, %v90, %v77
  %v92 = vpack.c.bf16 %v91, %v91
  %93 = vst [vmem:[%s3] sm:$0xf] %v92
  // Predicated region
  $region14: #{model_forward.55} parent=0 // pred_check
    _
  $region15: #{model_forward.55} parent=0 // pred_check_branch
    %95 = sbr.rel (0) target = $region17
  $region16: #{model_forward.55} parent=0 // pred_region
    _
  $region17: #{model_forward.55} parent=0 // pred_fallthru
    _
  // Predicated region
  $region18: #{model_forward.55} parent=0 // pred_check
    _
  $region19: #{model_forward.55} parent=0 // pred_check_branch
    %97 = sbr.rel (0) target = $region21
  $region20: #{model_forward.55} parent=0 // pred_region
    _
  $region21: #{model_forward.55} parent=0 // pred_fallthru
    _

// kernel: model_forward.56
$region0: #{model_forward.56}
  #allocation0 [shape = 'u32[]', space=smem, size = 0x4, offset = 0x4, fixed_abs, tag = 'smem constant byte address 0x4 - core index']
  #allocation1 [shape = 'u32[144,128]{1,0:T(1,128)}', space=vmem, size = 0x12000, scoped, tag = 'internal scratch']
  %s0 = inlined_call_operand.vmem [shape: bf16[24,24], index: 0, kind: input, shape index: {}]
  %s1 = inlined_call_operand.vmem [shape: bf16[24,128], index: 1, kind: input, shape index: {}]
  %s2 = inlined_call_operand.vmem [shape: f32[24,1], index: 2, kind: input, shape index: {}]
  %s3 = inlined_call_operand.vmem [shape: bf16[24,128], index: 3, kind: output, shape index: {}]
  %s4 = sld [smem:[#allocation0]]
  $region22: #{model_forward.56} parent=0
    _
  %s6 = ssub.s32 1, %s4
  %s7 = scalar_select 0, %s6, %s4
  // Predicated region
  $region2: #{model_forward.56} parent=0 // pred_check
    _
  $region3: #{model_forward.56} parent=0 // pred_check_branch
    %9 = sbr.rel (0) target = $region5
  $region4: #{model_forward.56} parent=0 // pred_region
    _
  $region5: #{model_forward.56} parent=0 // pred_fallthru
    _
  // Predicated region
  $region6: #{model_forward.56} parent=0 // pred_check
    _
  $region7: #{model_forward.56} parent=0 // pred_check_branch
    %11 = sbr.rel (0) target = $region9
  $region8: #{model_forward.56} parent=0 // pred_region
    _
  $region9: #{model_forward.56} parent=0 // pred_fallthru
    _
  // Predicated region
  $region10: #{model_forward.56} parent=0 // pred_check
    _
  $region11: #{model_forward.56} parent=0 // pred_check_branch
    %13 = sbr.rel (0) target = $region13
  $region12: #{model_forward.56} parent=0 // pred_region
    _
  $region13: #{model_forward.56} parent=0 // pred_fallthru
    _
  %v15 = vld [vmem:[%s0] sm:$0xf]
  %v16 = vld [vmem:[%s0 + $0x4] sm:$0xf]
  %v17 = vld [vmem:[%s0 + $0x8] sm:$0xf]
  %v18 = vld [vmem:[%s1] sm:$0xf]
  %v19 = vld [vmem:[%s1 + $0x4] sm:$0xf]
  %v20 = vld [vmem:[%s1 + $0x8] sm:$0xf]
  %v21 = vld [vmem:[%s2] sm:$0xff]
  %v22 = vld [vmem:[%s2 + $0x8] sm:$0xff]
  %v23 = vld [vmem:[%s2 + $0x10] sm:$0xff]
  %25 = vset.pattern.permute.xlu0 0
  %26 = vperm.xlu0 %25, %v21
  %v27 = vpop.permute.xlu0 %26
  %30 = vset.pattern.permute.xlu0 0
  %31 = vperm.xlu0 %30, %v22
  %v32 = vpop.permute.xlu0 %31
  %35 = vset.pattern.permute.xlu0 0
  %36 = vperm.xlu0 %35, %v23
  %v37 = vpop.permute.xlu0 %36
  %v42 = vunpack.c.l.b16 %v15
  %v43 = vunpack.c.l.b16 %v16
  %v44 = vunpack.c.l.b16 %v17
  %v45 = vpack.c.b16 %v43, %v42
  %v46 = vpack.c.b16 %v44, %v44
  %v50 = vunpack.c.l.b16 %v18
  %v51 = vunpack.c.l.b16 %v19
  %v52 = vunpack.c.l.b16 %v20
  %v53 = vpack.c.b16 %v51, %v50
  %v54 = vpack.c.b16 %v52, %v52
  %vm56 = vcmask 195584
  %v58 = vsel %vm56, %v45, 0
  %v61 = vsel %vm56, %v46, 0
  %vm63 = vcmask 1043456
  %v65 = vsel %vm63, %v54, 0
  %67 = vmatprep.subr.bf16.mxu0 0
  %68 = vmatpush1.bf16.msra.mxu0 %v53
  %69 = vmatprep.subr.bf16.mxu0 0
  %70 = vmatpush1.bf16.msra.mxu0 %v65
  %71 = vmatprep.subr.bf16.mxu0 0
  %72 = vmatpush1.bf16.msra.mxu0 0
  %73 = vmatprep.subr.bf16.mxu0 0
  %74 = vmatpush1.bf16.msra.mxu0 0
  %75 = vmatprep.subr.bf16.mxu0 0
  %76 = vmatpush1.bf16.msra.mxu0 0
  %77 = vmatprep.subr.bf16.mxu0 0
  %78 = vmatpush1.bf16.msra.mxu0 0
  %79 = vmatprep.subr.bf16.mxu0 0
  %80 = vmatpush1.bf16.msra.mxu0 0
  %81 = vmatprep.subr.bf16.mxu0 0
  %82 = vmatpush1.bf16.msra.mxu0 0
  %83 = vmatprep.subr.bf16.mxu0 0
  %84 = vmatpush1.bf16.msra.mxu0 0
  %85 = vmatprep.subr.bf16.mxu0 0
  %86 = vmatpush1.bf16.msra.mxu0 0
  %87 = vmatprep.subr.bf16.mxu0 0
  %88 = vmatpush1.bf16.msra.mxu0 0
  %89 = vmatprep.subr.bf16.mxu0 0
  %90 = vmatpush1.bf16.msra.mxu0 0
  %91 = vmatprep.subr.bf16.mxu0 0
  %92 = vmatpush1.bf16.msra.mxu0 0
  %93 = vmatprep.subr.bf16.mxu0 0
  %94 = vmatpush1.bf16.msra.mxu0 0
  %95 = vmatprep.subr.bf16.mxu0 0
  %96 = vmatpush1.bf16.msra.mxu0 0
  %97 = vmatprep.subr.bf16.mxu0 0
  %98 = vmatpush1.bf16.msra.mxu0 0
  %99 = vmatprep.mubr.bf16.mxu0 0
  %100 = vmatmul.mubr.bf16.gmra.mrb[0].mxu0 %v58
  %v101 = vpop.f32.mrb[0].mxu0
  %v102 = vadd.f32 %v27, %v101
  %v103 = vpop.f32.mrb[0].mxu0
  %v104 = vpop.f32.mrb[0].mxu0
  %v105 = vadd.f32 %v32, %v104
  %v106 = vpop.f32.mrb[0].mxu0
  %107 = vmatprep.mubr.bf16.mxu0 0
  %108 = vmatmul.mubr.bf16.gmra.mrb[0].mxu0 %v61
  %v109 = vpop.f32.mrb[0].mxu0
  %v110 = vadd.f32 %v37, %v109
  %v111 = vpop.f32.mrb[0].mxu0
  %v112 = vpop.f32.mrb[0].mxu0
  %v113 = vpop.f32.mrb[0].mxu0
  %114 = vdwg.mxu0
  %v115 = vxor.u32 %v102, 2147483648
  %v116 = vxor.u32 %v105, 2147483648
  %v117 = vxor.u32 %v110, 2147483648
  %v118 = vmul.f32 %v115, 1.442695
  %v119 = vpow.pop %v118
  %v120 = vmul.f32 %v116, 1.442695
  %v121 = vpow.pop %v120
  %v122 = vmul.f32 %v117, 1.442695
  %v123 = vpow.pop %v122
  %v124 = vadd.f32 %v119, 1.0
  %v125 = vadd.f32 %v121, 1.0
  %v126 = vadd.f32 %v123, 1.0
  %v127 = vrcp.pop %v124
  %v128 = vmul.f32 1.0, %v127
  %v129 = vrcp.pop %v125
  %v130 = vmul.f32 1.0, %v129
  %v131 = vrcp.pop %v126
  %v132 = vmul.f32 1.0, %v131
  %v133 = vmul.f32 %v102, %v128
  %v134 = vmul.f32 %v105, %v130
  %v135 = vmul.f32 %v110, %v132
  %v136 = vpack.c.bf16 %v134, %v133
  %v137 = vpack.c.bf16 %v135, %v135
  %v140 = vunpack.c.l.b16 %v136
  %v141 = vunpack.c.h.b16 %v136
  %v142 = vunpack.c.l.b16 %v137
  %v143 = vpack.c.b16 %v140, %v140
  %v144 = vpack.c.b16 %v141, %v141
  %v145 = vpack.c.b16 %v142, %v142
  %149 = vst [vmem:[%s3] sm:$0xf] %v143
  %150 = vst [vmem:[%s3 + $0x4] sm:$0xf] %v144
  %151 = vst [vmem:[%s3 + $0x8] sm:$0xf] %v145
  // Predicated region
  $region14: #{model_forward.56} parent=0 // pred_check
    _
  $region15: #{model_forward.56} parent=0 // pred_check_branch
    %153 = sbr.rel (0) target = $region17
  $region16: #{model_forward.56} parent=0 // pred_region
    _
  $region17: #{model_forward.56} parent=0 // pred_fallthru
    _
  // Predicated region
  $region18: #{model_forward.56} parent=0 // pred_check
    _
  $region19: #{model_forward.56} parent=0 // pred_check_branch
    %155 = sbr.rel (0) target = $region21
  $region20: #{model_forward.56} parent=0 // pred_region
    _
  $region21: #{model_forward.56} parent=0 // pred_fallthru
    _

// kernel: model_forward.50
$region0: #{model_forward.50}
  #allocation0 [shape = 'u32[]', space=smem, size = 0x4, offset = 0x4, fixed_abs, tag = 'smem constant byte address 0x4 - core index']
  #allocation1 [shape = 'u32[144,128]{1,0:T(1,128)}', space=vmem, size = 0x12000, scoped, tag = 'internal scratch']
  %s0 = inlined_call_operand.vmem [shape: bf16[24,288], index: 0, kind: input, shape index: {}]
  %s1 = inlined_call_operand.vmem [shape: bf16[288,128], index: 1, kind: input, shape index: {}]
  %s2 = inlined_call_operand.vmem [shape: f32[24,1], index: 2, kind: input, shape index: {}]
  %s3 = inlined_call_operand.vmem [shape: bf16[24,128], index: 3, kind: output, shape index: {}]
  %s4 = sld [smem:[#allocation0]]
  $region22: #{model_forward.50} parent=0
    _
  %s6 = ssub.s32 1, %s4
  %s7 = scalar_select 0, %s6, %s4
  // Predicated region
  $region2: #{model_forward.50} parent=0 // pred_check
    _
  $region3: #{model_forward.50} parent=0 // pred_check_branch
    %9 = sbr.rel (0) target = $region5
  $region4: #{model_forward.50} parent=0 // pred_region
    _
  $region5: #{model_forward.50} parent=0 // pred_fallthru
    _
  // Predicated region
  $region6: #{model_forward.50} parent=0 // pred_check
    _
  $region7: #{model_forward.50} parent=0 // pred_check_branch
    %11 = sbr.rel (0) target = $region9
  $region8: #{model_forward.50} parent=0 // pred_region
    _
  $region9: #{model_forward.50} parent=0 // pred_fallthru
    _
  // Predicated region
  $region10: #{model_forward.50} parent=0 // pred_check
    _
  $region11: #{model_forward.50} parent=0 // pred_check_branch
    %13 = sbr.rel (0) target = $region13
  $region12: #{model_forward.50} parent=0 // pred_region
    _
  $region13: #{model_forward.50} parent=0 // pred_fallthru
    _
  %v15 = vld [vmem:[%s0] sm:$0xff]
  %v16 = vld [vmem:[%s0 + $0x8] sm:$0xf]
  %v17 = vld [vmem:[%s0 + $0xc] sm:$0xff]
  %v18 = vld [vmem:[%s0 + $0x14] sm:$0xf]
  %v19 = vld [vmem:[%s0 + $0x18] sm:$0xff]
  %v20 = vld [vmem:[%s0 + $0x20] sm:$0xf]
  %v21 = vld [vmem:[%s1] sm:$0xf]
  %v22 = vld [vmem:[%s1 + $0x4] sm:$0xf]
  %v23 = vld [vmem:[%s1 + $0x8] sm:$0xf]
  %v24 = vld [vmem:[%s1 + $0xc] sm:$0xf]
  %v25 = vld [vmem:[%s1 + $0x10] sm:$0xf]
  %v26 = vld [vmem:[%s1 + $0x14] sm:$0xf]
  %v27 = vld [vmem:[%s1 + $0x18] sm:$0xf]
  %v28 = vld [vmem:[%s1 + $0x1c] sm:$0xf]
  %v29 = vld [vmem:[%s1 + $0x20] sm:$0xf]
  %v30 = vld [vmem:[%s1 + $0x24] sm:$0xf]
  %v31 = vld [vmem:[%s1 + $0x28] sm:$0xf]
  %v32 = vld [vmem:[%s1 + $0x2c] sm:$0xf]
  %v33 = vld [vmem:[%s1 + $0x30] sm:$0xf]
  %v34 = vld [vmem:[%s1 + $0x34] sm:$0xf]
  %v35 = vld [vmem:[%s1 + $0x38] sm:$0xf]
  %v36 = vld [vmem:[%s1 + $0x3c] sm:$0xf]
  %v37 = vld [vmem:[%s1 + $0x40] sm:$0xf]
  %v38 = vld [vmem:[%s1 + $0x44] sm:$0xf]
  %v39 = vld [vmem:[%s1 + $0x48] sm:$0xf]
  %v40 = vld [vmem:[%s1 + $0x4c] sm:$0xf]
  %v41 = vld [vmem:[%s1 + $0x50] sm:$0xf]
  %v42 = vld [vmem:[%s1 + $0x54] sm:$0xf]
  %v43 = vld [vmem:[%s1 + $0x58] sm:$0xf]
  %v44 = vld [vmem:[%s1 + $0x5c] sm:$0xf]
  %v45 = vld [vmem:[%s1 + $0x60] sm:$0xf]
  %v46 = vld [vmem:[%s1 + $0x64] sm:$0xf]
  %v47 = vld [vmem:[%s1 + $0x68] sm:$0xf]
  %v48 = vld [vmem:[%s1 + $0x6c] sm:$0xf]
  %v49 = vld [vmem:[%s1 + $0x70] sm:$0xf]
  %v50 = vld [vmem:[%s1 + $0x74] sm:$0xf]
  %v51 = vld [vmem:[%s1 + $0x78] sm:$0xf]
  %v52 = vld [vmem:[%s1 + $0x7c] sm:$0xf]
  %v53 = vld [vmem:[%s1 + $0x80] sm:$0xf]
  %v54 = vld [vmem:[%s1 + $0x84] sm:$0xf]
  %v55 = vld [vmem:[%s1 + $0x88] sm:$0xf]
  %v56 = vld [vmem:[%s1 + $0x8c] sm:$0xf]
  %v57 = vld [vmem:[%s2] sm:$0xff]
  %v58 = vld [vmem:[%s2 + $0x8] sm:$0xff]
  %v59 = vld [vmem:[%s2 + $0x10] sm:$0xff]
  %61 = vset.pattern.permute.xlu0 0
  %62 = vperm.xlu0 %61, %v57
  %v63 = vpop.permute.xlu0 %62
  %66 = vset.pattern.permute.xlu0 0
  %67 = vperm.xlu0 %66, %v58
  %v68 = vpop.permute.xlu0 %67
  %71 = vset.pattern.permute.xlu0 0
  %72 = vperm.xlu0 %71, %v59
  %v73 = vpop.permute.xlu0 %72
  %v81 = vunpack.c.l.b16 %v15
  %v82 = vunpack.c.h.b16 %v15
  %v83 = vunpack.c.l.b16 %v16
  %v84 = vunpack.c.l.b16 %v17
  %v85 = vunpack.c.h.b16 %v17
  %v86 = vunpack.c.l.b16 %v18
  %v87 = vunpack.c.l.b16 %v19
  %v88 = vunpack.c.h.b16 %v19
  %v89 = vunpack.c.l.b16 %v20
  %v90 = vpack.c.b16 %v84, %v81
  %v91 = vpack.c.b16 %v85, %v82
  %v92 = vpack.c.b16 %v86, %v83
  %v93 = vpack.c.b16 %v87, %v87
  %v94 = vpack.c.b16 %v88, %v88
  %v95 = vpack.c.b16 %v89, %v89
  %v136 = vunpack.c.l.b16 %v21
  %v137 = vunpack.c.l.b16 %v22
  %v138 = vunpack.c.l.b16 %v23
  %v139 = vunpack.c.l.b16 %v24
  %v140 = vunpack.c.l.b16 %v25
  %v141 = vunpack.c.l.b16 %v26
  %v142 = vunpack.c.l.b16 %v27
  %v143 = vunpack.c.l.b16 %v28
  %v144 = vunpack.c.l.b16 %v29
  %v145 = vunpack.c.l.b16 %v30
  %v146 = vunpack.c.l.b16 %v31
  %v147 = vunpack.c.l.b16 %v32
  %v148 = vunpack.c.l.b16 %v33
  %v149 = vunpack.c.l.b16 %v34
  %v150 = vunpack.c.l.b16 %v35
  %v151 = vunpack.c.l.b16 %v36
  %v152 = vunpack.c.l.b16 %v37
  %v153 = vunpack.c.l.b16 %v38
  %v154 = vunpack.c.l.b16 %v39
  %v155 = vunpack.c.l.b16 %v40
  %v156 = vunpack.c.l.b16 %v41
  %v157 = vunpack.c.l.b16 %v42
  %v158 = vunpack.c.l.b16 %v43
  %v159 = vunpack.c.l.b16 %v44
  %v160 = vunpack.c.l.b16 %v45
  %v161 = vunpack.c.l.b16 %v46
  %v162 = vunpack.c.l.b16 %v47
  %v163 = vunpack.c.l.b16 %v48
  %v164 = vunpack.c.l.b16 %v49
  %v165 = vunpack.c.l.b16 %v50
  %v166 = vunpack.c.l.b16 %v51
  %v167 = vunpack.c.l.b16 %v52
  %v168 = vunpack.c.l.b16 %v53
  %v169 = vunpack.c.l.b16 %v54
  %v170 = vunpack.c.l.b16 %v55
  %v171 = vunpack.c.l.b16 %v56
  %v172 = vpack.c.b16 %v137, %v136
  %v173 = vpack.c.b16 %v139, %v138
  %v174 = vpack.c.b16 %v141, %v140
  %v175 = vpack.c.b16 %v143, %v142
  %v176 = vpack.c.b16 %v145, %v144
  %v177 = vpack.c.b16 %v147, %v146
  %v178 = vpack.c.b16 %v149, %v148
  %v179 = vpack.c.b16 %v151, %v150
  %v180 = vpack.c.b16 %v153, %v152
  %v181 = vpack.c.b16 %v155, %v154
  %v182 = vpack.c.b16 %v157, %v156
  %v183 = vpack.c.b16 %v159, %v158
  %v184 = vpack.c.b16 %v161, %v160
  %v185 = vpack.c.b16 %v163, %v162
  %v186 = vpack.c.b16 %v165, %v164
  %v187 = vpack.c.b16 %v167, %v166
  %v188 = vpack.c.b16 %v169, %v168
  %v189 = vpack.c.b16 %v171, %v170
  %vm208 = vcmask 261120
  %v210 = vsel %vm208, %v92, 0
  %v213 = vsel %vm208, %v95, 0
  %215 = vmatprep.subr.bf16.mxu0 0
  %216 = vmatpush1.bf16.msra.mxu0 %v172
  %217 = vmatprep.subr.bf16.mxu0 0
  %218 = vmatpush1.bf16.msra.mxu0 %v173
  %219 = vmatprep.subr.bf16.mxu0 0
  %220 = vmatpush1.bf16.msra.mxu0 %v174
  %221 = vmatprep.subr.bf16.mxu0 0
  %222 = vmatpush1.bf16.msra.mxu0 %v175
  %223 = vmatprep.subr.bf16.mxu0 0
  %224 = vmatpush1.bf16.msra.mxu0 %v176
  %225 = vmatprep.subr.bf16.mxu0 0
  %226 = vmatpush1.bf16.msra.mxu0 %v177
  %227 = vmatprep.subr.bf16.mxu0 0
  %228 = vmatpush1.bf16.msra.mxu0 %v178
  %229 = vmatprep.subr.bf16.mxu0 0
  %230 = vmatpush1.bf16.msra.mxu0 %v179
  %231 = vmatprep.subr.bf16.mxu0 0
  %232 = vmatpush1.bf16.msra.mxu0 %v180
  %233 = vmatprep.subr.bf16.mxu0 0
  %234 = vmatpush1.bf16.msra.mxu0 %v181
  %235 = vmatprep.subr.bf16.mxu0 0
  %236 = vmatpush1.bf16.msra.mxu0 %v182
  %237 = vmatprep.subr.bf16.mxu0 0
  %238 = vmatpush1.bf16.msra.mxu0 %v183
  %239 = vmatprep.subr.bf16.mxu0 0
  %240 = vmatpush1.bf16.msra.mxu0 %v184
  %241 = vmatprep.subr.bf16.mxu0 0
  %242 = vmatpush1.bf16.msra.mxu0 %v185
  %243 = vmatprep.subr.bf16.mxu0 0
  %244 = vmatpush1.bf16.msra.mxu0 %v186
  %245 = vmatprep.subr.bf16.mxu0 0
  %246 = vmatpush1.bf16.msra.mxu0 %v187
  %247 = vmatprep.mubr.bf16.mxu0 %v91
  %248 = vmatmul.mubr.bf16.gmra.mrb[0].mxu0 %v90
  %v249 = vpop.f32.mrb[0].mxu0
  %v250 = vadd.f32 %v63, %v249
  %v251 = vpop.f32.mrb[0].mxu0
  %v252 = vpop.f32.mrb[0].mxu0
  %v253 = vadd.f32 %v68, %v252
  %v254 = vpop.f32.mrb[0].mxu0
  %255 = vmatprep.mubr.bf16.mxu0 %v94
  %256 = vmatmul.mubr.bf16.gmra.mrb[0].mxu0 %v93
  %v257 = vpop.f32.mrb[0].mxu0
  %v258 = vadd.f32 %v73, %v257
  %v259 = vpop.f32.mrb[0].mxu0
  %v260 = vpop.f32.mrb[0].mxu0
  %v261 = vpop.f32.mrb[0].mxu0
  %262 = vdwg.mxu0
  %263 = vmatprep.subr.bf16.mxu0 0
  %264 = vmatpush1.bf16.msra.mxu0 %v188
  %265 = vmatprep.subr.bf16.mxu0 0
  %266 = vmatpush1.bf16.msra.mxu0 %v189
  %267 = vmatprep.subr.bf16.mxu0 0
  %268 = vmatpush1.bf16.msra.mxu0 0
  %269 = vmatprep.subr.bf16.mxu0 0
  %270 = vmatpush1.bf16.msra.mxu0 0
  %271 = vmatprep.subr.bf16.mxu0 0
  %272 = vmatpush1.bf16.msra.mxu0 0
  %273 = vmatprep.subr.bf16.mxu0 0
  %274 = vmatpush1.bf16.msra.mxu0 0
  %275 = vmatprep.subr.bf16.mxu0 0
  %276 = vmatpush1.bf16.msra.mxu0 0
  %277 = vmatprep.subr.bf16.mxu0 0
  %278 = vmatpush1.bf16.msra.mxu0 0
  %279 = vmatprep.subr.bf16.mxu0 0
  %280 = vmatpush1.bf16.msra.mxu0 0
  %281 = vmatprep.subr.bf16.mxu0 0
  %282 = vmatpush1.bf16.msra.mxu0 0
  %283 = vmatprep.subr.bf16.mxu0 0
  %284 = vmatpush1.bf16.msra.mxu0 0
  %285 = vmatprep.subr.bf16.mxu0 0
  %286 = vmatpush1.bf16.msra.mxu0 0
  %287 = vmatprep.subr.bf16.mxu0 0
  %288 = vmatpush1.bf16.msra.mxu0 0
  %289 = vmatprep.subr.bf16.mxu0 0
  %290 = vmatpush1.bf16.msra.mxu0 0
  %291 = vmatprep.subr.bf16.mxu0 0
  %292 = vmatpush1.bf16.msra.mxu0 0
  %293 = vmatprep.subr.bf16.mxu0 0
  %294 = vmatpush1.bf16.msra.mxu0 0
  %295 = vmatprep.mubr.bf16.mxu0 0
  %296 = vmatmul.mubr.bf16.gmra.mrb[0].mxu0 %v210
  %v297 = vpop.f32.mrb[0].mxu0
  %v298 = vadd.f32 %v250, %v297
  %v299 = vpop.f32.mrb[0].mxu0
  %v300 = vpop.f32.mrb[0].mxu0
  %v301 = vadd.f32 %v253, %v300
  %v302 = vpop.f32.mrb[0].mxu0
  %303 = vmatprep.mubr.bf16.mxu0 0
  %304 = vmatmul.mubr.bf16.gmra.mrb[0].mxu0 %v213
  %v305 = vpop.f32.mrb[0].mxu0
  %v306 = vadd.f32 %v258, %v305
  %v307 = vpop.f32.mrb[0].mxu0
  %v308 = vpop.f32.mrb[0].mxu0
  %v309 = vpop.f32.mrb[0].mxu0
  %310 = vdwg.mxu0
  %v311 = vxor.u32 %v298, 2147483648
  %v312 = vxor.u32 %v301, 2147483648
  %v313 = vxor.u32 %v306, 2147483648
  %v314 = vmul.f32 %v311, 1.442695
  %v315 = vpow.pop %v314
  %v316 = vmul.f32 %v312, 1.442695
  %v317 = vpow.pop %v316
  %v318 = vmul.f32 %v313, 1.442695
  %v319 = vpow.pop %v318
  %v320 = vadd.f32 %v315, 1.0
  %v321 = vadd.f32 %v317, 1.0
  %v322 = vadd.f32 %v319, 1.0
  %v323 = vrcp.pop %v320
  %v324 = vmul.f32 1.0, %v323
  %v325 = vrcp.pop %v321
  %v326 = vmul.f32 1.0, %v325
  %v327 = vrcp.pop %v322
  %v328 = vmul.f32 1.0, %v327
  %v329 = vmul.f32 %v298, %v324
  %v330 = vmul.f32 %v301, %v326
  %v331 = vmul.f32 %v306, %v328
  %v332 = vpack.c.bf16 %v330, %v329
  %v333 = vpack.c.bf16 %v331, %v331
  %v336 = vunpack.c.l.b16 %v332
  %v337 = vunpack.c.h.b16 %v332
  %v338 = vunpack.c.l.b16 %v333
  %v339 = vpack.c.b16 %v336, %v336
  %v340 = vpack.c.b16 %v337, %v337
  %v341 = vpack.c.b16 %v338, %v338
  %345 = vst [vmem:[%s3] sm:$0xf] %v339
  %346 = vst [vmem:[%s3 + $0x4] sm:$0xf] %v340
  %347 = vst [vmem:[%s3 + $0x8] sm:$0xf] %v341
  // Predicated region
  $region14: #{model_forward.50} parent=0 // pred_check
    _
  $region15: #{model_forward.50} parent=0 // pred_check_branch
    %349 = sbr.rel (0) target = $region17
  $region16: #{model_forward.50} parent=0 // pred_region
    _
  $region17: #{model_forward.50} parent=0 // pred_fallthru
    _
  // Predicated region
  $region18: #{model_forward.50} parent=0 // pred_check
    _
  $region19: #{model_forward.50} parent=0 // pred_check_branch
    %351 = sbr.rel (0) target = $region21
  $region20: #{model_forward.50} parent=0 // pred_region
    _
  $region21: #{model_forward.50} parent=0 // pred_fallthru
    _

// kernel: model_forward.58
$region0: #{model_forward.58}
  #allocation0 [shape = 'u32[]', space=smem, size = 0x4, offset = 0x4, fixed_abs, tag = 'smem constant byte address 0x4 - core index']
  #allocation1 [shape = 'u32[144,128]{1,0:T(1,128)}', space=vmem, size = 0x12000, scoped, tag = 'internal scratch']
  %s0 = inlined_call_operand.vmem [shape: bf16[8,48], index: 0, kind: input, shape index: {}]
  %s1 = inlined_call_operand.vmem [shape: bf16[48,128], index: 1, kind: input, shape index: {}]
  %s2 = inlined_call_operand.vmem [shape: f32[8,1], index: 2, kind: input, shape index: {}]
  %s3 = inlined_call_operand.vmem [shape: bf16[8,128], index: 3, kind: output, shape index: {}]
  %s4 = sld [smem:[#allocation0]]
  $region22: #{model_forward.58} parent=0
    _
  %s6 = ssub.s32 1, %s4
  %s7 = scalar_select 0, %s6, %s4
  // Predicated region
  $region2: #{model_forward.58} parent=0 // pred_check
    _
  $region3: #{model_forward.58} parent=0 // pred_check_branch
    %9 = sbr.rel (0) target = $region5
  $region4: #{model_forward.58} parent=0 // pred_region
    _
  $region5: #{model_forward.58} parent=0 // pred_fallthru
    _
  // Predicated region
  $region6: #{model_forward.58} parent=0 // pred_check
    _
  $region7: #{model_forward.58} parent=0 // pred_check_branch
    %11 = sbr.rel (0) target = $region9
  $region8: #{model_forward.58} parent=0 // pred_region
    _
  $region9: #{model_forward.58} parent=0 // pred_fallthru
    _
  // Predicated region
  $region10: #{model_forward.58} parent=0 // pred_check
    _
  $region11: #{model_forward.58} parent=0 // pred_check_branch
    %13 = sbr.rel (0) target = $region13
  $region12: #{model_forward.58} parent=0 // pred_region
    _
  $region13: #{model_forward.58} parent=0 // pred_fallthru
    _
  %v15 = vld [vmem:[%s0] sm:$0xf]
  %v16 = vld [vmem:[%s1] sm:$0xf]
  %v17 = vld [vmem:[%s1 + $0x4] sm:$0xf]
  %v18 = vld [vmem:[%s1 + $0x8] sm:$0xf]
  %v19 = vld [vmem:[%s1 + $0xc] sm:$0xf]
  %v20 = vld [vmem:[%s1 + $0x10] sm:$0xf]
  %v21 = vld [vmem:[%s1 + $0x14] sm:$0xf]
  %v22 = vld [vmem:[%s2] sm:$0xff]
  %24 = vset.pattern.permute.xlu0 0
  %25 = vperm.xlu0 %24, %v22
  %v26 = vpop.permute.xlu0 %25
  %v34 = vunpack.c.l.b16 %v16
  %v35 = vunpack.c.l.b16 %v17
  %v36 = vunpack.c.l.b16 %v18
  %v37 = vunpack.c.l.b16 %v19
  %v38 = vunpack.c.l.b16 %v20
  %v39 = vunpack.c.l.b16 %v21
  %v40 = vpack.c.b16 %v35, %v34
  %v41 = vpack.c.b16 %v37, %v36
  %v42 = vpack.c.b16 %v39, %v38
  %vm46 = vcmask 392192
  %v48 = vsel %vm46, %v15, 0
  %50 = vmatprep.subr.bf16.mxu0 0
  %51 = vmatpush1.bf16.msra.mxu0 %v40
  %52 = vmatprep.subr.bf16.mxu0 0
  %53 = vmatpush1.bf16.msra.mxu0 %v41
  %54 = vmatprep.subr.bf16.mxu0 0
  %55 = vmatpush1.bf16.msra.mxu0 %v42
  %56 = vmatprep.subr.bf16.mxu0 0
  %57 = vmatpush1.bf16.msra.mxu0 0
  %58 = vmatprep.subr.bf16.mxu0 0
  %59 = vmatpush1.bf16.msra.mxu0 0
  %60 = vmatprep.subr.bf16.mxu0 0
  %61 = vmatpush1.bf16.msra.mxu0 0
  %62 = vmatprep.subr.bf16.mxu0 0
  %63 = vmatpush1.bf16.msra.mxu0 0
  %64 = vmatprep.subr.bf16.mxu0 0
  %65 = vmatpush1.bf16.msra.mxu0 0
  %66 = vmatprep.subr.bf16.mxu0 0
  %67 = vmatpush1.bf16.msra.mxu0 0
  %68 = vmatprep.subr.bf16.mxu0 0
  %69 = vmatpush1.bf16.msra.mxu0 0
  %70 = vmatprep.subr.bf16.mxu0 0
  %71 = vmatpush1.bf16.msra.mxu0 0
  %72 = vmatprep.subr.bf16.mxu0 0
  %73 = vmatpush1.bf16.msra.mxu0 0
  %74 = vmatprep.subr.bf16.mxu0 0
  %75 = vmatpush1.bf16.msra.mxu0 0
  %76 = vmatprep.subr.bf16.mxu0 0
  %77 = vmatpush1.bf16.msra.mxu0 0
  %78 = vmatprep.subr.bf16.mxu0 0
  %79 = vmatpush1.bf16.msra.mxu0 0
  %80 = vmatprep.subr.bf16.mxu0 0
  %81 = vmatpush1.bf16.msra.mxu0 0
  %82 = vmatprep.mubr.bf16.mxu0 0
  %83 = vmatmul.mubr.bf16.gmra.mrb[0].mxu0 %v48
  %v84 = vpop.f32.mrb[0].mxu0
  %v85 = vadd.f32 %v26, %v84
  %v86 = vpop.f32.mrb[0].mxu0
  %v87 = vpop.f32.mrb[0].mxu0
  %v88 = vpop.f32.mrb[0].mxu0
  %89 = vdwg.mxu0
  %v90 = vlaneseq
  %v91 = vshrl.u32 %v90, 7
  %vm92 = vcmp.lt.s32.totalorder %v91, 4
  %v93 = vxor.u32 %v85, 2147483648
  %v94 = vmul.f32 %v93, 1.442695
  %v95 = vpow.pop %v94
  %v96 = vadd.f32 %v95, 1.0
  %v97 = vrcp.pop %v96
  %v98 = vmul.f32 1.0, %v97
  %v99 = vsel %vm92, %v98, %v85
  %v100 = vpack.c.bf16 %v99, %v99
  %101 = vst [vmem:[%s3] sm:$0xf] %v100
  // Predicated region
  $region14: #{model_forward.58} parent=0 // pred_check
    _
  $region15: #{model_forward.58} parent=0 // pred_check_branch
    %103 = sbr.rel (0) target = $region17
  $region16: #{model_forward.58} parent=0 // pred_region
    _
  $region17: #{model_forward.58} parent=0 // pred_fallthru
    _
  // Predicated region
  $region18: #{model_forward.58} parent=0 // pred_check
    _
  $region19: #{model_forward.58} parent=0 // pred_check_branch
    %105 = sbr.rel (0) target = $region21
  $region20: #{model_forward.58} parent=0 // pred_region
    _
  $region21: #{model_forward.58} parent=0 // pred_fallthru
    _

// kernel: model_forward.57
$region0: #{model_forward.57}
  #allocation0 [shape = 'u32[]', space=smem, size = 0x4, offset = 0x4, fixed_abs, tag = 'smem constant byte address 0x4 - core index']
  #allocation1 [shape = 'u32[144,128]{1,0:T(1,128)}', space=vmem, size = 0x12000, scoped, tag = 'internal scratch']
  %s0 = inlined_call_operand.vmem [shape: bf16[48,216], index: 0, kind: input, shape index: {}]
  %s1 = inlined_call_operand.vmem [shape: bf16[216,128], index: 1, kind: input, shape index: {}]
  %s2 = inlined_call_operand.vmem [shape: f32[48,1], index: 2, kind: input, shape index: {}]
  %s3 = inlined_call_operand.vmem [shape: bf16[48,128], index: 3, kind: output, shape index: {}]
  %s4 = sld [smem:[#allocation0]]
  $region22: #{model_forward.57} parent=0
    _
  %s6 = ssub.s32 1, %s4
  %s7 = scalar_select 0, %s6, %s4
  // Predicated region
  $region2: #{model_forward.57} parent=0 // pred_check
    _
  $region3: #{model_forward.57} parent=0 // pred_check_branch
    %9 = sbr.rel (0) target = $region5
  $region4: #{model_forward.57} parent=0 // pred_region
    _
  $region5: #{model_forward.57} parent=0 // pred_fallthru
    _
  // Predicated region
  $region6: #{model_forward.57} parent=0 // pred_check
    _
  $region7: #{model_forward.57} parent=0 // pred_check_branch
    %11 = sbr.rel (0) target = $region9
  $region8: #{model_forward.57} parent=0 // pred_region
    _
  $region9: #{model_forward.57} parent=0 // pred_fallthru
    _
  // Predicated region
  $region10: #{model_forward.57} parent=0 // pred_check
    _
  $region11: #{model_forward.57} parent=0 // pred_check_branch
    %13 = sbr.rel (0) target = $region13
  $region12: #{model_forward.57} parent=0 // pred_region
    _
  $region13: #{model_forward.57} parent=0 // pred_fallthru
    _
  %v15 = vld [vmem:[%s0] sm:$0xff]
  %v16 = vld [vmem:[%s0 + $0x8] sm:$0xff]
  %v17 = vld [vmem:[%s0 + $0x10] sm:$0xff]
  %v18 = vld [vmem:[%s0 + $0x18] sm:$0xff]
  %v19 = vld [vmem:[%s0 + $0x20] sm:$0xff]
  %v20 = vld [vmem:[%s0 + $0x28] sm:$0xff]
  %v21 = vld [vmem:[%s1] sm:$0xf]
  %v22 = vld [vmem:[%s1 + $0x4] sm:$0xf]
  %v23 = vld [vmem:[%s1 + $0x8] sm:$0xf]
  %v24 = vld [vmem:[%s1 + $0xc] sm:$0xf]
  %v25 = vld [vmem:[%s1 + $0x10] sm:$0xf]
  %v26 = vld [vmem:[%s1 + $0x14] sm:$0xf]
  %v27 = vld [vmem:[%s1 + $0x18] sm:$0xf]
  %v28 = vld [vmem:[%s1 + $0x1c] sm:$0xf]
  %v29 = vld [vmem:[%s1 + $0x20] sm:$0xf]
  %v30 = vld [vmem:[%s1 + $0x24] sm:$0xf]
  %v31 = vld [vmem:[%s1 + $0x28] sm:$0xf]
  %v32 = vld [vmem:[%s1 + $0x2c] sm:$0xf]
  %v33 = vld [vmem:[%s1 + $0x30] sm:$0xf]
  %v34 = vld [vmem:[%s1 + $0x34] sm:$0xf]
  %v35 = vld [vmem:[%s1 + $0x38] sm:$0xf]
  %v36 = vld [vmem:[%s1 + $0x3c] sm:$0xf]
  %v37 = vld [vmem:[%s1 + $0x40] sm:$0xf]
  %v38 = vld [vmem:[%s1 + $0x44] sm:$0xf]
  %v39 = vld [vmem:[%s1 + $0x48] sm:$0xf]
  %v40 = vld [vmem:[%s1 + $0x4c] sm:$0xf]
  %v41 = vld [vmem:[%s1 + $0x50] sm:$0xf]
  %v42 = vld [vmem:[%s1 + $0x54] sm:$0xf]
  %v43 = vld [vmem:[%s1 + $0x58] sm:$0xf]
  %v44 = vld [vmem:[%s1 + $0x5c] sm:$0xf]
  %v45 = vld [vmem:[%s1 + $0x60] sm:$0xf]
  %v46 = vld [vmem:[%s1 + $0x64] sm:$0xf]
  %v47 = vld [vmem:[%s1 + $0x68] sm:$0xf]
  %v48 = vld [vmem:[%s2] sm:$0xff]
  %v49 = vld [vmem:[%s2 + $0x8] sm:$0xff]
  %v50 = vld [vmem:[%s2 + $0x10] sm:$0xff]
  %v51 = vld [vmem:[%s2 + $0x18] sm:$0xff]
  %v52 = vld [vmem:[%s2 + $0x20] sm:$0xff]
  %v53 = vld [vmem:[%s2 + $0x28] sm:$0xff]
  %55 = vset.pattern.permute.xlu0 0
  %56 = vperm.xlu0 %55, %v48
  %v57 = vpop.permute.xlu0 %56
  %60 = vset.pattern.permute.xlu0 0
  %61 = vperm.xlu0 %60, %v49
  %v62 = vpop.permute.xlu0 %61
  %65 = vset.pattern.permute.xlu0 0
  %66 = vperm.xlu0 %65, %v50
  %v67 = vpop.permute.xlu0 %66
  %70 = vset.pattern.permute.xlu0 0
  %71 = vperm.xlu0 %70, %v51
  %v72 = vpop.permute.xlu0 %71
  %75 = vset.pattern.permute.xlu0 0
  %76 = vperm.xlu0 %75, %v52
  %v77 = vpop.permute.xlu0 %76
  %80 = vset.pattern.permute.xlu0 0
  %81 = vperm.xlu0 %80, %v53
  %v82 = vpop.permute.xlu0 %81
  %v90 = vunpack.c.l.b16 %v15
  %v91 = vunpack.c.h.b16 %v15
  %v92 = vunpack.c.l.b16 %v16
  %v93 = vunpack.c.h.b16 %v16
  %v94 = vunpack.c.l.b16 %v17
  %v95 = vunpack.c.h.b16 %v17
  %v96 = vunpack.c.l.b16 %v18
  %v97 = vunpack.c.h.b16 %v18
  %v98 = vunpack.c.l.b16 %v19
  %v99 = vunpack.c.h.b16 %v19
  %v100 = vunpack.c.l.b16 %v20
  %v101 = vunpack.c.h.b16 %v20
  %v102 = vpack.c.b16 %v92, %v90
  %v103 = vpack.c.b16 %v93, %v91
  %v104 = vpack.c.b16 %v96, %v94
  %v105 = vpack.c.b16 %v97, %v95
  %v106 = vpack.c.b16 %v100, %v98
  %v107 = vpack.c.b16 %v101, %v99
  %v138 = vunpack.c.l.b16 %v21
  %v139 = vunpack.c.l.b16 %v22
  %v140 = vunpack.c.l.b16 %v23
  %v141 = vunpack.c.l.b16 %v24
  %v142 = vunpack.c.l.b16 %v25
  %v143 = vunpack.c.l.b16 %v26
  %v144 = vunpack.c.l.b16 %v27
  %v145 = vunpack.c.l.b16 %v28
  %v146 = vunpack.c.l.b16 %v29
  %v147 = vunpack.c.l.b16 %v30
  %v148 = vunpack.c.l.b16 %v31
  %v149 = vunpack.c.l.b16 %v32
  %v150 = vunpack.c.l.b16 %v33
  %v151 = vunpack.c.l.b16 %v34
  %v152 = vunpack.c.l.b16 %v35
  %v153 = vunpack.c.l.b16 %v36
  %v154 = vunpack.c.l.b16 %v37
  %v155 = vunpack.c.l.b16 %v38
  %v156 = vunpack.c.l.b16 %v39
  %v157 = vunpack.c.l.b16 %v40
  %v158 = vunpack.c.l.b16 %v41
  %v159 = vunpack.c.l.b16 %v42
  %v160 = vunpack.c.l.b16 %v43
  %v161 = vunpack.c.l.b16 %v44
  %v162 = vunpack.c.l.b16 %v45
  %v163 = vunpack.c.l.b16 %v46
  %v164 = vunpack.c.l.b16 %v47
  %v165 = vpack.c.b16 %v139, %v138
  %v166 = vpack.c.b16 %v141, %v140
  %v167 = vpack.c.b16 %v143, %v142
  %v168 = vpack.c.b16 %v145, %v144
  %v169 = vpack.c.b16 %v147, %v146
  %v170 = vpack.c.b16 %v149, %v148
  %v171 = vpack.c.b16 %v151, %v150
  %v172 = vpack.c.b16 %v153, %v152
  %v173 = vpack.c.b16 %v155, %v154
  %v174 = vpack.c.b16 %v157, %v156
  %v175 = vpack.c.b16 %v159, %v158
  %v176 = vpack.c.b16 %v161, %v160
  %v177 = vpack.c.b16 %v163, %v162
  %v178 = vpack.c.b16 %v164, %v164
  %vm192 = vcmask 719872
  %v194 = vsel %vm192, %v103, 0
  %v197 = vsel %vm192, %v105, 0
  %v200 = vsel %vm192, %v107, 0
  %vm202 = vcmask 1043456
  %v204 = vsel %vm202, %v178, 0
  %206 = vmatprep.subr.bf16.mxu0 0
  %207 = vmatpush1.bf16.msra.mxu0 %v165
  %208 = vmatprep.subr.bf16.mxu0 0
  %209 = vmatpush1.bf16.msra.mxu0 %v166
  %210 = vmatprep.subr.bf16.mxu0 0
  %211 = vmatpush1.bf16.msra.mxu0 %v167
  %212 = vmatprep.subr.bf16.mxu0 0
  %213 = vmatpush1.bf16.msra.mxu0 %v168
  %214 = vmatprep.subr.bf16.mxu0 0
  %215 = vmatpush1.bf16.msra.mxu0 %v169
  %216 = vmatprep.subr.bf16.mxu0 0
  %217 = vmatpush1.bf16.msra.mxu0 %v170
  %218 = vmatprep.subr.bf16.mxu0 0
  %219 = vmatpush1.bf16.msra.mxu0 %v171
  %220 = vmatprep.subr.bf16.mxu0 0
  %221 = vmatpush1.bf16.msra.mxu0 %v172
  %222 = vmatprep.subr.bf16.mxu0 0
  %223 = vmatpush1.bf16.msra.mxu0 %v173
  %224 = vmatprep.subr.bf16.mxu0 0
  %225 = vmatpush1.bf16.msra.mxu0 %v174
  %226 = vmatprep.subr.bf16.mxu0 0
  %227 = vmatpush1.bf16.msra.mxu0 %v175
  %228 = vmatprep.subr.bf16.mxu0 0
  %229 = vmatpush1.bf16.msra.mxu0 %v176
  %230 = vmatprep.subr.bf16.mxu0 0
  %231 = vmatpush1.bf16.msra.mxu0 %v177
  %232 = vmatprep.subr.bf16.mxu0 0
  %233 = vmatpush1.bf16.msra.mxu0 %v204
  %234 = vmatprep.subr.bf16.mxu0 0
  %235 = vmatpush1.bf16.msra.mxu0 0
  %236 = vmatprep.subr.bf16.mxu0 0
  %237 = vmatpush1.bf16.msra.mxu0 0
  %238 = vmatprep.mubr.bf16.mxu0 %v194
  %239 = vmatmul.mubr.bf16.gmra.mrb[0].mxu0 %v102
  %v240 = vpop.f32.mrb[0].mxu0
  %v241 = vadd.f32 %v57, %v240
  %v242 = vpop.f32.mrb[0].mxu0
  %v243 = vpop.f32.mrb[0].mxu0
  %v244 = vadd.f32 %v62, %v243
  %v245 = vpop.f32.mrb[0].mxu0
  %246 = vmatprep.mubr.bf16.mxu0 %v197
  %247 = vmatmul.mubr.bf16.gmra.mrb[0].mxu0 %v104
  %v248 = vpop.f32.mrb[0].mxu0
  %v249 = vadd.f32 %v67, %v248
  %v250 = vpop.f32.mrb[0].mxu0
  %v251 = vpop.f32.mrb[0].mxu0
  %v252 = vadd.f32 %v72, %v251
  %v253 = vpop.f32.mrb[0].mxu0
  %254 = vmatprep.mubr.bf16.mxu0 %v200
  %255 = vmatmul.mubr.bf16.gmra.mrb[0].mxu0 %v106
  %v256 = vpop.f32.mrb[0].mxu0
  %v257 = vadd.f32 %v77, %v256
  %v258 = vpop.f32.mrb[0].mxu0
  %v259 = vpop.f32.mrb[0].mxu0
  %v260 = vadd.f32 %v82, %v259
  %v261 = vpop.f32.mrb[0].mxu0
  %262 = vdwg.mxu0
  %v263 = vxor.u32 %v241, 2147483648
  %v264 = vxor.u32 %v244, 2147483648
  %v265 = vxor.u32 %v249, 2147483648
  %v266 = vxor.u32 %v252, 2147483648
  %v267 = vxor.u32 %v257, 2147483648
  %v268 = vxor.u32 %v260, 2147483648
  %v269 = vmul.f32 %v263, 1.442695
  %v270 = vpow.pop %v269
  %v271 = vmul.f32 %v264, 1.442695
  %v272 = vpow.pop %v271
  %v273 = vmul.f32 %v265, 1.442695
  %v274 = vpow.pop %v273
  %v275 = vmul.f32 %v266, 1.442695
  %v276 = vpow.pop %v275
  %v277 = vmul.f32 %v267, 1.442695
  %v278 = vpow.pop %v277
  %v279 = vmul.f32 %v268, 1.442695
  %v280 = vpow.pop %v279
  %v281 = vadd.f32 %v270, 1.0
  %v282 = vadd.f32 %v272, 1.0
  %v283 = vadd.f32 %v274, 1.0
  %v284 = vadd.f32 %v276, 1.0
  %v285 = vadd.f32 %v278, 1.0
  %v286 = vadd.f32 %v280, 1.0
  %v287 = vrcp.pop %v281
  %v288 = vmul.f32 1.0, %v287
  %v289 = vrcp.pop %v282
  %v290 = vmul.f32 1.0, %v289
  %v291 = vrcp.pop %v283
  %v292 = vmul.f32 1.0, %v291
  %v293 = vrcp.pop %v284
  %v294 = vmul.f32 1.0, %v293
  %v295 = vrcp.pop %v285
  %v296 = vmul.f32 1.0, %v295
  %v297 = vrcp.pop %v286
  %v298 = vmul.f32 1.0, %v297
  %v299 = vmul.f32 %v241, %v288
  %v300 = vmul.f32 %v244, %v290
  %v301 = vmul.f32 %v249, %v292
  %v302 = vmul.f32 %v252, %v294
  %v303 = vmul.f32 %v257, %v296
  %v304 = vmul.f32 %v260, %v298
  %v305 = vpack.c.bf16 %v300, %v299
  %v306 = vpack.c.bf16 %v302, %v301
  %v307 = vpack.c.bf16 %v304, %v303
  %v311 = vunpack.c.l.b16 %v305
  %v312 = vunpack.c.h.b16 %v305
  %v313 = vunpack.c.l.b16 %v306
  %v314 = vunpack.c.h.b16 %v306
  %v315 = vunpack.c.l.b16 %v307
  %v316 = vunpack.c.h.b16 %v307
  %v317 = vpack.c.b16 %v311, %v311
  %v318 = vpack.c.b16 %v312, %v312
  %v319 = vpack.c.b16 %v313, %v313
  %v320 = vpack.c.b16 %v314, %v314
  %v321 = vpack.c.b16 %v315, %v315
  %v322 = vpack.c.b16 %v316, %v316
  %329 = vst [vmem:[%s3] sm:$0xf] %v317
  %330 = vst [vmem:[%s3 + $0x4] sm:$0xf] %v318
  %331 = vst [vmem:[%s3 + $0x8] sm:$0xf] %v319
  %332 = vst [vmem:[%s3 + $0xc] sm:$0xf] %v320
  %333 = vst [vmem:[%s3 + $0x10] sm:$0xf] %v321
  %334 = vst [vmem:[%s3 + $0x14] sm:$0xf] %v322
  // Predicated region
  $region14: #{model_forward.57} parent=0 // pred_check
    _
  $region15: #{model_forward.57} parent=0 // pred_check_branch
    %336 = sbr.rel (0) target = $region17
  $region16: #{model_forward.57} parent=0 // pred_region
    _
  $region17: #{model_forward.57} parent=0 // pred_fallthru
    _
  // Predicated region
  $region18: #{model_forward.57} parent=0 // pred_check
    _
  $region19: #{model_forward.57} parent=0 // pred_check_branch
    %338 = sbr.rel (0) target = $region21
  $region20: #{model_forward.57} parent=0 // pred_region
    _
  $region21: #{model_forward.57} parent=0 // pred_fallthru
    _

// kernel: model_forward.51
$region0: #{model_forward.51}
  #allocation0 [shape = 'u32[]', space=smem, size = 0x4, offset = 0x4, fixed_abs, tag = 'smem constant byte address 0x4 - core index']
  #allocation1 [shape = 'u32[144,128]{1,0:T(1,128)}', space=vmem, size = 0x12000, scoped, tag = 'internal scratch']
  %s0 = inlined_call_operand.vmem [shape: bf16[24,216], index: 0, kind: input, shape index: {}]
  %s1 = inlined_call_operand.vmem [shape: bf16[216,128], index: 1, kind: input, shape index: {}]
  %s2 = inlined_call_operand.vmem [shape: f32[24,1], index: 2, kind: input, shape index: {}]
  %s3 = inlined_call_operand.vmem [shape: bf16[24,128], index: 3, kind: output, shape index: {}]
  %s4 = sld [smem:[#allocation0]]
  $region22: #{model_forward.51} parent=0
    _
  %s6 = ssub.s32 1, %s4
  %s7 = scalar_select 0, %s6, %s4
  // Predicated region
  $region2: #{model_forward.51} parent=0 // pred_check
    _
  $region3: #{model_forward.51} parent=0 // pred_check_branch
    %9 = sbr.rel (0) target = $region5
  $region4: #{model_forward.51} parent=0 // pred_region
    _
  $region5: #{model_forward.51} parent=0 // pred_fallthru
    _
  // Predicated region
  $region6: #{model_forward.51} parent=0 // pred_check
    _
  $region7: #{model_forward.51} parent=0 // pred_check_branch
    %11 = sbr.rel (0) target = $region9
  $region8: #{model_forward.51} parent=0 // pred_region
    _
  $region9: #{model_forward.51} parent=0 // pred_fallthru
    _
  // Predicated region
  $region10: #{model_forward.51} parent=0 // pred_check
    _
  $region11: #{model_forward.51} parent=0 // pred_check_branch
    %13 = sbr.rel (0) target = $region13
  $region12: #{model_forward.51} parent=0 // pred_region
    _
  $region13: #{model_forward.51} parent=0 // pred_fallthru
    _
  %v15 = vld [vmem:[%s0] sm:$0xff]
  %v16 = vld [vmem:[%s0 + $0x8] sm:$0xff]
  %v17 = vld [vmem:[%s0 + $0x10] sm:$0xff]
  %v18 = vld [vmem:[%s1] sm:$0xf]
  %v19 = vld [vmem:[%s1 + $0x4] sm:$0xf]
  %v20 = vld [vmem:[%s1 + $0x8] sm:$0xf]
  %v21 = vld [vmem:[%s1 + $0xc] sm:$0xf]
  %v22 = vld [vmem:[%s1 + $0x10] sm:$0xf]
  %v23 = vld [vmem:[%s1 + $0x14] sm:$0xf]
  %v24 = vld [vmem:[%s1 + $0x18] sm:$0xf]
  %v25 = vld [vmem:[%s1 + $0x1c] sm:$0xf]
  %v26 = vld [vmem:[%s1 + $0x20] sm:$0xf]
  %v27 = vld [vmem:[%s1 + $0x24] sm:$0xf]
  %v28 = vld [vmem:[%s1 + $0x28] sm:$0xf]
  %v29 = vld [vmem:[%s1 + $0x2c] sm:$0xf]
  %v30 = vld [vmem:[%s1 + $0x30] sm:$0xf]
  %v31 = vld [vmem:[%s1 + $0x34] sm:$0xf]
  %v32 = vld [vmem:[%s1 + $0x38] sm:$0xf]
  %v33 = vld [vmem:[%s1 + $0x3c] sm:$0xf]
  %v34 = vld [vmem:[%s1 + $0x40] sm:$0xf]
  %v35 = vld [vmem:[%s1 + $0x44] sm:$0xf]
  %v36 = vld [vmem:[%s1 + $0x48] sm:$0xf]
  %v37 = vld [vmem:[%s1 + $0x4c] sm:$0xf]
  %v38 = vld [vmem:[%s1 + $0x50] sm:$0xf]
  %v39 = vld [vmem:[%s1 + $0x54] sm:$0xf]
  %v40 = vld [vmem:[%s1 + $0x58] sm:$0xf]
  %v41 = vld [vmem:[%s1 + $0x5c] sm:$0xf]
  %v42 = vld [vmem:[%s1 + $0x60] sm:$0xf]
  %v43 = vld [vmem:[%s1 + $0x64] sm:$0xf]
  %v44 = vld [vmem:[%s1 + $0x68] sm:$0xf]
  %v45 = vld [vmem:[%s2] sm:$0xff]
  %v46 = vld [vmem:[%s2 + $0x8] sm:$0xff]
  %v47 = vld [vmem:[%s2 + $0x10] sm:$0xff]
  %49 = vset.pattern.permute.xlu0 0
  %50 = vperm.xlu0 %49, %v45
  %v51 = vpop.permute.xlu0 %50
  %54 = vset.pattern.permute.xlu0 0
  %55 = vperm.xlu0 %54, %v46
  %v56 = vpop.permute.xlu0 %55
  %59 = vset.pattern.permute.xlu0 0
  %60 = vperm.xlu0 %59, %v47
  %v61 = vpop.permute.xlu0 %60
  %v66 = vunpack.c.l.b16 %v15
  %v67 = vunpack.c.h.b16 %v15
  %v68 = vunpack.c.l.b16 %v16
  %v69 = vunpack.c.h.b16 %v16
  %v70 = vunpack.c.l.b16 %v17
  %v71 = vunpack.c.h.b16 %v17
  %v72 = vpack.c.b16 %v68, %v66
  %v73 = vpack.c.b16 %v69, %v67
  %v74 = vpack.c.b16 %v70, %v70
  %v75 = vpack.c.b16 %v71, %v71
  %v105 = vunpack.c.l.b16 %v18
  %v106 = vunpack.c.l.b16 %v19
  %v107 = vunpack.c.l.b16 %v20
  %v108 = vunpack.c.l.b16 %v21
  %v109 = vunpack.c.l.b16 %v22
  %v110 = vunpack.c.l.b16 %v23
  %v111 = vunpack.c.l.b16 %v24
  %v112 = vunpack.c.l.b16 %v25
  %v113 = vunpack.c.l.b16 %v26
  %v114 = vunpack.c.l.b16 %v27
  %v115 = vunpack.c.l.b16 %v28
  %v116 = vunpack.c.l.b16 %v29
  %v117 = vunpack.c.l.b16 %v30
  %v118 = vunpack.c.l.b16 %v31
  %v119 = vunpack.c.l.b16 %v32
  %v120 = vunpack.c.l.b16 %v33
  %v121 = vunpack.c.l.b16 %v34
  %v122 = vunpack.c.l.b16 %v35
  %v123 = vunpack.c.l.b16 %v36
  %v124 = vunpack.c.l.b16 %v37
  %v125 = vunpack.c.l.b16 %v38
  %v126 = vunpack.c.l.b16 %v39
  %v127 = vunpack.c.l.b16 %v40
  %v128 = vunpack.c.l.b16 %v41
  %v129 = vunpack.c.l.b16 %v42
  %v130 = vunpack.c.l.b16 %v43
  %v131 = vunpack.c.l.b16 %v44
  %v132 = vpack.c.b16 %v106, %v105
  %v133 = vpack.c.b16 %v108, %v107
  %v134 = vpack.c.b16 %v110, %v109
  %v135 = vpack.c.b16 %v112, %v111
  %v136 = vpack.c.b16 %v114, %v113
  %v137 = vpack.c.b16 %v116, %v115
  %v138 = vpack.c.b16 %v118, %v117
  %v139 = vpack.c.b16 %v120, %v119
  %v140 = vpack.c.b16 %v122, %v121
  %v141 = vpack.c.b16 %v124, %v123
  %v142 = vpack.c.b16 %v126, %v125
  %v143 = vpack.c.b16 %v128, %v127
  %v144 = vpack.c.b16 %v130, %v129
  %v145 = vpack.c.b16 %v131, %v131
  %vm159 = vcmask 719872
  %v161 = vsel %vm159, %v73, 0
  %v164 = vsel %vm159, %v75, 0
  %vm166 = vcmask 1043456
  %v168 = vsel %vm166, %v145, 0
  %170 = vmatprep.subr.bf16.mxu0 0
  %171 = vmatpush1.bf16.msra.mxu0 %v132
  %172 = vmatprep.subr.bf16.mxu0 0
  %173 = vmatpush1.bf16.msra.mxu0 %v133
  %174 = vmatprep.subr.bf16.mxu0 0
  %175 = vmatpush1.bf16.msra.mxu0 %v134
  %176 = vmatprep.subr.bf16.mxu0 0
  %177 = vmatpush1.bf16.msra.mxu0 %v135
  %178 = vmatprep.subr.bf16.mxu0 0
  %179 = vmatpush1.bf16.msra.mxu0 %v136
  %180 = vmatprep.subr.bf16.mxu0 0
  %181 = vmatpush1.bf16.msra.mxu0 %v137
  %182 = vmatprep.subr.bf16.mxu0 0
  %183 = vmatpush1.bf16.msra.mxu0 %v138
  %184 = vmatprep.subr.bf16.mxu0 0
  %185 = vmatpush1.bf16.msra.mxu0 %v139
  %186 = vmatprep.subr.bf16.mxu0 0
  %187 = vmatpush1.bf16.msra.mxu0 %v140
  %188 = vmatprep.subr.bf16.mxu0 0
  %189 = vmatpush1.bf16.msra.mxu0 %v141
  %190 = vmatprep.subr.bf16.mxu0 0
  %191 = vmatpush1.bf16.msra.mxu0 %v142
  %192 = vmatprep.subr.bf16.mxu0 0
  %193 = vmatpush1.bf16.msra.mxu0 %v143
  %194 = vmatprep.subr.bf16.mxu0 0
  %195 = vmatpush1.bf16.msra.mxu0 %v144
  %196 = vmatprep.subr.bf16.mxu0 0
  %197 = vmatpush1.bf16.msra.mxu0 %v168
  %198 = vmatprep.subr.bf16.mxu0 0
  %199 = vmatpush1.bf16.msra.mxu0 0
  %200 = vmatprep.subr.bf16.mxu0 0
  %201 = vmatpush1.bf16.msra.mxu0 0
  %202 = vmatprep.mubr.bf16.mxu0 %v161
  %203 = vmatmul.mubr.bf16.gmra.mrb[0].mxu0 %v72
  %v204 = vpop.f32.mrb[0].mxu0
  %v205 = vadd.f32 %v51, %v204
  %v206 = vpop.f32.mrb[0].mxu0
  %v207 = vpop.f32.mrb[0].mxu0
  %v208 = vadd.f32 %v56, %v207
  %v209 = vpop.f32.mrb[0].mxu0
  %210 = vmatprep.mubr.bf16.mxu0 %v164
  %211 = vmatmul.mubr.bf16.gmra.mrb[0].mxu0 %v74
  %v212 = vpop.f32.mrb[0].mxu0
  %v213 = vadd.f32 %v61, %v212
  %v214 = vpop.f32.mrb[0].mxu0
  %v215 = vpop.f32.mrb[0].mxu0
  %v216 = vpop.f32.mrb[0].mxu0
  %217 = vdwg.mxu0
  %v218 = vxor.u32 %v205, 2147483648
  %v219 = vxor.u32 %v208, 2147483648
  %v220 = vxor.u32 %v213, 2147483648
  %v221 = vmul.f32 %v218, 1.442695
  %v222 = vpow.pop %v221
  %v223 = vmul.f32 %v219, 1.442695
  %v224 = vpow.pop %v223
  %v225 = vmul.f32 %v220, 1.442695
  %v226 = vpow.pop %v225
  %v227 = vadd.f32 %v222, 1.0
  %v228 = vadd.f32 %v224, 1.0
  %v229 = vadd.f32 %v226, 1.0
  %v230 = vrcp.pop %v227
  %v231 = vmul.f32 1.0, %v230
  %v232 = vrcp.pop %v228
  %v233 = vmul.f32 1.0, %v232
  %v234 = vrcp.pop %v229
  %v235 = vmul.f32 1.0, %v234
  %v236 = vmul.f32 %v205, %v231
  %v237 = vmul.f32 %v208, %v233
  %v238 = vmul.f32 %v213, %v235
  %v239 = vpack.c.bf16 %v237, %v236
  %v240 = vpack.c.bf16 %v238, %v238
  %v243 = vunpack.c.l.b16 %v239
  %v244 = vunpack.c.h.b16 %v239
  %v245 = vunpack.c.l.b16 %v240
  %v246 = vpack.c.b16 %v243, %v243
  %v247 = vpack.c.b16 %v244, %v244
  %v248 = vpack.c.b16 %v245, %v245
  %252 = vst [vmem:[%s3] sm:$0xf] %v246
  %253 = vst [vmem:[%s3 + $0x4] sm:$0xf] %v247
  %254 = vst [vmem:[%s3 + $0x8] sm:$0xf] %v248
  // Predicated region
  $region14: #{model_forward.51} parent=0 // pred_check
    _
  $region15: #{model_forward.51} parent=0 // pred_check_branch
    %256 = sbr.rel (0) target = $region17
  $region16: #{model_forward.51} parent=0 // pred_region
    _
  $region17: #{model_forward.51} parent=0 // pred_fallthru
    _
  // Predicated region
  $region18: #{model_forward.51} parent=0 // pred_check
    _
  $region19: #{model_forward.51} parent=0 // pred_check_branch
    %258 = sbr.rel (0) target = $region21
  $region20: #{model_forward.51} parent=0 // pred_region
    _
  $region21: #{model_forward.51} parent=0 // pred_fallthru
    _

// kernel: model_forward.59
$region0: #{model_forward.59}
  #allocation0 [shape = 'u32[]', space=smem, size = 0x4, offset = 0x4, fixed_abs, tag = 'smem constant byte address 0x4 - core index']
  #allocation1 [shape = 'u32[144,128]{1,0:T(1,128)}', space=vmem, size = 0x12000, scoped, tag = 'internal scratch']
  %s0 = inlined_call_operand.vmem [shape: bf16[32,32], index: 0, kind: input, shape index: {}]
  %s1 = inlined_call_operand.vmem [shape: bf16[32,128], index: 1, kind: input, shape index: {}]
  %s2 = inlined_call_operand.vmem [shape: f32[32,1], index: 2, kind: input, shape index: {}]
  %s3 = inlined_call_operand.vmem [shape: bf16[32,128], index: 3, kind: output, shape index: {}]
  %s4 = sld [smem:[#allocation0]]
  $region22: #{model_forward.59} parent=0
    _
  %s6 = ssub.s32 1, %s4
  %s7 = scalar_select 0, %s6, %s4
  // Predicated region
  $region2: #{model_forward.59} parent=0 // pred_check
    _
  $region3: #{model_forward.59} parent=0 // pred_check_branch
    %9 = sbr.rel (0) target = $region5
  $region4: #{model_forward.59} parent=0 // pred_region
    _
  $region5: #{model_forward.59} parent=0 // pred_fallthru
    _
  // Predicated region
  $region6: #{model_forward.59} parent=0 // pred_check
    _
  $region7: #{model_forward.59} parent=0 // pred_check_branch
    %11 = sbr.rel (0) target = $region9
  $region8: #{model_forward.59} parent=0 // pred_region
    _
  $region9: #{model_forward.59} parent=0 // pred_fallthru
    _
  // Predicated region
  $region10: #{model_forward.59} parent=0 // pred_check
    _
  $region11: #{model_forward.59} parent=0 // pred_check_branch
    %13 = sbr.rel (0) target = $region13
  $region12: #{model_forward.59} parent=0 // pred_region
    _
  $region13: #{model_forward.59} parent=0 // pred_fallthru
    _
  %v15 = vld [vmem:[%s0] sm:$0xf]
  %v16 = vld [vmem:[%s0 + $0x4] sm:$0xf]
  %v17 = vld [vmem:[%s0 + $0x8] sm:$0xf]
  %v18 = vld [vmem:[%s0 + $0xc] sm:$0xf]
  %v19 = vld [vmem:[%s1] sm:$0xf]
  %v20 = vld [vmem:[%s1 + $0x4] sm:$0xf]
  %v21 = vld [vmem:[%s1 + $0x8] sm:$0xf]
  %v22 = vld [vmem:[%s1 + $0xc] sm:$0xf]
  %v23 = vld [vmem:[%s2] sm:$0xff]
  %v24 = vld [vmem:[%s2 + $0x8] sm:$0xff]
  %v25 = vld [vmem:[%s2 + $0x10] sm:$0xff]
  %v26 = vld [vmem:[%s2 + $0x18] sm:$0xff]
  %28 = vset.pattern.permute.xlu0 0
  %29 = vperm.xlu0 %28, %v23
  %v30 = vpop.permute.xlu0 %29
  %33 = vset.pattern.permute.xlu0 0
  %34 = vperm.xlu0 %33, %v24
  %v35 = vpop.permute.xlu0 %34
  %38 = vset.pattern.permute.xlu0 0
  %39 = vperm.xlu0 %38, %v25
  %v40 = vpop.permute.xlu0 %39
  %43 = vset.pattern.permute.xlu0 0
  %44 = vperm.xlu0 %43, %v26
  %v45 = vpop.permute.xlu0 %44
  %v51 = vunpack.c.l.b16 %v15
  %v52 = vunpack.c.l.b16 %v16
  %v53 = vunpack.c.l.b16 %v17
  %v54 = vunpack.c.l.b16 %v18
  %v55 = vpack.c.b16 %v52, %v51
  %v56 = vpack.c.b16 %v54, %v53
  %v61 = vunpack.c.l.b16 %v19
  %v62 = vunpack.c.l.b16 %v20
  %v63 = vunpack.c.l.b16 %v21
  %v64 = vunpack.c.l.b16 %v22
  %v65 = vpack.c.b16 %v62, %v61
  %v66 = vpack.c.b16 %v64, %v63
  %vm69 = vcmask 261120
  %v71 = vsel %vm69, %v55, 0
  %v74 = vsel %vm69, %v56, 0
  %76 = vmatprep.subr.bf16.mxu0 0
  %77 = vmatpush1.bf16.msra.mxu0 %v65
  %78 = vmatprep.subr.bf16.mxu0 0
  %79 = vmatpush1.bf16.msra.mxu0 %v66
  %80 = vmatprep.subr.bf16.mxu0 0
  %81 = vmatpush1.bf16.msra.mxu0 0
  %82 = vmatprep.subr.bf16.mxu0 0
  %83 = vmatpush1.bf16.msra.mxu0 0
  %84 = vmatprep.subr.bf16.mxu0 0
  %85 = vmatpush1.bf16.msra.mxu0 0
  %86 = vmatprep.subr.bf16.mxu0 0
  %87 = vmatpush1.bf16.msra.mxu0 0
  %88 = vmatprep.subr.bf16.mxu0 0
  %89 = vmatpush1.bf16.msra.mxu0 0
  %90 = vmatprep.subr.bf16.mxu0 0
  %91 = vmatpush1.bf16.msra.mxu0 0
  %92 = vmatprep.subr.bf16.mxu0 0
  %93 = vmatpush1.bf16.msra.mxu0 0
  %94 = vmatprep.subr.bf16.mxu0 0
  %95 = vmatpush1.bf16.msra.mxu0 0
  %96 = vmatprep.subr.bf16.mxu0 0
  %97 = vmatpush1.bf16.msra.mxu0 0
  %98 = vmatprep.subr.bf16.mxu0 0
  %99 = vmatpush1.bf16.msra.mxu0 0
  %100 = vmatprep.subr.bf16.mxu0 0
  %101 = vmatpush1.bf16.msra.mxu0 0
  %102 = vmatprep.subr.bf16.mxu0 0
  %103 = vmatpush1.bf16.msra.mxu0 0
  %104 = vmatprep.subr.bf16.mxu0 0
  %105 = vmatpush1.bf16.msra.mxu0 0
  %106 = vmatprep.subr.bf16.mxu0 0
  %107 = vmatpush1.bf16.msra.mxu0 0
  %108 = vmatprep.mubr.bf16.mxu0 0
  %109 = vmatmul.mubr.bf16.gmra.mrb[0].mxu0 %v71
  %v110 = vpop.f32.mrb[0].mxu0
  %v111 = vadd.f32 %v30, %v110
  %v112 = vpop.f32.mrb[0].mxu0
  %v113 = vpop.f32.mrb[0].mxu0
  %v114 = vadd.f32 %v35, %v113
  %v115 = vpop.f32.mrb[0].mxu0
  %116 = vmatprep.mubr.bf16.mxu0 0
  %117 = vmatmul.mubr.bf16.gmra.mrb[0].mxu0 %v74
  %v118 = vpop.f32.mrb[0].mxu0
  %v119 = vadd.f32 %v40, %v118
  %v120 = vpop.f32.mrb[0].mxu0
  %v121 = vpop.f32.mrb[0].mxu0
  %v122 = vadd.f32 %v45, %v121
  %v123 = vpop.f32.mrb[0].mxu0
  %124 = vdwg.mxu0
  %v125 = vxor.u32 %v111, 2147483648
  %v126 = vxor.u32 %v114, 2147483648
  %v127 = vxor.u32 %v119, 2147483648
  %v128 = vxor.u32 %v122, 2147483648
  %v129 = vmul.f32 %v125, 1.442695
  %v130 = vpow.pop %v129
  %v131 = vmul.f32 %v126, 1.442695
  %v132 = vpow.pop %v131
  %v133 = vmul.f32 %v127, 1.442695
  %v134 = vpow.pop %v133
  %v135 = vmul.f32 %v128, 1.442695
  %v136 = vpow.pop %v135
  %v137 = vadd.f32 %v130, 1.0
  %v138 = vadd.f32 %v132, 1.0
  %v139 = vadd.f32 %v134, 1.0
  %v140 = vadd.f32 %v136, 1.0
  %v141 = vrcp.pop %v137
  %v142 = vmul.f32 1.0, %v141
  %v143 = vrcp.pop %v138
  %v144 = vmul.f32 1.0, %v143
  %v145 = vrcp.pop %v139
  %v146 = vmul.f32 1.0, %v145
  %v147 = vrcp.pop %v140
  %v148 = vmul.f32 1.0, %v147
  %v149 = vmul.f32 %v111, %v142
  %v150 = vmul.f32 %v114, %v144
  %v151 = vmul.f32 %v119, %v146
  %v152 = vmul.f32 %v122, %v148
  %v153 = vpack.c.bf16 %v150, %v149
  %v154 = vpack.c.bf16 %v152, %v151
  %v157 = vunpack.c.l.b16 %v153
  %v158 = vunpack.c.h.b16 %v153
  %v159 = vunpack.c.l.b16 %v154
  %v160 = vunpack.c.h.b16 %v154
  %v161 = vpack.c.b16 %v157, %v157
  %v162 = vpack.c.b16 %v158, %v158
  %v163 = vpack.c.b16 %v159, %v159
  %v164 = vpack.c.b16 %v160, %v160
  %169 = vst [vmem:[%s3] sm:$0xf] %v161
  %170 = vst [vmem:[%s3 + $0x4] sm:$0xf] %v162
  %171 = vst [vmem:[%s3 + $0x8] sm:$0xf] %v163
  %172 = vst [vmem:[%s3 + $0xc] sm:$0xf] %v164
  // Predicated region
  $region14: #{model_forward.59} parent=0 // pred_check
    _
  $region15: #{model_forward.59} parent=0 // pred_check_branch
    %174 = sbr.rel (0) target = $region17
  $region16: #{model_forward.59} parent=0 // pred_region
    _
  $region17: #{model_forward.59} parent=0 // pred_fallthru
    _
  // Predicated region
  $region18: #{model_forward.59} parent=0 // pred_check
    _
  $region19: #{model_forward.59} parent=0 // pred_check_branch
    %176 = sbr.rel (0) target = $region21
  $region20: #{model_forward.59} parent=0 // pred_region
    _
  $region21: #{model_forward.59} parent=0 // pred_fallthru
    _

// kernel: model_forward.52
$region0: #{model_forward.52}
  #allocation0 [shape = 'u32[]', space=smem, size = 0x4, offset = 0x4, fixed_abs, tag = 'smem constant byte address 0x4 - core index']
  #allocation1 [shape = 'u32[144,128]{1,0:T(1,128)}', space=vmem, size = 0x12000, scoped, tag = 'internal scratch']
  %s0 = inlined_call_operand.vmem [shape: bf16[32,432], index: 0, kind: input, shape index: {}]
  %s1 = inlined_call_operand.vmem [shape: bf16[432,128], index: 1, kind: input, shape index: {}]
  %s2 = inlined_call_operand.vmem [shape: f32[32,1], index: 2, kind: input, shape index: {}]
  %s3 = inlined_call_operand.vmem [shape: bf16[32,128], index: 3, kind: output, shape index: {}]
  %s4 = sld [smem:[#allocation0]]
  $region22: #{model_forward.52} parent=0
    _
  %s6 = ssub.s32 1, %s4
  %s7 = scalar_select 0, %s6, %s4
  // Predicated region
  $region2: #{model_forward.52} parent=0 // pred_check
    _
  $region3: #{model_forward.52} parent=0 // pred_check_branch
    %9 = sbr.rel (0) target = $region5
  $region4: #{model_forward.52} parent=0 // pred_region
    _
  $region5: #{model_forward.52} parent=0 // pred_fallthru
    _
  // Predicated region
  $region6: #{model_forward.52} parent=0 // pred_check
    _
  $region7: #{model_forward.52} parent=0 // pred_check_branch
    %11 = sbr.rel (0) target = $region9
  $region8: #{model_forward.52} parent=0 // pred_region
    _
  $region9: #{model_forward.52} parent=0 // pred_fallthru
    _
  // Predicated region
  $region10: #{model_forward.52} parent=0 // pred_check
    _
  $region11: #{model_forward.52} parent=0 // pred_check_branch
    %13 = sbr.rel (0) target = $region13
  $region12: #{model_forward.52} parent=0 // pred_region
    _
  $region13: #{model_forward.52} parent=0 // pred_fallthru
    _
  %v15 = vld [vmem:[%s0] sm:$0xff]
  %v16 = vld [vmem:[%s0 + $0x8] sm:$0xff]
  %v17 = vld [vmem:[%s0 + $0x10] sm:$0xff]
  %v18 = vld [vmem:[%s0 + $0x18] sm:$0xff]
  %v19 = vld [vmem:[%s0 + $0x20] sm:$0xff]
  %v20 = vld [vmem:[%s0 + $0x28] sm:$0xff]
  %v21 = vld [vmem:[%s0 + $0x30] sm:$0xff]
  %v22 = vld [vmem:[%s0 + $0x38] sm:$0xff]
  %v23 = vld [vmem:[%s1] sm:$0xf]
  %v24 = vld [vmem:[%s1 + $0x4] sm:$0xf]
  %v25 = vld [vmem:[%s1 + $0x8] sm:$0xf]
  %v26 = vld [vmem:[%s1 + $0xc] sm:$0xf]
  %v27 = vld [vmem:[%s1 + $0x10] sm:$0xf]
  %v28 = vld [vmem:[%s1 + $0x14] sm:$0xf]
  %v29 = vld [vmem:[%s1 + $0x18] sm:$0xf]
  %v30 = vld [vmem:[%s1 + $0x1c] sm:$0xf]
  %v31 = vld [vmem:[%s1 + $0x20] sm:$0xf]
  %v32 = vld [vmem:[%s1 + $0x24] sm:$0xf]
  %v33 = vld [vmem:[%s1 + $0x28] sm:$0xf]
  %v34 = vld [vmem:[%s1 + $0x2c] sm:$0xf]
  %v35 = vld [vmem:[%s1 + $0x30] sm:$0xf]
  %v36 = vld [vmem:[%s1 + $0x34] sm:$0xf]
  %v37 = vld [vmem:[%s1 + $0x38] sm:$0xf]
  %v38 = vld [vmem:[%s1 + $0x3c] sm:$0xf]
  %v39 = vld [vmem:[%s1 + $0x40] sm:$0xf]
  %v40 = vld [vmem:[%s1 + $0x44] sm:$0xf]
  %v41 = vld [vmem:[%s1 + $0x48] sm:$0xf]
  %v42 = vld [vmem:[%s1 + $0x4c] sm:$0xf]
  %v43 = vld [vmem:[%s1 + $0x50] sm:$0xf]
  %v44 = vld [vmem:[%s1 + $0x54] sm:$0xf]
  %v45 = vld [vmem:[%s1 + $0x58] sm:$0xf]
  %v46 = vld [vmem:[%s1 + $0x5c] sm:$0xf]
  %v47 = vld [vmem:[%s1 + $0x60] sm:$0xf]
  %v48 = vld [vmem:[%s1 + $0x64] sm:$0xf]
  %v49 = vld [vmem:[%s1 + $0x68] sm:$0xf]
  %v50 = vld [vmem:[%s1 + $0x6c] sm:$0xf]
  %v51 = vld [vmem:[%s1 + $0x70] sm:$0xf]
  %v52 = vld [vmem:[%s1 + $0x74] sm:$0xf]
  %v53 = vld [vmem:[%s1 + $0x78] sm:$0xf]
  %v54 = vld [vmem:[%s1 + $0x7c] sm:$0xf]
  %v55 = vld [vmem:[%s1 + $0x80] sm:$0xf]
  %v56 = vld [vmem:[%s1 + $0x84] sm:$0xf]
  %v57 = vld [vmem:[%s1 + $0x88] sm:$0xf]
  %v58 = vld [vmem:[%s1 + $0x8c] sm:$0xf]
  %v59 = vld [vmem:[%s1 + $0x90] sm:$0xf]
  %v60 = vld [vmem:[%s1 + $0x94] sm:$0xf]
  %v61 = vld [vmem:[%s1 + $0x98] sm:$0xf]
  %v62 = vld [vmem:[%s1 + $0x9c] sm:$0xf]
  %v63 = vld [vmem:[%s1 + $0xa0] sm:$0xf]
  %v64 = vld [vmem:[%s1 + $0xa4] sm:$0xf]
  %v65 = vld [vmem:[%s1 + $0xa8] sm:$0xf]
  %v66 = vld [vmem:[%s1 + $0xac] sm:$0xf]
  %v67 = vld [vmem:[%s1 + $0xb0] sm:$0xf]
  %v68 = vld [vmem:[%s1 + $0xb4] sm:$0xf]
  %v69 = vld [vmem:[%s1 + $0xb8] sm:$0xf]
  %v70 = vld [vmem:[%s1 + $0xbc] sm:$0xf]
  %v71 = vld [vmem:[%s1 + $0xc0] sm:$0xf]
  %v72 = vld [vmem:[%s1 + $0xc4] sm:$0xf]
  %v73 = vld [vmem:[%s1 + $0xc8] sm:$0xf]
  %v74 = vld [vmem:[%s1 + $0xcc] sm:$0xf]
  %v75 = vld [vmem:[%s1 + $0xd0] sm:$0xf]
  %v76 = vld [vmem:[%s1 + $0xd4] sm:$0xf]
  %v77 = vld [vmem:[%s2] sm:$0xff]
  %v78 = vld [vmem:[%s2 + $0x8] sm:$0xff]
  %v79 = vld [vmem:[%s2 + $0x10] sm:$0xff]
  %v80 = vld [vmem:[%s2 + $0x18] sm:$0xff]
  %82 = vset.pattern.permute.xlu0 0
  %83 = vperm.xlu0 %82, %v77
  %v84 = vpop.permute.xlu0 %83
  %87 = vset.pattern.permute.xlu0 0
  %88 = vperm.xlu0 %87, %v78
  %v89 = vpop.permute.xlu0 %88
  %92 = vset.pattern.permute.xlu0 0
  %93 = vperm.xlu0 %92, %v79
  %v94 = vpop.permute.xlu0 %93
  %97 = vset.pattern.permute.xlu0 0
  %98 = vperm.xlu0 %97, %v80
  %v99 = vpop.permute.xlu0 %98
  %v109 = vunpack.c.l.b16 %v15
  %v110 = vunpack.c.h.b16 %v15
  %v111 = vunpack.c.l.b16 %v16
  %v112 = vunpack.c.h.b16 %v16
  %v113 = vunpack.c.l.b16 %v17
  %v114 = vunpack.c.h.b16 %v17
  %v115 = vunpack.c.l.b16 %v18
  %v116 = vunpack.c.h.b16 %v18
  %v117 = vunpack.c.l.b16 %v19
  %v118 = vunpack.c.h.b16 %v19
  %v119 = vunpack.c.l.b16 %v20
  %v120 = vunpack.c.h.b16 %v20
  %v121 = vunpack.c.l.b16 %v21
  %v122 = vunpack.c.h.b16 %v21
  %v123 = vunpack.c.l.b16 %v22
  %v124 = vunpack.c.h.b16 %v22
  %v125 = vpack.c.b16 %v113, %v109
  %v126 = vpack.c.b16 %v114, %v110
  %v127 = vpack.c.b16 %v115, %v111
  %v128 = vpack.c.b16 %v116, %v112
  %v129 = vpack.c.b16 %v121, %v117
  %v130 = vpack.c.b16 %v122, %v118
  %v131 = vpack.c.b16 %v123, %v119
  %v132 = vpack.c.b16 %v124, %v120
  %v193 = vunpack.c.l.b16 %v23
  %v194 = vunpack.c.l.b16 %v24
  %v195 = vunpack.c.l.b16 %v25
  %v196 = vunpack.c.l.b16 %v26
  %v197 = vunpack.c.l.b16 %v27
  %v198 = vunpack.c.l.b16 %v28
  %v199 = vunpack.c.l.b16 %v29
  %v200 = vunpack.c.l.b16 %v30
  %v201 = vunpack.c.l.b16 %v31
  %v202 = vunpack.c.l.b16 %v32
  %v203 = vunpack.c.l.b16 %v33
  %v204 = vunpack.c.l.b16 %v34
  %v205 = vunpack.c.l.b16 %v35
  %v206 = vunpack.c.l.b16 %v36
  %v207 = vunpack.c.l.b16 %v37
  %v208 = vunpack.c.l.b16 %v38
  %v209 = vunpack.c.l.b16 %v39
  %v210 = vunpack.c.l.b16 %v40
  %v211 = vunpack.c.l.b16 %v41
  %v212 = vunpack.c.l.b16 %v42
  %v213 = vunpack.c.l.b16 %v43
  %v214 = vunpack.c.l.b16 %v44
  %v215 = vunpack.c.l.b16 %v45
  %v216 = vunpack.c.l.b16 %v46
  %v217 = vunpack.c.l.b16 %v47
  %v218 = vunpack.c.l.b16 %v48
  %v219 = vunpack.c.l.b16 %v49
  %v220 = vunpack.c.l.b16 %v50
  %v221 = vunpack.c.l.b16 %v51
  %v222 = vunpack.c.l.b16 %v52
  %v223 = vunpack.c.l.b16 %v53
  %v224 = vunpack.c.l.b16 %v54
  %v225 = vunpack.c.l.b16 %v55
  %v226 = vunpack.c.l.b16 %v56
  %v227 = vunpack.c.l.b16 %v57
  %v228 = vunpack.c.l.b16 %v58
  %v229 = vunpack.c.l.b16 %v59
  %v230 = vunpack.c.l.b16 %v60
  %v231 = vunpack.c.l.b16 %v61
  %v232 = vunpack.c.l.b16 %v62
  %v233 = vunpack.c.l.b16 %v63
  %v234 = vunpack.c.l.b16 %v64
  %v235 = vunpack.c.l.b16 %v65
  %v236 = vunpack.c.l.b16 %v66
  %v237 = vunpack.c.l.b16 %v67
  %v238 = vunpack.c.l.b16 %v68
  %v239 = vunpack.c.l.b16 %v69
  %v240 = vunpack.c.l.b16 %v70
  %v241 = vunpack.c.l.b16 %v71
  %v242 = vunpack.c.l.b16 %v72
  %v243 = vunpack.c.l.b16 %v73
  %v244 = vunpack.c.l.b16 %v74
  %v245 = vunpack.c.l.b16 %v75
  %v246 = vunpack.c.l.b16 %v76
  %v247 = vpack.c.b16 %v194, %v193
  %v248 = vpack.c.b16 %v196, %v195
  %v249 = vpack.c.b16 %v198, %v197
  %v250 = vpack.c.b16 %v200, %v199
  %v251 = vpack.c.b16 %v202, %v201
  %v252 = vpack.c.b16 %v204, %v203
  %v253 = vpack.c.b16 %v206, %v205
  %v254 = vpack.c.b16 %v208, %v207
  %v255 = vpack.c.b16 %v210, %v209
  %v256 = vpack.c.b16 %v212, %v211
  %v257 = vpack.c.b16 %v214, %v213
  %v258 = vpack.c.b16 %v216, %v215
  %v259 = vpack.c.b16 %v218, %v217
  %v260 = vpack.c.b16 %v220, %v219
  %v261 = vpack.c.b16 %v222, %v221
  %v262 = vpack.c.b16 %v224, %v223
  %v263 = vpack.c.b16 %v226, %v225
  %v264 = vpack.c.b16 %v228, %v227
  %v265 = vpack.c.b16 %v230, %v229
  %v266 = vpack.c.b16 %v232, %v231
  %v267 = vpack.c.b16 %v234, %v233
  %v268 = vpack.c.b16 %v236, %v235
  %v269 = vpack.c.b16 %v238, %v237
  %v270 = vpack.c.b16 %v240, %v239
  %v271 = vpack.c.b16 %v242, %v241
  %v272 = vpack.c.b16 %v244, %v243
  %v273 = vpack.c.b16 %v246, %v245
  %vm301 = vcmask 392192
  %v303 = vsel %vm301, %v128, 0
  %v306 = vsel %vm301, %v132, 0
  %308 = vmatprep.subr.bf16.mxu0 0
  %309 = vmatpush1.bf16.msra.mxu0 %v247
  %310 = vmatprep.subr.bf16.mxu0 0
  %311 = vmatpush1.bf16.msra.mxu0 %v248
  %312 = vmatprep.subr.bf16.mxu0 0
  %313 = vmatpush1.bf16.msra.mxu0 %v249
  %314 = vmatprep.subr.bf16.mxu0 0
  %315 = vmatpush1.bf16.msra.mxu0 %v250
  %316 = vmatprep.subr.bf16.mxu0 0
  %317 = vmatpush1.bf16.msra.mxu0 %v251
  %318 = vmatprep.subr.bf16.mxu0 0
  %319 = vmatpush1.bf16.msra.mxu0 %v252
  %320 = vmatprep.subr.bf16.mxu0 0
  %321 = vmatpush1.bf16.msra.mxu0 %v253
  %322 = vmatprep.subr.bf16.mxu0 0
  %323 = vmatpush1.bf16.msra.mxu0 %v254
  %324 = vmatprep.subr.bf16.mxu0 0
  %325 = vmatpush1.bf16.msra.mxu0 %v255
  %326 = vmatprep.subr.bf16.mxu0 0
  %327 = vmatpush1.bf16.msra.mxu0 %v256
  %328 = vmatprep.subr.bf16.mxu0 0
  %329 = vmatpush1.bf16.msra.mxu0 %v257
  %330 = vmatprep.subr.bf16.mxu0 0
  %331 = vmatpush1.bf16.msra.mxu0 %v258
  %332 = vmatprep.subr.bf16.mxu0 0
  %333 = vmatpush1.bf16.msra.mxu0 %v259
  %334 = vmatprep.subr.bf16.mxu0 0
  %335 = vmatpush1.bf16.msra.mxu0 %v260
  %336 = vmatprep.subr.bf16.mxu0 0
  %337 = vmatpush1.bf16.msra.mxu0 %v261
  %338 = vmatprep.subr.bf16.mxu0 0
  %339 = vmatpush1.bf16.msra.mxu0 %v262
  %340 = vmatprep.mubr.bf16.mxu0 %v126
  %341 = vmatmul.mubr.bf16.gmra.mrb[0].mxu0 %v125
  %v342 = vpop.f32.mrb[0].mxu0
  %v343 = vadd.f32 %v84, %v342
  %v344 = vpop.f32.mrb[0].mxu0
  %v345 = vpop.f32.mrb[0].mxu0
  %v346 = vadd.f32 %v89, %v345
  %v347 = vpop.f32.mrb[0].mxu0
  %348 = vmatprep.mubr.bf16.mxu0 %v130
  %349 = vmatmul.mubr.bf16.gmra.mrb[0].mxu0 %v129
  %v350 = vpop.f32.mrb[0].mxu0
  %v351 = vadd.f32 %v94, %v350
  %v352 = vpop.f32.mrb[0].mxu0
  %v353 = vpop.f32.mrb[0].mxu0
  %v354 = vadd.f32 %v99, %v353
  %v355 = vpop.f32.mrb[0].mxu0
  %356 = vdwg.mxu0
  %357 = vmatprep.subr.bf16.mxu0 0
  %358 = vmatpush1.bf16.msra.mxu0 %v263
  %359 = vmatprep.subr.bf16.mxu0 0
  %360 = vmatpush1.bf16.msra.mxu0 %v264
  %361 = vmatprep.subr.bf16.mxu0 0
  %362 = vmatpush1.bf16.msra.mxu0 %v265
  %363 = vmatprep.subr.bf16.mxu0 0
  %364 = vmatpush1.bf16.msra.mxu0 %v266
  %365 = vmatprep.subr.bf16.mxu0 0
  %366 = vmatpush1.bf16.msra.mxu0 %v267
  %367 = vmatprep.subr.bf16.mxu0 0
  %368 = vmatpush1.bf16.msra.mxu0 %v268
  %369 = vmatprep.subr.bf16.mxu0 0
  %370 = vmatpush1.bf16.msra.mxu0 %v269
  %371 = vmatprep.subr.bf16.mxu0 0
  %372 = vmatpush1.bf16.msra.mxu0 %v270
  %373 = vmatprep.subr.bf16.mxu0 0
  %374 = vmatpush1.bf16.msra.mxu0 %v271
  %375 = vmatprep.subr.bf16.mxu0 0
  %376 = vmatpush1.bf16.msra.mxu0 %v272
  %377 = vmatprep.subr.bf16.mxu0 0
  %378 = vmatpush1.bf16.msra.mxu0 %v273
  %379 = vmatprep.subr.bf16.mxu0 0
  %380 = vmatpush1.bf16.msra.mxu0 0
  %381 = vmatprep.subr.bf16.mxu0 0
  %382 = vmatpush1.bf16.msra.mxu0 0
  %383 = vmatprep.subr.bf16.mxu0 0
  %384 = vmatpush1.bf16.msra.mxu0 0
  %385 = vmatprep.subr.bf16.mxu0 0
  %386 = vmatpush1.bf16.msra.mxu0 0
  %387 = vmatprep.subr.bf16.mxu0 0
  %388 = vmatpush1.bf16.msra.mxu0 0
  %389 = vmatprep.mubr.bf16.mxu0 %v303
  %390 = vmatmul.mubr.bf16.gmra.mrb[0].mxu0 %v127
  %v391 = vpop.f32.mrb[0].mxu0
  %v392 = vadd.f32 %v343, %v391
  %v393 = vpop.f32.mrb[0].mxu0
  %v394 = vpop.f32.mrb[0].mxu0
  %v395 = vadd.f32 %v346, %v394
  %v396 = vpop.f32.mrb[0].mxu0
  %397 = vmatprep.mubr.bf16.mxu0 %v306
  %398 = vmatmul.mubr.bf16.gmra.mrb[0].mxu0 %v131
  %v399 = vpop.f32.mrb[0].mxu0
  %v400 = vadd.f32 %v351, %v399
  %v401 = vpop.f32.mrb[0].mxu0
  %v402 = vpop.f32.mrb[0].mxu0
  %v403 = vadd.f32 %v354, %v402
  %v404 = vpop.f32.mrb[0].mxu0
  %405 = vdwg.mxu0
  %v406 = vxor.u32 %v392, 2147483648
  %v407 = vxor.u32 %v395, 2147483648
  %v408 = vxor.u32 %v400, 2147483648
  %v409 = vxor.u32 %v403, 2147483648
  %v410 = vmul.f32 %v406, 1.442695
  %v411 = vpow.pop %v410
  %v412 = vmul.f32 %v407, 1.442695
  %v413 = vpow.pop %v412
  %v414 = vmul.f32 %v408, 1.442695
  %v415 = vpow.pop %v414
  %v416 = vmul.f32 %v409, 1.442695
  %v417 = vpow.pop %v416
  %v418 = vadd.f32 %v411, 1.0
  %v419 = vadd.f32 %v413, 1.0
  %v420 = vadd.f32 %v415, 1.0
  %v421 = vadd.f32 %v417, 1.0
  %v422 = vrcp.pop %v418
  %v423 = vmul.f32 1.0, %v422
  %v424 = vrcp.pop %v419
  %v425 = vmul.f32 1.0, %v424
  %v426 = vrcp.pop %v420
  %v427 = vmul.f32 1.0, %v426
  %v428 = vrcp.pop %v421
  %v429 = vmul.f32 1.0, %v428
  %v430 = vmul.f32 %v392, %v423
  %v431 = vmul.f32 %v395, %v425
  %v432 = vmul.f32 %v400, %v427
  %v433 = vmul.f32 %v403, %v429
  %v434 = vpack.c.bf16 %v431, %v430
  %v435 = vpack.c.bf16 %v433, %v432
  %v438 = vunpack.c.l.b16 %v434
  %v439 = vunpack.c.h.b16 %v434
  %v440 = vunpack.c.l.b16 %v435
  %v441 = vunpack.c.h.b16 %v435
  %v442 = vpack.c.b16 %v438, %v438
  %v443 = vpack.c.b16 %v439, %v439
  %v444 = vpack.c.b16 %v440, %v440
  %v445 = vpack.c.b16 %v441, %v441
  %450 = vst [vmem:[%s3] sm:$0xf] %v442
  %451 = vst [vmem:[%s3 + $0x4] sm:$0xf] %v443
  %452 = vst [vmem:[%s3 + $0x8] sm:$0xf] %v444
  %453 = vst [vmem:[%s3 + $0xc] sm:$0xf] %v445
  // Predicated region
  $region14: #{model_forward.52} parent=0 // pred_check
    _
  $region15: #{model_forward.52} parent=0 // pred_check_branch
    %455 = sbr.rel (0) target = $region17
  $region16: #{model_forward.52} parent=0 // pred_region
    _
  $region17: #{model_forward.52} parent=0 // pred_fallthru
    _
  // Predicated region
  $region18: #{model_forward.52} parent=0 // pred_check
    _
  $region19: #{model_forward.52} parent=0 // pred_check_branch
    %457 = sbr.rel (0) target = $region21
  $region20: #{model_forward.52} parent=0 // pred_region
    _
  $region21: #{model_forward.52} parent=0 // pred_fallthru
    _

// kernel: model_forward.60
$region0: #{model_forward.60}
  #allocation0 [shape = 'u32[]', space=smem, size = 0x4, offset = 0x4, fixed_abs, tag = 'smem constant byte address 0x4 - core index']
  #allocation1 [shape = 'u32[144,128]{1,0:T(1,128)}', space=vmem, size = 0x12000, scoped, tag = 'internal scratch']
  %s0 = inlined_call_operand.vmem [shape: bf16[64,288], index: 0, kind: input, shape index: {}]
  %s1 = inlined_call_operand.vmem [shape: bf16[288,128], index: 1, kind: input, shape index: {}]
  %s2 = inlined_call_operand.vmem [shape: f32[64,1], index: 2, kind: input, shape index: {}]
  %s3 = inlined_call_operand.vmem [shape: bf16[64,128], index: 3, kind: output, shape index: {}]
  %s4 = sld [smem:[#allocation0]]
  $region22: #{model_forward.60} parent=0
    _
  %s6 = ssub.s32 1, %s4
  %s7 = scalar_select 0, %s6, %s4
  // Predicated region
  $region2: #{model_forward.60} parent=0 // pred_check
    _
  $region3: #{model_forward.60} parent=0 // pred_check_branch
    %9 = sbr.rel (0) target = $region5
  $region4: #{model_forward.60} parent=0 // pred_region
    _
  $region5: #{model_forward.60} parent=0 // pred_fallthru
    _
  // Predicated region
  $region6: #{model_forward.60} parent=0 // pred_check
    _
  $region7: #{model_forward.60} parent=0 // pred_check_branch
    %11 = sbr.rel (0) target = $region9
  $region8: #{model_forward.60} parent=0 // pred_region
    _
  $region9: #{model_forward.60} parent=0 // pred_fallthru
    _
  // Predicated region
  $region10: #{model_forward.60} parent=0 // pred_check
    _
  $region11: #{model_forward.60} parent=0 // pred_check_branch
    %13 = sbr.rel (0) target = $region13
  $region12: #{model_forward.60} parent=0 // pred_region
    _
  $region13: #{model_forward.60} parent=0 // pred_fallthru
    _
  %v15 = vld [vmem:[%s0] sm:$0xff]
  %v16 = vld [vmem:[%s0 + $0x8] sm:$0xf]
  %v17 = vld [vmem:[%s0 + $0xc] sm:$0xff]
  %v18 = vld [vmem:[%s0 + $0x14] sm:$0xf]
  %v19 = vld [vmem:[%s0 + $0x18] sm:$0xff]
  %v20 = vld [vmem:[%s0 + $0x20] sm:$0xf]
  %v21 = vld [vmem:[%s0 + $0x24] sm:$0xff]
  %v22 = vld [vmem:[%s0 + $0x2c] sm:$0xf]
  %v23 = vld [vmem:[%s0 + $0x30] sm:$0xff]
  %v24 = vld [vmem:[%s0 + $0x38] sm:$0xf]
  %v25 = vld [vmem:[%s0 + $0x3c] sm:$0xff]
  %v26 = vld [vmem:[%s0 + $0x44] sm:$0xf]
  %v27 = vld [vmem:[%s0 + $0x48] sm:$0xff]
  %v28 = vld [vmem:[%s0 + $0x50] sm:$0xf]
  %v29 = vld [vmem:[%s0 + $0x54] sm:$0xff]
  %v30 = vld [vmem:[%s0 + $0x5c] sm:$0xf]
  %v31 = vld [vmem:[%s1] sm:$0xf]
  %v32 = vld [vmem:[%s1 + $0x4] sm:$0xf]
  %v33 = vld [vmem:[%s1 + $0x8] sm:$0xf]
  %v34 = vld [vmem:[%s1 + $0xc] sm:$0xf]
  %v35 = vld [vmem:[%s1 + $0x10] sm:$0xf]
  %v36 = vld [vmem:[%s1 + $0x14] sm:$0xf]
  %v37 = vld [vmem:[%s1 + $0x18] sm:$0xf]
  %v38 = vld [vmem:[%s1 + $0x1c] sm:$0xf]
  %v39 = vld [vmem:[%s1 + $0x20] sm:$0xf]
  %v40 = vld [vmem:[%s1 + $0x24] sm:$0xf]
  %v41 = vld [vmem:[%s1 + $0x28] sm:$0xf]
  %v42 = vld [vmem:[%s1 + $0x2c] sm:$0xf]
  %v43 = vld [vmem:[%s1 + $0x30] sm:$0xf]
  %v44 = vld [vmem:[%s1 + $0x34] sm:$0xf]
  %v45 = vld [vmem:[%s1 + $0x38] sm:$0xf]
  %v46 = vld [vmem:[%s1 + $0x3c] sm:$0xf]
  %v47 = vld [vmem:[%s1 + $0x40] sm:$0xf]
  %v48 = vld [vmem:[%s1 + $0x44] sm:$0xf]
  %v49 = vld [vmem:[%s1 + $0x48] sm:$0xf]
  %v50 = vld [vmem:[%s1 + $0x4c] sm:$0xf]
  %v51 = vld [vmem:[%s1 + $0x50] sm:$0xf]
  %v52 = vld [vmem:[%s1 + $0x54] sm:$0xf]
  %v53 = vld [vmem:[%s1 + $0x58] sm:$0xf]
  %v54 = vld [vmem:[%s1 + $0x5c] sm:$0xf]
  %v55 = vld [vmem:[%s1 + $0x60] sm:$0xf]
  %v56 = vld [vmem:[%s1 + $0x64] sm:$0xf]
  %v57 = vld [vmem:[%s1 + $0x68] sm:$0xf]
  %v58 = vld [vmem:[%s1 + $0x6c] sm:$0xf]
  %v59 = vld [vmem:[%s1 + $0x70] sm:$0xf]
  %v60 = vld [vmem:[%s1 + $0x74] sm:$0xf]
  %v61 = vld [vmem:[%s1 + $0x78] sm:$0xf]
  %v62 = vld [vmem:[%s1 + $0x7c] sm:$0xf]
  %v63 = vld [vmem:[%s1 + $0x80] sm:$0xf]
  %v64 = vld [vmem:[%s1 + $0x84] sm:$0xf]
  %v65 = vld [vmem:[%s1 + $0x88] sm:$0xf]
  %v66 = vld [vmem:[%s1 + $0x8c] sm:$0xf]
  %v67 = vld [vmem:[%s2] sm:$0xff]
  %v68 = vld [vmem:[%s2 + $0x8] sm:$0xff]
  %v69 = vld [vmem:[%s2 + $0x10] sm:$0xff]
  %v70 = vld [vmem:[%s2 + $0x18] sm:$0xff]
  %v71 = vld [vmem:[%s2 + $0x20] sm:$0xff]
  %v72 = vld [vmem:[%s2 + $0x28] sm:$0xff]
  %v73 = vld [vmem:[%s2 + $0x30] sm:$0xff]
  %v74 = vld [vmem:[%s2 + $0x38] sm:$0xff]
  %76 = vset.pattern.permute.xlu0 0
  %77 = vperm.xlu0 %76, %v67
  %v78 = vpop.permute.xlu0 %77
  %81 = vset.pattern.permute.xlu0 0
  %82 = vperm.xlu0 %81, %v68
  %v83 = vpop.permute.xlu0 %82
  %86 = vset.pattern.permute.xlu0 0
  %87 = vperm.xlu0 %86, %v69
  %v88 = vpop.permute.xlu0 %87
  %91 = vset.pattern.permute.xlu0 0
  %92 = vperm.xlu0 %91, %v70
  %v93 = vpop.permute.xlu0 %92
  %96 = vset.pattern.permute.xlu0 0
  %97 = vperm.xlu0 %96, %v71
  %v98 = vpop.permute.xlu0 %97
  %101 = vset.pattern.permute.xlu0 0
  %102 = vperm.xlu0 %101, %v72
  %v103 = vpop.permute.xlu0 %102
  %106 = vset.pattern.permute.xlu0 0
  %107 = vperm.xlu0 %106, %v73
  %v108 = vpop.permute.xlu0 %107
  %111 = vset.pattern.permute.xlu0 0
  %112 = vperm.xlu0 %111, %v74
  %v113 = vpop.permute.xlu0 %112
  %v131 = vunpack.c.l.b16 %v15
  %v132 = vunpack.c.h.b16 %v15
  %v133 = vunpack.c.l.b16 %v16
  %v134 = vunpack.c.l.b16 %v17
  %v135 = vunpack.c.h.b16 %v17
  %v136 = vunpack.c.l.b16 %v18
  %v137 = vunpack.c.l.b16 %v19
  %v138 = vunpack.c.h.b16 %v19
  %v139 = vunpack.c.l.b16 %v20
  %v140 = vunpack.c.l.b16 %v21
  %v141 = vunpack.c.h.b16 %v21
  %v142 = vunpack.c.l.b16 %v22
  %v143 = vunpack.c.l.b16 %v23
  %v144 = vunpack.c.h.b16 %v23
  %v145 = vunpack.c.l.b16 %v24
  %v146 = vunpack.c.l.b16 %v25
  %v147 = vunpack.c.h.b16 %v25
  %v148 = vunpack.c.l.b16 %v26
  %v149 = vunpack.c.l.b16 %v27
  %v150 = vunpack.c.h.b16 %v27
  %v151 = vunpack.c.l.b16 %v28
  %v152 = vunpack.c.l.b16 %v29
  %v153 = vunpack.c.h.b16 %v29
  %v154 = vunpack.c.l.b16 %v30
  %v155 = vpack.c.b16 %v134, %v131
  %v156 = vpack.c.b16 %v135, %v132
  %v157 = vpack.c.b16 %v136, %v133
  %v158 = vpack.c.b16 %v140, %v137
  %v159 = vpack.c.b16 %v141, %v138
  %v160 = vpack.c.b16 %v142, %v139
  %v161 = vpack.c.b16 %v146, %v143
  %v162 = vpack.c.b16 %v147, %v144
  %v163 = vpack.c.b16 %v148, %v145
  %v164 = vpack.c.b16 %v152, %v149
  %v165 = vpack.c.b16 %v153, %v150
  %v166 = vpack.c.b16 %v154, %v151
  %v211 = vunpack.c.l.b16 %v31
  %v212 = vunpack.c.l.b16 %v32
  %v213 = vunpack.c.l.b16 %v33
  %v214 = vunpack.c.l.b16 %v34
  %v215 = vunpack.c.l.b16 %v35
  %v216 = vunpack.c.l.b16 %v36
  %v217 = vunpack.c.l.b16 %v37
  %v218 = vunpack.c.l.b16 %v38
  %v219 = vunpack.c.l.b16 %v39
  %v220 = vunpack.c.l.b16 %v40
  %v221 = vunpack.c.l.b16 %v41
  %v222 = vunpack.c.l.b16 %v42
  %v223 = vunpack.c.l.b16 %v43
  %v224 = vunpack.c.l.b16 %v44
  %v225 = vunpack.c.l.b16 %v45
  %v226 = vunpack.c.l.b16 %v46
  %v227 = vunpack.c.l.b16 %v47
  %v228 = vunpack.c.l.b16 %v48
  %v229 = vunpack.c.l.b16 %v49
  %v230 = vunpack.c.l.b16 %v50
  %v231 = vunpack.c.l.b16 %v51
  %v232 = vunpack.c.l.b16 %v52
  %v233 = vunpack.c.l.b16 %v53
  %v234 = vunpack.c.l.b16 %v54
  %v235 = vunpack.c.l.b16 %v55
  %v236 = vunpack.c.l.b16 %v56
  %v237 = vunpack.c.l.b16 %v57
  %v238 = vunpack.c.l.b16 %v58
  %v239 = vunpack.c.l.b16 %v59
  %v240 = vunpack.c.l.b16 %v60
  %v241 = vunpack.c.l.b16 %v61
  %v242 = vunpack.c.l.b16 %v62
  %v243 = vunpack.c.l.b16 %v63
  %v244 = vunpack.c.l.b16 %v64
  %v245 = vunpack.c.l.b16 %v65
  %v246 = vunpack.c.l.b16 %v66
  %v247 = vpack.c.b16 %v212, %v211
  %v248 = vpack.c.b16 %v214, %v213
  %v249 = vpack.c.b16 %v216, %v215
  %v250 = vpack.c.b16 %v218, %v217
  %v251 = vpack.c.b16 %v220, %v219
  %v252 = vpack.c.b16 %v222, %v221
  %v253 = vpack.c.b16 %v224, %v223
  %v254 = vpack.c.b16 %v226, %v225
  %v255 = vpack.c.b16 %v228, %v227
  %v256 = vpack.c.b16 %v230, %v229
  %v257 = vpack.c.b16 %v232, %v231
  %v258 = vpack.c.b16 %v234, %v233
  %v259 = vpack.c.b16 %v236, %v235
  %v260 = vpack.c.b16 %v238, %v237
  %v261 = vpack.c.b16 %v240, %v239
  %v262 = vpack.c.b16 %v242, %v241
  %v263 = vpack.c.b16 %v244, %v243
  %v264 = vpack.c.b16 %v246, %v245
  %vm283 = vcmask 261120
  %v285 = vsel %vm283, %v157, 0
  %v288 = vsel %vm283, %v160, 0
  %v291 = vsel %vm283, %v163, 0
  %v294 = vsel %vm283, %v166, 0
  %296 = vmatprep.subr.bf16.mxu0 0
  %297 = vmatpush1.bf16.msra.mxu0 %v247
  %298 = vmatprep.subr.bf16.mxu0 0
  %299 = vmatpush1.bf16.msra.mxu0 %v248
  %300 = vmatprep.subr.bf16.mxu0 0
  %301 = vmatpush1.bf16.msra.mxu0 %v249
  %302 = vmatprep.subr.bf16.mxu0 0
  %303 = vmatpush1.bf16.msra.mxu0 %v250
  %304 = vmatprep.subr.bf16.mxu0 0
  %305 = vmatpush1.bf16.msra.mxu0 %v251
  %306 = vmatprep.subr.bf16.mxu0 0
  %307 = vmatpush1.bf16.msra.mxu0 %v252
  %308 = vmatprep.subr.bf16.mxu0 0
  %309 = vmatpush1.bf16.msra.mxu0 %v253
  %310 = vmatprep.subr.bf16.mxu0 0
  %311 = vmatpush1.bf16.msra.mxu0 %v254
  %312 = vmatprep.subr.bf16.mxu0 0
  %313 = vmatpush1.bf16.msra.mxu0 %v255
  %314 = vmatprep.subr.bf16.mxu0 0
  %315 = vmatpush1.bf16.msra.mxu0 %v256
  %316 = vmatprep.subr.bf16.mxu0 0
  %317 = vmatpush1.bf16.msra.mxu0 %v257
  %318 = vmatprep.subr.bf16.mxu0 0
  %319 = vmatpush1.bf16.msra.mxu0 %v258
  %320 = vmatprep.subr.bf16.mxu0 0
  %321 = vmatpush1.bf16.msra.mxu0 %v259
  %322 = vmatprep.subr.bf16.mxu0 0
  %323 = vmatpush1.bf16.msra.mxu0 %v260
  %324 = vmatprep.subr.bf16.mxu0 0
  %325 = vmatpush1.bf16.msra.mxu0 %v261
  %326 = vmatprep.subr.bf16.mxu0 0
  %327 = vmatpush1.bf16.msra.mxu0 %v262
  %328 = vmatprep.mubr.bf16.mxu0 %v156
  %329 = vmatmul.mubr.bf16.gmra.mrb[0].mxu0 %v155
  %v330 = vpop.f32.mrb[0].mxu0
  %v331 = vadd.f32 %v78, %v330
  %v332 = vpop.f32.mrb[0].mxu0
  %v333 = vpop.f32.mrb[0].mxu0
  %v334 = vadd.f32 %v83, %v333
  %v335 = vpop.f32.mrb[0].mxu0
  %336 = vmatprep.mubr.bf16.mxu0 %v159
  %337 = vmatmul.mubr.bf16.gmra.mrb[0].mxu0 %v158
  %v338 = vpop.f32.mrb[0].mxu0
  %v339 = vadd.f32 %v88, %v338
  %v340 = vpop.f32.mrb[0].mxu0
  %v341 = vpop.f32.mrb[0].mxu0
  %v342 = vadd.f32 %v93, %v341
  %v343 = vpop.f32.mrb[0].mxu0
  %344 = vmatprep.mubr.bf16.mxu0 %v162
  %345 = vmatmul.mubr.bf16.gmra.mrb[0].mxu0 %v161
  %v346 = vpop.f32.mrb[0].mxu0
  %v347 = vadd.f32 %v98, %v346
  %v348 = vpop.f32.mrb[0].mxu0
  %v349 = vpop.f32.mrb[0].mxu0
  %v350 = vadd.f32 %v103, %v349
  %v351 = vpop.f32.mrb[0].mxu0
  %352 = vmatprep.mubr.bf16.mxu0 %v165
  %353 = vmatmul.mubr.bf16.gmra.mrb[0].mxu0 %v164
  %v354 = vpop.f32.mrb[0].mxu0
  %v355 = vadd.f32 %v108, %v354
  %v356 = vpop.f32.mrb[0].mxu0
  %v357 = vpop.f32.mrb[0].mxu0
  %v358 = vadd.f32 %v113, %v357
  %v359 = vpop.f32.mrb[0].mxu0
  %360 = vdwg.mxu0
  %361 = vmatprep.subr.bf16.mxu0 0
  %362 = vmatpush1.bf16.msra.mxu0 %v263
  %363 = vmatprep.subr.bf16.mxu0 0
  %364 = vmatpush1.bf16.msra.mxu0 %v264
  %365 = vmatprep.subr.bf16.mxu0 0
  %366 = vmatpush1.bf16.msra.mxu0 0
  %367 = vmatprep.subr.bf16.mxu0 0
  %368 = vmatpush1.bf16.msra.mxu0 0
  %369 = vmatprep.subr.bf16.mxu0 0
  %370 = vmatpush1.bf16.msra.mxu0 0
  %371 = vmatprep.subr.bf16.mxu0 0
  %372 = vmatpush1.bf16.msra.mxu0 0
  %373 = vmatprep.subr.bf16.mxu0 0
  %374 = vmatpush1.bf16.msra.mxu0 0
  %375 = vmatprep.subr.bf16.mxu0 0
  %376 = vmatpush1.bf16.msra.mxu0 0
  %377 = vmatprep.subr.bf16.mxu0 0
  %378 = vmatpush1.bf16.msra.mxu0 0
  %379 = vmatprep.subr.bf16.mxu0 0
  %380 = vmatpush1.bf16.msra.mxu0 0
  %381 = vmatprep.subr.bf16.mxu0 0
  %382 = vmatpush1.bf16.msra.mxu0 0
  %383 = vmatprep.subr.bf16.mxu0 0
  %384 = vmatpush1.bf16.msra.mxu0 0
  %385 = vmatprep.subr.bf16.mxu0 0
  %386 = vmatpush1.bf16.msra.mxu0 0
  %387 = vmatprep.subr.bf16.mxu0 0
  %388 = vmatpush1.bf16.msra.mxu0 0
  %389 = vmatprep.subr.bf16.mxu0 0
  %390 = vmatpush1.bf16.msra.mxu0 0
  %391 = vmatprep.subr.bf16.mxu0 0
  %392 = vmatpush1.bf16.msra.mxu0 0
  %393 = vmatprep.mubr.bf16.mxu0 0
  %394 = vmatmul.mubr.bf16.gmra.mrb[0].mxu0 %v285
  %v395 = vpop.f32.mrb[0].mxu0
  %v396 = vadd.f32 %v331, %v395
  %v397 = vpop.f32.mrb[0].mxu0
  %v398 = vpop.f32.mrb[0].mxu0
  %v399 = vadd.f32 %v334, %v398
  %v400 = vpop.f32.mrb[0].mxu0
  %401 = vmatprep.mubr.bf16.mxu0 0
  %402 = vmatmul.mubr.bf16.gmra.mrb[0].mxu0 %v288
  %v403 = vpop.f32.mrb[0].mxu0
  %v404 = vadd.f32 %v339, %v403
  %v405 = vpop.f32.mrb[0].mxu0
  %v406 = vpop.f32.mrb[0].mxu0
  %v407 = vadd.f32 %v342, %v406
  %v408 = vpop.f32.mrb[0].mxu0
  %409 = vmatprep.mubr.bf16.mxu0 0
  %410 = vmatmul.mubr.bf16.gmra.mrb[0].mxu0 %v291
  %v411 = vpop.f32.mrb[0].mxu0
  %v412 = vadd.f32 %v347, %v411
  %v413 = vpop.f32.mrb[0].mxu0
  %v414 = vpop.f32.mrb[0].mxu0
  %v415 = vadd.f32 %v350, %v414
  %v416 = vpop.f32.mrb[0].mxu0
  %417 = vmatprep.mubr.bf16.mxu0 0
  %418 = vmatmul.mubr.bf16.gmra.mrb[0].mxu0 %v294
  %v419 = vpop.f32.mrb[0].mxu0
  %v420 = vadd.f32 %v355, %v419
  %v421 = vpop.f32.mrb[0].mxu0
  %v422 = vpop.f32.mrb[0].mxu0
  %v423 = vadd.f32 %v358, %v422
  %v424 = vpop.f32.mrb[0].mxu0
  %425 = vdwg.mxu0
  %v426 = vxor.u32 %v396, 2147483648
  %v427 = vxor.u32 %v399, 2147483648
  %v428 = vxor.u32 %v404, 2147483648
  %v429 = vxor.u32 %v407, 2147483648
  %v430 = vxor.u32 %v412, 2147483648
  %v431 = vxor.u32 %v415, 2147483648
  %v432 = vxor.u32 %v420, 2147483648
  %v433 = vxor.u32 %v423, 2147483648
  %v434 = vmul.f32 %v426, 1.442695
  %v435 = vpow.pop %v434
  %v436 = vmul.f32 %v427, 1.442695
  %v437 = vpow.pop %v436
  %v438 = vmul.f32 %v428, 1.442695
  %v439 = vpow.pop %v438
  %v440 = vmul.f32 %v429, 1.442695
  %v441 = vpow.pop %v440
  %v442 = vmul.f32 %v430, 1.442695
  %v443 = vpow.pop %v442
  %v444 = vmul.f32 %v431, 1.442695
  %v445 = vpow.pop %v444
  %v446 = vmul.f32 %v432, 1.442695
  %v447 = vpow.pop %v446
  %v448 = vmul.f32 %v433, 1.442695
  %v449 = vpow.pop %v448
  %v450 = vadd.f32 %v435, 1.0
  %v451 = vadd.f32 %v437, 1.0
  %v452 = vadd.f32 %v439, 1.0
  %v453 = vadd.f32 %v441, 1.0
  %v454 = vadd.f32 %v443, 1.0
  %v455 = vadd.f32 %v445, 1.0
  %v456 = vadd.f32 %v447, 1.0
  %v457 = vadd.f32 %v449, 1.0
  %v458 = vrcp.pop %v450
  %v459 = vmul.f32 1.0, %v458
  %v460 = vrcp.pop %v451
  %v461 = vmul.f32 1.0, %v460
  %v462 = vrcp.pop %v452
  %v463 = vmul.f32 1.0, %v462
  %v464 = vrcp.pop %v453
  %v465 = vmul.f32 1.0, %v464
  %v466 = vrcp.pop %v454
  %v467 = vmul.f32 1.0, %v466
  %v468 = vrcp.pop %v455
  %v469 = vmul.f32 1.0, %v468
  %v470 = vrcp.pop %v456
  %v471 = vmul.f32 1.0, %v470
  %v472 = vrcp.pop %v457
  %v473 = vmul.f32 1.0, %v472
  %v474 = vmul.f32 %v396, %v459
  %v475 = vmul.f32 %v399, %v461
  %v476 = vmul.f32 %v404, %v463
  %v477 = vmul.f32 %v407, %v465
  %v478 = vmul.f32 %v412, %v467
  %v479 = vmul.f32 %v415, %v469
  %v480 = vmul.f32 %v420, %v471
  %v481 = vmul.f32 %v423, %v473
  %v482 = vpack.c.bf16 %v475, %v474
  %v483 = vpack.c.bf16 %v477, %v476
  %v484 = vpack.c.bf16 %v479, %v478
  %v485 = vpack.c.bf16 %v481, %v480
  %v490 = vunpack.c.l.b16 %v482
  %v491 = vunpack.c.h.b16 %v482
  %v492 = vunpack.c.l.b16 %v483
  %v493 = vunpack.c.h.b16 %v483
  %v494 = vunpack.c.l.b16 %v484
  %v495 = vunpack.c.h.b16 %v484
  %v496 = vunpack.c.l.b16 %v485
  %v497 = vunpack.c.h.b16 %v485
  %v498 = vpack.c.b16 %v490, %v490
  %v499 = vpack.c.b16 %v491, %v491
  %v500 = vpack.c.b16 %v492, %v492
  %v501 = vpack.c.b16 %v493, %v493
  %v502 = vpack.c.b16 %v494, %v494
  %v503 = vpack.c.b16 %v495, %v495
  %v504 = vpack.c.b16 %v496, %v496
  %v505 = vpack.c.b16 %v497, %v497
  %514 = vst [vmem:[%s3] sm:$0xf] %v498
  %515 = vst [vmem:[%s3 + $0x4] sm:$0xf] %v499
  %516 = vst [vmem:[%s3 + $0x8] sm:$0xf] %v500
  %517 = vst [vmem:[%s3 + $0xc] sm:$0xf] %v501
  %518 = vst [vmem:[%s3 + $0x10] sm:$0xf] %v502
  %519 = vst [vmem:[%s3 + $0x14] sm:$0xf] %v503
  %520 = vst [vmem:[%s3 + $0x18] sm:$0xf] %v504
  %521 = vst [vmem:[%s3 + $0x1c] sm:$0xf] %v505
  // Predicated region
  $region14: #{model_forward.60} parent=0 // pred_check
    _
  $region15: #{model_forward.60} parent=0 // pred_check_branch
    %523 = sbr.rel (0) target = $region17
  $region16: #{model_forward.60} parent=0 // pred_region
    _
  $region17: #{model_forward.60} parent=0 // pred_fallthru
    _
  // Predicated region
  $region18: #{model_forward.60} parent=0 // pred_check
    _
  $region19: #{model_forward.60} parent=0 // pred_check_branch
    %525 = sbr.rel (0) target = $region21
  $region20: #{model_forward.60} parent=0 // pred_region
    _
  $region21: #{model_forward.60} parent=0 // pred_fallthru
    _

// kernel: model_forward.61
$region0: #{model_forward.61}
  #allocation0 [shape = 'u32[]', space=smem, size = 0x4, offset = 0x4, fixed_abs, tag = 'smem constant byte address 0x4 - core index']
  #allocation1 [shape = 'u32[144,128]{1,0:T(1,128)}', space=vmem, size = 0x12000, scoped, tag = 'internal scratch']
  %s0 = inlined_call_operand.vmem [shape: bf16[8,64], index: 0, kind: input, shape index: {}]
  %s1 = inlined_call_operand.vmem [shape: bf16[64,128], index: 1, kind: input, shape index: {}]
  %s2 = inlined_call_operand.vmem [shape: f32[8,1], index: 2, kind: input, shape index: {}]
  %s3 = inlined_call_operand.vmem [shape: bf16[8,128], index: 3, kind: output, shape index: {}]
  %s4 = sld [smem:[#allocation0]]
  $region22: #{model_forward.61} parent=0
    _
  %s6 = ssub.s32 1, %s4
  %s7 = scalar_select 0, %s6, %s4
  // Predicated region
  $region2: #{model_forward.61} parent=0 // pred_check
    _
  $region3: #{model_forward.61} parent=0 // pred_check_branch
    %9 = sbr.rel (0) target = $region5
  $region4: #{model_forward.61} parent=0 // pred_region
    _
  $region5: #{model_forward.61} parent=0 // pred_fallthru
    _
  // Predicated region
  $region6: #{model_forward.61} parent=0 // pred_check
    _
  $region7: #{model_forward.61} parent=0 // pred_check_branch
    %11 = sbr.rel (0) target = $region9
  $region8: #{model_forward.61} parent=0 // pred_region
    _
  $region9: #{model_forward.61} parent=0 // pred_fallthru
    _
  // Predicated region
  $region10: #{model_forward.61} parent=0 // pred_check
    _
  $region11: #{model_forward.61} parent=0 // pred_check_branch
    %13 = sbr.rel (0) target = $region13
  $region12: #{model_forward.61} parent=0 // pred_region
    _
  $region13: #{model_forward.61} parent=0 // pred_fallthru
    _
  %v15 = vld [vmem:[%s0] sm:$0xf]
  %v16 = vld [vmem:[%s1] sm:$0xf]
  %v17 = vld [vmem:[%s1 + $0x4] sm:$0xf]
  %v18 = vld [vmem:[%s1 + $0x8] sm:$0xf]
  %v19 = vld [vmem:[%s1 + $0xc] sm:$0xf]
  %v20 = vld [vmem:[%s1 + $0x10] sm:$0xf]
  %v21 = vld [vmem:[%s1 + $0x14] sm:$0xf]
  %v22 = vld [vmem:[%s1 + $0x18] sm:$0xf]
  %v23 = vld [vmem:[%s1 + $0x1c] sm:$0xf]
  %v24 = vld [vmem:[%s2] sm:$0xff]
  %26 = vset.pattern.permute.xlu0 0
  %27 = vperm.xlu0 %26, %v24
  %v28 = vpop.permute.xlu0 %27
  %v38 = vunpack.c.l.b16 %v16
  %v39 = vunpack.c.l.b16 %v17
  %v40 = vunpack.c.l.b16 %v18
  %v41 = vunpack.c.l.b16 %v19
  %v42 = vunpack.c.l.b16 %v20
  %v43 = vunpack.c.l.b16 %v21
  %v44 = vunpack.c.l.b16 %v22
  %v45 = vunpack.c.l.b16 %v23
  %v46 = vpack.c.b16 %v39, %v38
  %v47 = vpack.c.b16 %v41, %v40
  %v48 = vpack.c.b16 %v43, %v42
  %v49 = vpack.c.b16 %v45, %v44
  %vm54 = vcmask 523264
  %v56 = vsel %vm54, %v15, 0
  %58 = vmatprep.subr.bf16.mxu0 0
  %59 = vmatpush1.bf16.msra.mxu0 %v46
  %60 = vmatprep.subr.bf16.mxu0 0
  %61 = vmatpush1.bf16.msra.mxu0 %v47
  %62 = vmatprep.subr.bf16.mxu0 0
  %63 = vmatpush1.bf16.msra.mxu0 %v48
  %64 = vmatprep.subr.bf16.mxu0 0
  %65 = vmatpush1.bf16.msra.mxu0 %v49
  %66 = vmatprep.subr.bf16.mxu0 0
  %67 = vmatpush1.bf16.msra.mxu0 0
  %68 = vmatprep.subr.bf16.mxu0 0
  %69 = vmatpush1.bf16.msra.mxu0 0
  %70 = vmatprep.subr.bf16.mxu0 0
  %71 = vmatpush1.bf16.msra.mxu0 0
  %72 = vmatprep.subr.bf16.mxu0 0
  %73 = vmatpush1.bf16.msra.mxu0 0
  %74 = vmatprep.subr.bf16.mxu0 0
  %75 = vmatpush1.bf16.msra.mxu0 0
  %76 = vmatprep.subr.bf16.mxu0 0
  %77 = vmatpush1.bf16.msra.mxu0 0
  %78 = vmatprep.subr.bf16.mxu0 0
  %79 = vmatpush1.bf16.msra.mxu0 0
  %80 = vmatprep.subr.bf16.mxu0 0
  %81 = vmatpush1.bf16.msra.mxu0 0
  %82 = vmatprep.subr.bf16.mxu0 0
  %83 = vmatpush1.bf16.msra.mxu0 0
  %84 = vmatprep.subr.bf16.mxu0 0
  %85 = vmatpush1.bf16.msra.mxu0 0
  %86 = vmatprep.subr.bf16.mxu0 0
  %87 = vmatpush1.bf16.msra.mxu0 0
  %88 = vmatprep.subr.bf16.mxu0 0
  %89 = vmatpush1.bf16.msra.mxu0 0
  %90 = vmatprep.mubr.bf16.mxu0 0
  %91 = vmatmul.mubr.bf16.gmra.mrb[0].mxu0 %v56
  %v92 = vpop.f32.mrb[0].mxu0
  %v93 = vadd.f32 %v28, %v92
  %v94 = vpop.f32.mrb[0].mxu0
  %v95 = vpop.f32.mrb[0].mxu0
  %v96 = vpop.f32.mrb[0].mxu0
  %97 = vdwg.mxu0
  %v98 = vlaneseq
  %v99 = vshrl.u32 %v98, 7
  %vm100 = vcmp.lt.s32.totalorder %v99, 4
  %v101 = vxor.u32 %v93, 2147483648
  %v102 = vmul.f32 %v101, 1.442695
  %v103 = vpow.pop %v102
  %v104 = vadd.f32 %v103, 1.0
  %v105 = vrcp.pop %v104
  %v106 = vmul.f32 1.0, %v105
  %v107 = vsel %vm100, %v106, %v93
  %v108 = vpack.c.bf16 %v107, %v107
  %109 = vst [vmem:[%s3] sm:$0xf] %v108
  // Predicated region
  $region14: #{model_forward.61} parent=0 // pred_check
    _
  $region15: #{model_forward.61} parent=0 // pred_check_branch
    %111 = sbr.rel (0) target = $region17
  $region16: #{model_forward.61} parent=0 // pred_region
    _
  $region17: #{model_forward.61} parent=0 // pred_fallthru
    _
  // Predicated region
  $region18: #{model_forward.61} parent=0 // pred_check
    _
  $region19: #{model_forward.61} parent=0 // pred_check_branch
    %113 = sbr.rel (0) target = $region21
  $region20: #{model_forward.61} parent=0 // pred_region
    _
  $region21: #{model_forward.61} parent=0 // pred_fallthru
    _

</llo_original>
